<compile_context>
chip_gen: v7x
topology: tpu7x:2x2x1
jax: 0.10.0
libtpu: 0.0.40
codegen_flags: <defaults>
</compile_context>

<pallas_src>
import functools

import jax
import jax.numpy as jnp
from jax.experimental import pallas as pl
from jax.experimental.pallas import tpu as pltpu


# ----------------------------------------------------------------------------
# Fused kernel: all RCABs + tail conv + outer residual, one image per step.
# ----------------------------------------------------------------------------
def residual_block_kernel(x_ref, w1_ref, b1_ref, w2_ref, b2_ref,
                          caw1t_ref, cab1_ref, caw2_ref, cab2_ref,
                          tw_ref, tb_ref,
                          o_ref, pad_ref,
                          *, H, W, C, n_rcab, mxu_dtype):
    # Zero only the 1-pixel halo border of the shared scratch.  The interior
    # is fully overwritten before each conv, so this is the only init needed,
    # and doing it every step keeps the kernel correct when the batch grid is
    # split across TensorCores.
    zrow = jnp.zeros((1, W + 2, C), jnp.float32)
    pad_ref[0:1, :, :] = zrow
    pad_ref[H + 1:H + 2, :, :] = zrow
    zcol = jnp.zeros((H, 1, C), jnp.float32)
    pad_ref[1:H + 1, 0:1, :] = zcol
    pad_ref[1:H + 1, W + 1:W + 2, :] = zcol

    x3d = x_ref[0].astype(jnp.float32)            # (H, W, C)
    x_flat = x3d.reshape(H * W, C)                # benign reshape (lane dim kept)
    y = x_flat                                    # running feature map, f32, on-chip

    def conv3x3(v_flat, w, b):
        """3x3 'same' conv: one MXU matmul with K = 9*C.

        v_flat: (H*W, C) f32.   w: (9*C, C) in mxu_dtype.   b: (1, C) f32.
        """
        pad_ref[1:H + 1, 1:W + 1, :] = v_flat.reshape(H, W, C)
        patch = jnp.concatenate(
            [pad_ref[dh:dh + H, dw:dw + W, :]
             for dh in range(3) for dw in range(3)], axis=-1)       # (H, W, 9C)
        patch = patch.reshape(H * W, 9 * C)
        return jnp.dot(patch.astype(mxu_dtype), w,
                       preferred_element_type=jnp.float32) + b      # (H*W, C) f32

    for i in range(n_rcab):                       # static unroll, static weight index
        # Channel attention from the RCAB input (matches PyTorch: CA(x)).
        # Tiny MLP on VPU/XLU: broadcast-multiply + reduce, no MXU round trips.
        pooled = jnp.mean(y, axis=0, keepdims=True)                   # (1, C)
        h = jnp.sum(caw1t_ref[i] * pooled, axis=-1, keepdims=True)    # (Cr, 1)
        h = jnp.maximum(h + cab1_ref[i], 0.0)                         # (Cr, 1)
        z = jnp.sum(h * caw2_ref[i], axis=0, keepdims=True)           # (1, C)
        ca = jax.nn.sigmoid(z + cab2_ref[i])                          # (1, C)

        # body: conv -> ReLU -> conv, then scale by CA and residual add.
        r = jnp.maximum(conv3x3(y, w1_ref[i], b1_ref[i]), 0.0)
        r = conv3x3(r, w2_ref[i], b2_ref[i])
        y = r * ca + y

    # Tail conv fused with the outer residual (+ original block input x).
    out = conv3x3(y, tw_ref[...], tb_ref[...]) + x_flat
    o_ref[0] = out.reshape(H, W, C).astype(o_ref.dtype)


# ----------------------------------------------------------------------------
# Wrapper: pack weights host-side, launch one fused kernel over the batch.
# ----------------------------------------------------------------------------
def residual_block_forward(x, params, *, mxu_dtype=jnp.float32):
    N, H, W, C = x.shape
    rcabs = params["rcabs"]
    n_rcab = len(rcabs)
    Cr = rcabs[0]["ca_w1"].shape[-1]

    # Fold all 9 taps of every 3x3 conv into the contraction dim: (3,3,C,C) -> (9C, C).
    w1 = jnp.stack([p["w1"].reshape(9 * C, C) for p in rcabs]).astype(mxu_dtype)
    b1 = jnp.stack([p["b1"] for p in rcabs])                       # (n_rcab, 1, C)
    w2 = jnp.stack([p["w2"].reshape(9 * C, C) for p in rcabs]).astype(mxu_dtype)
    b2 = jnp.stack([p["b2"] for p in rcabs])                       # (n_rcab, 1, C)
    # Channel-attention params arranged for VPU broadcast+reduce (no in-kernel transpose).
    caw1t = jnp.stack([p["ca_w1"].T for p in rcabs])               # (n_rcab, Cr, C)
    cab1 = jnp.stack([p["ca_b1"].reshape(Cr, 1) for p in rcabs])   # (n_rcab, Cr, 1)
    caw2 = jnp.stack([p["ca_w2"] for p in rcabs])                  # (n_rcab, Cr, C)
    cab2 = jnp.stack([p["ca_b2"] for p in rcabs])                  # (n_rcab, 1, C)
    tw = params["tail_w"].reshape(9 * C, C).astype(mxu_dtype)
    tb = params["tail_b"]                                          # (1, C)

    kern = functools.partial(residual_block_kernel, H=H, W=W, C=C,
                             n_rcab=n_rcab, mxu_dtype=mxu_dtype)

    full = lambda n: (0, 0, 0)   # whole-array (weight) blocks, fetched once
    return pl.pallas_call(
        kern,
        out_shape=jax.ShapeDtypeStruct((N, H, W, C), x.dtype),
        grid=(N,),
        in_specs=[
            pl.BlockSpec((1, H, W, C), lambda n: (n, 0, 0, 0)),    # x (per image)
            pl.BlockSpec((n_rcab, 9 * C, C), full),                # w1 (packed)
            pl.BlockSpec((n_rcab, 1, C), full),                    # b1
            pl.BlockSpec((n_rcab, 9 * C, C), full),                # w2 (packed)
            pl.BlockSpec((n_rcab, 1, C), full),                    # b2
            pl.BlockSpec((n_rcab, Cr, C), full),                   # ca_w1^T
            pl.BlockSpec((n_rcab, Cr, 1), full),                   # ca_b1 (column)
            pl.BlockSpec((n_rcab, Cr, C), full),                   # ca_w2
            pl.BlockSpec((n_rcab, 1, C), full),                    # ca_b2
            pl.BlockSpec((9 * C, C), lambda n: (0, 0)),            # tail_w (packed)
            pl.BlockSpec((1, C), lambda n: (0, 0)),                # tail_b
        ],
        out_specs=pl.BlockSpec((1, H, W, C), lambda n: (n, 0, 0, 0)),
        scratch_shapes=[pltpu.VMEM((H + 2, W + 2, C), jnp.float32)],  # shared halo buf
        compiler_params=pltpu.CompilerParams(
            dimension_semantics=("parallel",),        # v7x: both TCs split the batch
            vmem_limit_bytes=32 * 1024 * 1024,        # ample; valid on 64 MiB v7x too
        ),
    )(x, w1, b1, w2, b2, caw1t, cab1, caw2, cab2, tw, tb)


# ----------------------------------------------------------------------------
# Pure-JAX reference (correctness check)
# ----------------------------------------------------------------------------
def _conv_ref(x, w, b):
    y = jax.lax.conv_general_dilated(
        x, w, window_strides=(1, 1), padding="SAME",
        dimension_numbers=("NHWC", "HWIO", "NHWC"))
    return y + b.reshape(1, 1, 1, -1)


def _rcab_ref(x, p):
    r = jax.nn.relu(_conv_ref(x, p["w1"], p["b1"]))
    r = _conv_ref(r, p["w2"], p["b2"])
    pooled = jnp.mean(x, axis=(1, 2))                               # (N, C)
    h = jax.nn.relu(pooled @ p["ca_w1"] + p["ca_b1"])
    ca = jax.nn.sigmoid(h @ p["ca_w2"] + p["ca_b2"])                # (N, C)
    return r * ca[:, None, None, :] + x


def _residual_block_ref(x, params):
    y = x
    for p in params["rcabs"]:
        y = _rcab_ref(y, p)
    return _conv_ref(y, params["tail_w"], params["tail_b"]) + x


# ----------------------------------------------------------------------------
# Deterministic parameter init
# ----------------------------------------------------------------------------
def init_params(key, n_features, n_rcab, reduction=16):
    C = n_features
    Cr = max(n_features // reduction, 1)
    rcabs = []
    for _ in range(n_rcab):
        key, *ks = jax.random.split(key, 9)
        rcabs.append(dict(
            w1=jax.random.normal(ks[0], (3, 3, C, C), jnp.float32) * 0.05,
            b1=jax.random.normal(ks[1], (1, C), jnp.float32) * 0.01,
            w2=jax.random.normal(ks[2], (3, 3, C, C), jnp.float32) * 0.05,
            b2=jax.random.normal(ks[3], (1, C), jnp.float32) * 0.01,
            ca_w1=jax.random.normal(ks[4], (C, Cr), jnp.float32) * 0.1,
            ca_b1=jax.random.normal(ks[5], (1, Cr), jnp.float32) * 0.01,
            ca_w2=jax.random.normal(ks[6], (Cr, C), jnp.float32) * 0.1,
            ca_b2=jax.random.normal(ks[7], (1, C), jnp.float32) * 0.01,
        ))
    key, k1, k2 = jax.random.split(key, 3)
    return dict(
        rcabs=rcabs,
        tail_w=jax.random.normal(k1, (3, 3, C, C), jnp.float32) * 0.05,
        tail_b=jax.random.normal(k2, (1, C), jnp.float32) * 0.01,
    )


# ----------------------------------------------------------------------------
if __name__ == "__main__":
    N, H, W = 2, 16, 16
    n_features, n_rcab = 32, 2        # reduction=16 -> squeeze dim Cr = 2

    key = jax.random.PRNGKey(0)
    key, kx = jax.random.split(key)
    x = jax.random.normal(kx, (N, H, W, n_features), jnp.float32)   # NHWC
    params = init_params(key, n_features, n_rcab)

    fwd = jax.jit(residual_block_forward)
    out = jax.block_until_ready(fwd(x, params))
    ref = jax.block_until_ready(_residual_block_ref(x, params))

    assert out.shape == (N, H, W, n_features)
    err = float(jnp.max(jnp.abs(out - ref)))
    assert jnp.allclose(out, ref, atol=1e-4, rtol=1e-4), err
    print("KERNEL_OK")
</pallas_src>

<mosaic_0001>
module attributes {stable_mosaic.version = 11 : i64} {
  func.func @residual_block_kernel(%arg0: i32, %arg1: memref<1x16x16x32xf32, #tpu.memory_space<vmem>>, %arg2: memref<2x288x32xf32, #tpu.memory_space<vmem>>, %arg3: memref<2x1x32xf32, #tpu.memory_space<vmem>>, %arg4: memref<2x288x32xf32, #tpu.memory_space<vmem>>, %arg5: memref<2x1x32xf32, #tpu.memory_space<vmem>>, %arg6: memref<2x2x32xf32, #tpu.memory_space<vmem>>, %arg7: memref<2x2x1xf32, #tpu.memory_space<vmem>>, %arg8: memref<2x2x32xf32, #tpu.memory_space<vmem>>, %arg9: memref<2x1x32xf32, #tpu.memory_space<vmem>>, %arg10: memref<288x32xf32, #tpu.memory_space<vmem>>, %arg11: memref<1x32xf32, #tpu.memory_space<vmem>>, %arg12: memref<1x16x16x32xf32, #tpu.memory_space<vmem>>, %arg13: memref<18x18x32xf32, #tpu.memory_space<vmem>>) attributes {dimension_semantics = [#tpu.dimension_semantics<parallel>], iteration_bounds = array<i64: 2>, scalar_prefetch = 0 : i64, scratch_operands = 1 : i64, tpu.core_type = #tpu.core_type<tc>, window_params = [{transform_indices = @transform_0, window_bounds = array<i64: 1, 16, 16, 32>}, {pipeline_mode = #tpu.pipeline_mode<synchronous>, transform_indices = @transform_1, window_bounds = array<i64: 2, 288, 32>}, {pipeline_mode = #tpu.pipeline_mode<synchronous>, transform_indices = @transform_2, window_bounds = array<i64: 2, 1, 32>}, {pipeline_mode = #tpu.pipeline_mode<synchronous>, transform_indices = @transform_3, window_bounds = array<i64: 2, 288, 32>}, {pipeline_mode = #tpu.pipeline_mode<synchronous>, transform_indices = @transform_4, window_bounds = array<i64: 2, 1, 32>}, {pipeline_mode = #tpu.pipeline_mode<synchronous>, transform_indices = @transform_5, window_bounds = array<i64: 2, 2, 32>}, {pipeline_mode = #tpu.pipeline_mode<synchronous>, transform_indices = @transform_6, window_bounds = array<i64: 2, 2, 1>}, {pipeline_mode = #tpu.pipeline_mode<synchronous>, transform_indices = @transform_7, window_bounds = array<i64: 2, 2, 32>}, {pipeline_mode = #tpu.pipeline_mode<synchronous>, transform_indices = @transform_8, window_bounds = array<i64: 2, 1, 32>}, {pipeline_mode = #tpu.pipeline_mode<synchronous>, transform_indices = @transform_9, window_bounds = array<i64: 288, 32>}, {pipeline_mode = #tpu.pipeline_mode<synchronous>, transform_indices = @transform_10, window_bounds = array<i64: 1, 32>}, {transform_indices = @transform_11, window_bounds = array<i64: 1, 16, 16, 32>}]} {
    %cst = arith.constant 0.000000e+00 : f32
    %0 = vector.broadcast %cst : f32 to vector<1x18x32xf32>
    %c0 = arith.constant 0 : index
    %c0_0 = arith.constant 0 : index
    %c0_1 = arith.constant 0 : index
    %1 = vector.load %arg13[%c0, %c0_0, %c0_1] : memref<18x18x32xf32, #tpu.memory_space<vmem>>, vector<1x18x32xf32>
    tpu.vector_store %arg13[%c0, %c0_0, %c0_1], %0 {strides = array<i32>} : memref<18x18x32xf32, #tpu.memory_space<vmem>>, vector<1x18x32xf32>,
    %c17 = arith.constant 17 : index
    %c0_2 = arith.constant 0 : index
    %c0_3 = arith.constant 0 : index
    %2 = vector.load %arg13[%c17, %c0_2, %c0_3] : memref<18x18x32xf32, #tpu.memory_space<vmem>>, vector<1x18x32xf32>
    tpu.vector_store %arg13[%c17, %c0_2, %c0_3], %0 {strides = array<i32>} : memref<18x18x32xf32, #tpu.memory_space<vmem>>, vector<1x18x32xf32>,
    %cst_4 = arith.constant 0.000000e+00 : f32
    %3 = vector.broadcast %cst_4 : f32 to vector<16x1x32xf32>
    %c1 = arith.constant 1 : index
    %c0_5 = arith.constant 0 : index
    %c0_6 = arith.constant 0 : index
    %4 = vector.load %arg13[%c1, %c0_5, %c0_6] : memref<18x18x32xf32, #tpu.memory_space<vmem>>, vector<16x1x32xf32>
    tpu.vector_store %arg13[%c1, %c0_5, %c0_6], %3 {strides = array<i32>} : memref<18x18x32xf32, #tpu.memory_space<vmem>>, vector<16x1x32xf32>,
    %c1_7 = arith.constant 1 : index
    %c17_8 = arith.constant 17 : index
    %c0_9 = arith.constant 0 : index
    %5 = vector.load %arg13[%c1_7, %c17_8, %c0_9] : memref<18x18x32xf32, #tpu.memory_space<vmem>>, vector<16x1x32xf32>
    tpu.vector_store %arg13[%c1_7, %c17_8, %c0_9], %3 {strides = array<i32>} : memref<18x18x32xf32, #tpu.memory_space<vmem>>, vector<16x1x32xf32>,
    %c0_10 = arith.constant 0 : index
    %c0_11 = arith.constant 0 : index
    %c0_12 = arith.constant 0 : index
    %c0_13 = arith.constant 0 : index
    %6 = vector.load %arg1[%c0_10, %c0_11, %c0_12, %c0_13] : memref<1x16x16x32xf32, #tpu.memory_space<vmem>>, vector<1x16x16x32xf32>
    %7 = vector.shape_cast %6 : vector<1x16x16x32xf32> to vector<16x16x32xf32>
    %8 = vector.shape_cast %7 : vector<16x16x32xf32> to vector<256x32xf32>
    %cst_14 = arith.constant dense<0.000000e+00> : vector<32xf32>
    %9 = vector.multi_reduction <add>, %8, %cst_14 [0] : vector<256x32xf32> to vector<32xf32>
    %10 = vector.shape_cast %9 : vector<32xf32> to vector<1x32xf32>
    %cst_15 = arith.constant 2.560000e+02 : f32
    %11 = vector.broadcast %cst_15 : f32 to vector<1x32xf32>
    %12 = arith.divf %10, %11 : vector<1x32xf32>
    %c0_16 = arith.constant 0 : index
    %c0_17 = arith.constant 0 : index
    %c0_18 = arith.constant 0 : index
    %13 = vector.load %arg6[%c0_16, %c0_17, %c0_18] : memref<2x2x32xf32, #tpu.memory_space<vmem>>, vector<1x2x32xf32>
    %14 = vector.shape_cast %13 : vector<1x2x32xf32> to vector<2x32xf32>
    %15 = vector.broadcast %12 : vector<1x32xf32> to vector<2x32xf32>
    %16 = arith.mulf %14, %15 : vector<2x32xf32>
    %cst_19 = arith.constant dense<0.000000e+00> : vector<2xf32>
    %17 = vector.multi_reduction <add>, %16, %cst_19 [1] : vector<2x32xf32> to vector<2xf32>
    %18 = vector.shape_cast %17 : vector<2xf32> to vector<2x1xf32>
    %c0_20 = arith.constant 0 : index
    %c0_21 = arith.constant 0 : index
    %c0_22 = arith.constant 0 : index
    %19 = vector.load %arg7[%c0_20, %c0_21, %c0_22] : memref<2x2x1xf32, #tpu.memory_space<vmem>>, vector<1x2x1xf32>
    %20 = vector.shape_cast %19 : vector<1x2x1xf32> to vector<2x1xf32>
    %21 = arith.addf %18, %20 : vector<2x1xf32>
    %cst_23 = arith.constant 0.000000e+00 : f32
    %22 = vector.broadcast %cst_23 : f32 to vector<2x1xf32>
    %23 = arith.maximumf %21, %22 : vector<2x1xf32>
    %c0_24 = arith.constant 0 : index
    %c0_25 = arith.constant 0 : index
    %c0_26 = arith.constant 0 : index
    %24 = vector.load %arg8[%c0_24, %c0_25, %c0_26] : memref<2x2x32xf32, #tpu.memory_space<vmem>>, vector<1x2x32xf32>
    %25 = vector.shape_cast %24 : vector<1x2x32xf32> to vector<2x32xf32>
    %26 = vector.broadcast %23 : vector<2x1xf32> to vector<2x32xf32>
    %27 = arith.mulf %26, %25 : vector<2x32xf32>
    %cst_27 = arith.constant dense<0.000000e+00> : vector<32xf32>
    %28 = vector.multi_reduction <add>, %27, %cst_27 [0] : vector<2x32xf32> to vector<32xf32>
    %29 = vector.shape_cast %28 : vector<32xf32> to vector<1x32xf32>
    %c0_28 = arith.constant 0 : index
    %c0_29 = arith.constant 0 : index
    %c0_30 = arith.constant 0 : index
    %30 = vector.load %arg9[%c0_28, %c0_29, %c0_30] : memref<2x1x32xf32, #tpu.memory_space<vmem>>, vector<1x1x32xf32>
    %31 = vector.shape_cast %30 : vector<1x1x32xf32> to vector<1x32xf32>
    %32 = arith.addf %29, %31 : vector<1x32xf32>
    %33 = arith.negf %32 : vector<1x32xf32>
    %34 = math.exp %33 : vector<1x32xf32>
    %cst_31 = arith.constant 1.000000e+00 : f32
    %35 = vector.broadcast %cst_31 : f32 to vector<1x32xf32>
    %36 = arith.addf %35, %34 : vector<1x32xf32>
    %37 = arith.divf %35, %36 : vector<1x32xf32>
    %c0_32 = arith.constant 0 : index
    %c0_33 = arith.constant 0 : index
    %c0_34 = arith.constant 0 : index
    %38 = vector.load %arg2[%c0_32, %c0_33, %c0_34] : memref<2x288x32xf32, #tpu.memory_space<vmem>>, vector<1x288x32xf32>
    %39 = vector.shape_cast %38 : vector<1x288x32xf32> to vector<288x32xf32>
    %c0_35 = arith.constant 0 : index
    %c0_36 = arith.constant 0 : index
    %c0_37 = arith.constant 0 : index
    %40 = vector.load %arg3[%c0_35, %c0_36, %c0_37] : memref<2x1x32xf32, #tpu.memory_space<vmem>>, vector<1x1x32xf32>
    %41 = vector.shape_cast %40 : vector<1x1x32xf32> to vector<1x32xf32>
    %42 = vector.shape_cast %8 : vector<256x32xf32> to vector<16x16x32xf32>
    %c1_38 = arith.constant 1 : index
    %c1_39 = arith.constant 1 : index
    %c0_40 = arith.constant 0 : index
    %43 = vector.load %arg13[%c1_38, %c1_39, %c0_40] : memref<18x18x32xf32, #tpu.memory_space<vmem>>, vector<16x16x32xf32>
    tpu.vector_store %arg13[%c1_38, %c1_39, %c0_40], %42 {strides = array<i32>} : memref<18x18x32xf32, #tpu.memory_space<vmem>>, vector<16x16x32xf32>,
    %c0_41 = arith.constant 0 : index
    %c0_42 = arith.constant 0 : index
    %c0_43 = arith.constant 0 : index
    %44 = vector.load %arg13[%c0_41, %c0_42, %c0_43] : memref<18x18x32xf32, #tpu.memory_space<vmem>>, vector<16x16x32xf32>
    %c0_44 = arith.constant 0 : index
    %c1_45 = arith.constant 1 : index
    %c0_46 = arith.constant 0 : index
    %45 = vector.load %arg13[%c0_44, %c1_45, %c0_46] : memref<18x18x32xf32, #tpu.memory_space<vmem>>, vector<16x16x32xf32>
    %c0_47 = arith.constant 0 : index
    %c2 = arith.constant 2 : index
    %c0_48 = arith.constant 0 : index
    %46 = vector.load %arg13[%c0_47, %c2, %c0_48] : memref<18x18x32xf32, #tpu.memory_space<vmem>>, vector<16x16x32xf32>
    %c1_49 = arith.constant 1 : index
    %c0_50 = arith.constant 0 : index
    %c0_51 = arith.constant 0 : index
    %47 = vector.load %arg13[%c1_49, %c0_50, %c0_51] : memref<18x18x32xf32, #tpu.memory_space<vmem>>, vector<16x16x32xf32>
    %c1_52 = arith.constant 1 : index
    %c1_53 = arith.constant 1 : index
    %c0_54 = arith.constant 0 : index
    %48 = vector.load %arg13[%c1_52, %c1_53, %c0_54] : memref<18x18x32xf32, #tpu.memory_space<vmem>>, vector<16x16x32xf32>
    %c1_55 = arith.constant 1 : index
    %c2_56 = arith.constant 2 : index
    %c0_57 = arith.constant 0 : index
    %49 = vector.load %arg13[%c1_55, %c2_56, %c0_57] : memref<18x18x32xf32, #tpu.memory_space<vmem>>, vector<16x16x32xf32>
    %c2_58 = arith.constant 2 : index
    %c0_59 = arith.constant 0 : index
    %c0_60 = arith.constant 0 : index
    %50 = vector.load %arg13[%c2_58, %c0_59, %c0_60] : memref<18x18x32xf32, #tpu.memory_space<vmem>>, vector<16x16x32xf32>
    %c2_61 = arith.constant 2 : index
    %c1_62 = arith.constant 1 : index
    %c0_63 = arith.constant 0 : index
    %51 = vector.load %arg13[%c2_61, %c1_62, %c0_63] : memref<18x18x32xf32, #tpu.memory_space<vmem>>, vector<16x16x32xf32>
    %c2_64 = arith.constant 2 : index
    %c2_65 = arith.constant 2 : index
    %c0_66 = arith.constant 0 : index
    %52 = vector.load %arg13[%c2_64, %c2_65, %c0_66] : memref<18x18x32xf32, #tpu.memory_space<vmem>>, vector<16x16x32xf32>
    %53 = tpu.concatenate %44, %45, %46, %47, %48, %49, %50, %51, %52 in 2 : vector<16x16x32xf32>, vector<16x16x32xf32>, vector<16x16x32xf32>, vector<16x16x32xf32>, vector<16x16x32xf32>, vector<16x16x32xf32>, vector<16x16x32xf32>, vector<16x16x32xf32>, vector<16x16x32xf32> -> vector<16x16x288xf32>
    %54 = vector.shape_cast %53 : vector<16x16x288xf32> to vector<256x288xf32>
    %cst_67 = arith.constant dense<0.000000e+00> : vector<256x32xf32>
    %55 = tpu.matmul %54, %39, %cst_67 {dimension_numbers = #tpu.dot_dimension_numbers<[1], [0], [0], [1], [0, 0, 1, 1], [], []>} : vector<256x288xf32>, vector<288x32xf32>, vector<256x32xf32> -> vector<256x32xf32>
    %56 = vector.broadcast %41 : vector<1x32xf32> to vector<256x32xf32>
    %57 = arith.addf %55, %56 : vector<256x32xf32>
    %cst_68 = arith.constant 0.000000e+00 : f32
    %58 = vector.broadcast %cst_68 : f32 to vector<256x32xf32>
    %59 = arith.maximumf %57, %58 : vector<256x32xf32>
    %c0_69 = arith.constant 0 : index
    %c0_70 = arith.constant 0 : index
    %c0_71 = arith.constant 0 : index
    %60 = vector.load %arg4[%c0_69, %c0_70, %c0_71] : memref<2x288x32xf32, #tpu.memory_space<vmem>>, vector<1x288x32xf32>
    %61 = vector.shape_cast %60 : vector<1x288x32xf32> to vector<288x32xf32>
    %c0_72 = arith.constant 0 : index
    %c0_73 = arith.constant 0 : index
    %c0_74 = arith.constant 0 : index
    %62 = vector.load %arg5[%c0_72, %c0_73, %c0_74] : memref<2x1x32xf32, #tpu.memory_space<vmem>>, vector<1x1x32xf32>
    %63 = vector.shape_cast %62 : vector<1x1x32xf32> to vector<1x32xf32>
    %64 = vector.shape_cast %59 : vector<256x32xf32> to vector<16x16x32xf32>
    %c1_75 = arith.constant 1 : index
    %c1_76 = arith.constant 1 : index
    %c0_77 = arith.constant 0 : index
    %65 = vector.load %arg13[%c1_75, %c1_76, %c0_77] : memref<18x18x32xf32, #tpu.memory_space<vmem>>, vector<16x16x32xf32>
    tpu.vector_store %arg13[%c1_75, %c1_76, %c0_77], %64 {strides = array<i32>} : memref<18x18x32xf32, #tpu.memory_space<vmem>>, vector<16x16x32xf32>,
    %c0_78 = arith.constant 0 : index
    %c0_79 = arith.constant 0 : index
    %c0_80 = arith.constant 0 : index
    %66 = vector.load %arg13[%c0_78, %c0_79, %c0_80] : memref<18x18x32xf32, #tpu.memory_space<vmem>>, vector<16x16x32xf32>
    %c0_81 = arith.constant 0 : index
    %c1_82 = arith.constant 1 : index
    %c0_83 = arith.constant 0 : index
    %67 = vector.load %arg13[%c0_81, %c1_82, %c0_83] : memref<18x18x32xf32, #tpu.memory_space<vmem>>, vector<16x16x32xf32>
    %c0_84 = arith.constant 0 : index
    %c2_85 = arith.constant 2 : index
    %c0_86 = arith.constant 0 : index
    %68 = vector.load %arg13[%c0_84, %c2_85, %c0_86] : memref<18x18x32xf32, #tpu.memory_space<vmem>>, vector<16x16x32xf32>
    %c1_87 = arith.constant 1 : index
    %c0_88 = arith.constant 0 : index
    %c0_89 = arith.constant 0 : index
    %69 = vector.load %arg13[%c1_87, %c0_88, %c0_89] : memref<18x18x32xf32, #tpu.memory_space<vmem>>, vector<16x16x32xf32>
    %c1_90 = arith.constant 1 : index
    %c1_91 = arith.constant 1 : index
    %c0_92 = arith.constant 0 : index
    %70 = vector.load %arg13[%c1_90, %c1_91, %c0_92] : memref<18x18x32xf32, #tpu.memory_space<vmem>>, vector<16x16x32xf32>
    %c1_93 = arith.constant 1 : index
    %c2_94 = arith.constant 2 : index
    %c0_95 = arith.constant 0 : index
    %71 = vector.load %arg13[%c1_93, %c2_94, %c0_95] : memref<18x18x32xf32, #tpu.memory_space<vmem>>, vector<16x16x32xf32>
    %c2_96 = arith.constant 2 : index
    %c0_97 = arith.constant 0 : index
    %c0_98 = arith.constant 0 : index
    %72 = vector.load %arg13[%c2_96, %c0_97, %c0_98] : memref<18x18x32xf32, #tpu.memory_space<vmem>>, vector<16x16x32xf32>
    %c2_99 = arith.constant 2 : index
    %c1_100 = arith.constant 1 : index
    %c0_101 = arith.constant 0 : index
    %73 = vector.load %arg13[%c2_99, %c1_100, %c0_101] : memref<18x18x32xf32, #tpu.memory_space<vmem>>, vector<16x16x32xf32>
    %c2_102 = arith.constant 2 : index
    %c2_103 = arith.constant 2 : index
    %c0_104 = arith.constant 0 : index
    %74 = vector.load %arg13[%c2_102, %c2_103, %c0_104] : memref<18x18x32xf32, #tpu.memory_space<vmem>>, vector<16x16x32xf32>
    %75 = tpu.concatenate %66, %67, %68, %69, %70, %71, %72, %73, %74 in 2 : vector<16x16x32xf32>, vector<16x16x32xf32>, vector<16x16x32xf32>, vector<16x16x32xf32>, vector<16x16x32xf32>, vector<16x16x32xf32>, vector<16x16x32xf32>, vector<16x16x32xf32>, vector<16x16x32xf32> -> vector<16x16x288xf32>
    %76 = vector.shape_cast %75 : vector<16x16x288xf32> to vector<256x288xf32>
    %cst_105 = arith.constant dense<0.000000e+00> : vector<256x32xf32>
    %77 = tpu.matmul %76, %61, %cst_105 {dimension_numbers = #tpu.dot_dimension_numbers<[1], [0], [0], [1], [0, 0, 1, 1], [], []>} : vector<256x288xf32>, vector<288x32xf32>, vector<256x32xf32> -> vector<256x32xf32>
    %78 = vector.broadcast %63 : vector<1x32xf32> to vector<256x32xf32>
    %79 = arith.addf %77, %78 : vector<256x32xf32>
    %80 = vector.broadcast %37 : vector<1x32xf32> to vector<256x32xf32>
    %81 = arith.mulf %79, %80 : vector<256x32xf32>
    %82 = arith.addf %81, %8 : vector<256x32xf32>
    %cst_106 = arith.constant dense<0.000000e+00> : vector<32xf32>
    %83 = vector.multi_reduction <add>, %82, %cst_106 [0] : vector<256x32xf32> to vector<32xf32>
    %84 = vector.shape_cast %83 : vector<32xf32> to vector<1x32xf32>
    %cst_107 = arith.constant 2.560000e+02 : f32
    %85 = vector.broadcast %cst_107 : f32 to vector<1x32xf32>
    %86 = arith.divf %84, %85 : vector<1x32xf32>
    %c1_108 = arith.constant 1 : index
    %c0_109 = arith.constant 0 : index
    %c0_110 = arith.constant 0 : index
    %87 = vector.load %arg6[%c1_108, %c0_109, %c0_110] : memref<2x2x32xf32, #tpu.memory_space<vmem>>, vector<1x2x32xf32>
    %88 = vector.shape_cast %87 : vector<1x2x32xf32> to vector<2x32xf32>
    %89 = vector.broadcast %86 : vector<1x32xf32> to vector<2x32xf32>
    %90 = arith.mulf %88, %89 : vector<2x32xf32>
    %cst_111 = arith.constant dense<0.000000e+00> : vector<2xf32>
    %91 = vector.multi_reduction <add>, %90, %cst_111 [1] : vector<2x32xf32> to vector<2xf32>
    %92 = vector.shape_cast %91 : vector<2xf32> to vector<2x1xf32>
    %c1_112 = arith.constant 1 : index
    %c0_113 = arith.constant 0 : index
    %c0_114 = arith.constant 0 : index
    %93 = vector.load %arg7[%c1_112, %c0_113, %c0_114] : memref<2x2x1xf32, #tpu.memory_space<vmem>>, vector<1x2x1xf32>
    %94 = vector.shape_cast %93 : vector<1x2x1xf32> to vector<2x1xf32>
    %95 = arith.addf %92, %94 : vector<2x1xf32>
    %cst_115 = arith.constant 0.000000e+00 : f32
    %96 = vector.broadcast %cst_115 : f32 to vector<2x1xf32>
    %97 = arith.maximumf %95, %96 : vector<2x1xf32>
    %c1_116 = arith.constant 1 : index
    %c0_117 = arith.constant 0 : index
    %c0_118 = arith.constant 0 : index
    %98 = vector.load %arg8[%c1_116, %c0_117, %c0_118] : memref<2x2x32xf32, #tpu.memory_space<vmem>>, vector<1x2x32xf32>
    %99 = vector.shape_cast %98 : vector<1x2x32xf32> to vector<2x32xf32>
    %100 = vector.broadcast %97 : vector<2x1xf32> to vector<2x32xf32>
    %101 = arith.mulf %100, %99 : vector<2x32xf32>
    %cst_119 = arith.constant dense<0.000000e+00> : vector<32xf32>
    %102 = vector.multi_reduction <add>, %101, %cst_119 [0] : vector<2x32xf32> to vector<32xf32>
    %103 = vector.shape_cast %102 : vector<32xf32> to vector<1x32xf32>
    %c1_120 = arith.constant 1 : index
    %c0_121 = arith.constant 0 : index
    %c0_122 = arith.constant 0 : index
    %104 = vector.load %arg9[%c1_120, %c0_121, %c0_122] : memref<2x1x32xf32, #tpu.memory_space<vmem>>, vector<1x1x32xf32>
    %105 = vector.shape_cast %104 : vector<1x1x32xf32> to vector<1x32xf32>
    %106 = arith.addf %103, %105 : vector<1x32xf32>
    %107 = arith.negf %106 : vector<1x32xf32>
    %108 = math.exp %107 : vector<1x32xf32>
    %cst_123 = arith.constant 1.000000e+00 : f32
    %109 = vector.broadcast %cst_123 : f32 to vector<1x32xf32>
    %110 = arith.addf %109, %108 : vector<1x32xf32>
    %111 = arith.divf %109, %110 : vector<1x32xf32>
    %c1_124 = arith.constant 1 : index
    %c0_125 = arith.constant 0 : index
    %c0_126 = arith.constant 0 : index
    %112 = vector.load %arg2[%c1_124, %c0_125, %c0_126] : memref<2x288x32xf32, #tpu.memory_space<vmem>>, vector<1x288x32xf32>
    %113 = vector.shape_cast %112 : vector<1x288x32xf32> to vector<288x32xf32>
    %c1_127 = arith.constant 1 : index
    %c0_128 = arith.constant 0 : index
    %c0_129 = arith.constant 0 : index
    %114 = vector.load %arg3[%c1_127, %c0_128, %c0_129] : memref<2x1x32xf32, #tpu.memory_space<vmem>>, vector<1x1x32xf32>
    %115 = vector.shape_cast %114 : vector<1x1x32xf32> to vector<1x32xf32>
    %116 = vector.shape_cast %82 : vector<256x32xf32> to vector<16x16x32xf32>
    %c1_130 = arith.constant 1 : index
    %c1_131 = arith.constant 1 : index
    %c0_132 = arith.constant 0 : index
    %117 = vector.load %arg13[%c1_130, %c1_131, %c0_132] : memref<18x18x32xf32, #tpu.memory_space<vmem>>, vector<16x16x32xf32>
    tpu.vector_store %arg13[%c1_130, %c1_131, %c0_132], %116 {strides = array<i32>} : memref<18x18x32xf32, #tpu.memory_space<vmem>>, vector<16x16x32xf32>,
    %c0_133 = arith.constant 0 : index
    %c0_134 = arith.constant 0 : index
    %c0_135 = arith.constant 0 : index
    %118 = vector.load %arg13[%c0_133, %c0_134, %c0_135] : memref<18x18x32xf32, #tpu.memory_space<vmem>>, vector<16x16x32xf32>
    %c0_136 = arith.constant 0 : index
    %c1_137 = arith.constant 1 : index
    %c0_138 = arith.constant 0 : index
    %119 = vector.load %arg13[%c0_136, %c1_137, %c0_138] : memref<18x18x32xf32, #tpu.memory_space<vmem>>, vector<16x16x32xf32>
    %c0_139 = arith.constant 0 : index
    %c2_140 = arith.constant 2 : index
    %c0_141 = arith.constant 0 : index
    %120 = vector.load %arg13[%c0_139, %c2_140, %c0_141] : memref<18x18x32xf32, #tpu.memory_space<vmem>>, vector<16x16x32xf32>
    %c1_142 = arith.constant 1 : index
    %c0_143 = arith.constant 0 : index
    %c0_144 = arith.constant 0 : index
    %121 = vector.load %arg13[%c1_142, %c0_143, %c0_144] : memref<18x18x32xf32, #tpu.memory_space<vmem>>, vector<16x16x32xf32>
    %c1_145 = arith.constant 1 : index
    %c1_146 = arith.constant 1 : index
    %c0_147 = arith.constant 0 : index
    %122 = vector.load %arg13[%c1_145, %c1_146, %c0_147] : memref<18x18x32xf32, #tpu.memory_space<vmem>>, vector<16x16x32xf32>
    %c1_148 = arith.constant 1 : index
    %c2_149 = arith.constant 2 : index
    %c0_150 = arith.constant 0 : index
    %123 = vector.load %arg13[%c1_148, %c2_149, %c0_150] : memref<18x18x32xf32, #tpu.memory_space<vmem>>, vector<16x16x32xf32>
    %c2_151 = arith.constant 2 : index
    %c0_152 = arith.constant 0 : index
    %c0_153 = arith.constant 0 : index
    %124 = vector.load %arg13[%c2_151, %c0_152, %c0_153] : memref<18x18x32xf32, #tpu.memory_space<vmem>>, vector<16x16x32xf32>
    %c2_154 = arith.constant 2 : index
    %c1_155 = arith.constant 1 : index
    %c0_156 = arith.constant 0 : index
    %125 = vector.load %arg13[%c2_154, %c1_155, %c0_156] : memref<18x18x32xf32, #tpu.memory_space<vmem>>, vector<16x16x32xf32>
    %c2_157 = arith.constant 2 : index
    %c2_158 = arith.constant 2 : index
    %c0_159 = arith.constant 0 : index
    %126 = vector.load %arg13[%c2_157, %c2_158, %c0_159] : memref<18x18x32xf32, #tpu.memory_space<vmem>>, vector<16x16x32xf32>
    %127 = tpu.concatenate %118, %119, %120, %121, %122, %123, %124, %125, %126 in 2 : vector<16x16x32xf32>, vector<16x16x32xf32>, vector<16x16x32xf32>, vector<16x16x32xf32>, vector<16x16x32xf32>, vector<16x16x32xf32>, vector<16x16x32xf32>, vector<16x16x32xf32>, vector<16x16x32xf32> -> vector<16x16x288xf32>
    %128 = vector.shape_cast %127 : vector<16x16x288xf32> to vector<256x288xf32>
    %cst_160 = arith.constant dense<0.000000e+00> : vector<256x32xf32>
    %129 = tpu.matmul %128, %113, %cst_160 {dimension_numbers = #tpu.dot_dimension_numbers<[1], [0], [0], [1], [0, 0, 1, 1], [], []>} : vector<256x288xf32>, vector<288x32xf32>, vector<256x32xf32> -> vector<256x32xf32>
    %130 = vector.broadcast %115 : vector<1x32xf32> to vector<256x32xf32>
    %131 = arith.addf %129, %130 : vector<256x32xf32>
    %cst_161 = arith.constant 0.000000e+00 : f32
    %132 = vector.broadcast %cst_161 : f32 to vector<256x32xf32>
    %133 = arith.maximumf %131, %132 : vector<256x32xf32>
    %c1_162 = arith.constant 1 : index
    %c0_163 = arith.constant 0 : index
    %c0_164 = arith.constant 0 : index
    %134 = vector.load %arg4[%c1_162, %c0_163, %c0_164] : memref<2x288x32xf32, #tpu.memory_space<vmem>>, vector<1x288x32xf32>
    %135 = vector.shape_cast %134 : vector<1x288x32xf32> to vector<288x32xf32>
    %c1_165 = arith.constant 1 : index
    %c0_166 = arith.constant 0 : index
    %c0_167 = arith.constant 0 : index
    %136 = vector.load %arg5[%c1_165, %c0_166, %c0_167] : memref<2x1x32xf32, #tpu.memory_space<vmem>>, vector<1x1x32xf32>
    %137 = vector.shape_cast %136 : vector<1x1x32xf32> to vector<1x32xf32>
    %138 = vector.shape_cast %133 : vector<256x32xf32> to vector<16x16x32xf32>
    %c1_168 = arith.constant 1 : index
    %c1_169 = arith.constant 1 : index
    %c0_170 = arith.constant 0 : index
    %139 = vector.load %arg13[%c1_168, %c1_169, %c0_170] : memref<18x18x32xf32, #tpu.memory_space<vmem>>, vector<16x16x32xf32>
    tpu.vector_store %arg13[%c1_168, %c1_169, %c0_170], %138 {strides = array<i32>} : memref<18x18x32xf32, #tpu.memory_space<vmem>>, vector<16x16x32xf32>,
    %c0_171 = arith.constant 0 : index
    %c0_172 = arith.constant 0 : index
    %c0_173 = arith.constant 0 : index
    %140 = vector.load %arg13[%c0_171, %c0_172, %c0_173] : memref<18x18x32xf32, #tpu.memory_space<vmem>>, vector<16x16x32xf32>
    %c0_174 = arith.constant 0 : index
    %c1_175 = arith.constant 1 : index
    %c0_176 = arith.constant 0 : index
    %141 = vector.load %arg13[%c0_174, %c1_175, %c0_176] : memref<18x18x32xf32, #tpu.memory_space<vmem>>, vector<16x16x32xf32>
    %c0_177 = arith.constant 0 : index
    %c2_178 = arith.constant 2 : index
    %c0_179 = arith.constant 0 : index
    %142 = vector.load %arg13[%c0_177, %c2_178, %c0_179] : memref<18x18x32xf32, #tpu.memory_space<vmem>>, vector<16x16x32xf32>
    %c1_180 = arith.constant 1 : index
    %c0_181 = arith.constant 0 : index
    %c0_182 = arith.constant 0 : index
    %143 = vector.load %arg13[%c1_180, %c0_181, %c0_182] : memref<18x18x32xf32, #tpu.memory_space<vmem>>, vector<16x16x32xf32>
    %c1_183 = arith.constant 1 : index
    %c1_184 = arith.constant 1 : index
    %c0_185 = arith.constant 0 : index
    %144 = vector.load %arg13[%c1_183, %c1_184, %c0_185] : memref<18x18x32xf32, #tpu.memory_space<vmem>>, vector<16x16x32xf32>
    %c1_186 = arith.constant 1 : index
    %c2_187 = arith.constant 2 : index
    %c0_188 = arith.constant 0 : index
    %145 = vector.load %arg13[%c1_186, %c2_187, %c0_188] : memref<18x18x32xf32, #tpu.memory_space<vmem>>, vector<16x16x32xf32>
    %c2_189 = arith.constant 2 : index
    %c0_190 = arith.constant 0 : index
    %c0_191 = arith.constant 0 : index
    %146 = vector.load %arg13[%c2_189, %c0_190, %c0_191] : memref<18x18x32xf32, #tpu.memory_space<vmem>>, vector<16x16x32xf32>
    %c2_192 = arith.constant 2 : index
    %c1_193 = arith.constant 1 : index
    %c0_194 = arith.constant 0 : index
    %147 = vector.load %arg13[%c2_192, %c1_193, %c0_194] : memref<18x18x32xf32, #tpu.memory_space<vmem>>, vector<16x16x32xf32>
    %c2_195 = arith.constant 2 : index
    %c2_196 = arith.constant 2 : index
    %c0_197 = arith.constant 0 : index
    %148 = vector.load %arg13[%c2_195, %c2_196, %c0_197] : memref<18x18x32xf32, #tpu.memory_space<vmem>>, vector<16x16x32xf32>
    %149 = tpu.concatenate %140, %141, %142, %143, %144, %145, %146, %147, %148 in 2 : vector<16x16x32xf32>, vector<16x16x32xf32>, vector<16x16x32xf32>, vector<16x16x32xf32>, vector<16x16x32xf32>, vector<16x16x32xf32>, vector<16x16x32xf32>, vector<16x16x32xf32>, vector<16x16x32xf32> -> vector<16x16x288xf32>
    %150 = vector.shape_cast %149 : vector<16x16x288xf32> to vector<256x288xf32>
    %cst_198 = arith.constant dense<0.000000e+00> : vector<256x32xf32>
    %151 = tpu.matmul %150, %135, %cst_198 {dimension_numbers = #tpu.dot_dimension_numbers<[1], [0], [0], [1], [0, 0, 1, 1], [], []>} : vector<256x288xf32>, vector<288x32xf32>, vector<256x32xf32> -> vector<256x32xf32>
    %152 = vector.broadcast %137 : vector<1x32xf32> to vector<256x32xf32>
    %153 = arith.addf %151, %152 : vector<256x32xf32>
    %154 = vector.broadcast %111 : vector<1x32xf32> to vector<256x32xf32>
    %155 = arith.mulf %153, %154 : vector<256x32xf32>
    %156 = arith.addf %155, %82 : vector<256x32xf32>
    %c0_199 = arith.constant 0 : index
    %c0_200 = arith.constant 0 : index
    %157 = vector.load %arg10[%c0_199, %c0_200] : memref<288x32xf32, #tpu.memory_space<vmem>>, vector<288x32xf32>
    %c0_201 = arith.constant 0 : index
    %c0_202 = arith.constant 0 : index
    %158 = vector.load %arg11[%c0_201, %c0_202] : memref<1x32xf32, #tpu.memory_space<vmem>>, vector<1x32xf32>
    %159 = vector.shape_cast %156 : vector<256x32xf32> to vector<16x16x32xf32>
    %c1_203 = arith.constant 1 : index
    %c1_204 = arith.constant 1 : index
    %c0_205 = arith.constant 0 : index
    %160 = vector.load %arg13[%c1_203, %c1_204, %c0_205] : memref<18x18x32xf32, #tpu.memory_space<vmem>>, vector<16x16x32xf32>
    tpu.vector_store %arg13[%c1_203, %c1_204, %c0_205], %159 {strides = array<i32>} : memref<18x18x32xf32, #tpu.memory_space<vmem>>, vector<16x16x32xf32>,
    %c0_206 = arith.constant 0 : index
    %c0_207 = arith.constant 0 : index
    %c0_208 = arith.constant 0 : index
    %161 = vector.load %arg13[%c0_206, %c0_207, %c0_208] : memref<18x18x32xf32, #tpu.memory_space<vmem>>, vector<16x16x32xf32>
    %c0_209 = arith.constant 0 : index
    %c1_210 = arith.constant 1 : index
    %c0_211 = arith.constant 0 : index
    %162 = vector.load %arg13[%c0_209, %c1_210, %c0_211] : memref<18x18x32xf32, #tpu.memory_space<vmem>>, vector<16x16x32xf32>
    %c0_212 = arith.constant 0 : index
    %c2_213 = arith.constant 2 : index
    %c0_214 = arith.constant 0 : index
    %163 = vector.load %arg13[%c0_212, %c2_213, %c0_214] : memref<18x18x32xf32, #tpu.memory_space<vmem>>, vector<16x16x32xf32>
    %c1_215 = arith.constant 1 : index
    %c0_216 = arith.constant 0 : index
    %c0_217 = arith.constant 0 : index
    %164 = vector.load %arg13[%c1_215, %c0_216, %c0_217] : memref<18x18x32xf32, #tpu.memory_space<vmem>>, vector<16x16x32xf32>
    %c1_218 = arith.constant 1 : index
    %c1_219 = arith.constant 1 : index
    %c0_220 = arith.constant 0 : index
    %165 = vector.load %arg13[%c1_218, %c1_219, %c0_220] : memref<18x18x32xf32, #tpu.memory_space<vmem>>, vector<16x16x32xf32>
    %c1_221 = arith.constant 1 : index
    %c2_222 = arith.constant 2 : index
    %c0_223 = arith.constant 0 : index
    %166 = vector.load %arg13[%c1_221, %c2_222, %c0_223] : memref<18x18x32xf32, #tpu.memory_space<vmem>>, vector<16x16x32xf32>
    %c2_224 = arith.constant 2 : index
    %c0_225 = arith.constant 0 : index
    %c0_226 = arith.constant 0 : index
    %167 = vector.load %arg13[%c2_224, %c0_225, %c0_226] : memref<18x18x32xf32, #tpu.memory_space<vmem>>, vector<16x16x32xf32>
    %c2_227 = arith.constant 2 : index
    %c1_228 = arith.constant 1 : index
    %c0_229 = arith.constant 0 : index
    %168 = vector.load %arg13[%c2_227, %c1_228, %c0_229] : memref<18x18x32xf32, #tpu.memory_space<vmem>>, vector<16x16x32xf32>
    %c2_230 = arith.constant 2 : index
    %c2_231 = arith.constant 2 : index
    %c0_232 = arith.constant 0 : index
    %169 = vector.load %arg13[%c2_230, %c2_231, %c0_232] : memref<18x18x32xf32, #tpu.memory_space<vmem>>, vector<16x16x32xf32>
    %170 = tpu.concatenate %161, %162, %163, %164, %165, %166, %167, %168, %169 in 2 : vector<16x16x32xf32>, vector<16x16x32xf32>, vector<16x16x32xf32>, vector<16x16x32xf32>, vector<16x16x32xf32>, vector<16x16x32xf32>, vector<16x16x32xf32>, vector<16x16x32xf32>, vector<16x16x32xf32> -> vector<16x16x288xf32>
    %171 = vector.shape_cast %170 : vector<16x16x288xf32> to vector<256x288xf32>
    %cst_233 = arith.constant dense<0.000000e+00> : vector<256x32xf32>
    %172 = tpu.matmul %171, %157, %cst_233 {dimension_numbers = #tpu.dot_dimension_numbers<[1], [0], [0], [1], [0, 0, 1, 1], [], []>} : vector<256x288xf32>, vector<288x32xf32>, vector<256x32xf32> -> vector<256x32xf32>
    %173 = vector.broadcast %158 : vector<1x32xf32> to vector<256x32xf32>
    %174 = arith.addf %172, %173 : vector<256x32xf32>
    %175 = arith.addf %174, %8 : vector<256x32xf32>
    %176 = vector.shape_cast %175 : vector<256x32xf32> to vector<16x16x32xf32>
    %c0_234 = arith.constant 0 : index
    %c0_235 = arith.constant 0 : index
    %c0_236 = arith.constant 0 : index
    %c0_237 = arith.constant 0 : index
    %177 = vector.load %arg12[%c0_234, %c0_235, %c0_236, %c0_237] : memref<1x16x16x32xf32, #tpu.memory_space<vmem>>, vector<1x16x16x32xf32>
    %178 = vector.shape_cast %177 : vector<1x16x16x32xf32> to vector<16x16x32xf32>
    %179 = vector.shape_cast %176 : vector<16x16x32xf32> to vector<1x16x16x32xf32>
    tpu.vector_store %arg12[%c0_234, %c0_235, %c0_236, %c0_237], %179 {strides = array<i32>} : memref<1x16x16x32xf32, #tpu.memory_space<vmem>>, vector<1x16x16x32xf32>,
    return
  }
  func.func @transform_0(%arg0: i32) -> (i32, i32, i32, i32) {
    %c0_i32 = arith.constant 0 : i32
    %c0_i32_0 = arith.constant 0 : i32
    %c0_i32_1 = arith.constant 0 : i32
    %c0_i32_2 = arith.constant 0 : i32
    return %arg0, %c0_i32, %c0_i32_0, %c0_i32_1 : i32, i32, i32, i32
  }
  func.func @transform_1(%arg0: i32) -> (i32, i32, i32) {
    %c0_i32 = arith.constant 0 : i32
    %c0_i32_0 = arith.constant 0 : i32
    %c0_i32_1 = arith.constant 0 : i32
    %c0_i32_2 = arith.constant 0 : i32
    return %c0_i32, %c0_i32_0, %c0_i32_1 : i32, i32, i32
  }
  func.func @transform_2(%arg0: i32) -> (i32, i32, i32) {
    %c0_i32 = arith.constant 0 : i32
    %c0_i32_0 = arith.constant 0 : i32
    %c0_i32_1 = arith.constant 0 : i32
    %c0_i32_2 = arith.constant 0 : i32
    return %c0_i32, %c0_i32_0, %c0_i32_1 : i32, i32, i32
  }
  func.func @transform_3(%arg0: i32) -> (i32, i32, i32) {
    %c0_i32 = arith.constant 0 : i32
    %c0_i32_0 = arith.constant 0 : i32
    %c0_i32_1 = arith.constant 0 : i32
    %c0_i32_2 = arith.constant 0 : i32
    return %c0_i32, %c0_i32_0, %c0_i32_1 : i32, i32, i32
  }
  func.func @transform_4(%arg0: i32) -> (i32, i32, i32) {
    %c0_i32 = arith.constant 0 : i32
    %c0_i32_0 = arith.constant 0 : i32
    %c0_i32_1 = arith.constant 0 : i32
    %c0_i32_2 = arith.constant 0 : i32
    return %c0_i32, %c0_i32_0, %c0_i32_1 : i32, i32, i32
  }
  func.func @transform_5(%arg0: i32) -> (i32, i32, i32) {
    %c0_i32 = arith.constant 0 : i32
    %c0_i32_0 = arith.constant 0 : i32
    %c0_i32_1 = arith.constant 0 : i32
    %c0_i32_2 = arith.constant 0 : i32
    return %c0_i32, %c0_i32_0, %c0_i32_1 : i32, i32, i32
  }
  func.func @transform_6(%arg0: i32) -> (i32, i32, i32) {
    %c0_i32 = arith.constant 0 : i32
    %c0_i32_0 = arith.constant 0 : i32
    %c0_i32_1 = arith.constant 0 : i32
    %c0_i32_2 = arith.constant 0 : i32
    return %c0_i32, %c0_i32_0, %c0_i32_1 : i32, i32, i32
  }
  func.func @transform_7(%arg0: i32) -> (i32, i32, i32) {
    %c0_i32 = arith.constant 0 : i32
    %c0_i32_0 = arith.constant 0 : i32
    %c0_i32_1 = arith.constant 0 : i32
    %c0_i32_2 = arith.constant 0 : i32
    return %c0_i32, %c0_i32_0, %c0_i32_1 : i32, i32, i32
  }
  func.func @transform_8(%arg0: i32) -> (i32, i32, i32) {
    %c0_i32 = arith.constant 0 : i32
    %c0_i32_0 = arith.constant 0 : i32
    %c0_i32_1 = arith.constant 0 : i32
    %c0_i32_2 = arith.constant 0 : i32
    return %c0_i32, %c0_i32_0, %c0_i32_1 : i32, i32, i32
  }
  func.func @transform_9(%arg0: i32) -> (i32, i32) {
    %c0_i32 = arith.constant 0 : i32
    %c0_i32_0 = arith.constant 0 : i32
    %c0_i32_1 = arith.constant 0 : i32
    return %c0_i32, %c0_i32_0 : i32, i32
  }
  func.func @transform_10(%arg0: i32) -> (i32, i32) {
    %c0_i32 = arith.constant 0 : i32
    %c0_i32_0 = arith.constant 0 : i32
    %c0_i32_1 = arith.constant 0 : i32
    return %c0_i32, %c0_i32_0 : i32, i32
  }
  func.func @transform_11(%arg0: i32) -> (i32, i32, i32, i32) {
    %c0_i32 = arith.constant 0 : i32
    %c0_i32_0 = arith.constant 0 : i32
    %c0_i32_1 = arith.constant 0 : i32
    %c0_i32_2 = arith.constant 0 : i32
    return %arg0, %c0_i32, %c0_i32_0, %c0_i32_1 : i32, i32, i32, i32
  }
}

</mosaic_0001>

<llo_original>
// kernel: residual_block_forward.1
$region0: #{residual_block_forward.1}
  #allocation0 [shape = 'u32[]', space=smem, size = 0x4, offset = 0x4, fixed_abs, tag = 'smem constant byte address 0x4 - core index']
  #allocation1 [shape = 'u32[144,128]{1,0:T(1,128)}', space=vmem, size = 0x12000, scoped, tag = 'internal scratch']
  #allocation2 [shape = 'f32[18,18,32]{2,1,0:T(8,128)}', space=vmem, size = 0x36000, scoped, tag = 'scratch operand']
  %s0 = inlined_call_operand.vmem [shape: f32[2,16,16,32], index: 0, kind: input, shape index: {}]
  %s1 = inlined_call_operand.vmem [shape: f32[2,288,32], index: 1, kind: input, shape index: {}]
  %s2 = inlined_call_operand.vmem [shape: f32[2,1,32], index: 2, kind: input, shape index: {}]
  %s3 = inlined_call_operand.vmem [shape: f32[2,288,32], index: 3, kind: input, shape index: {}]
  %s4 = inlined_call_operand.vmem [shape: f32[2,1,32], index: 4, kind: input, shape index: {}]
  %s5 = inlined_call_operand.vmem [shape: f32[2,2,32], index: 5, kind: input, shape index: {}]
  %s6 = inlined_call_operand.vmem [shape: f32[2,2,1], index: 6, kind: input, shape index: {}]
  %s7 = inlined_call_operand.vmem [shape: f32[2,2,32], index: 7, kind: input, shape index: {}]
  %s8 = inlined_call_operand.vmem [shape: f32[2,1,32], index: 8, kind: input, shape index: {}]
  %s9 = inlined_call_operand.vmem [shape: f32[288,32], index: 9, kind: input, shape index: {}]
  %s10 = inlined_call_operand.vmem [shape: f32[1,32], index: 10, kind: input, shape index: {}]
  %s11 = inlined_call_operand.hbm [shape: f32[2,16,16,32], index: 11, kind: output, shape index: {}]
  %s12 = sld [smem:[#allocation0]]
  $region77: #{residual_block_forward.1} parent=0
    _
  %s14 = ssub.s32 1, %s12
  %s15 = scalar_select 0, %s14, %s12
  $region1: #{residual_block_forward.1} parent=0
    #allocation3 [shape = 'u8[262144]{0}', space=vmem, size = 0x40000, scoped, tag = 'output window, operand 0']
    #allocation4 [shape = 's32[2]{0}', space=sflag, size = 0x8, scoped, tag = 'scoped memory for residual_block_forward.1']
    %16 = vsyncpa [#allocation4], 0
    %s17 = scalar_lea.sflag [#allocation4], 1
    %18 = vsyncpa %s17, 0
    loop: start=0, step=1, limit=4
    $region2: #{residual_block_forward.1} parent=1 // loop_pre_header
      _
    $region3: #{residual_block_forward.1} parent=1 // loop_header
      %s20 = sphi 0, %s24
      %p21 = scmp.ge.s32.totalorder %s20, 4
      %s30 = sphi 0, %s32
      %s33 = sphi 0, %s30
      %s34 = sphi 0, %s33
      %s50 = sphi 0, %s34
      %s54 = sphi 0, %s54
      %s56 = sphi 0, %s54
      %s57 = sphi 0, %s56
      %s71 = sphi 0, %s57
      %s75 = sphi 0, %s75
      %s77 = sphi 0, %s75
      %s78 = sphi 0, %s77
      %s92 = sphi 0, %s78
      %s96 = sphi 0, %s96
      %s98 = sphi 0, %s96
      %s99 = sphi 0, %s98
      %s113 = sphi 0, %s99
      %s117 = sphi 0, %s117
      %s119 = sphi 0, %s117
      %s120 = sphi 0, %s119
      %s134 = sphi 0, %s120
      %s138 = sphi 0, %s138
      %s140 = sphi 0, %s138
      %s141 = sphi 0, %s140
      %s155 = sphi 0, %s141
      %s159 = sphi 0, %s159
      %s161 = sphi 0, %s159
      %s162 = sphi 0, %s161
      %s176 = sphi 0, %s162
      %s180 = sphi 0, %s180
      %s182 = sphi 0, %s180
      %s183 = sphi 0, %s182
      %s197 = sphi 0, %s183
      %s201 = sphi 0, %s201
      %s203 = sphi 0, %s201
      %s204 = sphi 0, %s203
      %s218 = sphi 0, %s204
      %s222 = sphi 0, %s222
      %s224 = sphi 0, %s222
      %s225 = sphi 0, %s224
      %s239 = sphi 0, %s225
      %s243 = sphi 0, %s243
      %s245 = sphi 0, %s243
      %s246 = sphi 0, %s245
      %s260 = sphi 0, %s246
      %s266 = sphi 0, %s268
      %s269 = sphi 0, %s266
      %s270 = sphi 0, %s269
      %s286 = sphi 0, %s270
    $region4: #{residual_block_forward.1} parent=1 // loop_header_branch
      %23 = sbr.rel (%p21) target = $region8
    $region5: #{residual_block_forward.1} parent=1 // loop_body
      %s25 = ssub.s32 %s20, 1
      %s26 = ssub.s32 %s20, 2
      %s27 = sadd.s32 %s20, 1
      %s28 = ssub.s32 %s20, %s27
      %p29 = scmp.eq.s32.totalorder %s28, 0
      %s31 = sadd.s32 %s30, 1
      %s32 = scalar_select %p29, %s30, %s31
      %p35 = pneg %p29
      %p36 = scmp.eq.s32.totalorder %s20, 1
      %p37 = por %p35, %p36
      %p38 = scmp.ne.s32.totalorder %s30, %s33
      %p39 = scmp.eq.s32.totalorder %s20, 0
      %p40 = por %p38, %p39
      %p41 = scmp.ne.s32.totalorder %s30, %s33
      %p42 = scmp.eq.s32.totalorder %s25, 1
      %p43 = por %p41, %p42
      %p44 = scmp.ne.s32.totalorder %s33, %s34
      %p45 = scmp.eq.s32.totalorder %s25, 0
      %p46 = por %p44, %p45
      %p47 = scmp.ne.s32.totalorder %s33, %s34
      %p48 = scmp.eq.s32.totalorder %s26, 1
      %p49 = por %p47, %p48
      %p51 = scmp.ne.s32.totalorder %s34, %s50
      %p52 = scmp.eq.s32.totalorder %s26, 0
      %p53 = por %p51, %p52
      %s55 = sadd.s32 %s54, 1
      %p58 = scmp.eq.s32.totalorder %s20, 1
      %p59 = scmp.ne.s32.totalorder %s54, %s56
      %p60 = scmp.eq.s32.totalorder %s20, 0
      %p61 = por %p59, %p60
      %p62 = scmp.ne.s32.totalorder %s54, %s56
      %p63 = scmp.eq.s32.totalorder %s25, 1
      %p64 = por %p62, %p63
      %p65 = scmp.ne.s32.totalorder %s56, %s57
      %p66 = scmp.eq.s32.totalorder %s25, 0
      %p67 = por %p65, %p66
      %p68 = scmp.ne.s32.totalorder %s56, %s57
      %p69 = scmp.eq.s32.totalorder %s26, 1
      %p70 = por %p68, %p69
      %p72 = scmp.ne.s32.totalorder %s57, %s71
      %p73 = scmp.eq.s32.totalorder %s26, 0
      %p74 = por %p72, %p73
      %s76 = sadd.s32 %s75, 1
      %p79 = scmp.eq.s32.totalorder %s20, 1
      %p80 = scmp.ne.s32.totalorder %s75, %s77
      %p81 = scmp.eq.s32.totalorder %s20, 0
      %p82 = por %p80, %p81
      %p83 = scmp.ne.s32.totalorder %s75, %s77
      %p84 = scmp.eq.s32.totalorder %s25, 1
      %p85 = por %p83, %p84
      %p86 = scmp.ne.s32.totalorder %s77, %s78
      %p87 = scmp.eq.s32.totalorder %s25, 0
      %p88 = por %p86, %p87
      %p89 = scmp.ne.s32.totalorder %s77, %s78
      %p90 = scmp.eq.s32.totalorder %s26, 1
      %p91 = por %p89, %p90
      %p93 = scmp.ne.s32.totalorder %s78, %s92
      %p94 = scmp.eq.s32.totalorder %s26, 0
      %p95 = por %p93, %p94
      %s97 = sadd.s32 %s96, 1
      %p100 = scmp.eq.s32.totalorder %s20, 1
      %p101 = scmp.ne.s32.totalorder %s96, %s98
      %p102 = scmp.eq.s32.totalorder %s20, 0
      %p103 = por %p101, %p102
      %p104 = scmp.ne.s32.totalorder %s96, %s98
      %p105 = scmp.eq.s32.totalorder %s25, 1
      %p106 = por %p104, %p105
      %p107 = scmp.ne.s32.totalorder %s98, %s99
      %p108 = scmp.eq.s32.totalorder %s25, 0
      %p109 = por %p107, %p108
      %p110 = scmp.ne.s32.totalorder %s98, %s99
      %p111 = scmp.eq.s32.totalorder %s26, 1
      %p112 = por %p110, %p111
      %p114 = scmp.ne.s32.totalorder %s99, %s113
      %p115 = scmp.eq.s32.totalorder %s26, 0
      %p116 = por %p114, %p115
      %s118 = sadd.s32 %s117, 1
      %p121 = scmp.eq.s32.totalorder %s20, 1
      %p122 = scmp.ne.s32.totalorder %s117, %s119
      %p123 = scmp.eq.s32.totalorder %s20, 0
      %p124 = por %p122, %p123
      %p125 = scmp.ne.s32.totalorder %s117, %s119
      %p126 = scmp.eq.s32.totalorder %s25, 1
      %p127 = por %p125, %p126
      %p128 = scmp.ne.s32.totalorder %s119, %s120
      %p129 = scmp.eq.s32.totalorder %s25, 0
      %p130 = por %p128, %p129
      %p131 = scmp.ne.s32.totalorder %s119, %s120
      %p132 = scmp.eq.s32.totalorder %s26, 1
      %p133 = por %p131, %p132
      %p135 = scmp.ne.s32.totalorder %s120, %s134
      %p136 = scmp.eq.s32.totalorder %s26, 0
      %p137 = por %p135, %p136
      %s139 = sadd.s32 %s138, 1
      %p142 = scmp.eq.s32.totalorder %s20, 1
      %p143 = scmp.ne.s32.totalorder %s138, %s140
      %p144 = scmp.eq.s32.totalorder %s20, 0
      %p145 = por %p143, %p144
      %p146 = scmp.ne.s32.totalorder %s138, %s140
      %p147 = scmp.eq.s32.totalorder %s25, 1
      %p148 = por %p146, %p147
      %p149 = scmp.ne.s32.totalorder %s140, %s141
      %p150 = scmp.eq.s32.totalorder %s25, 0
      %p151 = por %p149, %p150
      %p152 = scmp.ne.s32.totalorder %s140, %s141
      %p153 = scmp.eq.s32.totalorder %s26, 1
      %p154 = por %p152, %p153
      %p156 = scmp.ne.s32.totalorder %s141, %s155
      %p157 = scmp.eq.s32.totalorder %s26, 0
      %p158 = por %p156, %p157
      %s160 = sadd.s32 %s159, 1
      %p163 = scmp.eq.s32.totalorder %s20, 1
      %p164 = scmp.ne.s32.totalorder %s159, %s161
      %p165 = scmp.eq.s32.totalorder %s20, 0
      %p166 = por %p164, %p165
      %p167 = scmp.ne.s32.totalorder %s159, %s161
      %p168 = scmp.eq.s32.totalorder %s25, 1
      %p169 = por %p167, %p168
      %p170 = scmp.ne.s32.totalorder %s161, %s162
      %p171 = scmp.eq.s32.totalorder %s25, 0
      %p172 = por %p170, %p171
      %p173 = scmp.ne.s32.totalorder %s161, %s162
      %p174 = scmp.eq.s32.totalorder %s26, 1
      %p175 = por %p173, %p174
      %p177 = scmp.ne.s32.totalorder %s162, %s176
      %p178 = scmp.eq.s32.totalorder %s26, 0
      %p179 = por %p177, %p178
      %s181 = sadd.s32 %s180, 1
      %p184 = scmp.eq.s32.totalorder %s20, 1
      %p185 = scmp.ne.s32.totalorder %s180, %s182
      %p186 = scmp.eq.s32.totalorder %s20, 0
      %p187 = por %p185, %p186
      %p188 = scmp.ne.s32.totalorder %s180, %s182
      %p189 = scmp.eq.s32.totalorder %s25, 1
      %p190 = por %p188, %p189
      %p191 = scmp.ne.s32.totalorder %s182, %s183
      %p192 = scmp.eq.s32.totalorder %s25, 0
      %p193 = por %p191, %p192
      %p194 = scmp.ne.s32.totalorder %s182, %s183
      %p195 = scmp.eq.s32.totalorder %s26, 1
      %p196 = por %p194, %p195
      %p198 = scmp.ne.s32.totalorder %s183, %s197
      %p199 = scmp.eq.s32.totalorder %s26, 0
      %p200 = por %p198, %p199
      %s202 = sadd.s32 %s201, 1
      %p205 = scmp.eq.s32.totalorder %s20, 1
      %p206 = scmp.ne.s32.totalorder %s201, %s203
      %p207 = scmp.eq.s32.totalorder %s20, 0
      %p208 = por %p206, %p207
      %p209 = scmp.ne.s32.totalorder %s201, %s203
      %p210 = scmp.eq.s32.totalorder %s25, 1
      %p211 = por %p209, %p210
      %p212 = scmp.ne.s32.totalorder %s203, %s204
      %p213 = scmp.eq.s32.totalorder %s25, 0
      %p214 = por %p212, %p213
      %p215 = scmp.ne.s32.totalorder %s203, %s204
      %p216 = scmp.eq.s32.totalorder %s26, 1
      %p217 = por %p215, %p216
      %p219 = scmp.ne.s32.totalorder %s204, %s218
      %p220 = scmp.eq.s32.totalorder %s26, 0
      %p221 = por %p219, %p220
      %s223 = sadd.s32 %s222, 1
      %p226 = scmp.eq.s32.totalorder %s20, 1
      %p227 = scmp.ne.s32.totalorder %s222, %s224
      %p228 = scmp.eq.s32.totalorder %s20, 0
      %p229 = por %p227, %p228
      %p230 = scmp.ne.s32.totalorder %s222, %s224
      %p231 = scmp.eq.s32.totalorder %s25, 1
      %p232 = por %p230, %p231
      %p233 = scmp.ne.s32.totalorder %s224, %s225
      %p234 = scmp.eq.s32.totalorder %s25, 0
      %p235 = por %p233, %p234
      %p236 = scmp.ne.s32.totalorder %s224, %s225
      %p237 = scmp.eq.s32.totalorder %s26, 1
      %p238 = por %p236, %p237
      %p240 = scmp.ne.s32.totalorder %s225, %s239
      %p241 = scmp.eq.s32.totalorder %s26, 0
      %p242 = por %p240, %p241
      %s244 = sadd.s32 %s243, 1
      %p247 = scmp.eq.s32.totalorder %s20, 1
      %p248 = scmp.ne.s32.totalorder %s243, %s245
      %p249 = scmp.eq.s32.totalorder %s20, 0
      %p250 = por %p248, %p249
      %p251 = scmp.ne.s32.totalorder %s243, %s245
      %p252 = scmp.eq.s32.totalorder %s25, 1
      %p253 = por %p251, %p252
      %p254 = scmp.ne.s32.totalorder %s245, %s246
      %p255 = scmp.eq.s32.totalorder %s25, 0
      %p256 = por %p254, %p255
      %p257 = scmp.ne.s32.totalorder %s245, %s246
      %p258 = scmp.eq.s32.totalorder %s26, 1
      %p259 = por %p257, %p258
      %p261 = scmp.ne.s32.totalorder %s246, %s260
      %p262 = scmp.eq.s32.totalorder %s26, 0
      %p263 = por %p261, %p262
      %s264 = ssub.s32 %s20, %s27
      %p265 = scmp.eq.s32.totalorder %s264, 0
      %s267 = sadd.s32 %s266, 1
      %s268 = scalar_select %p265, %s266, %s267
      %p271 = pneg %p265
      %p272 = scmp.eq.s32.totalorder %s20, 1
      %p273 = por %p271, %p272
      %p274 = scmp.ne.s32.totalorder %s266, %s269
      %p275 = scmp.eq.s32.totalorder %s20, 0
      %p276 = por %p274, %p275
      %p277 = scmp.ne.s32.totalorder %s266, %s269
      %p278 = scmp.eq.s32.totalorder %s25, 1
      %p279 = por %p277, %p278
      %p280 = scmp.ne.s32.totalorder %s269, %s270
      %p281 = scmp.eq.s32.totalorder %s25, 0
      %p282 = por %p280, %p281
      %p283 = scmp.ne.s32.totalorder %s269, %s270
      %p284 = scmp.eq.s32.totalorder %s26, 1
      %p285 = por %p283, %p284
      %p287 = scmp.ne.s32.totalorder %s270, %s286
      %p288 = scmp.eq.s32.totalorder %s26, 0
      %p289 = por %p287, %p288
      %p290 = scmp.le.s32.totalorder 1, %s20
      %p291 = scmp.lt.s32.totalorder %s20, 3
      %p292 = pnand %p290, %p291
      %p293 = pneg %p292
      // Predicated region
      $region9: #{residual_block_forward.1} parent=5 // pred_check
        _
      $region10: #{residual_block_forward.1} parent=5 // pred_check_branch
        %295 = sbr.rel (%p292) target = $region12
      $region11: #{residual_block_forward.1} parent=5 // pred_region
        %s296 = ssub.s32 %s20, 1
        // Predicated region
        $region13: #{residual_block_forward.1} parent=11 // pred_check
          %p297 = pneg %p67
        $region14: #{residual_block_forward.1} parent=11 // pred_check_branch
          %299 = sbr.rel (%p297) target = $region16
        $region15: #{residual_block_forward.1} parent=11 // pred_region
          _
        $region16: #{residual_block_forward.1} parent=11 // pred_fallthru
          _
        // Predicated region
        $region17: #{residual_block_forward.1} parent=11 // pred_check
          %p300 = pneg %p88
        $region18: #{residual_block_forward.1} parent=11 // pred_check_branch
          %302 = sbr.rel (%p300) target = $region20
        $region19: #{residual_block_forward.1} parent=11 // pred_region
          _
        $region20: #{residual_block_forward.1} parent=11 // pred_fallthru
          _
        // Predicated region
        $region21: #{residual_block_forward.1} parent=11 // pred_check
          %p303 = pneg %p109
        $region22: #{residual_block_forward.1} parent=11 // pred_check_branch
          %305 = sbr.rel (%p303) target = $region24
        $region23: #{residual_block_forward.1} parent=11 // pred_region
          _
        $region24: #{residual_block_forward.1} parent=11 // pred_fallthru
          _
        // Predicated region
        $region25: #{residual_block_forward.1} parent=11 // pred_check
          %p306 = pneg %p130
        $region26: #{residual_block_forward.1} parent=11 // pred_check_branch
          %308 = sbr.rel (%p306) target = $region28
        $region27: #{residual_block_forward.1} parent=11 // pred_region
          _
        $region28: #{residual_block_forward.1} parent=11 // pred_fallthru
          _
        // Predicated region
        $region29: #{residual_block_forward.1} parent=11 // pred_check
          %p309 = pneg %p151
        $region30: #{residual_block_forward.1} parent=11 // pred_check_branch
          %311 = sbr.rel (%p309) target = $region32
        $region31: #{residual_block_forward.1} parent=11 // pred_region
          _
        $region32: #{residual_block_forward.1} parent=11 // pred_fallthru
          _
        // Predicated region
        $region33: #{residual_block_forward.1} parent=11 // pred_check
          %p312 = pneg %p172
        $region34: #{residual_block_forward.1} parent=11 // pred_check_branch
          %314 = sbr.rel (%p312) target = $region36
        $region35: #{residual_block_forward.1} parent=11 // pred_region
          _
        $region36: #{residual_block_forward.1} parent=11 // pred_fallthru
          _
        // Predicated region
        $region37: #{residual_block_forward.1} parent=11 // pred_check
          %p315 = pneg %p193
        $region38: #{residual_block_forward.1} parent=11 // pred_check_branch
          %317 = sbr.rel (%p315) target = $region40
        $region39: #{residual_block_forward.1} parent=11 // pred_region
          _
        $region40: #{residual_block_forward.1} parent=11 // pred_fallthru
          _
        // Predicated region
        $region41: #{residual_block_forward.1} parent=11 // pred_check
          %p318 = pneg %p214
        $region42: #{residual_block_forward.1} parent=11 // pred_check_branch
          %320 = sbr.rel (%p318) target = $region44
        $region43: #{residual_block_forward.1} parent=11 // pred_region
          _
        $region44: #{residual_block_forward.1} parent=11 // pred_fallthru
          _
        // Predicated region
        $region45: #{residual_block_forward.1} parent=11 // pred_check
          %p321 = pneg %p235
        $region46: #{residual_block_forward.1} parent=11 // pred_check_branch
          %323 = sbr.rel (%p321) target = $region48
        $region47: #{residual_block_forward.1} parent=11 // pred_region
          _
        $region48: #{residual_block_forward.1} parent=11 // pred_fallthru
          _
        // Predicated region
        $region49: #{residual_block_forward.1} parent=11 // pred_check
          %p324 = pneg %p256
        $region50: #{residual_block_forward.1} parent=11 // pred_check_branch
          %326 = sbr.rel (%p324) target = $region52
        $region51: #{residual_block_forward.1} parent=11 // pred_region
          _
        $region52: #{residual_block_forward.1} parent=11 // pred_fallthru
          _
      $region12: #{residual_block_forward.1} parent=5 // pred_fallthru
        _
      %p327 = scmp.lt.s32.totalorder %s20, 2
      // Predicated region
      $region53: #{residual_block_forward.1} parent=5 // pred_check
        %p328 = pneg %p327
      $region54: #{residual_block_forward.1} parent=5 // pred_check_branch
        %330 = sbr.rel (%p328) target = $region56
      $region55: #{residual_block_forward.1} parent=5 // pred_region
        // Predicated region
        $region57: #{residual_block_forward.1} parent=55 // pred_check
          %p331 = pneg %p40
        $region58: #{residual_block_forward.1} parent=55 // pred_check_branch
          %333 = sbr.rel (%p331) target = $region60
        $region59: #{residual_block_forward.1} parent=55 // pred_region
          %p334 = scmp.lt.s32.totalorder %s20, 1
          %s335 = scalar_select %p334, %s20, 1
          %s336 = smul.addr %s335, 32
          %s337 = smul.addr %s336, 8
          %s338 = scalar_lea.vmem %s0, %s337
        $region60: #{residual_block_forward.1} parent=55 // pred_fallthru
          _
      $region56: #{residual_block_forward.1} parent=5 // pred_fallthru
        _
      %p339 = scmp.le.s32.totalorder 1, %s20
      %p340 = scmp.lt.s32.totalorder %s20, 3
      %p341 = pnand %p339, %p340
      %p342 = pneg %p341
      // Predicated region
      $region61: #{residual_block_forward.1} parent=5 // pred_check
        _
      $region62: #{residual_block_forward.1} parent=5 // pred_check_branch
        %344 = sbr.rel (%p341) target = $region64
      $region63: #{residual_block_forward.1} parent=5 // pred_region
        %s345 = ssub.s32 %s20, 1
        %p346 = scmp.lt.s32.totalorder %s25, 1
        %s347 = scalar_select %p346, %s25, 1
        %s348 = smul.addr %s347, 32
        %s349 = smul.addr %s348, 8
        %s350 = scalar_lea.vmem %s0, %s349
        %p351 = pneg %p46
        %p352 = pneg %p43
        %p353 = pneg %p67
        %p354 = pneg %p64
        %p355 = pneg %p88
        %p356 = pneg %p85
        %p357 = pneg %p109
        %p358 = pneg %p106
        %p359 = pneg %p130
        %p360 = pneg %p127
        %p361 = pneg %p151
        %p362 = pneg %p148
        %p363 = pneg %p172
        %p364 = pneg %p169
        %p365 = pneg %p193
        %p366 = pneg %p190
        %p367 = pneg %p214
        %p368 = pneg %p211
        %p369 = pneg %p235
        %p370 = pneg %p232
        %p371 = pneg %p256
        %p372 = pneg %p253
        %p373 = pneg %p282
        %p374 = pneg %p279
        %s375 = sand.u32 %s269, 1
        %s376 = scalar_lea.sflag [#allocation4], %s375
        %s377 = sand.u32 %s269, 1
        %s378 = smul.addr %s377, 256
        %s379 = scalar_lea.vmem [#allocation3], %s378
        %p380 = scmp.lt.s32.totalorder %s25, 1
        %s381 = scalar_select %p380, %s25, 1
        %s382 = smul.addr %s381, 32
        %s383 = smul.addr %s382, 8
        %s384 = scalar_lea.vmem %s0, %s383
        %vm385 = vcmask 261120
        %386 = vst.msk [vmem:[#allocation2] sm:$0xff] %vm385, 0.0
        %387 = vst.msk [vmem:[#allocation2 + $0x8] sm:$0xff] %vm385, 0.0
        %vm388 = vcmask 254976
        %389 = vst.msk [vmem:[#allocation2 + $0x10] sm:$0x3] %vm388, 0.0
        %s390 = scalar_lea.vmem [#allocation2], 408
        %391 = vst.msk [vmem:[%s390] sm:$0xff] %vm385, 0.0
        %392 = vst.msk [vmem:[%s390 + $0x8] sm:$0xff] %vm385, 0.0
        %393 = vst.msk [vmem:[%s390 + $0x10] sm:$0x3] %vm388, 0.0
        %s394 = scalar_lea.vmem [#allocation2], 24
        %vm395 = vcmask 253952
        %396 = vst.msk [vmem:[%s394] sm:$0x1] %vm395, 0.0
        %397 = vst.msk [vmem:[%s394 + $0x18] sm:$0x1] %vm395, 0.0
        %398 = vst.msk [vmem:[%s394 + $0x30] sm:$0x1] %vm395, 0.0
        %399 = vst.msk [vmem:[%s394 + $0x48] sm:$0x1] %vm395, 0.0
        %400 = vst.msk [vmem:[%s394 + $0x60] sm:$0x1] %vm395, 0.0
        %401 = vst.msk [vmem:[%s394 + $0x78] sm:$0x1] %vm395, 0.0
        %402 = vst.msk [vmem:[%s394 + $0x90] sm:$0x1] %vm395, 0.0
        %403 = vst.msk [vmem:[%s394 + $0xa8] sm:$0x1] %vm395, 0.0
        %404 = vst.msk [vmem:[%s394 + $0xc0] sm:$0x1] %vm395, 0.0
        %405 = vst.msk [vmem:[%s394 + $0xd8] sm:$0x1] %vm395, 0.0
        %406 = vst.msk [vmem:[%s394 + $0xf0] sm:$0x1] %vm395, 0.0
        %407 = vst.msk [vmem:[%s394 + $0x108] sm:$0x1] %vm395, 0.0
        %408 = vst.msk [vmem:[%s394 + $0x120] sm:$0x1] %vm395, 0.0
        %409 = vst.msk [vmem:[%s394 + $0x138] sm:$0x1] %vm395, 0.0
        %410 = vst.msk [vmem:[%s394 + $0x150] sm:$0x1] %vm395, 0.0
        %411 = vst.msk [vmem:[%s394 + $0x168] sm:$0x1] %vm395, 0.0
        %412 = vst.msk [vmem:[%s394 + $0x11] sm:$0x1] %vm395, 0.0
        %413 = vst.msk [vmem:[%s394 + $0x29] sm:$0x1] %vm395, 0.0
        %414 = vst.msk [vmem:[%s394 + $0x41] sm:$0x1] %vm395, 0.0
        %415 = vst.msk [vmem:[%s394 + $0x59] sm:$0x1] %vm395, 0.0
        %416 = vst.msk [vmem:[%s394 + $0x71] sm:$0x1] %vm395, 0.0
        %417 = vst.msk [vmem:[%s394 + $0x89] sm:$0x1] %vm395, 0.0
        %418 = vst.msk [vmem:[%s394 + $0xa1] sm:$0x1] %vm395, 0.0
        %419 = vst.msk [vmem:[%s394 + $0xb9] sm:$0x1] %vm395, 0.0
        %420 = vst.msk [vmem:[%s394 + $0xd1] sm:$0x1] %vm395, 0.0
        %421 = vst.msk [vmem:[%s394 + $0xe9] sm:$0x1] %vm395, 0.0
        %422 = vst.msk [vmem:[%s394 + $0x101] sm:$0x1] %vm395, 0.0
        %423 = vst.msk [vmem:[%s394 + $0x119] sm:$0x1] %vm395, 0.0
        %424 = vst.msk [vmem:[%s394 + $0x131] sm:$0x1] %vm395, 0.0
        %425 = vst.msk [vmem:[%s394 + $0x149] sm:$0x1] %vm395, 0.0
        %426 = vst.msk [vmem:[%s394 + $0x161] sm:$0x1] %vm395, 0.0
        %427 = vst.msk [vmem:[%s394 + $0x179] sm:$0x1] %vm395, 0.0
        %v428 = vld [vmem:[%s384] sm:$0xff]
        %v429 = vld [vmem:[%s384 + $0x8] sm:$0xff]
        %v430 = vld [vmem:[%s384 + $0x10] sm:$0xff]
        %v431 = vld [vmem:[%s384 + $0x18] sm:$0xff]
        %v432 = vld [vmem:[%s384 + $0x20] sm:$0xff]
        %v433 = vld [vmem:[%s384 + $0x28] sm:$0xff]
        %v434 = vld [vmem:[%s384 + $0x30] sm:$0xff]
        %v435 = vld [vmem:[%s384 + $0x38] sm:$0xff]
        %v436 = vld [vmem:[%s384 + $0x40] sm:$0xff]
        %v437 = vld [vmem:[%s384 + $0x48] sm:$0xff]
        %v438 = vld [vmem:[%s384 + $0x50] sm:$0xff]
        %v439 = vld [vmem:[%s384 + $0x58] sm:$0xff]
        %v440 = vld [vmem:[%s384 + $0x60] sm:$0xff]
        %v441 = vld [vmem:[%s384 + $0x68] sm:$0xff]
        %v442 = vld [vmem:[%s384 + $0x70] sm:$0xff]
        %v443 = vld [vmem:[%s384 + $0x78] sm:$0xff]
        %v444 = vld [vmem:[%s384 + $0x80] sm:$0xff]
        %v445 = vld [vmem:[%s384 + $0x88] sm:$0xff]
        %v446 = vld [vmem:[%s384 + $0x90] sm:$0xff]
        %v447 = vld [vmem:[%s384 + $0x98] sm:$0xff]
        %v448 = vld [vmem:[%s384 + $0xa0] sm:$0xff]
        %v449 = vld [vmem:[%s384 + $0xa8] sm:$0xff]
        %v450 = vld [vmem:[%s384 + $0xb0] sm:$0xff]
        %v451 = vld [vmem:[%s384 + $0xb8] sm:$0xff]
        %v452 = vld [vmem:[%s384 + $0xc0] sm:$0xff]
        %v453 = vld [vmem:[%s384 + $0xc8] sm:$0xff]
        %v454 = vld [vmem:[%s384 + $0xd0] sm:$0xff]
        %v455 = vld [vmem:[%s384 + $0xd8] sm:$0xff]
        %v456 = vld [vmem:[%s384 + $0xe0] sm:$0xff]
        %v457 = vld [vmem:[%s384 + $0xe8] sm:$0xff]
        %v458 = vld [vmem:[%s384 + $0xf0] sm:$0xff]
        %v459 = vld [vmem:[%s384 + $0xf8] sm:$0xff]
        %v460 = vsel %vm385, %v428, 0.0
        %v461 = vsel %vm385, %v429, 0.0
        %v462 = vadd.f32 %v460, %v461
        %v463 = vsel %vm385, %v430, 0.0
        %v464 = vadd.f32 %v462, %v463
        %v465 = vsel %vm385, %v431, 0.0
        %v466 = vadd.f32 %v464, %v465
        %v467 = vsel %vm385, %v432, 0.0
        %v468 = vadd.f32 %v466, %v467
        %v469 = vsel %vm385, %v433, 0.0
        %v470 = vadd.f32 %v468, %v469
        %v471 = vsel %vm385, %v434, 0.0
        %v472 = vadd.f32 %v470, %v471
        %v473 = vsel %vm385, %v435, 0.0
        %v474 = vadd.f32 %v472, %v473
        %v475 = vsel %vm385, %v436, 0.0
        %v476 = vadd.f32 %v474, %v475
        %v477 = vsel %vm385, %v437, 0.0
        %v478 = vadd.f32 %v476, %v477
        %v479 = vsel %vm385, %v438, 0.0
        %v480 = vadd.f32 %v478, %v479
        %v481 = vsel %vm385, %v439, 0.0
        %v482 = vadd.f32 %v480, %v481
        %v483 = vsel %vm385, %v440, 0.0
        %v484 = vadd.f32 %v482, %v483
        %v485 = vsel %vm385, %v441, 0.0
        %v486 = vadd.f32 %v484, %v485
        %v487 = vsel %vm385, %v442, 0.0
        %v488 = vadd.f32 %v486, %v487
        %v489 = vsel %vm385, %v443, 0.0
        %v490 = vadd.f32 %v488, %v489
        %v491 = vsel %vm385, %v444, 0.0
        %v492 = vadd.f32 %v490, %v491
        %v493 = vsel %vm385, %v445, 0.0
        %v494 = vadd.f32 %v492, %v493
        %v495 = vsel %vm385, %v446, 0.0
        %v496 = vadd.f32 %v494, %v495
        %v497 = vsel %vm385, %v447, 0.0
        %v498 = vadd.f32 %v496, %v497
        %v499 = vsel %vm385, %v448, 0.0
        %v500 = vadd.f32 %v498, %v499
        %v501 = vsel %vm385, %v449, 0.0
        %v502 = vadd.f32 %v500, %v501
        %v503 = vsel %vm385, %v450, 0.0
        %v504 = vadd.f32 %v502, %v503
        %v505 = vsel %vm385, %v451, 0.0
        %v506 = vadd.f32 %v504, %v505
        %v507 = vsel %vm385, %v452, 0.0
        %v508 = vadd.f32 %v506, %v507
        %v509 = vsel %vm385, %v453, 0.0
        %v510 = vadd.f32 %v508, %v509
        %v511 = vsel %vm385, %v454, 0.0
        %v512 = vadd.f32 %v510, %v511
        %v513 = vsel %vm385, %v455, 0.0
        %v514 = vadd.f32 %v512, %v513
        %v515 = vsel %vm385, %v456, 0.0
        %v516 = vadd.f32 %v514, %v515
        %v517 = vsel %vm385, %v457, 0.0
        %v518 = vadd.f32 %v516, %v517
        %v519 = vsel %vm385, %v458, 0.0
        %v520 = vadd.f32 %v518, %v519
        %v521 = vsel %vm385, %v459, 0.0
        %v522 = vadd.f32 %v520, %v521
        %v523 = vrot.slane %v522, 4
        %v524 = vadd.f32 %v522, %v523
        %v525 = vrot.slane %v524, 2
        %v526 = vadd.f32 %v524, %v525
        %v527 = vrot.slane %v526, 1
        %v528 = vadd.f32 %v526, %v527
        %v529 = vrcp.pop 256.0
        %v530 = vmul.f32 %v528, %v529
        %v531 = vld [vmem:[%s5] sm:$0x3]
        %v532 = vmul.f32 %v531, %v530
        %v533 = vsel %vm388, %v532, 0.0
        %534 = vadd.xlane.f32.xlu0 %v533
        %v535 = vpop.xlane.xlu0 %534
        %v536 = vld [vmem:[%s6] sm:$0x3]
        %v537 = vadd.f32 %v535, %v536
        %v538 = vmax.f32 %v537, 0.0
        %v539 = vld [vmem:[%s7] sm:$0x3]
        %541 = vset.pattern.permute.xlu0 0
        %542 = vperm.xlu0 %541, %v538
        %v543 = vpop.permute.xlu0 %542
        %v545 = vmul.f32 %v543, %v539
        %v546 = vsel %vm388, %v545, 0.0
        %v547 = vrot.slane %v546, 4
        %v548 = vadd.f32 %v546, %v547
        %v549 = vrot.slane %v548, 2
        %v550 = vadd.f32 %v548, %v549
        %v551 = vrot.slane %v550, 1
        %v552 = vadd.f32 %v550, %v551
        %v553 = vld [vmem:[%s8] sm:$0x1]
        %v554 = vadd.f32 %v552, %v553
        %v555 = vxor.u32 %v554, 2147483648
        %v556 = vmul.f32 %v555, 1.442695
        %v557 = vpow.pop %v556
        %v558 = vadd.f32 %v557, 1.0
        %v559 = vrcp.pop %v558
        %v560 = vmul.f32 1.0, %v559
        %v561 = vld [vmem:[%s1] sm:$0xff]
        %v562 = vld [vmem:[%s1 + $0x8] sm:$0xff]
        %v563 = vld [vmem:[%s1 + $0x10] sm:$0xff]
        %v564 = vld [vmem:[%s1 + $0x18] sm:$0xff]
        %v565 = vld [vmem:[%s1 + $0x20] sm:$0xff]
        %v566 = vld [vmem:[%s1 + $0x28] sm:$0xff]
        %v567 = vld [vmem:[%s1 + $0x30] sm:$0xff]
        %v568 = vld [vmem:[%s1 + $0x38] sm:$0xff]
        %v569 = vld [vmem:[%s1 + $0x40] sm:$0xff]
        %v570 = vld [vmem:[%s1 + $0x48] sm:$0xff]
        %v571 = vld [vmem:[%s1 + $0x50] sm:$0xff]
        %v572 = vld [vmem:[%s1 + $0x58] sm:$0xff]
        %v573 = vld [vmem:[%s1 + $0x60] sm:$0xff]
        %v574 = vld [vmem:[%s1 + $0x68] sm:$0xff]
        %v575 = vld [vmem:[%s1 + $0x70] sm:$0xff]
        %v576 = vld [vmem:[%s1 + $0x78] sm:$0xff]
        %v577 = vld [vmem:[%s1 + $0x80] sm:$0xff]
        %v578 = vld [vmem:[%s1 + $0x88] sm:$0xff]
        %v579 = vld [vmem:[%s1 + $0x90] sm:$0xff]
        %v580 = vld [vmem:[%s1 + $0x98] sm:$0xff]
        %v581 = vld [vmem:[%s1 + $0xa0] sm:$0xff]
        %v582 = vld [vmem:[%s1 + $0xa8] sm:$0xff]
        %v583 = vld [vmem:[%s1 + $0xb0] sm:$0xff]
        %v584 = vld [vmem:[%s1 + $0xb8] sm:$0xff]
        %v585 = vld [vmem:[%s1 + $0xc0] sm:$0xff]
        %v586 = vld [vmem:[%s1 + $0xc8] sm:$0xff]
        %v587 = vld [vmem:[%s1 + $0xd0] sm:$0xff]
        %v588 = vld [vmem:[%s1 + $0xd8] sm:$0xff]
        %v589 = vld [vmem:[%s1 + $0xe0] sm:$0xff]
        %v590 = vld [vmem:[%s1 + $0xe8] sm:$0xff]
        %v591 = vld [vmem:[%s1 + $0xf0] sm:$0xff]
        %v592 = vld [vmem:[%s1 + $0xf8] sm:$0xff]
        %v593 = vld [vmem:[%s1 + $0x100] sm:$0xff]
        %v594 = vld [vmem:[%s1 + $0x108] sm:$0xff]
        %v595 = vld [vmem:[%s1 + $0x110] sm:$0xff]
        %v596 = vld [vmem:[%s1 + $0x118] sm:$0xff]
        %v597 = vld [vmem:[%s2] sm:$0x1]
        %598 = vst.msk [vmem:[%s394 + $0x1] sm:$0xff] %vm385, %v428
        %599 = vst.msk [vmem:[%s394 + $0x9] sm:$0xff] %vm385, %v429
        %600 = vst.msk [vmem:[%s394 + $0x19] sm:$0xff] %vm385, %v430
        %601 = vst.msk [vmem:[%s394 + $0x21] sm:$0xff] %vm385, %v431
        %602 = vst.msk [vmem:[%s394 + $0x31] sm:$0xff] %vm385, %v432
        %603 = vst.msk [vmem:[%s394 + $0x39] sm:$0xff] %vm385, %v433
        %604 = vst.msk [vmem:[%s394 + $0x49] sm:$0xff] %vm385, %v434
        %605 = vst.msk [vmem:[%s394 + $0x51] sm:$0xff] %vm385, %v435
        %606 = vst.msk [vmem:[%s394 + $0x61] sm:$0xff] %vm385, %v436
        %607 = vst.msk [vmem:[%s394 + $0x69] sm:$0xff] %vm385, %v437
        %608 = vst.msk [vmem:[%s394 + $0x79] sm:$0xff] %vm385, %v438
        %609 = vst.msk [vmem:[%s394 + $0x81] sm:$0xff] %vm385, %v439
        %610 = vst.msk [vmem:[%s394 + $0x91] sm:$0xff] %vm385, %v440
        %611 = vst.msk [vmem:[%s394 + $0x99] sm:$0xff] %vm385, %v441
        %612 = vst.msk [vmem:[%s394 + $0xa9] sm:$0xff] %vm385, %v442
        %613 = vst.msk [vmem:[%s394 + $0xb1] sm:$0xff] %vm385, %v443
        %614 = vst.msk [vmem:[%s394 + $0xc1] sm:$0xff] %vm385, %v444
        %615 = vst.msk [vmem:[%s394 + $0xc9] sm:$0xff] %vm385, %v445
        %616 = vst.msk [vmem:[%s394 + $0xd9] sm:$0xff] %vm385, %v446
        %617 = vst.msk [vmem:[%s394 + $0xe1] sm:$0xff] %vm385, %v447
        %618 = vst.msk [vmem:[%s394 + $0xf1] sm:$0xff] %vm385, %v448
        %619 = vst.msk [vmem:[%s394 + $0xf9] sm:$0xff] %vm385, %v449
        %620 = vst.msk [vmem:[%s394 + $0x109] sm:$0xff] %vm385, %v450
        %621 = vst.msk [vmem:[%s394 + $0x111] sm:$0xff] %vm385, %v451
        %622 = vst.msk [vmem:[%s394 + $0x121] sm:$0xff] %vm385, %v452
        %623 = vst.msk [vmem:[%s394 + $0x129] sm:$0xff] %vm385, %v453
        %624 = vst.msk [vmem:[%s394 + $0x139] sm:$0xff] %vm385, %v454
        %625 = vst.msk [vmem:[%s394 + $0x141] sm:$0xff] %vm385, %v455
        %626 = vst.msk [vmem:[%s394 + $0x151] sm:$0xff] %vm385, %v456
        %627 = vst.msk [vmem:[%s394 + $0x159] sm:$0xff] %vm385, %v457
        %628 = vst.msk [vmem:[%s394 + $0x169] sm:$0xff] %vm385, %v458
        %629 = vst.msk [vmem:[%s394 + $0x171] sm:$0xff] %vm385, %v459
        %v630 = vld [vmem:[#allocation2] sm:$0xff]
        %v631 = vld [vmem:[#allocation2 + $0x8] sm:$0xff]
        %v632 = vld [vmem:[#allocation2 + $0x18] sm:$0xff]
        %v633 = vld [vmem:[#allocation2 + $0x20] sm:$0xff]
        %v634 = vld [vmem:[#allocation2 + $0x30] sm:$0xff]
        %v635 = vld [vmem:[#allocation2 + $0x38] sm:$0xff]
        %v636 = vld [vmem:[#allocation2 + $0x48] sm:$0xff]
        %v637 = vld [vmem:[#allocation2 + $0x50] sm:$0xff]
        %v638 = vld [vmem:[#allocation2 + $0x60] sm:$0xff]
        %v639 = vld [vmem:[#allocation2 + $0x68] sm:$0xff]
        %v640 = vld [vmem:[#allocation2 + $0x78] sm:$0xff]
        %v641 = vld [vmem:[#allocation2 + $0x80] sm:$0xff]
        %v642 = vld [vmem:[#allocation2 + $0x90] sm:$0xff]
        %v643 = vld [vmem:[#allocation2 + $0x98] sm:$0xff]
        %v644 = vld [vmem:[#allocation2 + $0xa8] sm:$0xff]
        %v645 = vld [vmem:[#allocation2 + $0xb0] sm:$0xff]
        %v646 = vld [vmem:[#allocation2 + $0xc0] sm:$0xff]
        %v647 = vld [vmem:[#allocation2 + $0xc8] sm:$0xff]
        %v648 = vld [vmem:[#allocation2 + $0xd8] sm:$0xff]
        %v649 = vld [vmem:[#allocation2 + $0xe0] sm:$0xff]
        %v650 = vld [vmem:[#allocation2 + $0xf0] sm:$0xff]
        %v651 = vld [vmem:[#allocation2 + $0xf8] sm:$0xff]
        %v652 = vld [vmem:[#allocation2 + $0x108] sm:$0xff]
        %v653 = vld [vmem:[#allocation2 + $0x110] sm:$0xff]
        %v654 = vld [vmem:[#allocation2 + $0x120] sm:$0xff]
        %v655 = vld [vmem:[#allocation2 + $0x128] sm:$0xff]
        %v656 = vld [vmem:[#allocation2 + $0x138] sm:$0xff]
        %v657 = vld [vmem:[#allocation2 + $0x140] sm:$0xff]
        %v658 = vld [vmem:[#allocation2 + $0x150] sm:$0xff]
        %v659 = vld [vmem:[#allocation2 + $0x158] sm:$0xff]
        %v660 = vld [vmem:[#allocation2 + $0x168] sm:$0xff]
        %v661 = vld [vmem:[#allocation2 + $0x170] sm:$0xff]
        %v662 = vld [vmem:[#allocation2 + $0x1] sm:$0xff]
        %v663 = vld [vmem:[#allocation2 + $0x9] sm:$0xff]
        %v664 = vld [vmem:[#allocation2 + $0x19] sm:$0xff]
        %v665 = vld [vmem:[#allocation2 + $0x21] sm:$0xff]
        %v666 = vld [vmem:[#allocation2 + $0x31] sm:$0xff]
        %v667 = vld [vmem:[#allocation2 + $0x39] sm:$0xff]
        %v668 = vld [vmem:[#allocation2 + $0x49] sm:$0xff]
        %v669 = vld [vmem:[#allocation2 + $0x51] sm:$0xff]
        %v670 = vld [vmem:[#allocation2 + $0x61] sm:$0xff]
        %v671 = vld [vmem:[#allocation2 + $0x69] sm:$0xff]
        %v672 = vld [vmem:[#allocation2 + $0x79] sm:$0xff]
        %v673 = vld [vmem:[#allocation2 + $0x81] sm:$0xff]
        %v674 = vld [vmem:[#allocation2 + $0x91] sm:$0xff]
        %v675 = vld [vmem:[#allocation2 + $0x99] sm:$0xff]
        %v676 = vld [vmem:[#allocation2 + $0xa9] sm:$0xff]
        %v677 = vld [vmem:[#allocation2 + $0xb1] sm:$0xff]
        %v678 = vld [vmem:[#allocation2 + $0xc1] sm:$0xff]
        %v679 = vld [vmem:[#allocation2 + $0xc9] sm:$0xff]
        %v680 = vld [vmem:[#allocation2 + $0xd9] sm:$0xff]
        %v681 = vld [vmem:[#allocation2 + $0xe1] sm:$0xff]
        %v682 = vld [vmem:[#allocation2 + $0xf1] sm:$0xff]
        %v683 = vld [vmem:[#allocation2 + $0xf9] sm:$0xff]
        %v684 = vld [vmem:[#allocation2 + $0x109] sm:$0xff]
        %v685 = vld [vmem:[#allocation2 + $0x111] sm:$0xff]
        %v686 = vld [vmem:[#allocation2 + $0x121] sm:$0xff]
        %v687 = vld [vmem:[#allocation2 + $0x129] sm:$0xff]
        %v688 = vld [vmem:[#allocation2 + $0x139] sm:$0xff]
        %v689 = vld [vmem:[#allocation2 + $0x141] sm:$0xff]
        %v690 = vld [vmem:[#allocation2 + $0x151] sm:$0xff]
        %v691 = vld [vmem:[#allocation2 + $0x159] sm:$0xff]
        %v692 = vld [vmem:[#allocation2 + $0x169] sm:$0xff]
        %v693 = vld [vmem:[#allocation2 + $0x171] sm:$0xff]
        %v694 = vld [vmem:[#allocation2 + $0x2] sm:$0xff]
        %v695 = vld [vmem:[#allocation2 + $0xa] sm:$0xff]
        %v696 = vld [vmem:[#allocation2 + $0x1a] sm:$0xff]
        %v697 = vld [vmem:[#allocation2 + $0x22] sm:$0xff]
        %v698 = vld [vmem:[#allocation2 + $0x32] sm:$0xff]
        %v699 = vld [vmem:[#allocation2 + $0x3a] sm:$0xff]
        %v700 = vld [vmem:[#allocation2 + $0x4a] sm:$0xff]
        %v701 = vld [vmem:[#allocation2 + $0x52] sm:$0xff]
        %v702 = vld [vmem:[#allocation2 + $0x62] sm:$0xff]
        %v703 = vld [vmem:[#allocation2 + $0x6a] sm:$0xff]
        %v704 = vld [vmem:[#allocation2 + $0x7a] sm:$0xff]
        %v705 = vld [vmem:[#allocation2 + $0x82] sm:$0xff]
        %v706 = vld [vmem:[#allocation2 + $0x92] sm:$0xff]
        %v707 = vld [vmem:[#allocation2 + $0x9a] sm:$0xff]
        %v708 = vld [vmem:[#allocation2 + $0xaa] sm:$0xff]
        %v709 = vld [vmem:[#allocation2 + $0xb2] sm:$0xff]
        %v710 = vld [vmem:[#allocation2 + $0xc2] sm:$0xff]
        %v711 = vld [vmem:[#allocation2 + $0xca] sm:$0xff]
        %v712 = vld [vmem:[#allocation2 + $0xda] sm:$0xff]
        %v713 = vld [vmem:[#allocation2 + $0xe2] sm:$0xff]
        %v714 = vld [vmem:[#allocation2 + $0xf2] sm:$0xff]
        %v715 = vld [vmem:[#allocation2 + $0xfa] sm:$0xff]
        %v716 = vld [vmem:[#allocation2 + $0x10a] sm:$0xff]
        %v717 = vld [vmem:[#allocation2 + $0x112] sm:$0xff]
        %v718 = vld [vmem:[#allocation2 + $0x122] sm:$0xff]
        %v719 = vld [vmem:[#allocation2 + $0x12a] sm:$0xff]
        %v720 = vld [vmem:[#allocation2 + $0x13a] sm:$0xff]
        %v721 = vld [vmem:[#allocation2 + $0x142] sm:$0xff]
        %v722 = vld [vmem:[#allocation2 + $0x152] sm:$0xff]
        %v723 = vld [vmem:[#allocation2 + $0x15a] sm:$0xff]
        %v724 = vld [vmem:[#allocation2 + $0x16a] sm:$0xff]
        %v725 = vld [vmem:[#allocation2 + $0x172] sm:$0xff]
        %v726 = vld [vmem:[%s394] sm:$0xff]
        %v727 = vld [vmem:[%s394 + $0x8] sm:$0xff]
        %v728 = vld [vmem:[%s394 + $0x18] sm:$0xff]
        %v729 = vld [vmem:[%s394 + $0x20] sm:$0xff]
        %v730 = vld [vmem:[%s394 + $0x30] sm:$0xff]
        %v731 = vld [vmem:[%s394 + $0x38] sm:$0xff]
        %v732 = vld [vmem:[%s394 + $0x48] sm:$0xff]
        %v733 = vld [vmem:[%s394 + $0x50] sm:$0xff]
        %v734 = vld [vmem:[%s394 + $0x60] sm:$0xff]
        %v735 = vld [vmem:[%s394 + $0x68] sm:$0xff]
        %v736 = vld [vmem:[%s394 + $0x78] sm:$0xff]
        %v737 = vld [vmem:[%s394 + $0x80] sm:$0xff]
        %v738 = vld [vmem:[%s394 + $0x90] sm:$0xff]
        %v739 = vld [vmem:[%s394 + $0x98] sm:$0xff]
        %v740 = vld [vmem:[%s394 + $0xa8] sm:$0xff]
        %v741 = vld [vmem:[%s394 + $0xb0] sm:$0xff]
        %v742 = vld [vmem:[%s394 + $0xc0] sm:$0xff]
        %v743 = vld [vmem:[%s394 + $0xc8] sm:$0xff]
        %v744 = vld [vmem:[%s394 + $0xd8] sm:$0xff]
        %v745 = vld [vmem:[%s394 + $0xe0] sm:$0xff]
        %v746 = vld [vmem:[%s394 + $0xf0] sm:$0xff]
        %v747 = vld [vmem:[%s394 + $0xf8] sm:$0xff]
        %v748 = vld [vmem:[%s394 + $0x108] sm:$0xff]
        %v749 = vld [vmem:[%s394 + $0x110] sm:$0xff]
        %v750 = vld [vmem:[%s394 + $0x120] sm:$0xff]
        %v751 = vld [vmem:[%s394 + $0x128] sm:$0xff]
        %v752 = vld [vmem:[%s394 + $0x138] sm:$0xff]
        %v753 = vld [vmem:[%s394 + $0x140] sm:$0xff]
        %v754 = vld [vmem:[%s394 + $0x150] sm:$0xff]
        %v755 = vld [vmem:[%s394 + $0x158] sm:$0xff]
        %v756 = vld [vmem:[%s394 + $0x168] sm:$0xff]
        %v757 = vld [vmem:[%s394 + $0x170] sm:$0xff]
        %v758 = vld [vmem:[%s394 + $0x1] sm:$0xff]
        %v759 = vld [vmem:[%s394 + $0x9] sm:$0xff]
        %v760 = vld [vmem:[%s394 + $0x19] sm:$0xff]
        %v761 = vld [vmem:[%s394 + $0x21] sm:$0xff]
        %v762 = vld [vmem:[%s394 + $0x31] sm:$0xff]
        %v763 = vld [vmem:[%s394 + $0x39] sm:$0xff]
        %v764 = vld [vmem:[%s394 + $0x49] sm:$0xff]
        %v765 = vld [vmem:[%s394 + $0x51] sm:$0xff]
        %v766 = vld [vmem:[%s394 + $0x61] sm:$0xff]
        %v767 = vld [vmem:[%s394 + $0x69] sm:$0xff]
        %v768 = vld [vmem:[%s394 + $0x79] sm:$0xff]
        %v769 = vld [vmem:[%s394 + $0x81] sm:$0xff]
        %v770 = vld [vmem:[%s394 + $0x91] sm:$0xff]
        %v771 = vld [vmem:[%s394 + $0x99] sm:$0xff]
        %v772 = vld [vmem:[%s394 + $0xa9] sm:$0xff]
        %v773 = vld [vmem:[%s394 + $0xb1] sm:$0xff]
        %v774 = vld [vmem:[%s394 + $0xc1] sm:$0xff]
        %v775 = vld [vmem:[%s394 + $0xc9] sm:$0xff]
        %v776 = vld [vmem:[%s394 + $0xd9] sm:$0xff]
        %v777 = vld [vmem:[%s394 + $0xe1] sm:$0xff]
        %v778 = vld [vmem:[%s394 + $0xf1] sm:$0xff]
        %v779 = vld [vmem:[%s394 + $0xf9] sm:$0xff]
        %v780 = vld [vmem:[%s394 + $0x109] sm:$0xff]
        %v781 = vld [vmem:[%s394 + $0x111] sm:$0xff]
        %v782 = vld [vmem:[%s394 + $0x121] sm:$0xff]
        %v783 = vld [vmem:[%s394 + $0x129] sm:$0xff]
        %v784 = vld [vmem:[%s394 + $0x139] sm:$0xff]
        %v785 = vld [vmem:[%s394 + $0x141] sm:$0xff]
        %v786 = vld [vmem:[%s394 + $0x151] sm:$0xff]
        %v787 = vld [vmem:[%s394 + $0x159] sm:$0xff]
        %v788 = vld [vmem:[%s394 + $0x169] sm:$0xff]
        %v789 = vld [vmem:[%s394 + $0x171] sm:$0xff]
        %v790 = vld [vmem:[%s394 + $0x2] sm:$0xff]
        %v791 = vld [vmem:[%s394 + $0xa] sm:$0xff]
        %v792 = vld [vmem:[%s394 + $0x1a] sm:$0xff]
        %v793 = vld [vmem:[%s394 + $0x22] sm:$0xff]
        %v794 = vld [vmem:[%s394 + $0x32] sm:$0xff]
        %v795 = vld [vmem:[%s394 + $0x3a] sm:$0xff]
        %v796 = vld [vmem:[%s394 + $0x4a] sm:$0xff]
        %v797 = vld [vmem:[%s394 + $0x52] sm:$0xff]
        %v798 = vld [vmem:[%s394 + $0x62] sm:$0xff]
        %v799 = vld [vmem:[%s394 + $0x6a] sm:$0xff]
        %v800 = vld [vmem:[%s394 + $0x7a] sm:$0xff]
        %v801 = vld [vmem:[%s394 + $0x82] sm:$0xff]
        %v802 = vld [vmem:[%s394 + $0x92] sm:$0xff]
        %v803 = vld [vmem:[%s394 + $0x9a] sm:$0xff]
        %v804 = vld [vmem:[%s394 + $0xaa] sm:$0xff]
        %v805 = vld [vmem:[%s394 + $0xb2] sm:$0xff]
        %v806 = vld [vmem:[%s394 + $0xc2] sm:$0xff]
        %v807 = vld [vmem:[%s394 + $0xca] sm:$0xff]
        %v808 = vld [vmem:[%s394 + $0xda] sm:$0xff]
        %v809 = vld [vmem:[%s394 + $0xe2] sm:$0xff]
        %v810 = vld [vmem:[%s394 + $0xf2] sm:$0xff]
        %v811 = vld [vmem:[%s394 + $0xfa] sm:$0xff]
        %v812 = vld [vmem:[%s394 + $0x10a] sm:$0xff]
        %v813 = vld [vmem:[%s394 + $0x112] sm:$0xff]
        %v814 = vld [vmem:[%s394 + $0x122] sm:$0xff]
        %v815 = vld [vmem:[%s394 + $0x12a] sm:$0xff]
        %v816 = vld [vmem:[%s394 + $0x13a] sm:$0xff]
        %v817 = vld [vmem:[%s394 + $0x142] sm:$0xff]
        %v818 = vld [vmem:[%s394 + $0x152] sm:$0xff]
        %v819 = vld [vmem:[%s394 + $0x15a] sm:$0xff]
        %v820 = vld [vmem:[%s394 + $0x16a] sm:$0xff]
        %v821 = vld [vmem:[%s394 + $0x172] sm:$0xff]
        %s822 = scalar_lea.vmem [#allocation2], 48
        %v823 = vld [vmem:[%s822] sm:$0xff]
        %v824 = vld [vmem:[%s822 + $0x8] sm:$0xff]
        %v825 = vld [vmem:[%s822 + $0x18] sm:$0xff]
        %v826 = vld [vmem:[%s822 + $0x20] sm:$0xff]
        %v827 = vld [vmem:[%s822 + $0x30] sm:$0xff]
        %v828 = vld [vmem:[%s822 + $0x38] sm:$0xff]
        %v829 = vld [vmem:[%s822 + $0x48] sm:$0xff]
        %v830 = vld [vmem:[%s822 + $0x50] sm:$0xff]
        %v831 = vld [vmem:[%s822 + $0x60] sm:$0xff]
        %v832 = vld [vmem:[%s822 + $0x68] sm:$0xff]
        %v833 = vld [vmem:[%s822 + $0x78] sm:$0xff]
        %v834 = vld [vmem:[%s822 + $0x80] sm:$0xff]
        %v835 = vld [vmem:[%s822 + $0x90] sm:$0xff]
        %v836 = vld [vmem:[%s822 + $0x98] sm:$0xff]
        %v837 = vld [vmem:[%s822 + $0xa8] sm:$0xff]
        %v838 = vld [vmem:[%s822 + $0xb0] sm:$0xff]
        %v839 = vld [vmem:[%s822 + $0xc0] sm:$0xff]
        %v840 = vld [vmem:[%s822 + $0xc8] sm:$0xff]
        %v841 = vld [vmem:[%s822 + $0xd8] sm:$0xff]
        %v842 = vld [vmem:[%s822 + $0xe0] sm:$0xff]
        %v843 = vld [vmem:[%s822 + $0xf0] sm:$0xff]
        %v844 = vld [vmem:[%s822 + $0xf8] sm:$0xff]
        %v845 = vld [vmem:[%s822 + $0x108] sm:$0xff]
        %v846 = vld [vmem:[%s822 + $0x110] sm:$0xff]
        %v847 = vld [vmem:[%s822 + $0x120] sm:$0xff]
        %v848 = vld [vmem:[%s822 + $0x128] sm:$0xff]
        %v849 = vld [vmem:[%s822 + $0x138] sm:$0xff]
        %v850 = vld [vmem:[%s822 + $0x140] sm:$0xff]
        %v851 = vld [vmem:[%s822 + $0x150] sm:$0xff]
        %v852 = vld [vmem:[%s822 + $0x158] sm:$0xff]
        %v853 = vld [vmem:[%s822 + $0x168] sm:$0xff]
        %v854 = vld [vmem:[%s822 + $0x170] sm:$0xff]
        %v855 = vld [vmem:[%s822 + $0x1] sm:$0xff]
        %v856 = vld [vmem:[%s822 + $0x9] sm:$0xff]
        %v857 = vld [vmem:[%s822 + $0x19] sm:$0xff]
        %v858 = vld [vmem:[%s822 + $0x21] sm:$0xff]
        %v859 = vld [vmem:[%s822 + $0x31] sm:$0xff]
        %v860 = vld [vmem:[%s822 + $0x39] sm:$0xff]
        %v861 = vld [vmem:[%s822 + $0x49] sm:$0xff]
        %v862 = vld [vmem:[%s822 + $0x51] sm:$0xff]
        %v863 = vld [vmem:[%s822 + $0x61] sm:$0xff]
        %v864 = vld [vmem:[%s822 + $0x69] sm:$0xff]
        %v865 = vld [vmem:[%s822 + $0x79] sm:$0xff]
        %v866 = vld [vmem:[%s822 + $0x81] sm:$0xff]
        %v867 = vld [vmem:[%s822 + $0x91] sm:$0xff]
        %v868 = vld [vmem:[%s822 + $0x99] sm:$0xff]
        %v869 = vld [vmem:[%s822 + $0xa9] sm:$0xff]
        %v870 = vld [vmem:[%s822 + $0xb1] sm:$0xff]
        %v871 = vld [vmem:[%s822 + $0xc1] sm:$0xff]
        %v872 = vld [vmem:[%s822 + $0xc9] sm:$0xff]
        %v873 = vld [vmem:[%s822 + $0xd9] sm:$0xff]
        %v874 = vld [vmem:[%s822 + $0xe1] sm:$0xff]
        %v875 = vld [vmem:[%s822 + $0xf1] sm:$0xff]
        %v876 = vld [vmem:[%s822 + $0xf9] sm:$0xff]
        %v877 = vld [vmem:[%s822 + $0x109] sm:$0xff]
        %v878 = vld [vmem:[%s822 + $0x111] sm:$0xff]
        %v879 = vld [vmem:[%s822 + $0x121] sm:$0xff]
        %v880 = vld [vmem:[%s822 + $0x129] sm:$0xff]
        %v881 = vld [vmem:[%s822 + $0x139] sm:$0xff]
        %v882 = vld [vmem:[%s822 + $0x141] sm:$0xff]
        %v883 = vld [vmem:[%s822 + $0x151] sm:$0xff]
        %v884 = vld [vmem:[%s822 + $0x159] sm:$0xff]
        %v885 = vld [vmem:[%s822 + $0x169] sm:$0xff]
        %v886 = vld [vmem:[%s822 + $0x171] sm:$0xff]
        %v887 = vld [vmem:[%s822 + $0x2] sm:$0xff]
        %v888 = vld [vmem:[%s822 + $0xa] sm:$0xff]
        %v889 = vld [vmem:[%s822 + $0x1a] sm:$0xff]
        %v890 = vld [vmem:[%s822 + $0x22] sm:$0xff]
        %v891 = vld [vmem:[%s822 + $0x32] sm:$0xff]
        %v892 = vld [vmem:[%s822 + $0x3a] sm:$0xff]
        %v893 = vld [vmem:[%s822 + $0x4a] sm:$0xff]
        %v894 = vld [vmem:[%s822 + $0x52] sm:$0xff]
        %v895 = vld [vmem:[%s822 + $0x62] sm:$0xff]
        %v896 = vld [vmem:[%s822 + $0x6a] sm:$0xff]
        %v897 = vld [vmem:[%s822 + $0x7a] sm:$0xff]
        %v898 = vld [vmem:[%s822 + $0x82] sm:$0xff]
        %v899 = vld [vmem:[%s822 + $0x92] sm:$0xff]
        %v900 = vld [vmem:[%s822 + $0x9a] sm:$0xff]
        %v901 = vld [vmem:[%s822 + $0xaa] sm:$0xff]
        %v902 = vld [vmem:[%s822 + $0xb2] sm:$0xff]
        %v903 = vld [vmem:[%s822 + $0xc2] sm:$0xff]
        %v904 = vld [vmem:[%s822 + $0xca] sm:$0xff]
        %v905 = vld [vmem:[%s822 + $0xda] sm:$0xff]
        %v906 = vld [vmem:[%s822 + $0xe2] sm:$0xff]
        %v907 = vld [vmem:[%s822 + $0xf2] sm:$0xff]
        %v908 = vld [vmem:[%s822 + $0xfa] sm:$0xff]
        %v909 = vld [vmem:[%s822 + $0x10a] sm:$0xff]
        %v910 = vld [vmem:[%s822 + $0x112] sm:$0xff]
        %v911 = vld [vmem:[%s822 + $0x122] sm:$0xff]
        %v912 = vld [vmem:[%s822 + $0x12a] sm:$0xff]
        %v913 = vld [vmem:[%s822 + $0x13a] sm:$0xff]
        %v914 = vld [vmem:[%s822 + $0x142] sm:$0xff]
        %v915 = vld [vmem:[%s822 + $0x152] sm:$0xff]
        %v916 = vld [vmem:[%s822 + $0x15a] sm:$0xff]
        %v917 = vld [vmem:[%s822 + $0x16a] sm:$0xff]
        %v918 = vld [vmem:[%s822 + $0x172] sm:$0xff]
        %951 = vrot.lane.b32.xlu0 %v662, 32
        %v952 = vpop.permute.xlu0 %951
        %953 = vrot.lane.b32.xlu0 %v663, 32
        %v954 = vpop.permute.xlu0 %953
        %955 = vrot.lane.b32.xlu0 %v664, 32
        %v956 = vpop.permute.xlu0 %955
        %957 = vrot.lane.b32.xlu0 %v665, 32
        %v958 = vpop.permute.xlu0 %957
        %959 = vrot.lane.b32.xlu0 %v666, 32
        %v960 = vpop.permute.xlu0 %959
        %961 = vrot.lane.b32.xlu0 %v667, 32
        %v962 = vpop.permute.xlu0 %961
        %963 = vrot.lane.b32.xlu0 %v668, 32
        %v964 = vpop.permute.xlu0 %963
        %965 = vrot.lane.b32.xlu0 %v669, 32
        %v966 = vpop.permute.xlu0 %965
        %967 = vrot.lane.b32.xlu0 %v670, 32
        %v968 = vpop.permute.xlu0 %967
        %969 = vrot.lane.b32.xlu0 %v671, 32
        %v970 = vpop.permute.xlu0 %969
        %971 = vrot.lane.b32.xlu0 %v672, 32
        %v972 = vpop.permute.xlu0 %971
        %973 = vrot.lane.b32.xlu0 %v673, 32
        %v974 = vpop.permute.xlu0 %973
        %975 = vrot.lane.b32.xlu0 %v674, 32
        %v976 = vpop.permute.xlu0 %975
        %977 = vrot.lane.b32.xlu0 %v675, 32
        %v978 = vpop.permute.xlu0 %977
        %979 = vrot.lane.b32.xlu0 %v676, 32
        %v980 = vpop.permute.xlu0 %979
        %981 = vrot.lane.b32.xlu0 %v677, 32
        %v982 = vpop.permute.xlu0 %981
        %983 = vrot.lane.b32.xlu0 %v678, 32
        %v984 = vpop.permute.xlu0 %983
        %985 = vrot.lane.b32.xlu0 %v679, 32
        %v986 = vpop.permute.xlu0 %985
        %987 = vrot.lane.b32.xlu0 %v680, 32
        %v988 = vpop.permute.xlu0 %987
        %989 = vrot.lane.b32.xlu0 %v681, 32
        %v990 = vpop.permute.xlu0 %989
        %991 = vrot.lane.b32.xlu0 %v682, 32
        %v992 = vpop.permute.xlu0 %991
        %993 = vrot.lane.b32.xlu0 %v683, 32
        %v994 = vpop.permute.xlu0 %993
        %995 = vrot.lane.b32.xlu0 %v684, 32
        %v996 = vpop.permute.xlu0 %995
        %997 = vrot.lane.b32.xlu0 %v685, 32
        %v998 = vpop.permute.xlu0 %997
        %999 = vrot.lane.b32.xlu0 %v686, 32
        %v1000 = vpop.permute.xlu0 %999
        %1001 = vrot.lane.b32.xlu0 %v687, 32
        %v1002 = vpop.permute.xlu0 %1001
        %1003 = vrot.lane.b32.xlu0 %v688, 32
        %v1004 = vpop.permute.xlu0 %1003
        %1005 = vrot.lane.b32.xlu0 %v689, 32
        %v1006 = vpop.permute.xlu0 %1005
        %1007 = vrot.lane.b32.xlu0 %v690, 32
        %v1008 = vpop.permute.xlu0 %1007
        %1009 = vrot.lane.b32.xlu0 %v691, 32
        %v1010 = vpop.permute.xlu0 %1009
        %1011 = vrot.lane.b32.xlu0 %v692, 32
        %v1012 = vpop.permute.xlu0 %1011
        %1013 = vrot.lane.b32.xlu0 %v693, 32
        %v1014 = vpop.permute.xlu0 %1013
        %1079 = vrot.lane.b32.xlu0 %v694, 64
        %v1080 = vpop.permute.xlu0 %1079
        %1081 = vrot.lane.b32.xlu0 %v695, 64
        %v1082 = vpop.permute.xlu0 %1081
        %1083 = vrot.lane.b32.xlu0 %v696, 64
        %v1084 = vpop.permute.xlu0 %1083
        %1085 = vrot.lane.b32.xlu0 %v697, 64
        %v1086 = vpop.permute.xlu0 %1085
        %1087 = vrot.lane.b32.xlu0 %v698, 64
        %v1088 = vpop.permute.xlu0 %1087
        %1089 = vrot.lane.b32.xlu0 %v699, 64
        %v1090 = vpop.permute.xlu0 %1089
        %1091 = vrot.lane.b32.xlu0 %v700, 64
        %v1092 = vpop.permute.xlu0 %1091
        %1093 = vrot.lane.b32.xlu0 %v701, 64
        %v1094 = vpop.permute.xlu0 %1093
        %1095 = vrot.lane.b32.xlu0 %v702, 64
        %v1096 = vpop.permute.xlu0 %1095
        %1097 = vrot.lane.b32.xlu0 %v703, 64
        %v1098 = vpop.permute.xlu0 %1097
        %1099 = vrot.lane.b32.xlu0 %v704, 64
        %v1100 = vpop.permute.xlu0 %1099
        %1101 = vrot.lane.b32.xlu0 %v705, 64
        %v1102 = vpop.permute.xlu0 %1101
        %1103 = vrot.lane.b32.xlu0 %v706, 64
        %v1104 = vpop.permute.xlu0 %1103
        %1105 = vrot.lane.b32.xlu0 %v707, 64
        %v1106 = vpop.permute.xlu0 %1105
        %1107 = vrot.lane.b32.xlu0 %v708, 64
        %v1108 = vpop.permute.xlu0 %1107
        %1109 = vrot.lane.b32.xlu0 %v709, 64
        %v1110 = vpop.permute.xlu0 %1109
        %1111 = vrot.lane.b32.xlu0 %v710, 64
        %v1112 = vpop.permute.xlu0 %1111
        %1113 = vrot.lane.b32.xlu0 %v711, 64
        %v1114 = vpop.permute.xlu0 %1113
        %1115 = vrot.lane.b32.xlu0 %v712, 64
        %v1116 = vpop.permute.xlu0 %1115
        %1117 = vrot.lane.b32.xlu0 %v713, 64
        %v1118 = vpop.permute.xlu0 %1117
        %1119 = vrot.lane.b32.xlu0 %v714, 64
        %v1120 = vpop.permute.xlu0 %1119
        %1121 = vrot.lane.b32.xlu0 %v715, 64
        %v1122 = vpop.permute.xlu0 %1121
        %1123 = vrot.lane.b32.xlu0 %v716, 64
        %v1124 = vpop.permute.xlu0 %1123
        %1125 = vrot.lane.b32.xlu0 %v717, 64
        %v1126 = vpop.permute.xlu0 %1125
        %1127 = vrot.lane.b32.xlu0 %v718, 64
        %v1128 = vpop.permute.xlu0 %1127
        %1129 = vrot.lane.b32.xlu0 %v719, 64
        %v1130 = vpop.permute.xlu0 %1129
        %1131 = vrot.lane.b32.xlu0 %v720, 64
        %v1132 = vpop.permute.xlu0 %1131
        %1133 = vrot.lane.b32.xlu0 %v721, 64
        %v1134 = vpop.permute.xlu0 %1133
        %1135 = vrot.lane.b32.xlu0 %v722, 64
        %v1136 = vpop.permute.xlu0 %1135
        %1137 = vrot.lane.b32.xlu0 %v723, 64
        %v1138 = vpop.permute.xlu0 %1137
        %1139 = vrot.lane.b32.xlu0 %v724, 64
        %v1140 = vpop.permute.xlu0 %1139
        %1141 = vrot.lane.b32.xlu0 %v725, 64
        %v1142 = vpop.permute.xlu0 %1141
        %1207 = vrot.lane.b32.xlu0 %v726, 96
        %v1208 = vpop.permute.xlu0 %1207
        %1209 = vrot.lane.b32.xlu0 %v727, 96
        %v1210 = vpop.permute.xlu0 %1209
        %1211 = vrot.lane.b32.xlu0 %v728, 96
        %v1212 = vpop.permute.xlu0 %1211
        %1213 = vrot.lane.b32.xlu0 %v729, 96
        %v1214 = vpop.permute.xlu0 %1213
        %1215 = vrot.lane.b32.xlu0 %v730, 96
        %v1216 = vpop.permute.xlu0 %1215
        %1217 = vrot.lane.b32.xlu0 %v731, 96
        %v1218 = vpop.permute.xlu0 %1217
        %1219 = vrot.lane.b32.xlu0 %v732, 96
        %v1220 = vpop.permute.xlu0 %1219
        %1221 = vrot.lane.b32.xlu0 %v733, 96
        %v1222 = vpop.permute.xlu0 %1221
        %1223 = vrot.lane.b32.xlu0 %v734, 96
        %v1224 = vpop.permute.xlu0 %1223
        %1225 = vrot.lane.b32.xlu0 %v735, 96
        %v1226 = vpop.permute.xlu0 %1225
        %1227 = vrot.lane.b32.xlu0 %v736, 96
        %v1228 = vpop.permute.xlu0 %1227
        %1229 = vrot.lane.b32.xlu0 %v737, 96
        %v1230 = vpop.permute.xlu0 %1229
        %1231 = vrot.lane.b32.xlu0 %v738, 96
        %v1232 = vpop.permute.xlu0 %1231
        %1233 = vrot.lane.b32.xlu0 %v739, 96
        %v1234 = vpop.permute.xlu0 %1233
        %1235 = vrot.lane.b32.xlu0 %v740, 96
        %v1236 = vpop.permute.xlu0 %1235
        %1237 = vrot.lane.b32.xlu0 %v741, 96
        %v1238 = vpop.permute.xlu0 %1237
        %1239 = vrot.lane.b32.xlu0 %v742, 96
        %v1240 = vpop.permute.xlu0 %1239
        %1241 = vrot.lane.b32.xlu0 %v743, 96
        %v1242 = vpop.permute.xlu0 %1241
        %1243 = vrot.lane.b32.xlu0 %v744, 96
        %v1244 = vpop.permute.xlu0 %1243
        %1245 = vrot.lane.b32.xlu0 %v745, 96
        %v1246 = vpop.permute.xlu0 %1245
        %1247 = vrot.lane.b32.xlu0 %v746, 96
        %v1248 = vpop.permute.xlu0 %1247
        %1249 = vrot.lane.b32.xlu0 %v747, 96
        %v1250 = vpop.permute.xlu0 %1249
        %1251 = vrot.lane.b32.xlu0 %v748, 96
        %v1252 = vpop.permute.xlu0 %1251
        %1253 = vrot.lane.b32.xlu0 %v749, 96
        %v1254 = vpop.permute.xlu0 %1253
        %1255 = vrot.lane.b32.xlu0 %v750, 96
        %v1256 = vpop.permute.xlu0 %1255
        %1257 = vrot.lane.b32.xlu0 %v751, 96
        %v1258 = vpop.permute.xlu0 %1257
        %1259 = vrot.lane.b32.xlu0 %v752, 96
        %v1260 = vpop.permute.xlu0 %1259
        %1261 = vrot.lane.b32.xlu0 %v753, 96
        %v1262 = vpop.permute.xlu0 %1261
        %1263 = vrot.lane.b32.xlu0 %v754, 96
        %v1264 = vpop.permute.xlu0 %1263
        %1265 = vrot.lane.b32.xlu0 %v755, 96
        %v1266 = vpop.permute.xlu0 %1265
        %1267 = vrot.lane.b32.xlu0 %v756, 96
        %v1268 = vpop.permute.xlu0 %1267
        %1269 = vrot.lane.b32.xlu0 %v757, 96
        %v1270 = vpop.permute.xlu0 %1269
        %1335 = vrot.lane.b32.xlu0 %v790, 32
        %v1336 = vpop.permute.xlu0 %1335
        %1337 = vrot.lane.b32.xlu0 %v791, 32
        %v1338 = vpop.permute.xlu0 %1337
        %1339 = vrot.lane.b32.xlu0 %v792, 32
        %v1340 = vpop.permute.xlu0 %1339
        %1341 = vrot.lane.b32.xlu0 %v793, 32
        %v1342 = vpop.permute.xlu0 %1341
        %1343 = vrot.lane.b32.xlu0 %v794, 32
        %v1344 = vpop.permute.xlu0 %1343
        %1345 = vrot.lane.b32.xlu0 %v795, 32
        %v1346 = vpop.permute.xlu0 %1345
        %1347 = vrot.lane.b32.xlu0 %v796, 32
        %v1348 = vpop.permute.xlu0 %1347
        %1349 = vrot.lane.b32.xlu0 %v797, 32
        %v1350 = vpop.permute.xlu0 %1349
        %1351 = vrot.lane.b32.xlu0 %v798, 32
        %v1352 = vpop.permute.xlu0 %1351
        %1353 = vrot.lane.b32.xlu0 %v799, 32
        %v1354 = vpop.permute.xlu0 %1353
        %1355 = vrot.lane.b32.xlu0 %v800, 32
        %v1356 = vpop.permute.xlu0 %1355
        %1357 = vrot.lane.b32.xlu0 %v801, 32
        %v1358 = vpop.permute.xlu0 %1357
        %1359 = vrot.lane.b32.xlu0 %v802, 32
        %v1360 = vpop.permute.xlu0 %1359
        %1361 = vrot.lane.b32.xlu0 %v803, 32
        %v1362 = vpop.permute.xlu0 %1361
        %1363 = vrot.lane.b32.xlu0 %v804, 32
        %v1364 = vpop.permute.xlu0 %1363
        %1365 = vrot.lane.b32.xlu0 %v805, 32
        %v1366 = vpop.permute.xlu0 %1365
        %1367 = vrot.lane.b32.xlu0 %v806, 32
        %v1368 = vpop.permute.xlu0 %1367
        %1369 = vrot.lane.b32.xlu0 %v807, 32
        %v1370 = vpop.permute.xlu0 %1369
        %1371 = vrot.lane.b32.xlu0 %v808, 32
        %v1372 = vpop.permute.xlu0 %1371
        %1373 = vrot.lane.b32.xlu0 %v809, 32
        %v1374 = vpop.permute.xlu0 %1373
        %1375 = vrot.lane.b32.xlu0 %v810, 32
        %v1376 = vpop.permute.xlu0 %1375
        %1377 = vrot.lane.b32.xlu0 %v811, 32
        %v1378 = vpop.permute.xlu0 %1377
        %1379 = vrot.lane.b32.xlu0 %v812, 32
        %v1380 = vpop.permute.xlu0 %1379
        %1381 = vrot.lane.b32.xlu0 %v813, 32
        %v1382 = vpop.permute.xlu0 %1381
        %1383 = vrot.lane.b32.xlu0 %v814, 32
        %v1384 = vpop.permute.xlu0 %1383
        %1385 = vrot.lane.b32.xlu0 %v815, 32
        %v1386 = vpop.permute.xlu0 %1385
        %1387 = vrot.lane.b32.xlu0 %v816, 32
        %v1388 = vpop.permute.xlu0 %1387
        %1389 = vrot.lane.b32.xlu0 %v817, 32
        %v1390 = vpop.permute.xlu0 %1389
        %1391 = vrot.lane.b32.xlu0 %v818, 32
        %v1392 = vpop.permute.xlu0 %1391
        %1393 = vrot.lane.b32.xlu0 %v819, 32
        %v1394 = vpop.permute.xlu0 %1393
        %1395 = vrot.lane.b32.xlu0 %v820, 32
        %v1396 = vpop.permute.xlu0 %1395
        %1397 = vrot.lane.b32.xlu0 %v821, 32
        %v1398 = vpop.permute.xlu0 %1397
        %1463 = vrot.lane.b32.xlu0 %v823, 64
        %v1464 = vpop.permute.xlu0 %1463
        %1465 = vrot.lane.b32.xlu0 %v824, 64
        %v1466 = vpop.permute.xlu0 %1465
        %1467 = vrot.lane.b32.xlu0 %v825, 64
        %v1468 = vpop.permute.xlu0 %1467
        %1469 = vrot.lane.b32.xlu0 %v826, 64
        %v1470 = vpop.permute.xlu0 %1469
        %1471 = vrot.lane.b32.xlu0 %v827, 64
        %v1472 = vpop.permute.xlu0 %1471
        %1473 = vrot.lane.b32.xlu0 %v828, 64
        %v1474 = vpop.permute.xlu0 %1473
        %1475 = vrot.lane.b32.xlu0 %v829, 64
        %v1476 = vpop.permute.xlu0 %1475
        %1477 = vrot.lane.b32.xlu0 %v830, 64
        %v1478 = vpop.permute.xlu0 %1477
        %1479 = vrot.lane.b32.xlu0 %v831, 64
        %v1480 = vpop.permute.xlu0 %1479
        %1481 = vrot.lane.b32.xlu0 %v832, 64
        %v1482 = vpop.permute.xlu0 %1481
        %1483 = vrot.lane.b32.xlu0 %v833, 64
        %v1484 = vpop.permute.xlu0 %1483
        %1485 = vrot.lane.b32.xlu0 %v834, 64
        %v1486 = vpop.permute.xlu0 %1485
        %1487 = vrot.lane.b32.xlu0 %v835, 64
        %v1488 = vpop.permute.xlu0 %1487
        %1489 = vrot.lane.b32.xlu0 %v836, 64
        %v1490 = vpop.permute.xlu0 %1489
        %1491 = vrot.lane.b32.xlu0 %v837, 64
        %v1492 = vpop.permute.xlu0 %1491
        %1493 = vrot.lane.b32.xlu0 %v838, 64
        %v1494 = vpop.permute.xlu0 %1493
        %1495 = vrot.lane.b32.xlu0 %v839, 64
        %v1496 = vpop.permute.xlu0 %1495
        %1497 = vrot.lane.b32.xlu0 %v840, 64
        %v1498 = vpop.permute.xlu0 %1497
        %1499 = vrot.lane.b32.xlu0 %v841, 64
        %v1500 = vpop.permute.xlu0 %1499
        %1501 = vrot.lane.b32.xlu0 %v842, 64
        %v1502 = vpop.permute.xlu0 %1501
        %1503 = vrot.lane.b32.xlu0 %v843, 64
        %v1504 = vpop.permute.xlu0 %1503
        %1505 = vrot.lane.b32.xlu0 %v844, 64
        %v1506 = vpop.permute.xlu0 %1505
        %1507 = vrot.lane.b32.xlu0 %v845, 64
        %v1508 = vpop.permute.xlu0 %1507
        %1509 = vrot.lane.b32.xlu0 %v846, 64
        %v1510 = vpop.permute.xlu0 %1509
        %1511 = vrot.lane.b32.xlu0 %v847, 64
        %v1512 = vpop.permute.xlu0 %1511
        %1513 = vrot.lane.b32.xlu0 %v848, 64
        %v1514 = vpop.permute.xlu0 %1513
        %1515 = vrot.lane.b32.xlu0 %v849, 64
        %v1516 = vpop.permute.xlu0 %1515
        %1517 = vrot.lane.b32.xlu0 %v850, 64
        %v1518 = vpop.permute.xlu0 %1517
        %1519 = vrot.lane.b32.xlu0 %v851, 64
        %v1520 = vpop.permute.xlu0 %1519
        %1521 = vrot.lane.b32.xlu0 %v852, 64
        %v1522 = vpop.permute.xlu0 %1521
        %1523 = vrot.lane.b32.xlu0 %v853, 64
        %v1524 = vpop.permute.xlu0 %1523
        %1525 = vrot.lane.b32.xlu0 %v854, 64
        %v1526 = vpop.permute.xlu0 %1525
        %1591 = vrot.lane.b32.xlu0 %v855, 96
        %v1592 = vpop.permute.xlu0 %1591
        %1593 = vrot.lane.b32.xlu0 %v856, 96
        %v1594 = vpop.permute.xlu0 %1593
        %1595 = vrot.lane.b32.xlu0 %v857, 96
        %v1596 = vpop.permute.xlu0 %1595
        %1597 = vrot.lane.b32.xlu0 %v858, 96
        %v1598 = vpop.permute.xlu0 %1597
        %1599 = vrot.lane.b32.xlu0 %v859, 96
        %v1600 = vpop.permute.xlu0 %1599
        %1601 = vrot.lane.b32.xlu0 %v860, 96
        %v1602 = vpop.permute.xlu0 %1601
        %1603 = vrot.lane.b32.xlu0 %v861, 96
        %v1604 = vpop.permute.xlu0 %1603
        %1605 = vrot.lane.b32.xlu0 %v862, 96
        %v1606 = vpop.permute.xlu0 %1605
        %1607 = vrot.lane.b32.xlu0 %v863, 96
        %v1608 = vpop.permute.xlu0 %1607
        %1609 = vrot.lane.b32.xlu0 %v864, 96
        %v1610 = vpop.permute.xlu0 %1609
        %1611 = vrot.lane.b32.xlu0 %v865, 96
        %v1612 = vpop.permute.xlu0 %1611
        %1613 = vrot.lane.b32.xlu0 %v866, 96
        %v1614 = vpop.permute.xlu0 %1613
        %1615 = vrot.lane.b32.xlu0 %v867, 96
        %v1616 = vpop.permute.xlu0 %1615
        %1617 = vrot.lane.b32.xlu0 %v868, 96
        %v1618 = vpop.permute.xlu0 %1617
        %1619 = vrot.lane.b32.xlu0 %v869, 96
        %v1620 = vpop.permute.xlu0 %1619
        %1621 = vrot.lane.b32.xlu0 %v870, 96
        %v1622 = vpop.permute.xlu0 %1621
        %1623 = vrot.lane.b32.xlu0 %v871, 96
        %v1624 = vpop.permute.xlu0 %1623
        %1625 = vrot.lane.b32.xlu0 %v872, 96
        %v1626 = vpop.permute.xlu0 %1625
        %1627 = vrot.lane.b32.xlu0 %v873, 96
        %v1628 = vpop.permute.xlu0 %1627
        %1629 = vrot.lane.b32.xlu0 %v874, 96
        %v1630 = vpop.permute.xlu0 %1629
        %1631 = vrot.lane.b32.xlu0 %v875, 96
        %v1632 = vpop.permute.xlu0 %1631
        %1633 = vrot.lane.b32.xlu0 %v876, 96
        %v1634 = vpop.permute.xlu0 %1633
        %1635 = vrot.lane.b32.xlu0 %v877, 96
        %v1636 = vpop.permute.xlu0 %1635
        %1637 = vrot.lane.b32.xlu0 %v878, 96
        %v1638 = vpop.permute.xlu0 %1637
        %1639 = vrot.lane.b32.xlu0 %v879, 96
        %v1640 = vpop.permute.xlu0 %1639
        %1641 = vrot.lane.b32.xlu0 %v880, 96
        %v1642 = vpop.permute.xlu0 %1641
        %1643 = vrot.lane.b32.xlu0 %v881, 96
        %v1644 = vpop.permute.xlu0 %1643
        %1645 = vrot.lane.b32.xlu0 %v882, 96
        %v1646 = vpop.permute.xlu0 %1645
        %1647 = vrot.lane.b32.xlu0 %v883, 96
        %v1648 = vpop.permute.xlu0 %1647
        %1649 = vrot.lane.b32.xlu0 %v884, 96
        %v1650 = vpop.permute.xlu0 %1649
        %1651 = vrot.lane.b32.xlu0 %v885, 96
        %v1652 = vpop.permute.xlu0 %1651
        %1653 = vrot.lane.b32.xlu0 %v886, 96
        %v1654 = vpop.permute.xlu0 %1653
        %v1687 = vsel %vm385, %v630, %v952
        %v1688 = vsel %vm385, %v631, %v954
        %v1689 = vsel %vm385, %v632, %v956
        %v1690 = vsel %vm385, %v633, %v958
        %v1691 = vsel %vm385, %v634, %v960
        %v1692 = vsel %vm385, %v635, %v962
        %v1693 = vsel %vm385, %v636, %v964
        %v1694 = vsel %vm385, %v637, %v966
        %v1695 = vsel %vm385, %v638, %v968
        %v1696 = vsel %vm385, %v639, %v970
        %v1697 = vsel %vm385, %v640, %v972
        %v1698 = vsel %vm385, %v641, %v974
        %v1699 = vsel %vm385, %v642, %v976
        %v1700 = vsel %vm385, %v643, %v978
        %v1701 = vsel %vm385, %v644, %v980
        %v1702 = vsel %vm385, %v645, %v982
        %v1703 = vsel %vm385, %v646, %v984
        %v1704 = vsel %vm385, %v647, %v986
        %v1705 = vsel %vm385, %v648, %v988
        %v1706 = vsel %vm385, %v649, %v990
        %v1707 = vsel %vm385, %v650, %v992
        %v1708 = vsel %vm385, %v651, %v994
        %v1709 = vsel %vm385, %v652, %v996
        %v1710 = vsel %vm385, %v653, %v998
        %v1711 = vsel %vm385, %v654, %v1000
        %v1712 = vsel %vm385, %v655, %v1002
        %v1713 = vsel %vm385, %v656, %v1004
        %v1714 = vsel %vm385, %v657, %v1006
        %v1715 = vsel %vm385, %v658, %v1008
        %v1716 = vsel %vm385, %v659, %v1010
        %v1717 = vsel %vm385, %v660, %v1012
        %v1718 = vsel %vm385, %v661, %v1014
        %vm1719 = vcmask 523264
        %v1720 = vsel %vm1719, %v1687, %v1080
        %v1721 = vsel %vm1719, %v1688, %v1082
        %v1722 = vsel %vm1719, %v1689, %v1084
        %v1723 = vsel %vm1719, %v1690, %v1086
        %v1724 = vsel %vm1719, %v1691, %v1088
        %v1725 = vsel %vm1719, %v1692, %v1090
        %v1726 = vsel %vm1719, %v1693, %v1092
        %v1727 = vsel %vm1719, %v1694, %v1094
        %v1728 = vsel %vm1719, %v1695, %v1096
        %v1729 = vsel %vm1719, %v1696, %v1098
        %v1730 = vsel %vm1719, %v1697, %v1100
        %v1731 = vsel %vm1719, %v1698, %v1102
        %v1732 = vsel %vm1719, %v1699, %v1104
        %v1733 = vsel %vm1719, %v1700, %v1106
        %v1734 = vsel %vm1719, %v1701, %v1108
        %v1735 = vsel %vm1719, %v1702, %v1110
        %v1736 = vsel %vm1719, %v1703, %v1112
        %v1737 = vsel %vm1719, %v1704, %v1114
        %v1738 = vsel %vm1719, %v1705, %v1116
        %v1739 = vsel %vm1719, %v1706, %v1118
        %v1740 = vsel %vm1719, %v1707, %v1120
        %v1741 = vsel %vm1719, %v1708, %v1122
        %v1742 = vsel %vm1719, %v1709, %v1124
        %v1743 = vsel %vm1719, %v1710, %v1126
        %v1744 = vsel %vm1719, %v1711, %v1128
        %v1745 = vsel %vm1719, %v1712, %v1130
        %v1746 = vsel %vm1719, %v1713, %v1132
        %v1747 = vsel %vm1719, %v1714, %v1134
        %v1748 = vsel %vm1719, %v1715, %v1136
        %v1749 = vsel %vm1719, %v1716, %v1138
        %v1750 = vsel %vm1719, %v1717, %v1140
        %v1751 = vsel %vm1719, %v1718, %v1142
        %vm1752 = vcmask 785408
        %v1753 = vsel %vm1752, %v1720, %v1208
        %v1754 = vsel %vm1752, %v1721, %v1210
        %v1755 = vsel %vm1752, %v1722, %v1212
        %v1756 = vsel %vm1752, %v1723, %v1214
        %v1757 = vsel %vm1752, %v1724, %v1216
        %v1758 = vsel %vm1752, %v1725, %v1218
        %v1759 = vsel %vm1752, %v1726, %v1220
        %v1760 = vsel %vm1752, %v1727, %v1222
        %v1761 = vsel %vm1752, %v1728, %v1224
        %v1762 = vsel %vm1752, %v1729, %v1226
        %v1763 = vsel %vm1752, %v1730, %v1228
        %v1764 = vsel %vm1752, %v1731, %v1230
        %v1765 = vsel %vm1752, %v1732, %v1232
        %v1766 = vsel %vm1752, %v1733, %v1234
        %v1767 = vsel %vm1752, %v1734, %v1236
        %v1768 = vsel %vm1752, %v1735, %v1238
        %v1769 = vsel %vm1752, %v1736, %v1240
        %v1770 = vsel %vm1752, %v1737, %v1242
        %v1771 = vsel %vm1752, %v1738, %v1244
        %v1772 = vsel %vm1752, %v1739, %v1246
        %v1773 = vsel %vm1752, %v1740, %v1248
        %v1774 = vsel %vm1752, %v1741, %v1250
        %v1775 = vsel %vm1752, %v1742, %v1252
        %v1776 = vsel %vm1752, %v1743, %v1254
        %v1777 = vsel %vm1752, %v1744, %v1256
        %v1778 = vsel %vm1752, %v1745, %v1258
        %v1779 = vsel %vm1752, %v1746, %v1260
        %v1780 = vsel %vm1752, %v1747, %v1262
        %v1781 = vsel %vm1752, %v1748, %v1264
        %v1782 = vsel %vm1752, %v1749, %v1266
        %v1783 = vsel %vm1752, %v1750, %v1268
        %v1784 = vsel %vm1752, %v1751, %v1270
        %v1785 = vsel %vm385, %v758, %v1336
        %v1786 = vsel %vm385, %v759, %v1338
        %v1787 = vsel %vm385, %v760, %v1340
        %v1788 = vsel %vm385, %v761, %v1342
        %v1789 = vsel %vm385, %v762, %v1344
        %v1790 = vsel %vm385, %v763, %v1346
        %v1791 = vsel %vm385, %v764, %v1348
        %v1792 = vsel %vm385, %v765, %v1350
        %v1793 = vsel %vm385, %v766, %v1352
        %v1794 = vsel %vm385, %v767, %v1354
        %v1795 = vsel %vm385, %v768, %v1356
        %v1796 = vsel %vm385, %v769, %v1358
        %v1797 = vsel %vm385, %v770, %v1360
        %v1798 = vsel %vm385, %v771, %v1362
        %v1799 = vsel %vm385, %v772, %v1364
        %v1800 = vsel %vm385, %v773, %v1366
        %v1801 = vsel %vm385, %v774, %v1368
        %v1802 = vsel %vm385, %v775, %v1370
        %v1803 = vsel %vm385, %v776, %v1372
        %v1804 = vsel %vm385, %v777, %v1374
        %v1805 = vsel %vm385, %v778, %v1376
        %v1806 = vsel %vm385, %v779, %v1378
        %v1807 = vsel %vm385, %v780, %v1380
        %v1808 = vsel %vm385, %v781, %v1382
        %v1809 = vsel %vm385, %v782, %v1384
        %v1810 = vsel %vm385, %v783, %v1386
        %v1811 = vsel %vm385, %v784, %v1388
        %v1812 = vsel %vm385, %v785, %v1390
        %v1813 = vsel %vm385, %v786, %v1392
        %v1814 = vsel %vm385, %v787, %v1394
        %v1815 = vsel %vm385, %v788, %v1396
        %v1816 = vsel %vm385, %v789, %v1398
        %v1817 = vsel %vm1719, %v1785, %v1464
        %v1818 = vsel %vm1719, %v1786, %v1466
        %v1819 = vsel %vm1719, %v1787, %v1468
        %v1820 = vsel %vm1719, %v1788, %v1470
        %v1821 = vsel %vm1719, %v1789, %v1472
        %v1822 = vsel %vm1719, %v1790, %v1474
        %v1823 = vsel %vm1719, %v1791, %v1476
        %v1824 = vsel %vm1719, %v1792, %v1478
        %v1825 = vsel %vm1719, %v1793, %v1480
        %v1826 = vsel %vm1719, %v1794, %v1482
        %v1827 = vsel %vm1719, %v1795, %v1484
        %v1828 = vsel %vm1719, %v1796, %v1486
        %v1829 = vsel %vm1719, %v1797, %v1488
        %v1830 = vsel %vm1719, %v1798, %v1490
        %v1831 = vsel %vm1719, %v1799, %v1492
        %v1832 = vsel %vm1719, %v1800, %v1494
        %v1833 = vsel %vm1719, %v1801, %v1496
        %v1834 = vsel %vm1719, %v1802, %v1498
        %v1835 = vsel %vm1719, %v1803, %v1500
        %v1836 = vsel %vm1719, %v1804, %v1502
        %v1837 = vsel %vm1719, %v1805, %v1504
        %v1838 = vsel %vm1719, %v1806, %v1506
        %v1839 = vsel %vm1719, %v1807, %v1508
        %v1840 = vsel %vm1719, %v1808, %v1510
        %v1841 = vsel %vm1719, %v1809, %v1512
        %v1842 = vsel %vm1719, %v1810, %v1514
        %v1843 = vsel %vm1719, %v1811, %v1516
        %v1844 = vsel %vm1719, %v1812, %v1518
        %v1845 = vsel %vm1719, %v1813, %v1520
        %v1846 = vsel %vm1719, %v1814, %v1522
        %v1847 = vsel %vm1719, %v1815, %v1524
        %v1848 = vsel %vm1719, %v1816, %v1526
        %v1849 = vsel %vm1752, %v1817, %v1592
        %v1850 = vsel %vm1752, %v1818, %v1594
        %v1851 = vsel %vm1752, %v1819, %v1596
        %v1852 = vsel %vm1752, %v1820, %v1598
        %v1853 = vsel %vm1752, %v1821, %v1600
        %v1854 = vsel %vm1752, %v1822, %v1602
        %v1855 = vsel %vm1752, %v1823, %v1604
        %v1856 = vsel %vm1752, %v1824, %v1606
        %v1857 = vsel %vm1752, %v1825, %v1608
        %v1858 = vsel %vm1752, %v1826, %v1610
        %v1859 = vsel %vm1752, %v1827, %v1612
        %v1860 = vsel %vm1752, %v1828, %v1614
        %v1861 = vsel %vm1752, %v1829, %v1616
        %v1862 = vsel %vm1752, %v1830, %v1618
        %v1863 = vsel %vm1752, %v1831, %v1620
        %v1864 = vsel %vm1752, %v1832, %v1622
        %v1865 = vsel %vm1752, %v1833, %v1624
        %v1866 = vsel %vm1752, %v1834, %v1626
        %v1867 = vsel %vm1752, %v1835, %v1628
        %v1868 = vsel %vm1752, %v1836, %v1630
        %v1869 = vsel %vm1752, %v1837, %v1632
        %v1870 = vsel %vm1752, %v1838, %v1634
        %v1871 = vsel %vm1752, %v1839, %v1636
        %v1872 = vsel %vm1752, %v1840, %v1638
        %v1873 = vsel %vm1752, %v1841, %v1640
        %v1874 = vsel %vm1752, %v1842, %v1642
        %v1875 = vsel %vm1752, %v1843, %v1644
        %v1876 = vsel %vm1752, %v1844, %v1646
        %v1877 = vsel %vm1752, %v1845, %v1648
        %v1878 = vsel %vm1752, %v1846, %v1650
        %v1879 = vsel %vm1752, %v1847, %v1652
        %v1880 = vsel %vm1752, %v1848, %v1654
        %v1882 = vlaneseq
        %v1883 = vshrl.u32 %v1882, 7
        %v1884 = vsub.s32 0, %v1883
        %v1885 = vrot.slane %v597, %v1884
        %v1888 = vsel %vm385, %v887, 0
        %v1891 = vsel %vm385, %v888, 0
        %v1894 = vsel %vm385, %v889, 0
        %v1897 = vsel %vm385, %v890, 0
        %v1900 = vsel %vm385, %v891, 0
        %v1903 = vsel %vm385, %v892, 0
        %v1906 = vsel %vm385, %v893, 0
        %v1909 = vsel %vm385, %v894, 0
        %v1912 = vsel %vm385, %v895, 0
        %v1915 = vsel %vm385, %v896, 0
        %v1918 = vsel %vm385, %v897, 0
        %v1921 = vsel %vm385, %v898, 0
        %v1924 = vsel %vm385, %v899, 0
        %v1927 = vsel %vm385, %v900, 0
        %v1930 = vsel %vm385, %v901, 0
        %v1933 = vsel %vm385, %v902, 0
        %v1936 = vsel %vm385, %v903, 0
        %v1939 = vsel %vm385, %v904, 0
        %v1942 = vsel %vm385, %v905, 0
        %v1945 = vsel %vm385, %v906, 0
        %v1948 = vsel %vm385, %v907, 0
        %v1951 = vsel %vm385, %v908, 0
        %v1954 = vsel %vm385, %v909, 0
        %v1957 = vsel %vm385, %v910, 0
        %v1960 = vsel %vm385, %v911, 0
        %v1963 = vsel %vm385, %v912, 0
        %v1966 = vsel %vm385, %v913, 0
        %v1969 = vsel %vm385, %v914, 0
        %v1972 = vsel %vm385, %v915, 0
        %v1975 = vsel %vm385, %v916, 0
        %v1978 = vsel %vm385, %v917, 0
        %v1981 = vsel %vm385, %v918, 0
        %1983 = vmatprep.subr.mxu0 0.0
        %1984 = vmatpush1.msra.mxu0 %v561
        %1985 = vmatprep.subr.mxu0 0.0
        %1986 = vmatpush1.msra.mxu0 %v562
        %1987 = vmatprep.subr.mxu0 0.0
        %1988 = vmatpush1.msra.mxu0 %v563
        %1989 = vmatprep.subr.mxu0 0.0
        %1990 = vmatpush1.msra.mxu0 %v564
        %1991 = vmatprep.subr.mxu0 0.0
        %1992 = vmatpush1.msra.mxu0 %v565
        %1993 = vmatprep.subr.mxu0 0.0
        %1994 = vmatpush1.msra.mxu0 %v566
        %1995 = vmatprep.subr.mxu0 0.0
        %1996 = vmatpush1.msra.mxu0 %v567
        %1997 = vmatprep.subr.mxu0 0.0
        %1998 = vmatpush1.msra.mxu0 %v568
        %1999 = vmatprep.subr.mxu0 0.0
        %2000 = vmatpush1.msra.mxu0 %v569
        %2001 = vmatprep.subr.mxu0 0.0
        %2002 = vmatpush1.msra.mxu0 %v570
        %2003 = vmatprep.subr.mxu0 0.0
        %2004 = vmatpush1.msra.mxu0 %v571
        %2005 = vmatprep.subr.mxu0 0.0
        %2006 = vmatpush1.msra.mxu0 %v572
        %2007 = vmatprep.subr.mxu0 0.0
        %2008 = vmatpush1.msra.mxu0 %v573
        %2009 = vmatprep.subr.mxu0 0.0
        %2010 = vmatpush1.msra.mxu0 %v574
        %2011 = vmatprep.subr.mxu0 0.0
        %2012 = vmatpush1.msra.mxu0 %v575
        %2013 = vmatprep.subr.mxu0 0.0
        %2014 = vmatpush1.msra.mxu0 %v576
        %2015 = vmatprep.subr.mxu0 0.0
        %2016 = vmatpush1.msra.mxu0 %v577
        %2017 = vmatprep.subr.mxu0 0.0
        %2018 = vmatpush1.msra.mxu0 %v578
        %2019 = vmatprep.subr.mxu0 0.0
        %2020 = vmatpush1.msra.mxu0 %v579
        %2021 = vmatprep.subr.mxu0 0.0
        %2022 = vmatpush1.msra.mxu0 %v580
        %2023 = vmatprep.subr.mxu0 0.0
        %2024 = vmatpush1.msra.mxu0 %v581
        %2025 = vmatprep.subr.mxu0 0.0
        %2026 = vmatpush1.msra.mxu0 %v582
        %2027 = vmatprep.subr.mxu0 0.0
        %2028 = vmatpush1.msra.mxu0 %v583
        %2029 = vmatprep.subr.mxu0 0.0
        %2030 = vmatpush1.msra.mxu0 %v584
        %2031 = vmatprep.subr.mxu0 0.0
        %2032 = vmatpush1.msra.mxu0 %v585
        %2033 = vmatprep.subr.mxu0 0.0
        %2034 = vmatpush1.msra.mxu0 %v586
        %2035 = vmatprep.subr.mxu0 0.0
        %2036 = vmatpush1.msra.mxu0 %v587
        %2037 = vmatprep.subr.mxu0 0.0
        %2038 = vmatpush1.msra.mxu0 %v588
        %2039 = vmatprep.subr.mxu0 0.0
        %2040 = vmatpush1.msra.mxu0 %v589
        %2041 = vmatprep.subr.mxu0 0.0
        %2042 = vmatpush1.msra.mxu0 %v590
        %2043 = vmatprep.subr.mxu0 0.0
        %2044 = vmatpush1.msra.mxu0 %v591
        %2045 = vmatprep.subr.mxu0 0.0
        %2046 = vmatpush1.msra.mxu0 %v592
        %2047 = vmatprep.mubr.f32.mxu0 %v1849
        %2048 = vmatmul.mubr.f32.gmra.mrb[0].mxu0 %v1753
        %v2049 = vpop.f32.mrb[0].mxu0
        %v2050 = vadd.f32 %v1885, %v2049
        %v2051 = vpop.f32.mrb[0].mxu0
        %2052 = vmatprep.mubr.f32.mxu0 %v1850
        %2053 = vmatmul.mubr.f32.gmra.mrb[0].mxu0 %v1754
        %v2054 = vpop.f32.mrb[0].mxu0
        %v2055 = vadd.f32 %v1885, %v2054
        %v2056 = vpop.f32.mrb[0].mxu0
        %2057 = vmatprep.mubr.f32.mxu0 %v1851
        %2058 = vmatmul.mubr.f32.gmra.mrb[0].mxu0 %v1755
        %v2059 = vpop.f32.mrb[0].mxu0
        %v2060 = vadd.f32 %v1885, %v2059
        %v2061 = vpop.f32.mrb[0].mxu0
        %2062 = vmatprep.mubr.f32.mxu0 %v1852
        %2063 = vmatmul.mubr.f32.gmra.mrb[0].mxu0 %v1756
        %v2064 = vpop.f32.mrb[0].mxu0
        %v2065 = vadd.f32 %v1885, %v2064
        %v2066 = vpop.f32.mrb[0].mxu0
        %2067 = vmatprep.mubr.f32.mxu0 %v1853
        %2068 = vmatmul.mubr.f32.gmra.mrb[0].mxu0 %v1757
        %v2069 = vpop.f32.mrb[0].mxu0
        %v2070 = vadd.f32 %v1885, %v2069
        %v2071 = vpop.f32.mrb[0].mxu0
        %2072 = vmatprep.mubr.f32.mxu0 %v1854
        %2073 = vmatmul.mubr.f32.gmra.mrb[0].mxu0 %v1758
        %v2074 = vpop.f32.mrb[0].mxu0
        %v2075 = vadd.f32 %v1885, %v2074
        %v2076 = vpop.f32.mrb[0].mxu0
        %2077 = vmatprep.mubr.f32.mxu0 %v1855
        %2078 = vmatmul.mubr.f32.gmra.mrb[0].mxu0 %v1759
        %v2079 = vpop.f32.mrb[0].mxu0
        %v2080 = vadd.f32 %v1885, %v2079
        %v2081 = vpop.f32.mrb[0].mxu0
        %2082 = vmatprep.mubr.f32.mxu0 %v1856
        %2083 = vmatmul.mubr.f32.gmra.mrb[0].mxu0 %v1760
        %v2084 = vpop.f32.mrb[0].mxu0
        %v2085 = vadd.f32 %v1885, %v2084
        %v2086 = vpop.f32.mrb[0].mxu0
        %2087 = vmatprep.mubr.f32.mxu0 %v1857
        %2088 = vmatmul.mubr.f32.gmra.mrb[0].mxu0 %v1761
        %v2089 = vpop.f32.mrb[0].mxu0
        %v2090 = vadd.f32 %v1885, %v2089
        %v2091 = vpop.f32.mrb[0].mxu0
        %2092 = vmatprep.mubr.f32.mxu0 %v1858
        %2093 = vmatmul.mubr.f32.gmra.mrb[0].mxu0 %v1762
        %v2094 = vpop.f32.mrb[0].mxu0
        %v2095 = vadd.f32 %v1885, %v2094
        %v2096 = vpop.f32.mrb[0].mxu0
        %2097 = vmatprep.mubr.f32.mxu0 %v1859
        %2098 = vmatmul.mubr.f32.gmra.mrb[0].mxu0 %v1763
        %v2099 = vpop.f32.mrb[0].mxu0
        %v2100 = vadd.f32 %v1885, %v2099
        %v2101 = vpop.f32.mrb[0].mxu0
        %2102 = vmatprep.mubr.f32.mxu0 %v1860
        %2103 = vmatmul.mubr.f32.gmra.mrb[0].mxu0 %v1764
        %v2104 = vpop.f32.mrb[0].mxu0
        %v2105 = vadd.f32 %v1885, %v2104
        %v2106 = vpop.f32.mrb[0].mxu0
        %2107 = vmatprep.mubr.f32.mxu0 %v1861
        %2108 = vmatmul.mubr.f32.gmra.mrb[0].mxu0 %v1765
        %v2109 = vpop.f32.mrb[0].mxu0
        %v2110 = vadd.f32 %v1885, %v2109
        %v2111 = vpop.f32.mrb[0].mxu0
        %2112 = vmatprep.mubr.f32.mxu0 %v1862
        %2113 = vmatmul.mubr.f32.gmra.mrb[0].mxu0 %v1766
        %v2114 = vpop.f32.mrb[0].mxu0
        %v2115 = vadd.f32 %v1885, %v2114
        %v2116 = vpop.f32.mrb[0].mxu0
        %2117 = vmatprep.mubr.f32.mxu0 %v1863
        %2118 = vmatmul.mubr.f32.gmra.mrb[0].mxu0 %v1767
        %v2119 = vpop.f32.mrb[0].mxu0
        %v2120 = vadd.f32 %v1885, %v2119
        %v2121 = vpop.f32.mrb[0].mxu0
        %2122 = vmatprep.mubr.f32.mxu0 %v1864
        %2123 = vmatmul.mubr.f32.gmra.mrb[0].mxu0 %v1768
        %v2124 = vpop.f32.mrb[0].mxu0
        %v2125 = vadd.f32 %v1885, %v2124
        %v2126 = vpop.f32.mrb[0].mxu0
        %2127 = vmatprep.mubr.f32.mxu0 %v1865
        %2128 = vmatmul.mubr.f32.gmra.mrb[0].mxu0 %v1769
        %v2129 = vpop.f32.mrb[0].mxu0
        %v2130 = vadd.f32 %v1885, %v2129
        %v2131 = vpop.f32.mrb[0].mxu0
        %2132 = vmatprep.mubr.f32.mxu0 %v1866
        %2133 = vmatmul.mubr.f32.gmra.mrb[0].mxu0 %v1770
        %v2134 = vpop.f32.mrb[0].mxu0
        %v2135 = vadd.f32 %v1885, %v2134
        %v2136 = vpop.f32.mrb[0].mxu0
        %2137 = vmatprep.mubr.f32.mxu0 %v1867
        %2138 = vmatmul.mubr.f32.gmra.mrb[0].mxu0 %v1771
        %v2139 = vpop.f32.mrb[0].mxu0
        %v2140 = vadd.f32 %v1885, %v2139
        %v2141 = vpop.f32.mrb[0].mxu0
        %2142 = vmatprep.mubr.f32.mxu0 %v1868
        %2143 = vmatmul.mubr.f32.gmra.mrb[0].mxu0 %v1772
        %v2144 = vpop.f32.mrb[0].mxu0
        %v2145 = vadd.f32 %v1885, %v2144
        %v2146 = vpop.f32.mrb[0].mxu0
        %2147 = vmatprep.mubr.f32.mxu0 %v1869
        %2148 = vmatmul.mubr.f32.gmra.mrb[0].mxu0 %v1773
        %v2149 = vpop.f32.mrb[0].mxu0
        %v2150 = vadd.f32 %v1885, %v2149
        %v2151 = vpop.f32.mrb[0].mxu0
        %2152 = vmatprep.mubr.f32.mxu0 %v1870
        %2153 = vmatmul.mubr.f32.gmra.mrb[0].mxu0 %v1774
        %v2154 = vpop.f32.mrb[0].mxu0
        %v2155 = vadd.f32 %v1885, %v2154
        %v2156 = vpop.f32.mrb[0].mxu0
        %2157 = vmatprep.mubr.f32.mxu0 %v1871
        %2158 = vmatmul.mubr.f32.gmra.mrb[0].mxu0 %v1775
        %v2159 = vpop.f32.mrb[0].mxu0
        %v2160 = vadd.f32 %v1885, %v2159
        %v2161 = vpop.f32.mrb[0].mxu0
        %2162 = vmatprep.mubr.f32.mxu0 %v1872
        %2163 = vmatmul.mubr.f32.gmra.mrb[0].mxu0 %v1776
        %v2164 = vpop.f32.mrb[0].mxu0
        %v2165 = vadd.f32 %v1885, %v2164
        %v2166 = vpop.f32.mrb[0].mxu0
        %2167 = vmatprep.mubr.f32.mxu0 %v1873
        %2168 = vmatmul.mubr.f32.gmra.mrb[0].mxu0 %v1777
        %v2169 = vpop.f32.mrb[0].mxu0
        %v2170 = vadd.f32 %v1885, %v2169
        %v2171 = vpop.f32.mrb[0].mxu0
        %2172 = vmatprep.mubr.f32.mxu0 %v1874
        %2173 = vmatmul.mubr.f32.gmra.mrb[0].mxu0 %v1778
        %v2174 = vpop.f32.mrb[0].mxu0
        %v2175 = vadd.f32 %v1885, %v2174
        %v2176 = vpop.f32.mrb[0].mxu0
        %2177 = vmatprep.mubr.f32.mxu0 %v1875
        %2178 = vmatmul.mubr.f32.gmra.mrb[0].mxu0 %v1779
        %v2179 = vpop.f32.mrb[0].mxu0
        %v2180 = vadd.f32 %v1885, %v2179
        %v2181 = vpop.f32.mrb[0].mxu0
        %2182 = vmatprep.mubr.f32.mxu0 %v1876
        %2183 = vmatmul.mubr.f32.gmra.mrb[0].mxu0 %v1780
        %v2184 = vpop.f32.mrb[0].mxu0
        %v2185 = vadd.f32 %v1885, %v2184
        %v2186 = vpop.f32.mrb[0].mxu0
        %2187 = vmatprep.mubr.f32.mxu0 %v1877
        %2188 = vmatmul.mubr.f32.gmra.mrb[0].mxu0 %v1781
        %v2189 = vpop.f32.mrb[0].mxu0
        %v2190 = vadd.f32 %v1885, %v2189
        %v2191 = vpop.f32.mrb[0].mxu0
        %2192 = vmatprep.mubr.f32.mxu0 %v1878
        %2193 = vmatmul.mubr.f32.gmra.mrb[0].mxu0 %v1782
        %v2194 = vpop.f32.mrb[0].mxu0
        %v2195 = vadd.f32 %v1885, %v2194
        %v2196 = vpop.f32.mrb[0].mxu0
        %2197 = vmatprep.mubr.f32.mxu0 %v1879
        %2198 = vmatmul.mubr.f32.gmra.mrb[0].mxu0 %v1783
        %v2199 = vpop.f32.mrb[0].mxu0
        %v2200 = vadd.f32 %v1885, %v2199
        %v2201 = vpop.f32.mrb[0].mxu0
        %2202 = vmatprep.mubr.f32.mxu0 %v1880
        %2203 = vmatmul.mubr.f32.gmra.mrb[0].mxu0 %v1784
        %v2204 = vpop.f32.mrb[0].mxu0
        %v2205 = vadd.f32 %v1885, %v2204
        %v2206 = vpop.f32.mrb[0].mxu0
        %2207 = vdwg.mxu0
        %2208 = vmatprep.subr.mxu0 0.0
        %2209 = vmatpush1.msra.mxu0 %v593
        %2210 = vmatprep.subr.mxu0 0.0
        %2211 = vmatpush1.msra.mxu0 %v594
        %2212 = vmatprep.subr.mxu0 0.0
        %2213 = vmatpush1.msra.mxu0 %v595
        %2214 = vmatprep.subr.mxu0 0.0
        %2215 = vmatpush1.msra.mxu0 %v596
        %2216 = vmatprep.subr.mxu0 0.0
        %2217 = vmatpush1.msra.mxu0 0.0
        %2218 = vmatprep.subr.mxu0 0.0
        %2219 = vmatpush1.msra.mxu0 0.0
        %2220 = vmatprep.subr.mxu0 0.0
        %2221 = vmatpush1.msra.mxu0 0.0
        %2222 = vmatprep.subr.mxu0 0.0
        %2223 = vmatpush1.msra.mxu0 0.0
        %2224 = vmatprep.subr.mxu0 0.0
        %2225 = vmatpush1.msra.mxu0 0.0
        %2226 = vmatprep.subr.mxu0 0.0
        %2227 = vmatpush1.msra.mxu0 0.0
        %2228 = vmatprep.subr.mxu0 0.0
        %2229 = vmatpush1.msra.mxu0 0.0
        %2230 = vmatprep.subr.mxu0 0.0
        %2231 = vmatpush1.msra.mxu0 0.0
        %2232 = vmatprep.subr.mxu0 0.0
        %2233 = vmatpush1.msra.mxu0 0.0
        %2234 = vmatprep.subr.mxu0 0.0
        %2235 = vmatpush1.msra.mxu0 0.0
        %2236 = vmatprep.subr.mxu0 0.0
        %2237 = vmatpush1.msra.mxu0 0.0
        %2238 = vmatprep.subr.mxu0 0.0
        %2239 = vmatpush1.msra.mxu0 0.0
        %2240 = vmatprep.subr.mxu0 0.0
        %2241 = vmatpush1.msra.mxu0 0.0
        %2242 = vmatprep.subr.mxu0 0.0
        %2243 = vmatpush1.msra.mxu0 0.0
        %2244 = vmatprep.subr.mxu0 0.0
        %2245 = vmatpush1.msra.mxu0 0.0
        %2246 = vmatprep.subr.mxu0 0.0
        %2247 = vmatpush1.msra.mxu0 0.0
        %2248 = vmatprep.subr.mxu0 0.0
        %2249 = vmatpush1.msra.mxu0 0.0
        %2250 = vmatprep.subr.mxu0 0.0
        %2251 = vmatpush1.msra.mxu0 0.0
        %2252 = vmatprep.subr.mxu0 0.0
        %2253 = vmatpush1.msra.mxu0 0.0
        %2254 = vmatprep.subr.mxu0 0.0
        %2255 = vmatpush1.msra.mxu0 0.0
        %2256 = vmatprep.subr.mxu0 0.0
        %2257 = vmatpush1.msra.mxu0 0.0
        %2258 = vmatprep.subr.mxu0 0.0
        %2259 = vmatpush1.msra.mxu0 0.0
        %2260 = vmatprep.subr.mxu0 0.0
        %2261 = vmatpush1.msra.mxu0 0.0
        %2262 = vmatprep.subr.mxu0 0.0
        %2263 = vmatpush1.msra.mxu0 0.0
        %2264 = vmatprep.subr.mxu0 0.0
        %2265 = vmatpush1.msra.mxu0 0.0
        %2266 = vmatprep.subr.mxu0 0.0
        %2267 = vmatpush1.msra.mxu0 0.0
        %2268 = vmatprep.subr.mxu0 0.0
        %2269 = vmatpush1.msra.mxu0 0.0
        %2270 = vmatprep.subr.mxu0 0.0
        %2271 = vmatpush1.msra.mxu0 0.0
        %2272 = vmatprep.mubr.f32.mxu0 0.0
        %2273 = vmatmul.mubr.f32.gmra.mrb[0].mxu0 %v1888
        %v2274 = vpop.f32.mrb[0].mxu0
        %v2275 = vadd.f32 %v2050, %v2274
        %v2276 = vpop.f32.mrb[0].mxu0
        %2277 = vmatprep.mubr.f32.mxu0 0.0
        %2278 = vmatmul.mubr.f32.gmra.mrb[0].mxu0 %v1891
        %v2279 = vpop.f32.mrb[0].mxu0
        %v2280 = vadd.f32 %v2055, %v2279
        %v2281 = vpop.f32.mrb[0].mxu0
        %2282 = vmatprep.mubr.f32.mxu0 0.0
        %2283 = vmatmul.mubr.f32.gmra.mrb[0].mxu0 %v1894
        %v2284 = vpop.f32.mrb[0].mxu0
        %v2285 = vadd.f32 %v2060, %v2284
        %v2286 = vpop.f32.mrb[0].mxu0
        %2287 = vmatprep.mubr.f32.mxu0 0.0
        %2288 = vmatmul.mubr.f32.gmra.mrb[0].mxu0 %v1897
        %v2289 = vpop.f32.mrb[0].mxu0
        %v2290 = vadd.f32 %v2065, %v2289
        %v2291 = vpop.f32.mrb[0].mxu0
        %2292 = vmatprep.mubr.f32.mxu0 0.0
        %2293 = vmatmul.mubr.f32.gmra.mrb[0].mxu0 %v1900
        %v2294 = vpop.f32.mrb[0].mxu0
        %v2295 = vadd.f32 %v2070, %v2294
        %v2296 = vpop.f32.mrb[0].mxu0
        %2297 = vmatprep.mubr.f32.mxu0 0.0
        %2298 = vmatmul.mubr.f32.gmra.mrb[0].mxu0 %v1903
        %v2299 = vpop.f32.mrb[0].mxu0
        %v2300 = vadd.f32 %v2075, %v2299
        %v2301 = vpop.f32.mrb[0].mxu0
        %2302 = vmatprep.mubr.f32.mxu0 0.0
        %2303 = vmatmul.mubr.f32.gmra.mrb[0].mxu0 %v1906
        %v2304 = vpop.f32.mrb[0].mxu0
        %v2305 = vadd.f32 %v2080, %v2304
        %v2306 = vpop.f32.mrb[0].mxu0
        %2307 = vmatprep.mubr.f32.mxu0 0.0
        %2308 = vmatmul.mubr.f32.gmra.mrb[0].mxu0 %v1909
        %v2309 = vpop.f32.mrb[0].mxu0
        %v2310 = vadd.f32 %v2085, %v2309
        %v2311 = vpop.f32.mrb[0].mxu0
        %2312 = vmatprep.mubr.f32.mxu0 0.0
        %2313 = vmatmul.mubr.f32.gmra.mrb[0].mxu0 %v1912
        %v2314 = vpop.f32.mrb[0].mxu0
        %v2315 = vadd.f32 %v2090, %v2314
        %v2316 = vpop.f32.mrb[0].mxu0
        %2317 = vmatprep.mubr.f32.mxu0 0.0
        %2318 = vmatmul.mubr.f32.gmra.mrb[0].mxu0 %v1915
        %v2319 = vpop.f32.mrb[0].mxu0
        %v2320 = vadd.f32 %v2095, %v2319
        %v2321 = vpop.f32.mrb[0].mxu0
        %2322 = vmatprep.mubr.f32.mxu0 0.0
        %2323 = vmatmul.mubr.f32.gmra.mrb[0].mxu0 %v1918
        %v2324 = vpop.f32.mrb[0].mxu0
        %v2325 = vadd.f32 %v2100, %v2324
        %v2326 = vpop.f32.mrb[0].mxu0
        %2327 = vmatprep.mubr.f32.mxu0 0.0
        %2328 = vmatmul.mubr.f32.gmra.mrb[0].mxu0 %v1921
        %v2329 = vpop.f32.mrb[0].mxu0
        %v2330 = vadd.f32 %v2105, %v2329
        %v2331 = vpop.f32.mrb[0].mxu0
        %2332 = vmatprep.mubr.f32.mxu0 0.0
        %2333 = vmatmul.mubr.f32.gmra.mrb[0].mxu0 %v1924
        %v2334 = vpop.f32.mrb[0].mxu0
        %v2335 = vadd.f32 %v2110, %v2334
        %v2336 = vpop.f32.mrb[0].mxu0
        %2337 = vmatprep.mubr.f32.mxu0 0.0
        %2338 = vmatmul.mubr.f32.gmra.mrb[0].mxu0 %v1927
        %v2339 = vpop.f32.mrb[0].mxu0
        %v2340 = vadd.f32 %v2115, %v2339
        %v2341 = vpop.f32.mrb[0].mxu0
        %2342 = vmatprep.mubr.f32.mxu0 0.0
        %2343 = vmatmul.mubr.f32.gmra.mrb[0].mxu0 %v1930
        %v2344 = vpop.f32.mrb[0].mxu0
        %v2345 = vadd.f32 %v2120, %v2344
        %v2346 = vpop.f32.mrb[0].mxu0
        %2347 = vmatprep.mubr.f32.mxu0 0.0
        %2348 = vmatmul.mubr.f32.gmra.mrb[0].mxu0 %v1933
        %v2349 = vpop.f32.mrb[0].mxu0
        %v2350 = vadd.f32 %v2125, %v2349
        %v2351 = vpop.f32.mrb[0].mxu0
        %2352 = vmatprep.mubr.f32.mxu0 0.0
        %2353 = vmatmul.mubr.f32.gmra.mrb[0].mxu0 %v1936
        %v2354 = vpop.f32.mrb[0].mxu0
        %v2355 = vadd.f32 %v2130, %v2354
        %v2356 = vpop.f32.mrb[0].mxu0
        %2357 = vmatprep.mubr.f32.mxu0 0.0
        %2358 = vmatmul.mubr.f32.gmra.mrb[0].mxu0 %v1939
        %v2359 = vpop.f32.mrb[0].mxu0
        %v2360 = vadd.f32 %v2135, %v2359
        %v2361 = vpop.f32.mrb[0].mxu0
        %2362 = vmatprep.mubr.f32.mxu0 0.0
        %2363 = vmatmul.mubr.f32.gmra.mrb[0].mxu0 %v1942
        %v2364 = vpop.f32.mrb[0].mxu0
        %v2365 = vadd.f32 %v2140, %v2364
        %v2366 = vpop.f32.mrb[0].mxu0
        %2367 = vmatprep.mubr.f32.mxu0 0.0
        %2368 = vmatmul.mubr.f32.gmra.mrb[0].mxu0 %v1945
        %v2369 = vpop.f32.mrb[0].mxu0
        %v2370 = vadd.f32 %v2145, %v2369
        %v2371 = vpop.f32.mrb[0].mxu0
        %2372 = vmatprep.mubr.f32.mxu0 0.0
        %2373 = vmatmul.mubr.f32.gmra.mrb[0].mxu0 %v1948
        %v2374 = vpop.f32.mrb[0].mxu0
        %v2375 = vadd.f32 %v2150, %v2374
        %v2376 = vpop.f32.mrb[0].mxu0
        %2377 = vmatprep.mubr.f32.mxu0 0.0
        %2378 = vmatmul.mubr.f32.gmra.mrb[0].mxu0 %v1951
        %v2379 = vpop.f32.mrb[0].mxu0
        %v2380 = vadd.f32 %v2155, %v2379
        %v2381 = vpop.f32.mrb[0].mxu0
        %2382 = vmatprep.mubr.f32.mxu0 0.0
        %2383 = vmatmul.mubr.f32.gmra.mrb[0].mxu0 %v1954
        %v2384 = vpop.f32.mrb[0].mxu0
        %v2385 = vadd.f32 %v2160, %v2384
        %v2386 = vpop.f32.mrb[0].mxu0
        %2387 = vmatprep.mubr.f32.mxu0 0.0
        %2388 = vmatmul.mubr.f32.gmra.mrb[0].mxu0 %v1957
        %v2389 = vpop.f32.mrb[0].mxu0
        %v2390 = vadd.f32 %v2165, %v2389
        %v2391 = vpop.f32.mrb[0].mxu0
        %2392 = vmatprep.mubr.f32.mxu0 0.0
        %2393 = vmatmul.mubr.f32.gmra.mrb[0].mxu0 %v1960
        %v2394 = vpop.f32.mrb[0].mxu0
        %v2395 = vadd.f32 %v2170, %v2394
        %v2396 = vpop.f32.mrb[0].mxu0
        %2397 = vmatprep.mubr.f32.mxu0 0.0
        %2398 = vmatmul.mubr.f32.gmra.mrb[0].mxu0 %v1963
        %v2399 = vpop.f32.mrb[0].mxu0
        %v2400 = vadd.f32 %v2175, %v2399
        %v2401 = vpop.f32.mrb[0].mxu0
        %2402 = vmatprep.mubr.f32.mxu0 0.0
        %2403 = vmatmul.mubr.f32.gmra.mrb[0].mxu0 %v1966
        %v2404 = vpop.f32.mrb[0].mxu0
        %v2405 = vadd.f32 %v2180, %v2404
        %v2406 = vpop.f32.mrb[0].mxu0
        %2407 = vmatprep.mubr.f32.mxu0 0.0
        %2408 = vmatmul.mubr.f32.gmra.mrb[0].mxu0 %v1969
        %v2409 = vpop.f32.mrb[0].mxu0
        %v2410 = vadd.f32 %v2185, %v2409
        %v2411 = vpop.f32.mrb[0].mxu0
        %2412 = vmatprep.mubr.f32.mxu0 0.0
        %2413 = vmatmul.mubr.f32.gmra.mrb[0].mxu0 %v1972
        %v2414 = vpop.f32.mrb[0].mxu0
        %v2415 = vadd.f32 %v2190, %v2414
        %v2416 = vpop.f32.mrb[0].mxu0
        %2417 = vmatprep.mubr.f32.mxu0 0.0
        %2418 = vmatmul.mubr.f32.gmra.mrb[0].mxu0 %v1975
        %v2419 = vpop.f32.mrb[0].mxu0
        %v2420 = vadd.f32 %v2195, %v2419
        %v2421 = vpop.f32.mrb[0].mxu0
        %2422 = vmatprep.mubr.f32.mxu0 0.0
        %2423 = vmatmul.mubr.f32.gmra.mrb[0].mxu0 %v1978
        %v2424 = vpop.f32.mrb[0].mxu0
        %v2425 = vadd.f32 %v2200, %v2424
        %v2426 = vpop.f32.mrb[0].mxu0
        %2427 = vmatprep.mubr.f32.mxu0 0.0
        %2428 = vmatmul.mubr.f32.gmra.mrb[0].mxu0 %v1981
        %v2429 = vpop.f32.mrb[0].mxu0
        %v2430 = vadd.f32 %v2205, %v2429
        %v2431 = vpop.f32.mrb[0].mxu0
        %2432 = vdwg.mxu0
        %v2433 = vmax.f32 %v2275, 0.0
        %v2434 = vmax.f32 %v2280, 0.0
        %v2435 = vmax.f32 %v2285, 0.0
        %v2436 = vmax.f32 %v2290, 0.0
        %v2437 = vmax.f32 %v2295, 0.0
        %v2438 = vmax.f32 %v2300, 0.0
        %v2439 = vmax.f32 %v2305, 0.0
        %v2440 = vmax.f32 %v2310, 0.0
        %v2441 = vmax.f32 %v2315, 0.0
        %v2442 = vmax.f32 %v2320, 0.0
        %v2443 = vmax.f32 %v2325, 0.0
        %v2444 = vmax.f32 %v2330, 0.0
        %v2445 = vmax.f32 %v2335, 0.0
        %v2446 = vmax.f32 %v2340, 0.0
        %v2447 = vmax.f32 %v2345, 0.0
        %v2448 = vmax.f32 %v2350, 0.0
        %v2449 = vmax.f32 %v2355, 0.0
        %v2450 = vmax.f32 %v2360, 0.0
        %v2451 = vmax.f32 %v2365, 0.0
        %v2452 = vmax.f32 %v2370, 0.0
        %v2453 = vmax.f32 %v2375, 0.0
        %v2454 = vmax.f32 %v2380, 0.0
        %v2455 = vmax.f32 %v2385, 0.0
        %v2456 = vmax.f32 %v2390, 0.0
        %v2457 = vmax.f32 %v2395, 0.0
        %v2458 = vmax.f32 %v2400, 0.0
        %v2459 = vmax.f32 %v2405, 0.0
        %v2460 = vmax.f32 %v2410, 0.0
        %v2461 = vmax.f32 %v2415, 0.0
        %v2462 = vmax.f32 %v2420, 0.0
        %v2463 = vmax.f32 %v2425, 0.0
        %v2464 = vmax.f32 %v2430, 0.0
        %v2465 = vld [vmem:[%s3] sm:$0xff]
        %v2466 = vld [vmem:[%s3 + $0x8] sm:$0xff]
        %v2467 = vld [vmem:[%s3 + $0x10] sm:$0xff]
        %v2468 = vld [vmem:[%s3 + $0x18] sm:$0xff]
        %v2469 = vld [vmem:[%s3 + $0x20] sm:$0xff]
        %v2470 = vld [vmem:[%s3 + $0x28] sm:$0xff]
        %v2471 = vld [vmem:[%s3 + $0x30] sm:$0xff]
        %v2472 = vld [vmem:[%s3 + $0x38] sm:$0xff]
        %v2473 = vld [vmem:[%s3 + $0x40] sm:$0xff]
        %v2474 = vld [vmem:[%s3 + $0x48] sm:$0xff]
        %v2475 = vld [vmem:[%s3 + $0x50] sm:$0xff]
        %v2476 = vld [vmem:[%s3 + $0x58] sm:$0xff]
        %v2477 = vld [vmem:[%s3 + $0x60] sm:$0xff]
        %v2478 = vld [vmem:[%s3 + $0x68] sm:$0xff]
        %v2479 = vld [vmem:[%s3 + $0x70] sm:$0xff]
        %v2480 = vld [vmem:[%s3 + $0x78] sm:$0xff]
        %v2481 = vld [vmem:[%s3 + $0x80] sm:$0xff]
        %v2482 = vld [vmem:[%s3 + $0x88] sm:$0xff]
        %v2483 = vld [vmem:[%s3 + $0x90] sm:$0xff]
        %v2484 = vld [vmem:[%s3 + $0x98] sm:$0xff]
        %v2485 = vld [vmem:[%s3 + $0xa0] sm:$0xff]
        %v2486 = vld [vmem:[%s3 + $0xa8] sm:$0xff]
        %v2487 = vld [vmem:[%s3 + $0xb0] sm:$0xff]
        %v2488 = vld [vmem:[%s3 + $0xb8] sm:$0xff]
        %v2489 = vld [vmem:[%s3 + $0xc0] sm:$0xff]
        %v2490 = vld [vmem:[%s3 + $0xc8] sm:$0xff]
        %v2491 = vld [vmem:[%s3 + $0xd0] sm:$0xff]
        %v2492 = vld [vmem:[%s3 + $0xd8] sm:$0xff]
        %v2493 = vld [vmem:[%s3 + $0xe0] sm:$0xff]
        %v2494 = vld [vmem:[%s3 + $0xe8] sm:$0xff]
        %v2495 = vld [vmem:[%s3 + $0xf0] sm:$0xff]
        %v2496 = vld [vmem:[%s3 + $0xf8] sm:$0xff]
        %v2497 = vld [vmem:[%s3 + $0x100] sm:$0xff]
        %v2498 = vld [vmem:[%s3 + $0x108] sm:$0xff]
        %v2499 = vld [vmem:[%s3 + $0x110] sm:$0xff]
        %v2500 = vld [vmem:[%s3 + $0x118] sm:$0xff]
        %v2501 = vld [vmem:[%s4] sm:$0x1]
        %2502 = vst.msk [vmem:[%s394 + $0x1] sm:$0xff] %vm385, %v2433
        %2503 = vst.msk [vmem:[%s394 + $0x9] sm:$0xff] %vm385, %v2434
        %2504 = vst.msk [vmem:[%s394 + $0x19] sm:$0xff] %vm385, %v2435
        %2505 = vst.msk [vmem:[%s394 + $0x21] sm:$0xff] %vm385, %v2436
        %2506 = vst.msk [vmem:[%s394 + $0x31] sm:$0xff] %vm385, %v2437
        %2507 = vst.msk [vmem:[%s394 + $0x39] sm:$0xff] %vm385, %v2438
        %2508 = vst.msk [vmem:[%s394 + $0x49] sm:$0xff] %vm385, %v2439
        %2509 = vst.msk [vmem:[%s394 + $0x51] sm:$0xff] %vm385, %v2440
        %2510 = vst.msk [vmem:[%s394 + $0x61] sm:$0xff] %vm385, %v2441
        %2511 = vst.msk [vmem:[%s394 + $0x69] sm:$0xff] %vm385, %v2442
        %2512 = vst.msk [vmem:[%s394 + $0x79] sm:$0xff] %vm385, %v2443
        %2513 = vst.msk [vmem:[%s394 + $0x81] sm:$0xff] %vm385, %v2444
        %2514 = vst.msk [vmem:[%s394 + $0x91] sm:$0xff] %vm385, %v2445
        %2515 = vst.msk [vmem:[%s394 + $0x99] sm:$0xff] %vm385, %v2446
        %2516 = vst.msk [vmem:[%s394 + $0xa9] sm:$0xff] %vm385, %v2447
        %2517 = vst.msk [vmem:[%s394 + $0xb1] sm:$0xff] %vm385, %v2448
        %2518 = vst.msk [vmem:[%s394 + $0xc1] sm:$0xff] %vm385, %v2449
        %2519 = vst.msk [vmem:[%s394 + $0xc9] sm:$0xff] %vm385, %v2450
        %2520 = vst.msk [vmem:[%s394 + $0xd9] sm:$0xff] %vm385, %v2451
        %2521 = vst.msk [vmem:[%s394 + $0xe1] sm:$0xff] %vm385, %v2452
        %2522 = vst.msk [vmem:[%s394 + $0xf1] sm:$0xff] %vm385, %v2453
        %2523 = vst.msk [vmem:[%s394 + $0xf9] sm:$0xff] %vm385, %v2454
        %2524 = vst.msk [vmem:[%s394 + $0x109] sm:$0xff] %vm385, %v2455
        %2525 = vst.msk [vmem:[%s394 + $0x111] sm:$0xff] %vm385, %v2456
        %2526 = vst.msk [vmem:[%s394 + $0x121] sm:$0xff] %vm385, %v2457
        %2527 = vst.msk [vmem:[%s394 + $0x129] sm:$0xff] %vm385, %v2458
        %2528 = vst.msk [vmem:[%s394 + $0x139] sm:$0xff] %vm385, %v2459
        %2529 = vst.msk [vmem:[%s394 + $0x141] sm:$0xff] %vm385, %v2460
        %2530 = vst.msk [vmem:[%s394 + $0x151] sm:$0xff] %vm385, %v2461
        %2531 = vst.msk [vmem:[%s394 + $0x159] sm:$0xff] %vm385, %v2462
        %2532 = vst.msk [vmem:[%s394 + $0x169] sm:$0xff] %vm385, %v2463
        %2533 = vst.msk [vmem:[%s394 + $0x171] sm:$0xff] %vm385, %v2464
        %v2534 = vld [vmem:[#allocation2] sm:$0xff]
        %v2535 = vld [vmem:[#allocation2 + $0x8] sm:$0xff]
        %v2536 = vld [vmem:[#allocation2 + $0x18] sm:$0xff]
        %v2537 = vld [vmem:[#allocation2 + $0x20] sm:$0xff]
        %v2538 = vld [vmem:[#allocation2 + $0x30] sm:$0xff]
        %v2539 = vld [vmem:[#allocation2 + $0x38] sm:$0xff]
        %v2540 = vld [vmem:[#allocation2 + $0x48] sm:$0xff]
        %v2541 = vld [vmem:[#allocation2 + $0x50] sm:$0xff]
        %v2542 = vld [vmem:[#allocation2 + $0x60] sm:$0xff]
        %v2543 = vld [vmem:[#allocation2 + $0x68] sm:$0xff]
        %v2544 = vld [vmem:[#allocation2 + $0x78] sm:$0xff]
        %v2545 = vld [vmem:[#allocation2 + $0x80] sm:$0xff]
        %v2546 = vld [vmem:[#allocation2 + $0x90] sm:$0xff]
        %v2547 = vld [vmem:[#allocation2 + $0x98] sm:$0xff]
        %v2548 = vld [vmem:[#allocation2 + $0xa8] sm:$0xff]
        %v2549 = vld [vmem:[#allocation2 + $0xb0] sm:$0xff]
        %v2550 = vld [vmem:[#allocation2 + $0xc0] sm:$0xff]
        %v2551 = vld [vmem:[#allocation2 + $0xc8] sm:$0xff]
        %v2552 = vld [vmem:[#allocation2 + $0xd8] sm:$0xff]
        %v2553 = vld [vmem:[#allocation2 + $0xe0] sm:$0xff]
        %v2554 = vld [vmem:[#allocation2 + $0xf0] sm:$0xff]
        %v2555 = vld [vmem:[#allocation2 + $0xf8] sm:$0xff]
        %v2556 = vld [vmem:[#allocation2 + $0x108] sm:$0xff]
        %v2557 = vld [vmem:[#allocation2 + $0x110] sm:$0xff]
        %v2558 = vld [vmem:[#allocation2 + $0x120] sm:$0xff]
        %v2559 = vld [vmem:[#allocation2 + $0x128] sm:$0xff]
        %v2560 = vld [vmem:[#allocation2 + $0x138] sm:$0xff]
        %v2561 = vld [vmem:[#allocation2 + $0x140] sm:$0xff]
        %v2562 = vld [vmem:[#allocation2 + $0x150] sm:$0xff]
        %v2563 = vld [vmem:[#allocation2 + $0x158] sm:$0xff]
        %v2564 = vld [vmem:[#allocation2 + $0x168] sm:$0xff]
        %v2565 = vld [vmem:[#allocation2 + $0x170] sm:$0xff]
        %v2566 = vld [vmem:[#allocation2 + $0x1] sm:$0xff]
        %v2567 = vld [vmem:[#allocation2 + $0x9] sm:$0xff]
        %v2568 = vld [vmem:[#allocation2 + $0x19] sm:$0xff]
        %v2569 = vld [vmem:[#allocation2 + $0x21] sm:$0xff]
        %v2570 = vld [vmem:[#allocation2 + $0x31] sm:$0xff]
        %v2571 = vld [vmem:[#allocation2 + $0x39] sm:$0xff]
        %v2572 = vld [vmem:[#allocation2 + $0x49] sm:$0xff]
        %v2573 = vld [vmem:[#allocation2 + $0x51] sm:$0xff]
        %v2574 = vld [vmem:[#allocation2 + $0x61] sm:$0xff]
        %v2575 = vld [vmem:[#allocation2 + $0x69] sm:$0xff]
        %v2576 = vld [vmem:[#allocation2 + $0x79] sm:$0xff]
        %v2577 = vld [vmem:[#allocation2 + $0x81] sm:$0xff]
        %v2578 = vld [vmem:[#allocation2 + $0x91] sm:$0xff]
        %v2579 = vld [vmem:[#allocation2 + $0x99] sm:$0xff]
        %v2580 = vld [vmem:[#allocation2 + $0xa9] sm:$0xff]
        %v2581 = vld [vmem:[#allocation2 + $0xb1] sm:$0xff]
        %v2582 = vld [vmem:[#allocation2 + $0xc1] sm:$0xff]
        %v2583 = vld [vmem:[#allocation2 + $0xc9] sm:$0xff]
        %v2584 = vld [vmem:[#allocation2 + $0xd9] sm:$0xff]
        %v2585 = vld [vmem:[#allocation2 + $0xe1] sm:$0xff]
        %v2586 = vld [vmem:[#allocation2 + $0xf1] sm:$0xff]
        %v2587 = vld [vmem:[#allocation2 + $0xf9] sm:$0xff]
        %v2588 = vld [vmem:[#allocation2 + $0x109] sm:$0xff]
        %v2589 = vld [vmem:[#allocation2 + $0x111] sm:$0xff]
        %v2590 = vld [vmem:[#allocation2 + $0x121] sm:$0xff]
        %v2591 = vld [vmem:[#allocation2 + $0x129] sm:$0xff]
        %v2592 = vld [vmem:[#allocation2 + $0x139] sm:$0xff]
        %v2593 = vld [vmem:[#allocation2 + $0x141] sm:$0xff]
        %v2594 = vld [vmem:[#allocation2 + $0x151] sm:$0xff]
        %v2595 = vld [vmem:[#allocation2 + $0x159] sm:$0xff]
        %v2596 = vld [vmem:[#allocation2 + $0x169] sm:$0xff]
        %v2597 = vld [vmem:[#allocation2 + $0x171] sm:$0xff]
        %v2598 = vld [vmem:[#allocation2 + $0x2] sm:$0xff]
        %v2599 = vld [vmem:[#allocation2 + $0xa] sm:$0xff]
        %v2600 = vld [vmem:[#allocation2 + $0x1a] sm:$0xff]
        %v2601 = vld [vmem:[#allocation2 + $0x22] sm:$0xff]
        %v2602 = vld [vmem:[#allocation2 + $0x32] sm:$0xff]
        %v2603 = vld [vmem:[#allocation2 + $0x3a] sm:$0xff]
        %v2604 = vld [vmem:[#allocation2 + $0x4a] sm:$0xff]
        %v2605 = vld [vmem:[#allocation2 + $0x52] sm:$0xff]
        %v2606 = vld [vmem:[#allocation2 + $0x62] sm:$0xff]
        %v2607 = vld [vmem:[#allocation2 + $0x6a] sm:$0xff]
        %v2608 = vld [vmem:[#allocation2 + $0x7a] sm:$0xff]
        %v2609 = vld [vmem:[#allocation2 + $0x82] sm:$0xff]
        %v2610 = vld [vmem:[#allocation2 + $0x92] sm:$0xff]
        %v2611 = vld [vmem:[#allocation2 + $0x9a] sm:$0xff]
        %v2612 = vld [vmem:[#allocation2 + $0xaa] sm:$0xff]
        %v2613 = vld [vmem:[#allocation2 + $0xb2] sm:$0xff]
        %v2614 = vld [vmem:[#allocation2 + $0xc2] sm:$0xff]
        %v2615 = vld [vmem:[#allocation2 + $0xca] sm:$0xff]
        %v2616 = vld [vmem:[#allocation2 + $0xda] sm:$0xff]
        %v2617 = vld [vmem:[#allocation2 + $0xe2] sm:$0xff]
        %v2618 = vld [vmem:[#allocation2 + $0xf2] sm:$0xff]
        %v2619 = vld [vmem:[#allocation2 + $0xfa] sm:$0xff]
        %v2620 = vld [vmem:[#allocation2 + $0x10a] sm:$0xff]
        %v2621 = vld [vmem:[#allocation2 + $0x112] sm:$0xff]
        %v2622 = vld [vmem:[#allocation2 + $0x122] sm:$0xff]
        %v2623 = vld [vmem:[#allocation2 + $0x12a] sm:$0xff]
        %v2624 = vld [vmem:[#allocation2 + $0x13a] sm:$0xff]
        %v2625 = vld [vmem:[#allocation2 + $0x142] sm:$0xff]
        %v2626 = vld [vmem:[#allocation2 + $0x152] sm:$0xff]
        %v2627 = vld [vmem:[#allocation2 + $0x15a] sm:$0xff]
        %v2628 = vld [vmem:[#allocation2 + $0x16a] sm:$0xff]
        %v2629 = vld [vmem:[#allocation2 + $0x172] sm:$0xff]
        %v2630 = vld [vmem:[%s394] sm:$0xff]
        %v2631 = vld [vmem:[%s394 + $0x8] sm:$0xff]
        %v2632 = vld [vmem:[%s394 + $0x18] sm:$0xff]
        %v2633 = vld [vmem:[%s394 + $0x20] sm:$0xff]
        %v2634 = vld [vmem:[%s394 + $0x30] sm:$0xff]
        %v2635 = vld [vmem:[%s394 + $0x38] sm:$0xff]
        %v2636 = vld [vmem:[%s394 + $0x48] sm:$0xff]
        %v2637 = vld [vmem:[%s394 + $0x50] sm:$0xff]
        %v2638 = vld [vmem:[%s394 + $0x60] sm:$0xff]
        %v2639 = vld [vmem:[%s394 + $0x68] sm:$0xff]
        %v2640 = vld [vmem:[%s394 + $0x78] sm:$0xff]
        %v2641 = vld [vmem:[%s394 + $0x80] sm:$0xff]
        %v2642 = vld [vmem:[%s394 + $0x90] sm:$0xff]
        %v2643 = vld [vmem:[%s394 + $0x98] sm:$0xff]
        %v2644 = vld [vmem:[%s394 + $0xa8] sm:$0xff]
        %v2645 = vld [vmem:[%s394 + $0xb0] sm:$0xff]
        %v2646 = vld [vmem:[%s394 + $0xc0] sm:$0xff]
        %v2647 = vld [vmem:[%s394 + $0xc8] sm:$0xff]
        %v2648 = vld [vmem:[%s394 + $0xd8] sm:$0xff]
        %v2649 = vld [vmem:[%s394 + $0xe0] sm:$0xff]
        %v2650 = vld [vmem:[%s394 + $0xf0] sm:$0xff]
        %v2651 = vld [vmem:[%s394 + $0xf8] sm:$0xff]
        %v2652 = vld [vmem:[%s394 + $0x108] sm:$0xff]
        %v2653 = vld [vmem:[%s394 + $0x110] sm:$0xff]
        %v2654 = vld [vmem:[%s394 + $0x120] sm:$0xff]
        %v2655 = vld [vmem:[%s394 + $0x128] sm:$0xff]
        %v2656 = vld [vmem:[%s394 + $0x138] sm:$0xff]
        %v2657 = vld [vmem:[%s394 + $0x140] sm:$0xff]
        %v2658 = vld [vmem:[%s394 + $0x150] sm:$0xff]
        %v2659 = vld [vmem:[%s394 + $0x158] sm:$0xff]
        %v2660 = vld [vmem:[%s394 + $0x168] sm:$0xff]
        %v2661 = vld [vmem:[%s394 + $0x170] sm:$0xff]
        %v2662 = vld [vmem:[%s394 + $0x1] sm:$0xff]
        %v2663 = vld [vmem:[%s394 + $0x9] sm:$0xff]
        %v2664 = vld [vmem:[%s394 + $0x19] sm:$0xff]
        %v2665 = vld [vmem:[%s394 + $0x21] sm:$0xff]
        %v2666 = vld [vmem:[%s394 + $0x31] sm:$0xff]
        %v2667 = vld [vmem:[%s394 + $0x39] sm:$0xff]
        %v2668 = vld [vmem:[%s394 + $0x49] sm:$0xff]
        %v2669 = vld [vmem:[%s394 + $0x51] sm:$0xff]
        %v2670 = vld [vmem:[%s394 + $0x61] sm:$0xff]
        %v2671 = vld [vmem:[%s394 + $0x69] sm:$0xff]
        %v2672 = vld [vmem:[%s394 + $0x79] sm:$0xff]
        %v2673 = vld [vmem:[%s394 + $0x81] sm:$0xff]
        %v2674 = vld [vmem:[%s394 + $0x91] sm:$0xff]
        %v2675 = vld [vmem:[%s394 + $0x99] sm:$0xff]
        %v2676 = vld [vmem:[%s394 + $0xa9] sm:$0xff]
        %v2677 = vld [vmem:[%s394 + $0xb1] sm:$0xff]
        %v2678 = vld [vmem:[%s394 + $0xc1] sm:$0xff]
        %v2679 = vld [vmem:[%s394 + $0xc9] sm:$0xff]
        %v2680 = vld [vmem:[%s394 + $0xd9] sm:$0xff]
        %v2681 = vld [vmem:[%s394 + $0xe1] sm:$0xff]
        %v2682 = vld [vmem:[%s394 + $0xf1] sm:$0xff]
        %v2683 = vld [vmem:[%s394 + $0xf9] sm:$0xff]
        %v2684 = vld [vmem:[%s394 + $0x109] sm:$0xff]
        %v2685 = vld [vmem:[%s394 + $0x111] sm:$0xff]
        %v2686 = vld [vmem:[%s394 + $0x121] sm:$0xff]
        %v2687 = vld [vmem:[%s394 + $0x129] sm:$0xff]
        %v2688 = vld [vmem:[%s394 + $0x139] sm:$0xff]
        %v2689 = vld [vmem:[%s394 + $0x141] sm:$0xff]
        %v2690 = vld [vmem:[%s394 + $0x151] sm:$0xff]
        %v2691 = vld [vmem:[%s394 + $0x159] sm:$0xff]
        %v2692 = vld [vmem:[%s394 + $0x169] sm:$0xff]
        %v2693 = vld [vmem:[%s394 + $0x171] sm:$0xff]
        %v2694 = vld [vmem:[%s394 + $0x2] sm:$0xff]
        %v2695 = vld [vmem:[%s394 + $0xa] sm:$0xff]
        %v2696 = vld [vmem:[%s394 + $0x1a] sm:$0xff]
        %v2697 = vld [vmem:[%s394 + $0x22] sm:$0xff]
        %v2698 = vld [vmem:[%s394 + $0x32] sm:$0xff]
        %v2699 = vld [vmem:[%s394 + $0x3a] sm:$0xff]
        %v2700 = vld [vmem:[%s394 + $0x4a] sm:$0xff]
        %v2701 = vld [vmem:[%s394 + $0x52] sm:$0xff]
        %v2702 = vld [vmem:[%s394 + $0x62] sm:$0xff]
        %v2703 = vld [vmem:[%s394 + $0x6a] sm:$0xff]
        %v2704 = vld [vmem:[%s394 + $0x7a] sm:$0xff]
        %v2705 = vld [vmem:[%s394 + $0x82] sm:$0xff]
        %v2706 = vld [vmem:[%s394 + $0x92] sm:$0xff]
        %v2707 = vld [vmem:[%s394 + $0x9a] sm:$0xff]
        %v2708 = vld [vmem:[%s394 + $0xaa] sm:$0xff]
        %v2709 = vld [vmem:[%s394 + $0xb2] sm:$0xff]
        %v2710 = vld [vmem:[%s394 + $0xc2] sm:$0xff]
        %v2711 = vld [vmem:[%s394 + $0xca] sm:$0xff]
        %v2712 = vld [vmem:[%s394 + $0xda] sm:$0xff]
        %v2713 = vld [vmem:[%s394 + $0xe2] sm:$0xff]
        %v2714 = vld [vmem:[%s394 + $0xf2] sm:$0xff]
        %v2715 = vld [vmem:[%s394 + $0xfa] sm:$0xff]
        %v2716 = vld [vmem:[%s394 + $0x10a] sm:$0xff]
        %v2717 = vld [vmem:[%s394 + $0x112] sm:$0xff]
        %v2718 = vld [vmem:[%s394 + $0x122] sm:$0xff]
        %v2719 = vld [vmem:[%s394 + $0x12a] sm:$0xff]
        %v2720 = vld [vmem:[%s394 + $0x13a] sm:$0xff]
        %v2721 = vld [vmem:[%s394 + $0x142] sm:$0xff]
        %v2722 = vld [vmem:[%s394 + $0x152] sm:$0xff]
        %v2723 = vld [vmem:[%s394 + $0x15a] sm:$0xff]
        %v2724 = vld [vmem:[%s394 + $0x16a] sm:$0xff]
        %v2725 = vld [vmem:[%s394 + $0x172] sm:$0xff]
        %v2726 = vld [vmem:[%s822] sm:$0xff]
        %v2727 = vld [vmem:[%s822 + $0x8] sm:$0xff]
        %v2728 = vld [vmem:[%s822 + $0x18] sm:$0xff]
        %v2729 = vld [vmem:[%s822 + $0x20] sm:$0xff]
        %v2730 = vld [vmem:[%s822 + $0x30] sm:$0xff]
        %v2731 = vld [vmem:[%s822 + $0x38] sm:$0xff]
        %v2732 = vld [vmem:[%s822 + $0x48] sm:$0xff]
        %v2733 = vld [vmem:[%s822 + $0x50] sm:$0xff]
        %v2734 = vld [vmem:[%s822 + $0x60] sm:$0xff]
        %v2735 = vld [vmem:[%s822 + $0x68] sm:$0xff]
        %v2736 = vld [vmem:[%s822 + $0x78] sm:$0xff]
        %v2737 = vld [vmem:[%s822 + $0x80] sm:$0xff]
        %v2738 = vld [vmem:[%s822 + $0x90] sm:$0xff]
        %v2739 = vld [vmem:[%s822 + $0x98] sm:$0xff]
        %v2740 = vld [vmem:[%s822 + $0xa8] sm:$0xff]
        %v2741 = vld [vmem:[%s822 + $0xb0] sm:$0xff]
        %v2742 = vld [vmem:[%s822 + $0xc0] sm:$0xff]
        %v2743 = vld [vmem:[%s822 + $0xc8] sm:$0xff]
        %v2744 = vld [vmem:[%s822 + $0xd8] sm:$0xff]
        %v2745 = vld [vmem:[%s822 + $0xe0] sm:$0xff]
        %v2746 = vld [vmem:[%s822 + $0xf0] sm:$0xff]
        %v2747 = vld [vmem:[%s822 + $0xf8] sm:$0xff]
        %v2748 = vld [vmem:[%s822 + $0x108] sm:$0xff]
        %v2749 = vld [vmem:[%s822 + $0x110] sm:$0xff]
        %v2750 = vld [vmem:[%s822 + $0x120] sm:$0xff]
        %v2751 = vld [vmem:[%s822 + $0x128] sm:$0xff]
        %v2752 = vld [vmem:[%s822 + $0x138] sm:$0xff]
        %v2753 = vld [vmem:[%s822 + $0x140] sm:$0xff]
        %v2754 = vld [vmem:[%s822 + $0x150] sm:$0xff]
        %v2755 = vld [vmem:[%s822 + $0x158] sm:$0xff]
        %v2756 = vld [vmem:[%s822 + $0x168] sm:$0xff]
        %v2757 = vld [vmem:[%s822 + $0x170] sm:$0xff]
        %v2758 = vld [vmem:[%s822 + $0x1] sm:$0xff]
        %v2759 = vld [vmem:[%s822 + $0x9] sm:$0xff]
        %v2760 = vld [vmem:[%s822 + $0x19] sm:$0xff]
        %v2761 = vld [vmem:[%s822 + $0x21] sm:$0xff]
        %v2762 = vld [vmem:[%s822 + $0x31] sm:$0xff]
        %v2763 = vld [vmem:[%s822 + $0x39] sm:$0xff]
        %v2764 = vld [vmem:[%s822 + $0x49] sm:$0xff]
        %v2765 = vld [vmem:[%s822 + $0x51] sm:$0xff]
        %v2766 = vld [vmem:[%s822 + $0x61] sm:$0xff]
        %v2767 = vld [vmem:[%s822 + $0x69] sm:$0xff]
        %v2768 = vld [vmem:[%s822 + $0x79] sm:$0xff]
        %v2769 = vld [vmem:[%s822 + $0x81] sm:$0xff]
        %v2770 = vld [vmem:[%s822 + $0x91] sm:$0xff]
        %v2771 = vld [vmem:[%s822 + $0x99] sm:$0xff]
        %v2772 = vld [vmem:[%s822 + $0xa9] sm:$0xff]
        %v2773 = vld [vmem:[%s822 + $0xb1] sm:$0xff]
        %v2774 = vld [vmem:[%s822 + $0xc1] sm:$0xff]
        %v2775 = vld [vmem:[%s822 + $0xc9] sm:$0xff]
        %v2776 = vld [vmem:[%s822 + $0xd9] sm:$0xff]
        %v2777 = vld [vmem:[%s822 + $0xe1] sm:$0xff]
        %v2778 = vld [vmem:[%s822 + $0xf1] sm:$0xff]
        %v2779 = vld [vmem:[%s822 + $0xf9] sm:$0xff]
        %v2780 = vld [vmem:[%s822 + $0x109] sm:$0xff]
        %v2781 = vld [vmem:[%s822 + $0x111] sm:$0xff]
        %v2782 = vld [vmem:[%s822 + $0x121] sm:$0xff]
        %v2783 = vld [vmem:[%s822 + $0x129] sm:$0xff]
        %v2784 = vld [vmem:[%s822 + $0x139] sm:$0xff]
        %v2785 = vld [vmem:[%s822 + $0x141] sm:$0xff]
        %v2786 = vld [vmem:[%s822 + $0x151] sm:$0xff]
        %v2787 = vld [vmem:[%s822 + $0x159] sm:$0xff]
        %v2788 = vld [vmem:[%s822 + $0x169] sm:$0xff]
        %v2789 = vld [vmem:[%s822 + $0x171] sm:$0xff]
        %v2790 = vld [vmem:[%s822 + $0x2] sm:$0xff]
        %v2791 = vld [vmem:[%s822 + $0xa] sm:$0xff]
        %v2792 = vld [vmem:[%s822 + $0x1a] sm:$0xff]
        %v2793 = vld [vmem:[%s822 + $0x22] sm:$0xff]
        %v2794 = vld [vmem:[%s822 + $0x32] sm:$0xff]
        %v2795 = vld [vmem:[%s822 + $0x3a] sm:$0xff]
        %v2796 = vld [vmem:[%s822 + $0x4a] sm:$0xff]
        %v2797 = vld [vmem:[%s822 + $0x52] sm:$0xff]
        %v2798 = vld [vmem:[%s822 + $0x62] sm:$0xff]
        %v2799 = vld [vmem:[%s822 + $0x6a] sm:$0xff]
        %v2800 = vld [vmem:[%s822 + $0x7a] sm:$0xff]
        %v2801 = vld [vmem:[%s822 + $0x82] sm:$0xff]
        %v2802 = vld [vmem:[%s822 + $0x92] sm:$0xff]
        %v2803 = vld [vmem:[%s822 + $0x9a] sm:$0xff]
        %v2804 = vld [vmem:[%s822 + $0xaa] sm:$0xff]
        %v2805 = vld [vmem:[%s822 + $0xb2] sm:$0xff]
        %v2806 = vld [vmem:[%s822 + $0xc2] sm:$0xff]
        %v2807 = vld [vmem:[%s822 + $0xca] sm:$0xff]
        %v2808 = vld [vmem:[%s822 + $0xda] sm:$0xff]
        %v2809 = vld [vmem:[%s822 + $0xe2] sm:$0xff]
        %v2810 = vld [vmem:[%s822 + $0xf2] sm:$0xff]
        %v2811 = vld [vmem:[%s822 + $0xfa] sm:$0xff]
        %v2812 = vld [vmem:[%s822 + $0x10a] sm:$0xff]
        %v2813 = vld [vmem:[%s822 + $0x112] sm:$0xff]
        %v2814 = vld [vmem:[%s822 + $0x122] sm:$0xff]
        %v2815 = vld [vmem:[%s822 + $0x12a] sm:$0xff]
        %v2816 = vld [vmem:[%s822 + $0x13a] sm:$0xff]
        %v2817 = vld [vmem:[%s822 + $0x142] sm:$0xff]
        %v2818 = vld [vmem:[%s822 + $0x152] sm:$0xff]
        %v2819 = vld [vmem:[%s822 + $0x15a] sm:$0xff]
        %v2820 = vld [vmem:[%s822 + $0x16a] sm:$0xff]
        %v2821 = vld [vmem:[%s822 + $0x172] sm:$0xff]
        %2854 = vrot.lane.b32.xlu0 %v2566, 32
        %v2855 = vpop.permute.xlu0 %2854
        %2856 = vrot.lane.b32.xlu0 %v2567, 32
        %v2857 = vpop.permute.xlu0 %2856
        %2858 = vrot.lane.b32.xlu0 %v2568, 32
        %v2859 = vpop.permute.xlu0 %2858
        %2860 = vrot.lane.b32.xlu0 %v2569, 32
        %v2861 = vpop.permute.xlu0 %2860
        %2862 = vrot.lane.b32.xlu0 %v2570, 32
        %v2863 = vpop.permute.xlu0 %2862
        %2864 = vrot.lane.b32.xlu0 %v2571, 32
        %v2865 = vpop.permute.xlu0 %2864
        %2866 = vrot.lane.b32.xlu0 %v2572, 32
        %v2867 = vpop.permute.xlu0 %2866
        %2868 = vrot.lane.b32.xlu0 %v2573, 32
        %v2869 = vpop.permute.xlu0 %2868
        %2870 = vrot.lane.b32.xlu0 %v2574, 32
        %v2871 = vpop.permute.xlu0 %2870
        %2872 = vrot.lane.b32.xlu0 %v2575, 32
        %v2873 = vpop.permute.xlu0 %2872
        %2874 = vrot.lane.b32.xlu0 %v2576, 32
        %v2875 = vpop.permute.xlu0 %2874
        %2876 = vrot.lane.b32.xlu0 %v2577, 32
        %v2877 = vpop.permute.xlu0 %2876
        %2878 = vrot.lane.b32.xlu0 %v2578, 32
        %v2879 = vpop.permute.xlu0 %2878
        %2880 = vrot.lane.b32.xlu0 %v2579, 32
        %v2881 = vpop.permute.xlu0 %2880
        %2882 = vrot.lane.b32.xlu0 %v2580, 32
        %v2883 = vpop.permute.xlu0 %2882
        %2884 = vrot.lane.b32.xlu0 %v2581, 32
        %v2885 = vpop.permute.xlu0 %2884
        %2886 = vrot.lane.b32.xlu0 %v2582, 32
        %v2887 = vpop.permute.xlu0 %2886
        %2888 = vrot.lane.b32.xlu0 %v2583, 32
        %v2889 = vpop.permute.xlu0 %2888
        %2890 = vrot.lane.b32.xlu0 %v2584, 32
        %v2891 = vpop.permute.xlu0 %2890
        %2892 = vrot.lane.b32.xlu0 %v2585, 32
        %v2893 = vpop.permute.xlu0 %2892
        %2894 = vrot.lane.b32.xlu0 %v2586, 32
        %v2895 = vpop.permute.xlu0 %2894
        %2896 = vrot.lane.b32.xlu0 %v2587, 32
        %v2897 = vpop.permute.xlu0 %2896
        %2898 = vrot.lane.b32.xlu0 %v2588, 32
        %v2899 = vpop.permute.xlu0 %2898
        %2900 = vrot.lane.b32.xlu0 %v2589, 32
        %v2901 = vpop.permute.xlu0 %2900
        %2902 = vrot.lane.b32.xlu0 %v2590, 32
        %v2903 = vpop.permute.xlu0 %2902
        %2904 = vrot.lane.b32.xlu0 %v2591, 32
        %v2905 = vpop.permute.xlu0 %2904
        %2906 = vrot.lane.b32.xlu0 %v2592, 32
        %v2907 = vpop.permute.xlu0 %2906
        %2908 = vrot.lane.b32.xlu0 %v2593, 32
        %v2909 = vpop.permute.xlu0 %2908
        %2910 = vrot.lane.b32.xlu0 %v2594, 32
        %v2911 = vpop.permute.xlu0 %2910
        %2912 = vrot.lane.b32.xlu0 %v2595, 32
        %v2913 = vpop.permute.xlu0 %2912
        %2914 = vrot.lane.b32.xlu0 %v2596, 32
        %v2915 = vpop.permute.xlu0 %2914
        %2916 = vrot.lane.b32.xlu0 %v2597, 32
        %v2917 = vpop.permute.xlu0 %2916
        %2982 = vrot.lane.b32.xlu0 %v2598, 64
        %v2983 = vpop.permute.xlu0 %2982
        %2984 = vrot.lane.b32.xlu0 %v2599, 64
        %v2985 = vpop.permute.xlu0 %2984
        %2986 = vrot.lane.b32.xlu0 %v2600, 64
        %v2987 = vpop.permute.xlu0 %2986
        %2988 = vrot.lane.b32.xlu0 %v2601, 64
        %v2989 = vpop.permute.xlu0 %2988
        %2990 = vrot.lane.b32.xlu0 %v2602, 64
        %v2991 = vpop.permute.xlu0 %2990
        %2992 = vrot.lane.b32.xlu0 %v2603, 64
        %v2993 = vpop.permute.xlu0 %2992
        %2994 = vrot.lane.b32.xlu0 %v2604, 64
        %v2995 = vpop.permute.xlu0 %2994
        %2996 = vrot.lane.b32.xlu0 %v2605, 64
        %v2997 = vpop.permute.xlu0 %2996
        %2998 = vrot.lane.b32.xlu0 %v2606, 64
        %v2999 = vpop.permute.xlu0 %2998
        %3000 = vrot.lane.b32.xlu0 %v2607, 64
        %v3001 = vpop.permute.xlu0 %3000
        %3002 = vrot.lane.b32.xlu0 %v2608, 64
        %v3003 = vpop.permute.xlu0 %3002
        %3004 = vrot.lane.b32.xlu0 %v2609, 64
        %v3005 = vpop.permute.xlu0 %3004
        %3006 = vrot.lane.b32.xlu0 %v2610, 64
        %v3007 = vpop.permute.xlu0 %3006
        %3008 = vrot.lane.b32.xlu0 %v2611, 64
        %v3009 = vpop.permute.xlu0 %3008
        %3010 = vrot.lane.b32.xlu0 %v2612, 64
        %v3011 = vpop.permute.xlu0 %3010
        %3012 = vrot.lane.b32.xlu0 %v2613, 64
        %v3013 = vpop.permute.xlu0 %3012
        %3014 = vrot.lane.b32.xlu0 %v2614, 64
        %v3015 = vpop.permute.xlu0 %3014
        %3016 = vrot.lane.b32.xlu0 %v2615, 64
        %v3017 = vpop.permute.xlu0 %3016
        %3018 = vrot.lane.b32.xlu0 %v2616, 64
        %v3019 = vpop.permute.xlu0 %3018
        %3020 = vrot.lane.b32.xlu0 %v2617, 64
        %v3021 = vpop.permute.xlu0 %3020
        %3022 = vrot.lane.b32.xlu0 %v2618, 64
        %v3023 = vpop.permute.xlu0 %3022
        %3024 = vrot.lane.b32.xlu0 %v2619, 64
        %v3025 = vpop.permute.xlu0 %3024
        %3026 = vrot.lane.b32.xlu0 %v2620, 64
        %v3027 = vpop.permute.xlu0 %3026
        %3028 = vrot.lane.b32.xlu0 %v2621, 64
        %v3029 = vpop.permute.xlu0 %3028
        %3030 = vrot.lane.b32.xlu0 %v2622, 64
        %v3031 = vpop.permute.xlu0 %3030
        %3032 = vrot.lane.b32.xlu0 %v2623, 64
        %v3033 = vpop.permute.xlu0 %3032
        %3034 = vrot.lane.b32.xlu0 %v2624, 64
        %v3035 = vpop.permute.xlu0 %3034
        %3036 = vrot.lane.b32.xlu0 %v2625, 64
        %v3037 = vpop.permute.xlu0 %3036
        %3038 = vrot.lane.b32.xlu0 %v2626, 64
        %v3039 = vpop.permute.xlu0 %3038
        %3040 = vrot.lane.b32.xlu0 %v2627, 64
        %v3041 = vpop.permute.xlu0 %3040
        %3042 = vrot.lane.b32.xlu0 %v2628, 64
        %v3043 = vpop.permute.xlu0 %3042
        %3044 = vrot.lane.b32.xlu0 %v2629, 64
        %v3045 = vpop.permute.xlu0 %3044
        %3110 = vrot.lane.b32.xlu0 %v2630, 96
        %v3111 = vpop.permute.xlu0 %3110
        %3112 = vrot.lane.b32.xlu0 %v2631, 96
        %v3113 = vpop.permute.xlu0 %3112
        %3114 = vrot.lane.b32.xlu0 %v2632, 96
        %v3115 = vpop.permute.xlu0 %3114
        %3116 = vrot.lane.b32.xlu0 %v2633, 96
        %v3117 = vpop.permute.xlu0 %3116
        %3118 = vrot.lane.b32.xlu0 %v2634, 96
        %v3119 = vpop.permute.xlu0 %3118
        %3120 = vrot.lane.b32.xlu0 %v2635, 96
        %v3121 = vpop.permute.xlu0 %3120
        %3122 = vrot.lane.b32.xlu0 %v2636, 96
        %v3123 = vpop.permute.xlu0 %3122
        %3124 = vrot.lane.b32.xlu0 %v2637, 96
        %v3125 = vpop.permute.xlu0 %3124
        %3126 = vrot.lane.b32.xlu0 %v2638, 96
        %v3127 = vpop.permute.xlu0 %3126
        %3128 = vrot.lane.b32.xlu0 %v2639, 96
        %v3129 = vpop.permute.xlu0 %3128
        %3130 = vrot.lane.b32.xlu0 %v2640, 96
        %v3131 = vpop.permute.xlu0 %3130
        %3132 = vrot.lane.b32.xlu0 %v2641, 96
        %v3133 = vpop.permute.xlu0 %3132
        %3134 = vrot.lane.b32.xlu0 %v2642, 96
        %v3135 = vpop.permute.xlu0 %3134
        %3136 = vrot.lane.b32.xlu0 %v2643, 96
        %v3137 = vpop.permute.xlu0 %3136
        %3138 = vrot.lane.b32.xlu0 %v2644, 96
        %v3139 = vpop.permute.xlu0 %3138
        %3140 = vrot.lane.b32.xlu0 %v2645, 96
        %v3141 = vpop.permute.xlu0 %3140
        %3142 = vrot.lane.b32.xlu0 %v2646, 96
        %v3143 = vpop.permute.xlu0 %3142
        %3144 = vrot.lane.b32.xlu0 %v2647, 96
        %v3145 = vpop.permute.xlu0 %3144
        %3146 = vrot.lane.b32.xlu0 %v2648, 96
        %v3147 = vpop.permute.xlu0 %3146
        %3148 = vrot.lane.b32.xlu0 %v2649, 96
        %v3149 = vpop.permute.xlu0 %3148
        %3150 = vrot.lane.b32.xlu0 %v2650, 96
        %v3151 = vpop.permute.xlu0 %3150
        %3152 = vrot.lane.b32.xlu0 %v2651, 96
        %v3153 = vpop.permute.xlu0 %3152
        %3154 = vrot.lane.b32.xlu0 %v2652, 96
        %v3155 = vpop.permute.xlu0 %3154
        %3156 = vrot.lane.b32.xlu0 %v2653, 96
        %v3157 = vpop.permute.xlu0 %3156
        %3158 = vrot.lane.b32.xlu0 %v2654, 96
        %v3159 = vpop.permute.xlu0 %3158
        %3160 = vrot.lane.b32.xlu0 %v2655, 96
        %v3161 = vpop.permute.xlu0 %3160
        %3162 = vrot.lane.b32.xlu0 %v2656, 96
        %v3163 = vpop.permute.xlu0 %3162
        %3164 = vrot.lane.b32.xlu0 %v2657, 96
        %v3165 = vpop.permute.xlu0 %3164
        %3166 = vrot.lane.b32.xlu0 %v2658, 96
        %v3167 = vpop.permute.xlu0 %3166
        %3168 = vrot.lane.b32.xlu0 %v2659, 96
        %v3169 = vpop.permute.xlu0 %3168
        %3170 = vrot.lane.b32.xlu0 %v2660, 96
        %v3171 = vpop.permute.xlu0 %3170
        %3172 = vrot.lane.b32.xlu0 %v2661, 96
        %v3173 = vpop.permute.xlu0 %3172
        %3238 = vrot.lane.b32.xlu0 %v2694, 32
        %v3239 = vpop.permute.xlu0 %3238
        %3240 = vrot.lane.b32.xlu0 %v2695, 32
        %v3241 = vpop.permute.xlu0 %3240
        %3242 = vrot.lane.b32.xlu0 %v2696, 32
        %v3243 = vpop.permute.xlu0 %3242
        %3244 = vrot.lane.b32.xlu0 %v2697, 32
        %v3245 = vpop.permute.xlu0 %3244
        %3246 = vrot.lane.b32.xlu0 %v2698, 32
        %v3247 = vpop.permute.xlu0 %3246
        %3248 = vrot.lane.b32.xlu0 %v2699, 32
        %v3249 = vpop.permute.xlu0 %3248
        %3250 = vrot.lane.b32.xlu0 %v2700, 32
        %v3251 = vpop.permute.xlu0 %3250
        %3252 = vrot.lane.b32.xlu0 %v2701, 32
        %v3253 = vpop.permute.xlu0 %3252
        %3254 = vrot.lane.b32.xlu0 %v2702, 32
        %v3255 = vpop.permute.xlu0 %3254
        %3256 = vrot.lane.b32.xlu0 %v2703, 32
        %v3257 = vpop.permute.xlu0 %3256
        %3258 = vrot.lane.b32.xlu0 %v2704, 32
        %v3259 = vpop.permute.xlu0 %3258
        %3260 = vrot.lane.b32.xlu0 %v2705, 32
        %v3261 = vpop.permute.xlu0 %3260
        %3262 = vrot.lane.b32.xlu0 %v2706, 32
        %v3263 = vpop.permute.xlu0 %3262
        %3264 = vrot.lane.b32.xlu0 %v2707, 32
        %v3265 = vpop.permute.xlu0 %3264
        %3266 = vrot.lane.b32.xlu0 %v2708, 32
        %v3267 = vpop.permute.xlu0 %3266
        %3268 = vrot.lane.b32.xlu0 %v2709, 32
        %v3269 = vpop.permute.xlu0 %3268
        %3270 = vrot.lane.b32.xlu0 %v2710, 32
        %v3271 = vpop.permute.xlu0 %3270
        %3272 = vrot.lane.b32.xlu0 %v2711, 32
        %v3273 = vpop.permute.xlu0 %3272
        %3274 = vrot.lane.b32.xlu0 %v2712, 32
        %v3275 = vpop.permute.xlu0 %3274
        %3276 = vrot.lane.b32.xlu0 %v2713, 32
        %v3277 = vpop.permute.xlu0 %3276
        %3278 = vrot.lane.b32.xlu0 %v2714, 32
        %v3279 = vpop.permute.xlu0 %3278
        %3280 = vrot.lane.b32.xlu0 %v2715, 32
        %v3281 = vpop.permute.xlu0 %3280
        %3282 = vrot.lane.b32.xlu0 %v2716, 32
        %v3283 = vpop.permute.xlu0 %3282
        %3284 = vrot.lane.b32.xlu0 %v2717, 32
        %v3285 = vpop.permute.xlu0 %3284
        %3286 = vrot.lane.b32.xlu0 %v2718, 32
        %v3287 = vpop.permute.xlu0 %3286
        %3288 = vrot.lane.b32.xlu0 %v2719, 32
        %v3289 = vpop.permute.xlu0 %3288
        %3290 = vrot.lane.b32.xlu0 %v2720, 32
        %v3291 = vpop.permute.xlu0 %3290
        %3292 = vrot.lane.b32.xlu0 %v2721, 32
        %v3293 = vpop.permute.xlu0 %3292
        %3294 = vrot.lane.b32.xlu0 %v2722, 32
        %v3295 = vpop.permute.xlu0 %3294
        %3296 = vrot.lane.b32.xlu0 %v2723, 32
        %v3297 = vpop.permute.xlu0 %3296
        %3298 = vrot.lane.b32.xlu0 %v2724, 32
        %v3299 = vpop.permute.xlu0 %3298
        %3300 = vrot.lane.b32.xlu0 %v2725, 32
        %v3301 = vpop.permute.xlu0 %3300
        %3366 = vrot.lane.b32.xlu0 %v2726, 64
        %v3367 = vpop.permute.xlu0 %3366
        %3368 = vrot.lane.b32.xlu0 %v2727, 64
        %v3369 = vpop.permute.xlu0 %3368
        %3370 = vrot.lane.b32.xlu0 %v2728, 64
        %v3371 = vpop.permute.xlu0 %3370
        %3372 = vrot.lane.b32.xlu0 %v2729, 64
        %v3373 = vpop.permute.xlu0 %3372
        %3374 = vrot.lane.b32.xlu0 %v2730, 64
        %v3375 = vpop.permute.xlu0 %3374
        %3376 = vrot.lane.b32.xlu0 %v2731, 64
        %v3377 = vpop.permute.xlu0 %3376
        %3378 = vrot.lane.b32.xlu0 %v2732, 64
        %v3379 = vpop.permute.xlu0 %3378
        %3380 = vrot.lane.b32.xlu0 %v2733, 64
        %v3381 = vpop.permute.xlu0 %3380
        %3382 = vrot.lane.b32.xlu0 %v2734, 64
        %v3383 = vpop.permute.xlu0 %3382
        %3384 = vrot.lane.b32.xlu0 %v2735, 64
        %v3385 = vpop.permute.xlu0 %3384
        %3386 = vrot.lane.b32.xlu0 %v2736, 64
        %v3387 = vpop.permute.xlu0 %3386
        %3388 = vrot.lane.b32.xlu0 %v2737, 64
        %v3389 = vpop.permute.xlu0 %3388
        %3390 = vrot.lane.b32.xlu0 %v2738, 64
        %v3391 = vpop.permute.xlu0 %3390
        %3392 = vrot.lane.b32.xlu0 %v2739, 64
        %v3393 = vpop.permute.xlu0 %3392
        %3394 = vrot.lane.b32.xlu0 %v2740, 64
        %v3395 = vpop.permute.xlu0 %3394
        %3396 = vrot.lane.b32.xlu0 %v2741, 64
        %v3397 = vpop.permute.xlu0 %3396
        %3398 = vrot.lane.b32.xlu0 %v2742, 64
        %v3399 = vpop.permute.xlu0 %3398
        %3400 = vrot.lane.b32.xlu0 %v2743, 64
        %v3401 = vpop.permute.xlu0 %3400
        %3402 = vrot.lane.b32.xlu0 %v2744, 64
        %v3403 = vpop.permute.xlu0 %3402
        %3404 = vrot.lane.b32.xlu0 %v2745, 64
        %v3405 = vpop.permute.xlu0 %3404
        %3406 = vrot.lane.b32.xlu0 %v2746, 64
        %v3407 = vpop.permute.xlu0 %3406
        %3408 = vrot.lane.b32.xlu0 %v2747, 64
        %v3409 = vpop.permute.xlu0 %3408
        %3410 = vrot.lane.b32.xlu0 %v2748, 64
        %v3411 = vpop.permute.xlu0 %3410
        %3412 = vrot.lane.b32.xlu0 %v2749, 64
        %v3413 = vpop.permute.xlu0 %3412
        %3414 = vrot.lane.b32.xlu0 %v2750, 64
        %v3415 = vpop.permute.xlu0 %3414
        %3416 = vrot.lane.b32.xlu0 %v2751, 64
        %v3417 = vpop.permute.xlu0 %3416
        %3418 = vrot.lane.b32.xlu0 %v2752, 64
        %v3419 = vpop.permute.xlu0 %3418
        %3420 = vrot.lane.b32.xlu0 %v2753, 64
        %v3421 = vpop.permute.xlu0 %3420
        %3422 = vrot.lane.b32.xlu0 %v2754, 64
        %v3423 = vpop.permute.xlu0 %3422
        %3424 = vrot.lane.b32.xlu0 %v2755, 64
        %v3425 = vpop.permute.xlu0 %3424
        %3426 = vrot.lane.b32.xlu0 %v2756, 64
        %v3427 = vpop.permute.xlu0 %3426
        %3428 = vrot.lane.b32.xlu0 %v2757, 64
        %v3429 = vpop.permute.xlu0 %3428
        %3494 = vrot.lane.b32.xlu0 %v2758, 96
        %v3495 = vpop.permute.xlu0 %3494
        %3496 = vrot.lane.b32.xlu0 %v2759, 96
        %v3497 = vpop.permute.xlu0 %3496
        %3498 = vrot.lane.b32.xlu0 %v2760, 96
        %v3499 = vpop.permute.xlu0 %3498
        %3500 = vrot.lane.b32.xlu0 %v2761, 96
        %v3501 = vpop.permute.xlu0 %3500
        %3502 = vrot.lane.b32.xlu0 %v2762, 96
        %v3503 = vpop.permute.xlu0 %3502
        %3504 = vrot.lane.b32.xlu0 %v2763, 96
        %v3505 = vpop.permute.xlu0 %3504
        %3506 = vrot.lane.b32.xlu0 %v2764, 96
        %v3507 = vpop.permute.xlu0 %3506
        %3508 = vrot.lane.b32.xlu0 %v2765, 96
        %v3509 = vpop.permute.xlu0 %3508
        %3510 = vrot.lane.b32.xlu0 %v2766, 96
        %v3511 = vpop.permute.xlu0 %3510
        %3512 = vrot.lane.b32.xlu0 %v2767, 96
        %v3513 = vpop.permute.xlu0 %3512
        %3514 = vrot.lane.b32.xlu0 %v2768, 96
        %v3515 = vpop.permute.xlu0 %3514
        %3516 = vrot.lane.b32.xlu0 %v2769, 96
        %v3517 = vpop.permute.xlu0 %3516
        %3518 = vrot.lane.b32.xlu0 %v2770, 96
        %v3519 = vpop.permute.xlu0 %3518
        %3520 = vrot.lane.b32.xlu0 %v2771, 96
        %v3521 = vpop.permute.xlu0 %3520
        %3522 = vrot.lane.b32.xlu0 %v2772, 96
        %v3523 = vpop.permute.xlu0 %3522
        %3524 = vrot.lane.b32.xlu0 %v2773, 96
        %v3525 = vpop.permute.xlu0 %3524
        %3526 = vrot.lane.b32.xlu0 %v2774, 96
        %v3527 = vpop.permute.xlu0 %3526
        %3528 = vrot.lane.b32.xlu0 %v2775, 96
        %v3529 = vpop.permute.xlu0 %3528
        %3530 = vrot.lane.b32.xlu0 %v2776, 96
        %v3531 = vpop.permute.xlu0 %3530
        %3532 = vrot.lane.b32.xlu0 %v2777, 96
        %v3533 = vpop.permute.xlu0 %3532
        %3534 = vrot.lane.b32.xlu0 %v2778, 96
        %v3535 = vpop.permute.xlu0 %3534
        %3536 = vrot.lane.b32.xlu0 %v2779, 96
        %v3537 = vpop.permute.xlu0 %3536
        %3538 = vrot.lane.b32.xlu0 %v2780, 96
        %v3539 = vpop.permute.xlu0 %3538
        %3540 = vrot.lane.b32.xlu0 %v2781, 96
        %v3541 = vpop.permute.xlu0 %3540
        %3542 = vrot.lane.b32.xlu0 %v2782, 96
        %v3543 = vpop.permute.xlu0 %3542
        %3544 = vrot.lane.b32.xlu0 %v2783, 96
        %v3545 = vpop.permute.xlu0 %3544
        %3546 = vrot.lane.b32.xlu0 %v2784, 96
        %v3547 = vpop.permute.xlu0 %3546
        %3548 = vrot.lane.b32.xlu0 %v2785, 96
        %v3549 = vpop.permute.xlu0 %3548
        %3550 = vrot.lane.b32.xlu0 %v2786, 96
        %v3551 = vpop.permute.xlu0 %3550
        %3552 = vrot.lane.b32.xlu0 %v2787, 96
        %v3553 = vpop.permute.xlu0 %3552
        %3554 = vrot.lane.b32.xlu0 %v2788, 96
        %v3555 = vpop.permute.xlu0 %3554
        %3556 = vrot.lane.b32.xlu0 %v2789, 96
        %v3557 = vpop.permute.xlu0 %3556
        %v3590 = vsel %vm385, %v2534, %v2855
        %v3591 = vsel %vm385, %v2535, %v2857
        %v3592 = vsel %vm385, %v2536, %v2859
        %v3593 = vsel %vm385, %v2537, %v2861
        %v3594 = vsel %vm385, %v2538, %v2863
        %v3595 = vsel %vm385, %v2539, %v2865
        %v3596 = vsel %vm385, %v2540, %v2867
        %v3597 = vsel %vm385, %v2541, %v2869
        %v3598 = vsel %vm385, %v2542, %v2871
        %v3599 = vsel %vm385, %v2543, %v2873
        %v3600 = vsel %vm385, %v2544, %v2875
        %v3601 = vsel %vm385, %v2545, %v2877
        %v3602 = vsel %vm385, %v2546, %v2879
        %v3603 = vsel %vm385, %v2547, %v2881
        %v3604 = vsel %vm385, %v2548, %v2883
        %v3605 = vsel %vm385, %v2549, %v2885
        %v3606 = vsel %vm385, %v2550, %v2887
        %v3607 = vsel %vm385, %v2551, %v2889
        %v3608 = vsel %vm385, %v2552, %v2891
        %v3609 = vsel %vm385, %v2553, %v2893
        %v3610 = vsel %vm385, %v2554, %v2895
        %v3611 = vsel %vm385, %v2555, %v2897
        %v3612 = vsel %vm385, %v2556, %v2899
        %v3613 = vsel %vm385, %v2557, %v2901
        %v3614 = vsel %vm385, %v2558, %v2903
        %v3615 = vsel %vm385, %v2559, %v2905
        %v3616 = vsel %vm385, %v2560, %v2907
        %v3617 = vsel %vm385, %v2561, %v2909
        %v3618 = vsel %vm385, %v2562, %v2911
        %v3619 = vsel %vm385, %v2563, %v2913
        %v3620 = vsel %vm385, %v2564, %v2915
        %v3621 = vsel %vm385, %v2565, %v2917
        %v3622 = vsel %vm1719, %v3590, %v2983
        %v3623 = vsel %vm1719, %v3591, %v2985
        %v3624 = vsel %vm1719, %v3592, %v2987
        %v3625 = vsel %vm1719, %v3593, %v2989
        %v3626 = vsel %vm1719, %v3594, %v2991
        %v3627 = vsel %vm1719, %v3595, %v2993
        %v3628 = vsel %vm1719, %v3596, %v2995
        %v3629 = vsel %vm1719, %v3597, %v2997
        %v3630 = vsel %vm1719, %v3598, %v2999
        %v3631 = vsel %vm1719, %v3599, %v3001
        %v3632 = vsel %vm1719, %v3600, %v3003
        %v3633 = vsel %vm1719, %v3601, %v3005
        %v3634 = vsel %vm1719, %v3602, %v3007
        %v3635 = vsel %vm1719, %v3603, %v3009
        %v3636 = vsel %vm1719, %v3604, %v3011
        %v3637 = vsel %vm1719, %v3605, %v3013
        %v3638 = vsel %vm1719, %v3606, %v3015
        %v3639 = vsel %vm1719, %v3607, %v3017
        %v3640 = vsel %vm1719, %v3608, %v3019
        %v3641 = vsel %vm1719, %v3609, %v3021
        %v3642 = vsel %vm1719, %v3610, %v3023
        %v3643 = vsel %vm1719, %v3611, %v3025
        %v3644 = vsel %vm1719, %v3612, %v3027
        %v3645 = vsel %vm1719, %v3613, %v3029
        %v3646 = vsel %vm1719, %v3614, %v3031
        %v3647 = vsel %vm1719, %v3615, %v3033
        %v3648 = vsel %vm1719, %v3616, %v3035
        %v3649 = vsel %vm1719, %v3617, %v3037
        %v3650 = vsel %vm1719, %v3618, %v3039
        %v3651 = vsel %vm1719, %v3619, %v3041
        %v3652 = vsel %vm1719, %v3620, %v3043
        %v3653 = vsel %vm1719, %v3621, %v3045
        %v3654 = vsel %vm1752, %v3622, %v3111
        %v3655 = vsel %vm1752, %v3623, %v3113
        %v3656 = vsel %vm1752, %v3624, %v3115
        %v3657 = vsel %vm1752, %v3625, %v3117
        %v3658 = vsel %vm1752, %v3626, %v3119
        %v3659 = vsel %vm1752, %v3627, %v3121
        %v3660 = vsel %vm1752, %v3628, %v3123
        %v3661 = vsel %vm1752, %v3629, %v3125
        %v3662 = vsel %vm1752, %v3630, %v3127
        %v3663 = vsel %vm1752, %v3631, %v3129
        %v3664 = vsel %vm1752, %v3632, %v3131
        %v3665 = vsel %vm1752, %v3633, %v3133
        %v3666 = vsel %vm1752, %v3634, %v3135
        %v3667 = vsel %vm1752, %v3635, %v3137
        %v3668 = vsel %vm1752, %v3636, %v3139
        %v3669 = vsel %vm1752, %v3637, %v3141
        %v3670 = vsel %vm1752, %v3638, %v3143
        %v3671 = vsel %vm1752, %v3639, %v3145
        %v3672 = vsel %vm1752, %v3640, %v3147
        %v3673 = vsel %vm1752, %v3641, %v3149
        %v3674 = vsel %vm1752, %v3642, %v3151
        %v3675 = vsel %vm1752, %v3643, %v3153
        %v3676 = vsel %vm1752, %v3644, %v3155
        %v3677 = vsel %vm1752, %v3645, %v3157
        %v3678 = vsel %vm1752, %v3646, %v3159
        %v3679 = vsel %vm1752, %v3647, %v3161
        %v3680 = vsel %vm1752, %v3648, %v3163
        %v3681 = vsel %vm1752, %v3649, %v3165
        %v3682 = vsel %vm1752, %v3650, %v3167
        %v3683 = vsel %vm1752, %v3651, %v3169
        %v3684 = vsel %vm1752, %v3652, %v3171
        %v3685 = vsel %vm1752, %v3653, %v3173
        %v3686 = vsel %vm385, %v2662, %v3239
        %v3687 = vsel %vm385, %v2663, %v3241
        %v3688 = vsel %vm385, %v2664, %v3243
        %v3689 = vsel %vm385, %v2665, %v3245
        %v3690 = vsel %vm385, %v2666, %v3247
        %v3691 = vsel %vm385, %v2667, %v3249
        %v3692 = vsel %vm385, %v2668, %v3251
        %v3693 = vsel %vm385, %v2669, %v3253
        %v3694 = vsel %vm385, %v2670, %v3255
        %v3695 = vsel %vm385, %v2671, %v3257
        %v3696 = vsel %vm385, %v2672, %v3259
        %v3697 = vsel %vm385, %v2673, %v3261
        %v3698 = vsel %vm385, %v2674, %v3263
        %v3699 = vsel %vm385, %v2675, %v3265
        %v3700 = vsel %vm385, %v2676, %v3267
        %v3701 = vsel %vm385, %v2677, %v3269
        %v3702 = vsel %vm385, %v2678, %v3271
        %v3703 = vsel %vm385, %v2679, %v3273
        %v3704 = vsel %vm385, %v2680, %v3275
        %v3705 = vsel %vm385, %v2681, %v3277
        %v3706 = vsel %vm385, %v2682, %v3279
        %v3707 = vsel %vm385, %v2683, %v3281
        %v3708 = vsel %vm385, %v2684, %v3283
        %v3709 = vsel %vm385, %v2685, %v3285
        %v3710 = vsel %vm385, %v2686, %v3287
        %v3711 = vsel %vm385, %v2687, %v3289
        %v3712 = vsel %vm385, %v2688, %v3291
        %v3713 = vsel %vm385, %v2689, %v3293
        %v3714 = vsel %vm385, %v2690, %v3295
        %v3715 = vsel %vm385, %v2691, %v3297
        %v3716 = vsel %vm385, %v2692, %v3299
        %v3717 = vsel %vm385, %v2693, %v3301
        %v3718 = vsel %vm1719, %v3686, %v3367
        %v3719 = vsel %vm1719, %v3687, %v3369
        %v3720 = vsel %vm1719, %v3688, %v3371
        %v3721 = vsel %vm1719, %v3689, %v3373
        %v3722 = vsel %vm1719, %v3690, %v3375
        %v3723 = vsel %vm1719, %v3691, %v3377
        %v3724 = vsel %vm1719, %v3692, %v3379
        %v3725 = vsel %vm1719, %v3693, %v3381
        %v3726 = vsel %vm1719, %v3694, %v3383
        %v3727 = vsel %vm1719, %v3695, %v3385
        %v3728 = vsel %vm1719, %v3696, %v3387
        %v3729 = vsel %vm1719, %v3697, %v3389
        %v3730 = vsel %vm1719, %v3698, %v3391
        %v3731 = vsel %vm1719, %v3699, %v3393
        %v3732 = vsel %vm1719, %v3700, %v3395
        %v3733 = vsel %vm1719, %v3701, %v3397
        %v3734 = vsel %vm1719, %v3702, %v3399
        %v3735 = vsel %vm1719, %v3703, %v3401
        %v3736 = vsel %vm1719, %v3704, %v3403
        %v3737 = vsel %vm1719, %v3705, %v3405
        %v3738 = vsel %vm1719, %v3706, %v3407
        %v3739 = vsel %vm1719, %v3707, %v3409
        %v3740 = vsel %vm1719, %v3708, %v3411
        %v3741 = vsel %vm1719, %v3709, %v3413
        %v3742 = vsel %vm1719, %v3710, %v3415
        %v3743 = vsel %vm1719, %v3711, %v3417
        %v3744 = vsel %vm1719, %v3712, %v3419
        %v3745 = vsel %vm1719, %v3713, %v3421
        %v3746 = vsel %vm1719, %v3714, %v3423
        %v3747 = vsel %vm1719, %v3715, %v3425
        %v3748 = vsel %vm1719, %v3716, %v3427
        %v3749 = vsel %vm1719, %v3717, %v3429
        %v3750 = vsel %vm1752, %v3718, %v3495
        %v3751 = vsel %vm1752, %v3719, %v3497
        %v3752 = vsel %vm1752, %v3720, %v3499
        %v3753 = vsel %vm1752, %v3721, %v3501
        %v3754 = vsel %vm1752, %v3722, %v3503
        %v3755 = vsel %vm1752, %v3723, %v3505
        %v3756 = vsel %vm1752, %v3724, %v3507
        %v3757 = vsel %vm1752, %v3725, %v3509
        %v3758 = vsel %vm1752, %v3726, %v3511
        %v3759 = vsel %vm1752, %v3727, %v3513
        %v3760 = vsel %vm1752, %v3728, %v3515
        %v3761 = vsel %vm1752, %v3729, %v3517
        %v3762 = vsel %vm1752, %v3730, %v3519
        %v3763 = vsel %vm1752, %v3731, %v3521
        %v3764 = vsel %vm1752, %v3732, %v3523
        %v3765 = vsel %vm1752, %v3733, %v3525
        %v3766 = vsel %vm1752, %v3734, %v3527
        %v3767 = vsel %vm1752, %v3735, %v3529
        %v3768 = vsel %vm1752, %v3736, %v3531
        %v3769 = vsel %vm1752, %v3737, %v3533
        %v3770 = vsel %vm1752, %v3738, %v3535
        %v3771 = vsel %vm1752, %v3739, %v3537
        %v3772 = vsel %vm1752, %v3740, %v3539
        %v3773 = vsel %vm1752, %v3741, %v3541
        %v3774 = vsel %vm1752, %v3742, %v3543
        %v3775 = vsel %vm1752, %v3743, %v3545
        %v3776 = vsel %vm1752, %v3744, %v3547
        %v3777 = vsel %vm1752, %v3745, %v3549
        %v3778 = vsel %vm1752, %v3746, %v3551
        %v3779 = vsel %vm1752, %v3747, %v3553
        %v3780 = vsel %vm1752, %v3748, %v3555
        %v3781 = vsel %vm1752, %v3749, %v3557
        %v3783 = vlaneseq
        %v3784 = vshrl.u32 %v3783, 7
        %v3785 = vsub.s32 0, %v3784
        %v3786 = vrot.slane %v2501, %v3785
        %v3789 = vsel %vm385, %v2790, 0
        %v3792 = vsel %vm385, %v2791, 0
        %v3795 = vsel %vm385, %v2792, 0
        %v3798 = vsel %vm385, %v2793, 0
        %v3801 = vsel %vm385, %v2794, 0
        %v3804 = vsel %vm385, %v2795, 0
        %v3807 = vsel %vm385, %v2796, 0
        %v3810 = vsel %vm385, %v2797, 0
        %v3813 = vsel %vm385, %v2798, 0
        %v3816 = vsel %vm385, %v2799, 0
        %v3819 = vsel %vm385, %v2800, 0
        %v3822 = vsel %vm385, %v2801, 0
        %v3825 = vsel %vm385, %v2802, 0
        %v3828 = vsel %vm385, %v2803, 0
        %v3831 = vsel %vm385, %v2804, 0
        %v3834 = vsel %vm385, %v2805, 0
        %v3837 = vsel %vm385, %v2806, 0
        %v3840 = vsel %vm385, %v2807, 0
        %v3843 = vsel %vm385, %v2808, 0
        %v3846 = vsel %vm385, %v2809, 0
        %v3849 = vsel %vm385, %v2810, 0
        %v3852 = vsel %vm385, %v2811, 0
        %v3855 = vsel %vm385, %v2812, 0
        %v3858 = vsel %vm385, %v2813, 0
        %v3861 = vsel %vm385, %v2814, 0
        %v3864 = vsel %vm385, %v2815, 0
        %v3867 = vsel %vm385, %v2816, 0
        %v3870 = vsel %vm385, %v2817, 0
        %v3873 = vsel %vm385, %v2818, 0
        %v3876 = vsel %vm385, %v2819, 0
        %v3879 = vsel %vm385, %v2820, 0
        %v3882 = vsel %vm385, %v2821, 0
        %3884 = vmatprep.subr.mxu0 0.0
        %3885 = vmatpush1.msra.mxu0 %v2465
        %3886 = vmatprep.subr.mxu0 0.0
        %3887 = vmatpush1.msra.mxu0 %v2466
        %3888 = vmatprep.subr.mxu0 0.0
        %3889 = vmatpush1.msra.mxu0 %v2467
        %3890 = vmatprep.subr.mxu0 0.0
        %3891 = vmatpush1.msra.mxu0 %v2468
        %3892 = vmatprep.subr.mxu0 0.0
        %3893 = vmatpush1.msra.mxu0 %v2469
        %3894 = vmatprep.subr.mxu0 0.0
        %3895 = vmatpush1.msra.mxu0 %v2470
        %3896 = vmatprep.subr.mxu0 0.0
        %3897 = vmatpush1.msra.mxu0 %v2471
        %3898 = vmatprep.subr.mxu0 0.0
        %3899 = vmatpush1.msra.mxu0 %v2472
        %3900 = vmatprep.subr.mxu0 0.0
        %3901 = vmatpush1.msra.mxu0 %v2473
        %3902 = vmatprep.subr.mxu0 0.0
        %3903 = vmatpush1.msra.mxu0 %v2474
        %3904 = vmatprep.subr.mxu0 0.0
        %3905 = vmatpush1.msra.mxu0 %v2475
        %3906 = vmatprep.subr.mxu0 0.0
        %3907 = vmatpush1.msra.mxu0 %v2476
        %3908 = vmatprep.subr.mxu0 0.0
        %3909 = vmatpush1.msra.mxu0 %v2477
        %3910 = vmatprep.subr.mxu0 0.0
        %3911 = vmatpush1.msra.mxu0 %v2478
        %3912 = vmatprep.subr.mxu0 0.0
        %3913 = vmatpush1.msra.mxu0 %v2479
        %3914 = vmatprep.subr.mxu0 0.0
        %3915 = vmatpush1.msra.mxu0 %v2480
        %3916 = vmatprep.subr.mxu0 0.0
        %3917 = vmatpush1.msra.mxu0 %v2481
        %3918 = vmatprep.subr.mxu0 0.0
        %3919 = vmatpush1.msra.mxu0 %v2482
        %3920 = vmatprep.subr.mxu0 0.0
        %3921 = vmatpush1.msra.mxu0 %v2483
        %3922 = vmatprep.subr.mxu0 0.0
        %3923 = vmatpush1.msra.mxu0 %v2484
        %3924 = vmatprep.subr.mxu0 0.0
        %3925 = vmatpush1.msra.mxu0 %v2485
        %3926 = vmatprep.subr.mxu0 0.0
        %3927 = vmatpush1.msra.mxu0 %v2486
        %3928 = vmatprep.subr.mxu0 0.0
        %3929 = vmatpush1.msra.mxu0 %v2487
        %3930 = vmatprep.subr.mxu0 0.0
        %3931 = vmatpush1.msra.mxu0 %v2488
        %3932 = vmatprep.subr.mxu0 0.0
        %3933 = vmatpush1.msra.mxu0 %v2489
        %3934 = vmatprep.subr.mxu0 0.0
        %3935 = vmatpush1.msra.mxu0 %v2490
        %3936 = vmatprep.subr.mxu0 0.0
        %3937 = vmatpush1.msra.mxu0 %v2491
        %3938 = vmatprep.subr.mxu0 0.0
        %3939 = vmatpush1.msra.mxu0 %v2492
        %3940 = vmatprep.subr.mxu0 0.0
        %3941 = vmatpush1.msra.mxu0 %v2493
        %3942 = vmatprep.subr.mxu0 0.0
        %3943 = vmatpush1.msra.mxu0 %v2494
        %3944 = vmatprep.subr.mxu0 0.0
        %3945 = vmatpush1.msra.mxu0 %v2495
        %3946 = vmatprep.subr.mxu0 0.0
        %3947 = vmatpush1.msra.mxu0 %v2496
        %3948 = vmatprep.mubr.f32.mxu0 %v3750
        %3949 = vmatmul.mubr.f32.gmra.mrb[0].mxu0 %v3654
        %v3950 = vpop.f32.mrb[0].mxu0
        %v3951 = vadd.f32 %v3786, %v3950
        %v3952 = vpop.f32.mrb[0].mxu0
        %3953 = vmatprep.mubr.f32.mxu0 %v3751
        %3954 = vmatmul.mubr.f32.gmra.mrb[0].mxu0 %v3655
        %v3955 = vpop.f32.mrb[0].mxu0
        %v3956 = vadd.f32 %v3786, %v3955
        %v3957 = vpop.f32.mrb[0].mxu0
        %3958 = vmatprep.mubr.f32.mxu0 %v3752
        %3959 = vmatmul.mubr.f32.gmra.mrb[0].mxu0 %v3656
        %v3960 = vpop.f32.mrb[0].mxu0
        %v3961 = vadd.f32 %v3786, %v3960
        %v3962 = vpop.f32.mrb[0].mxu0
        %3963 = vmatprep.mubr.f32.mxu0 %v3753
        %3964 = vmatmul.mubr.f32.gmra.mrb[0].mxu0 %v3657
        %v3965 = vpop.f32.mrb[0].mxu0
        %v3966 = vadd.f32 %v3786, %v3965
        %v3967 = vpop.f32.mrb[0].mxu0
        %3968 = vmatprep.mubr.f32.mxu0 %v3754
        %3969 = vmatmul.mubr.f32.gmra.mrb[0].mxu0 %v3658
        %v3970 = vpop.f32.mrb[0].mxu0
        %v3971 = vadd.f32 %v3786, %v3970
        %v3972 = vpop.f32.mrb[0].mxu0
        %3973 = vmatprep.mubr.f32.mxu0 %v3755
        %3974 = vmatmul.mubr.f32.gmra.mrb[0].mxu0 %v3659
        %v3975 = vpop.f32.mrb[0].mxu0
        %v3976 = vadd.f32 %v3786, %v3975
        %v3977 = vpop.f32.mrb[0].mxu0
        %3978 = vmatprep.mubr.f32.mxu0 %v3756
        %3979 = vmatmul.mubr.f32.gmra.mrb[0].mxu0 %v3660
        %v3980 = vpop.f32.mrb[0].mxu0
        %v3981 = vadd.f32 %v3786, %v3980
        %v3982 = vpop.f32.mrb[0].mxu0
        %3983 = vmatprep.mubr.f32.mxu0 %v3757
        %3984 = vmatmul.mubr.f32.gmra.mrb[0].mxu0 %v3661
        %v3985 = vpop.f32.mrb[0].mxu0
        %v3986 = vadd.f32 %v3786, %v3985
        %v3987 = vpop.f32.mrb[0].mxu0
        %3988 = vmatprep.mubr.f32.mxu0 %v3758
        %3989 = vmatmul.mubr.f32.gmra.mrb[0].mxu0 %v3662
        %v3990 = vpop.f32.mrb[0].mxu0
        %v3991 = vadd.f32 %v3786, %v3990
        %v3992 = vpop.f32.mrb[0].mxu0
        %3993 = vmatprep.mubr.f32.mxu0 %v3759
        %3994 = vmatmul.mubr.f32.gmra.mrb[0].mxu0 %v3663
        %v3995 = vpop.f32.mrb[0].mxu0
        %v3996 = vadd.f32 %v3786, %v3995
        %v3997 = vpop.f32.mrb[0].mxu0
        %3998 = vmatprep.mubr.f32.mxu0 %v3760
        %3999 = vmatmul.mubr.f32.gmra.mrb[0].mxu0 %v3664
        %v4000 = vpop.f32.mrb[0].mxu0
        %v4001 = vadd.f32 %v3786, %v4000
        %v4002 = vpop.f32.mrb[0].mxu0
        %4003 = vmatprep.mubr.f32.mxu0 %v3761
        %4004 = vmatmul.mubr.f32.gmra.mrb[0].mxu0 %v3665
        %v4005 = vpop.f32.mrb[0].mxu0
        %v4006 = vadd.f32 %v3786, %v4005
        %v4007 = vpop.f32.mrb[0].mxu0
        %4008 = vmatprep.mubr.f32.mxu0 %v3762
        %4009 = vmatmul.mubr.f32.gmra.mrb[0].mxu0 %v3666
        %v4010 = vpop.f32.mrb[0].mxu0
        %v4011 = vadd.f32 %v3786, %v4010
        %v4012 = vpop.f32.mrb[0].mxu0
        %4013 = vmatprep.mubr.f32.mxu0 %v3763
        %4014 = vmatmul.mubr.f32.gmra.mrb[0].mxu0 %v3667
        %v4015 = vpop.f32.mrb[0].mxu0
        %v4016 = vadd.f32 %v3786, %v4015
        %v4017 = vpop.f32.mrb[0].mxu0
        %4018 = vmatprep.mubr.f32.mxu0 %v3764
        %4019 = vmatmul.mubr.f32.gmra.mrb[0].mxu0 %v3668
        %v4020 = vpop.f32.mrb[0].mxu0
        %v4021 = vadd.f32 %v3786, %v4020
        %v4022 = vpop.f32.mrb[0].mxu0
        %4023 = vmatprep.mubr.f32.mxu0 %v3765
        %4024 = vmatmul.mubr.f32.gmra.mrb[0].mxu0 %v3669
        %v4025 = vpop.f32.mrb[0].mxu0
        %v4026 = vadd.f32 %v3786, %v4025
        %v4027 = vpop.f32.mrb[0].mxu0
        %4028 = vmatprep.mubr.f32.mxu0 %v3766
        %4029 = vmatmul.mubr.f32.gmra.mrb[0].mxu0 %v3670
        %v4030 = vpop.f32.mrb[0].mxu0
        %v4031 = vadd.f32 %v3786, %v4030
        %v4032 = vpop.f32.mrb[0].mxu0
        %4033 = vmatprep.mubr.f32.mxu0 %v3767
        %4034 = vmatmul.mubr.f32.gmra.mrb[0].mxu0 %v3671
        %v4035 = vpop.f32.mrb[0].mxu0
        %v4036 = vadd.f32 %v3786, %v4035
        %v4037 = vpop.f32.mrb[0].mxu0
        %4038 = vmatprep.mubr.f32.mxu0 %v3768
        %4039 = vmatmul.mubr.f32.gmra.mrb[0].mxu0 %v3672
        %v4040 = vpop.f32.mrb[0].mxu0
        %v4041 = vadd.f32 %v3786, %v4040
        %v4042 = vpop.f32.mrb[0].mxu0
        %4043 = vmatprep.mubr.f32.mxu0 %v3769
        %4044 = vmatmul.mubr.f32.gmra.mrb[0].mxu0 %v3673
        %v4045 = vpop.f32.mrb[0].mxu0
        %v4046 = vadd.f32 %v3786, %v4045
        %v4047 = vpop.f32.mrb[0].mxu0
        %4048 = vmatprep.mubr.f32.mxu0 %v3770
        %4049 = vmatmul.mubr.f32.gmra.mrb[0].mxu0 %v3674
        %v4050 = vpop.f32.mrb[0].mxu0
        %v4051 = vadd.f32 %v3786, %v4050
        %v4052 = vpop.f32.mrb[0].mxu0
        %4053 = vmatprep.mubr.f32.mxu0 %v3771
        %4054 = vmatmul.mubr.f32.gmra.mrb[0].mxu0 %v3675
        %v4055 = vpop.f32.mrb[0].mxu0
        %v4056 = vadd.f32 %v3786, %v4055
        %v4057 = vpop.f32.mrb[0].mxu0
        %4058 = vmatprep.mubr.f32.mxu0 %v3772
        %4059 = vmatmul.mubr.f32.gmra.mrb[0].mxu0 %v3676
        %v4060 = vpop.f32.mrb[0].mxu0
        %v4061 = vadd.f32 %v3786, %v4060
        %v4062 = vpop.f32.mrb[0].mxu0
        %4063 = vmatprep.mubr.f32.mxu0 %v3773
        %4064 = vmatmul.mubr.f32.gmra.mrb[0].mxu0 %v3677
        %v4065 = vpop.f32.mrb[0].mxu0
        %v4066 = vadd.f32 %v3786, %v4065
        %v4067 = vpop.f32.mrb[0].mxu0
        %4068 = vmatprep.mubr.f32.mxu0 %v3774
        %4069 = vmatmul.mubr.f32.gmra.mrb[0].mxu0 %v3678
        %v4070 = vpop.f32.mrb[0].mxu0
        %v4071 = vadd.f32 %v3786, %v4070
        %v4072 = vpop.f32.mrb[0].mxu0
        %4073 = vmatprep.mubr.f32.mxu0 %v3775
        %4074 = vmatmul.mubr.f32.gmra.mrb[0].mxu0 %v3679
        %v4075 = vpop.f32.mrb[0].mxu0
        %v4076 = vadd.f32 %v3786, %v4075
        %v4077 = vpop.f32.mrb[0].mxu0
        %4078 = vmatprep.mubr.f32.mxu0 %v3776
        %4079 = vmatmul.mubr.f32.gmra.mrb[0].mxu0 %v3680
        %v4080 = vpop.f32.mrb[0].mxu0
        %v4081 = vadd.f32 %v3786, %v4080
        %v4082 = vpop.f32.mrb[0].mxu0
        %4083 = vmatprep.mubr.f32.mxu0 %v3777
        %4084 = vmatmul.mubr.f32.gmra.mrb[0].mxu0 %v3681
        %v4085 = vpop.f32.mrb[0].mxu0
        %v4086 = vadd.f32 %v3786, %v4085
        %v4087 = vpop.f32.mrb[0].mxu0
        %4088 = vmatprep.mubr.f32.mxu0 %v3778
        %4089 = vmatmul.mubr.f32.gmra.mrb[0].mxu0 %v3682
        %v4090 = vpop.f32.mrb[0].mxu0
        %v4091 = vadd.f32 %v3786, %v4090
        %v4092 = vpop.f32.mrb[0].mxu0
        %4093 = vmatprep.mubr.f32.mxu0 %v3779
        %4094 = vmatmul.mubr.f32.gmra.mrb[0].mxu0 %v3683
        %v4095 = vpop.f32.mrb[0].mxu0
        %v4096 = vadd.f32 %v3786, %v4095
        %v4097 = vpop.f32.mrb[0].mxu0
        %4098 = vmatprep.mubr.f32.mxu0 %v3780
        %4099 = vmatmul.mubr.f32.gmra.mrb[0].mxu0 %v3684
        %v4100 = vpop.f32.mrb[0].mxu0
        %v4101 = vadd.f32 %v3786, %v4100
        %v4102 = vpop.f32.mrb[0].mxu0
        %4103 = vmatprep.mubr.f32.mxu0 %v3781
        %4104 = vmatmul.mubr.f32.gmra.mrb[0].mxu0 %v3685
        %v4105 = vpop.f32.mrb[0].mxu0
        %v4106 = vadd.f32 %v3786, %v4105
        %v4107 = vpop.f32.mrb[0].mxu0
        %4108 = vdwg.mxu0
        %4109 = vmatprep.subr.mxu0 0.0
        %4110 = vmatpush1.msra.mxu0 %v2497
        %4111 = vmatprep.subr.mxu0 0.0
        %4112 = vmatpush1.msra.mxu0 %v2498
        %4113 = vmatprep.subr.mxu0 0.0
        %4114 = vmatpush1.msra.mxu0 %v2499
        %4115 = vmatprep.subr.mxu0 0.0
        %4116 = vmatpush1.msra.mxu0 %v2500
        %4117 = vmatprep.subr.mxu0 0.0
        %4118 = vmatpush1.msra.mxu0 0.0
        %4119 = vmatprep.subr.mxu0 0.0
        %4120 = vmatpush1.msra.mxu0 0.0
        %4121 = vmatprep.subr.mxu0 0.0
        %4122 = vmatpush1.msra.mxu0 0.0
        %4123 = vmatprep.subr.mxu0 0.0
        %4124 = vmatpush1.msra.mxu0 0.0
        %4125 = vmatprep.subr.mxu0 0.0
        %4126 = vmatpush1.msra.mxu0 0.0
        %4127 = vmatprep.subr.mxu0 0.0
        %4128 = vmatpush1.msra.mxu0 0.0
        %4129 = vmatprep.subr.mxu0 0.0
        %4130 = vmatpush1.msra.mxu0 0.0
        %4131 = vmatprep.subr.mxu0 0.0
        %4132 = vmatpush1.msra.mxu0 0.0
        %4133 = vmatprep.subr.mxu0 0.0
        %4134 = vmatpush1.msra.mxu0 0.0
        %4135 = vmatprep.subr.mxu0 0.0
        %4136 = vmatpush1.msra.mxu0 0.0
        %4137 = vmatprep.subr.mxu0 0.0
        %4138 = vmatpush1.msra.mxu0 0.0
        %4139 = vmatprep.subr.mxu0 0.0
        %4140 = vmatpush1.msra.mxu0 0.0
        %4141 = vmatprep.subr.mxu0 0.0
        %4142 = vmatpush1.msra.mxu0 0.0
        %4143 = vmatprep.subr.mxu0 0.0
        %4144 = vmatpush1.msra.mxu0 0.0
        %4145 = vmatprep.subr.mxu0 0.0
        %4146 = vmatpush1.msra.mxu0 0.0
        %4147 = vmatprep.subr.mxu0 0.0
        %4148 = vmatpush1.msra.mxu0 0.0
        %4149 = vmatprep.subr.mxu0 0.0
        %4150 = vmatpush1.msra.mxu0 0.0
        %4151 = vmatprep.subr.mxu0 0.0
        %4152 = vmatpush1.msra.mxu0 0.0
        %4153 = vmatprep.subr.mxu0 0.0
        %4154 = vmatpush1.msra.mxu0 0.0
        %4155 = vmatprep.subr.mxu0 0.0
        %4156 = vmatpush1.msra.mxu0 0.0
        %4157 = vmatprep.subr.mxu0 0.0
        %4158 = vmatpush1.msra.mxu0 0.0
        %4159 = vmatprep.subr.mxu0 0.0
        %4160 = vmatpush1.msra.mxu0 0.0
        %4161 = vmatprep.subr.mxu0 0.0
        %4162 = vmatpush1.msra.mxu0 0.0
        %4163 = vmatprep.subr.mxu0 0.0
        %4164 = vmatpush1.msra.mxu0 0.0
        %4165 = vmatprep.subr.mxu0 0.0
        %4166 = vmatpush1.msra.mxu0 0.0
        %4167 = vmatprep.subr.mxu0 0.0
        %4168 = vmatpush1.msra.mxu0 0.0
        %4169 = vmatprep.subr.mxu0 0.0
        %4170 = vmatpush1.msra.mxu0 0.0
        %4171 = vmatprep.subr.mxu0 0.0
        %4172 = vmatpush1.msra.mxu0 0.0
        %4173 = vmatprep.mubr.f32.mxu0 0.0
        %4174 = vmatmul.mubr.f32.gmra.mrb[0].mxu0 %v3789
        %v4175 = vpop.f32.mrb[0].mxu0
        %v4176 = vadd.f32 %v3951, %v4175
        %v4177 = vpop.f32.mrb[0].mxu0
        %4178 = vmatprep.mubr.f32.mxu0 0.0
        %4179 = vmatmul.mubr.f32.gmra.mrb[0].mxu0 %v3792
        %v4180 = vpop.f32.mrb[0].mxu0
        %v4181 = vadd.f32 %v3956, %v4180
        %v4182 = vpop.f32.mrb[0].mxu0
        %4183 = vmatprep.mubr.f32.mxu0 0.0
        %4184 = vmatmul.mubr.f32.gmra.mrb[0].mxu0 %v3795
        %v4185 = vpop.f32.mrb[0].mxu0
        %v4186 = vadd.f32 %v3961, %v4185
        %v4187 = vpop.f32.mrb[0].mxu0
        %4188 = vmatprep.mubr.f32.mxu0 0.0
        %4189 = vmatmul.mubr.f32.gmra.mrb[0].mxu0 %v3798
        %v4190 = vpop.f32.mrb[0].mxu0
        %v4191 = vadd.f32 %v3966, %v4190
        %v4192 = vpop.f32.mrb[0].mxu0
        %4193 = vmatprep.mubr.f32.mxu0 0.0
        %4194 = vmatmul.mubr.f32.gmra.mrb[0].mxu0 %v3801
        %v4195 = vpop.f32.mrb[0].mxu0
        %v4196 = vadd.f32 %v3971, %v4195
        %v4197 = vpop.f32.mrb[0].mxu0
        %4198 = vmatprep.mubr.f32.mxu0 0.0
        %4199 = vmatmul.mubr.f32.gmra.mrb[0].mxu0 %v3804
        %v4200 = vpop.f32.mrb[0].mxu0
        %v4201 = vadd.f32 %v3976, %v4200
        %v4202 = vpop.f32.mrb[0].mxu0
        %4203 = vmatprep.mubr.f32.mxu0 0.0
        %4204 = vmatmul.mubr.f32.gmra.mrb[0].mxu0 %v3807
        %v4205 = vpop.f32.mrb[0].mxu0
        %v4206 = vadd.f32 %v3981, %v4205
        %v4207 = vpop.f32.mrb[0].mxu0
        %4208 = vmatprep.mubr.f32.mxu0 0.0
        %4209 = vmatmul.mubr.f32.gmra.mrb[0].mxu0 %v3810
        %v4210 = vpop.f32.mrb[0].mxu0
        %v4211 = vadd.f32 %v3986, %v4210
        %v4212 = vpop.f32.mrb[0].mxu0
        %4213 = vmatprep.mubr.f32.mxu0 0.0
        %4214 = vmatmul.mubr.f32.gmra.mrb[0].mxu0 %v3813
        %v4215 = vpop.f32.mrb[0].mxu0
        %v4216 = vadd.f32 %v3991, %v4215
        %v4217 = vpop.f32.mrb[0].mxu0
        %4218 = vmatprep.mubr.f32.mxu0 0.0
        %4219 = vmatmul.mubr.f32.gmra.mrb[0].mxu0 %v3816
        %v4220 = vpop.f32.mrb[0].mxu0
        %v4221 = vadd.f32 %v3996, %v4220
        %v4222 = vpop.f32.mrb[0].mxu0
        %4223 = vmatprep.mubr.f32.mxu0 0.0
        %4224 = vmatmul.mubr.f32.gmra.mrb[0].mxu0 %v3819
        %v4225 = vpop.f32.mrb[0].mxu0
        %v4226 = vadd.f32 %v4001, %v4225
        %v4227 = vpop.f32.mrb[0].mxu0
        %4228 = vmatprep.mubr.f32.mxu0 0.0
        %4229 = vmatmul.mubr.f32.gmra.mrb[0].mxu0 %v3822
        %v4230 = vpop.f32.mrb[0].mxu0
        %v4231 = vadd.f32 %v4006, %v4230
        %v4232 = vpop.f32.mrb[0].mxu0
        %4233 = vmatprep.mubr.f32.mxu0 0.0
        %4234 = vmatmul.mubr.f32.gmra.mrb[0].mxu0 %v3825
        %v4235 = vpop.f32.mrb[0].mxu0
        %v4236 = vadd.f32 %v4011, %v4235
        %v4237 = vpop.f32.mrb[0].mxu0
        %4238 = vmatprep.mubr.f32.mxu0 0.0
        %4239 = vmatmul.mubr.f32.gmra.mrb[0].mxu0 %v3828
        %v4240 = vpop.f32.mrb[0].mxu0
        %v4241 = vadd.f32 %v4016, %v4240
        %v4242 = vpop.f32.mrb[0].mxu0
        %4243 = vmatprep.mubr.f32.mxu0 0.0
        %4244 = vmatmul.mubr.f32.gmra.mrb[0].mxu0 %v3831
        %v4245 = vpop.f32.mrb[0].mxu0
        %v4246 = vadd.f32 %v4021, %v4245
        %v4247 = vpop.f32.mrb[0].mxu0
        %4248 = vmatprep.mubr.f32.mxu0 0.0
        %4249 = vmatmul.mubr.f32.gmra.mrb[0].mxu0 %v3834
        %v4250 = vpop.f32.mrb[0].mxu0
        %v4251 = vadd.f32 %v4026, %v4250
        %v4252 = vpop.f32.mrb[0].mxu0
        %4253 = vmatprep.mubr.f32.mxu0 0.0
        %4254 = vmatmul.mubr.f32.gmra.mrb[0].mxu0 %v3837
        %v4255 = vpop.f32.mrb[0].mxu0
        %v4256 = vadd.f32 %v4031, %v4255
        %v4257 = vpop.f32.mrb[0].mxu0
        %4258 = vmatprep.mubr.f32.mxu0 0.0
        %4259 = vmatmul.mubr.f32.gmra.mrb[0].mxu0 %v3840
        %v4260 = vpop.f32.mrb[0].mxu0
        %v4261 = vadd.f32 %v4036, %v4260
        %v4262 = vpop.f32.mrb[0].mxu0
        %4263 = vmatprep.mubr.f32.mxu0 0.0
        %4264 = vmatmul.mubr.f32.gmra.mrb[0].mxu0 %v3843
        %v4265 = vpop.f32.mrb[0].mxu0
        %v4266 = vadd.f32 %v4041, %v4265
        %v4267 = vpop.f32.mrb[0].mxu0
        %4268 = vmatprep.mubr.f32.mxu0 0.0
        %4269 = vmatmul.mubr.f32.gmra.mrb[0].mxu0 %v3846
        %v4270 = vpop.f32.mrb[0].mxu0
        %v4271 = vadd.f32 %v4046, %v4270
        %v4272 = vpop.f32.mrb[0].mxu0
        %4273 = vmatprep.mubr.f32.mxu0 0.0
        %4274 = vmatmul.mubr.f32.gmra.mrb[0].mxu0 %v3849
        %v4275 = vpop.f32.mrb[0].mxu0
        %v4276 = vadd.f32 %v4051, %v4275
        %v4277 = vpop.f32.mrb[0].mxu0
        %4278 = vmatprep.mubr.f32.mxu0 0.0
        %4279 = vmatmul.mubr.f32.gmra.mrb[0].mxu0 %v3852
        %v4280 = vpop.f32.mrb[0].mxu0
        %v4281 = vadd.f32 %v4056, %v4280
        %v4282 = vpop.f32.mrb[0].mxu0
        %4283 = vmatprep.mubr.f32.mxu0 0.0
        %4284 = vmatmul.mubr.f32.gmra.mrb[0].mxu0 %v3855
        %v4285 = vpop.f32.mrb[0].mxu0
        %v4286 = vadd.f32 %v4061, %v4285
        %v4287 = vpop.f32.mrb[0].mxu0
        %4288 = vmatprep.mubr.f32.mxu0 0.0
        %4289 = vmatmul.mubr.f32.gmra.mrb[0].mxu0 %v3858
        %v4290 = vpop.f32.mrb[0].mxu0
        %v4291 = vadd.f32 %v4066, %v4290
        %v4292 = vpop.f32.mrb[0].mxu0
        %4293 = vmatprep.mubr.f32.mxu0 0.0
        %4294 = vmatmul.mubr.f32.gmra.mrb[0].mxu0 %v3861
        %v4295 = vpop.f32.mrb[0].mxu0
        %v4296 = vadd.f32 %v4071, %v4295
        %v4297 = vpop.f32.mrb[0].mxu0
        %4298 = vmatprep.mubr.f32.mxu0 0.0
        %4299 = vmatmul.mubr.f32.gmra.mrb[0].mxu0 %v3864
        %v4300 = vpop.f32.mrb[0].mxu0
        %v4301 = vadd.f32 %v4076, %v4300
        %v4302 = vpop.f32.mrb[0].mxu0
        %4303 = vmatprep.mubr.f32.mxu0 0.0
        %4304 = vmatmul.mubr.f32.gmra.mrb[0].mxu0 %v3867
        %v4305 = vpop.f32.mrb[0].mxu0
        %v4306 = vadd.f32 %v4081, %v4305
        %v4307 = vpop.f32.mrb[0].mxu0
        %4308 = vmatprep.mubr.f32.mxu0 0.0
        %4309 = vmatmul.mubr.f32.gmra.mrb[0].mxu0 %v3870
        %v4310 = vpop.f32.mrb[0].mxu0
        %v4311 = vadd.f32 %v4086, %v4310
        %v4312 = vpop.f32.mrb[0].mxu0
        %4313 = vmatprep.mubr.f32.mxu0 0.0
        %4314 = vmatmul.mubr.f32.gmra.mrb[0].mxu0 %v3873
        %v4315 = vpop.f32.mrb[0].mxu0
        %v4316 = vadd.f32 %v4091, %v4315
        %v4317 = vpop.f32.mrb[0].mxu0
        %4318 = vmatprep.mubr.f32.mxu0 0.0
        %4319 = vmatmul.mubr.f32.gmra.mrb[0].mxu0 %v3876
        %v4320 = vpop.f32.mrb[0].mxu0
        %v4321 = vadd.f32 %v4096, %v4320
        %v4322 = vpop.f32.mrb[0].mxu0
        %4323 = vmatprep.mubr.f32.mxu0 0.0
        %4324 = vmatmul.mubr.f32.gmra.mrb[0].mxu0 %v3879
        %v4325 = vpop.f32.mrb[0].mxu0
        %v4326 = vadd.f32 %v4101, %v4325
        %v4327 = vpop.f32.mrb[0].mxu0
        %4328 = vmatprep.mubr.f32.mxu0 0.0
        %4329 = vmatmul.mubr.f32.gmra.mrb[0].mxu0 %v3882
        %v4330 = vpop.f32.mrb[0].mxu0
        %v4331 = vadd.f32 %v4106, %v4330
        %v4332 = vpop.f32.mrb[0].mxu0
        %4333 = vdwg.mxu0
        %v4334 = vlaneseq
        %v4335 = vshrl.u32 %v4334, 7
        %v4336 = vsub.s32 0, %v4335
        %v4337 = vrot.slane %v560, %v4336
        %v4338 = vmul.f32 %v4176, %v4337
        %v4339 = vmul.f32 %v4181, %v4337
        %v4340 = vmul.f32 %v4186, %v4337
        %v4341 = vmul.f32 %v4191, %v4337
        %v4342 = vmul.f32 %v4196, %v4337
        %v4343 = vmul.f32 %v4201, %v4337
        %v4344 = vmul.f32 %v4206, %v4337
        %v4345 = vmul.f32 %v4211, %v4337
        %v4346 = vmul.f32 %v4216, %v4337
        %v4347 = vmul.f32 %v4221, %v4337
        %v4348 = vmul.f32 %v4226, %v4337
        %v4349 = vmul.f32 %v4231, %v4337
        %v4350 = vmul.f32 %v4236, %v4337
        %v4351 = vmul.f32 %v4241, %v4337
        %v4352 = vmul.f32 %v4246, %v4337
        %v4353 = vmul.f32 %v4251, %v4337
        %v4354 = vmul.f32 %v4256, %v4337
        %v4355 = vmul.f32 %v4261, %v4337
        %v4356 = vmul.f32 %v4266, %v4337
        %v4357 = vmul.f32 %v4271, %v4337
        %v4358 = vmul.f32 %v4276, %v4337
        %v4359 = vmul.f32 %v4281, %v4337
        %v4360 = vmul.f32 %v4286, %v4337
        %v4361 = vmul.f32 %v4291, %v4337
        %v4362 = vmul.f32 %v4296, %v4337
        %v4363 = vmul.f32 %v4301, %v4337
        %v4364 = vmul.f32 %v4306, %v4337
        %v4365 = vmul.f32 %v4311, %v4337
        %v4366 = vmul.f32 %v4316, %v4337
        %v4367 = vmul.f32 %v4321, %v4337
        %v4368 = vmul.f32 %v4326, %v4337
        %v4369 = vmul.f32 %v4331, %v4337
        %v4370 = vadd.f32 %v4338, %v428
        %v4371 = vadd.f32 %v4339, %v429
        %v4372 = vadd.f32 %v4340, %v430
        %v4373 = vadd.f32 %v4341, %v431
        %v4374 = vadd.f32 %v4342, %v432
        %v4375 = vadd.f32 %v4343, %v433
        %v4376 = vadd.f32 %v4344, %v434
        %v4377 = vadd.f32 %v4345, %v435
        %v4378 = vadd.f32 %v4346, %v436
        %v4379 = vadd.f32 %v4347, %v437
        %v4380 = vadd.f32 %v4348, %v438
        %v4381 = vadd.f32 %v4349, %v439
        %v4382 = vadd.f32 %v4350, %v440
        %v4383 = vadd.f32 %v4351, %v441
        %v4384 = vadd.f32 %v4352, %v442
        %v4385 = vadd.f32 %v4353, %v443
        %v4386 = vadd.f32 %v4354, %v444
        %v4387 = vadd.f32 %v4355, %v445
        %v4388 = vadd.f32 %v4356, %v446
        %v4389 = vadd.f32 %v4357, %v447
        %v4390 = vadd.f32 %v4358, %v448
        %v4391 = vadd.f32 %v4359, %v449
        %v4392 = vadd.f32 %v4360, %v450
        %v4393 = vadd.f32 %v4361, %v451
        %v4394 = vadd.f32 %v4362, %v452
        %v4395 = vadd.f32 %v4363, %v453
        %v4396 = vadd.f32 %v4364, %v454
        %v4397 = vadd.f32 %v4365, %v455
        %v4398 = vadd.f32 %v4366, %v456
        %v4399 = vadd.f32 %v4367, %v457
        %v4400 = vadd.f32 %v4368, %v458
        %v4401 = vadd.f32 %v4369, %v459
        %v4402 = vsel %vm385, %v4370, 0.0
        %v4403 = vsel %vm385, %v4371, 0.0
        %v4404 = vadd.f32 %v4402, %v4403
        %v4405 = vsel %vm385, %v4372, 0.0
        %v4406 = vadd.f32 %v4404, %v4405
        %v4407 = vsel %vm385, %v4373, 0.0
        %v4408 = vadd.f32 %v4406, %v4407
        %v4409 = vsel %vm385, %v4374, 0.0
        %v4410 = vadd.f32 %v4408, %v4409
        %v4411 = vsel %vm385, %v4375, 0.0
        %v4412 = vadd.f32 %v4410, %v4411
        %v4413 = vsel %vm385, %v4376, 0.0
        %v4414 = vadd.f32 %v4412, %v4413
        %v4415 = vsel %vm385, %v4377, 0.0
        %v4416 = vadd.f32 %v4414, %v4415
        %v4417 = vsel %vm385, %v4378, 0.0
        %v4418 = vadd.f32 %v4416, %v4417
        %v4419 = vsel %vm385, %v4379, 0.0
        %v4420 = vadd.f32 %v4418, %v4419
        %v4421 = vsel %vm385, %v4380, 0.0
        %v4422 = vadd.f32 %v4420, %v4421
        %v4423 = vsel %vm385, %v4381, 0.0
        %v4424 = vadd.f32 %v4422, %v4423
        %v4425 = vsel %vm385, %v4382, 0.0
        %v4426 = vadd.f32 %v4424, %v4425
        %v4427 = vsel %vm385, %v4383, 0.0
        %v4428 = vadd.f32 %v4426, %v4427
        %v4429 = vsel %vm385, %v4384, 0.0
        %v4430 = vadd.f32 %v4428, %v4429
        %v4431 = vsel %vm385, %v4385, 0.0
        %v4432 = vadd.f32 %v4430, %v4431
        %v4433 = vsel %vm385, %v4386, 0.0
        %v4434 = vadd.f32 %v4432, %v4433
        %v4435 = vsel %vm385, %v4387, 0.0
        %v4436 = vadd.f32 %v4434, %v4435
        %v4437 = vsel %vm385, %v4388, 0.0
        %v4438 = vadd.f32 %v4436, %v4437
        %v4439 = vsel %vm385, %v4389, 0.0
        %v4440 = vadd.f32 %v4438, %v4439
        %v4441 = vsel %vm385, %v4390, 0.0
        %v4442 = vadd.f32 %v4440, %v4441
        %v4443 = vsel %vm385, %v4391, 0.0
        %v4444 = vadd.f32 %v4442, %v4443
        %v4445 = vsel %vm385, %v4392, 0.0
        %v4446 = vadd.f32 %v4444, %v4445
        %v4447 = vsel %vm385, %v4393, 0.0
        %v4448 = vadd.f32 %v4446, %v4447
        %v4449 = vsel %vm385, %v4394, 0.0
        %v4450 = vadd.f32 %v4448, %v4449
        %v4451 = vsel %vm385, %v4395, 0.0
        %v4452 = vadd.f32 %v4450, %v4451
        %v4453 = vsel %vm385, %v4396, 0.0
        %v4454 = vadd.f32 %v4452, %v4453
        %v4455 = vsel %vm385, %v4397, 0.0
        %v4456 = vadd.f32 %v4454, %v4455
        %v4457 = vsel %vm385, %v4398, 0.0
        %v4458 = vadd.f32 %v4456, %v4457
        %v4459 = vsel %vm385, %v4399, 0.0
        %v4460 = vadd.f32 %v4458, %v4459
        %v4461 = vsel %vm385, %v4400, 0.0
        %v4462 = vadd.f32 %v4460, %v4461
        %v4463 = vsel %vm385, %v4401, 0.0
        %v4464 = vadd.f32 %v4462, %v4463
        %v4465 = vrot.slane %v4464, 4
        %v4466 = vadd.f32 %v4464, %v4465
        %v4467 = vrot.slane %v4466, 2
        %v4468 = vadd.f32 %v4466, %v4467
        %v4469 = vrot.slane %v4468, 1
        %v4470 = vadd.f32 %v4468, %v4469
        %v4471 = vmul.f32 %v4470, %v529
        %s4472 = scalar_lea.vmem %s5, 2
        %v4473 = vld [vmem:[%s4472] sm:$0x3]
        %v4474 = vmul.f32 %v4473, %v4471
        %v4475 = vsel %vm388, %v4474, 0.0
        %4476 = vadd.xlane.f32.xlu0 %v4475
        %v4477 = vpop.xlane.xlu0 %4476
        %s4478 = scalar_lea.vmem %s6, 2
        %v4479 = vld [vmem:[%s4478] sm:$0x3]
        %v4480 = vadd.f32 %v4477, %v4479
        %v4481 = vmax.f32 %v4480, 0.0
        %s4482 = scalar_lea.vmem %s7, 2
        %v4483 = vld [vmem:[%s4482] sm:$0x3]
        %4485 = vset.pattern.permute.xlu0 0
        %4486 = vperm.xlu0 %4485, %v4481
        %v4487 = vpop.permute.xlu0 %4486
        %v4489 = vmul.f32 %v4487, %v4483
        %v4490 = vsel %vm388, %v4489, 0.0
        %v4491 = vrot.slane %v4490, 4
        %v4492 = vadd.f32 %v4490, %v4491
        %v4493 = vrot.slane %v4492, 2
        %v4494 = vadd.f32 %v4492, %v4493
        %v4495 = vrot.slane %v4494, 1
        %v4496 = vadd.f32 %v4494, %v4495
        %s4497 = scalar_lea.vmem %s8, 1
        %v4498 = vld [vmem:[%s4497] sm:$0x1]
        %v4499 = vadd.f32 %v4496, %v4498
        %v4500 = vxor.u32 %v4499, 2147483648
        %v4501 = vmul.f32 %v4500, 1.442695
        %v4502 = vpow.pop %v4501
        %v4503 = vadd.f32 %v4502, 1.0
        %v4504 = vrcp.pop %v4503
        %v4505 = vmul.f32 1.0, %v4504
        %s4506 = scalar_lea.vmem %s1, 288
        %v4507 = vld [vmem:[%s4506] sm:$0xff]
        %v4508 = vld [vmem:[%s4506 + $0x8] sm:$0xff]
        %v4509 = vld [vmem:[%s4506 + $0x10] sm:$0xff]
        %v4510 = vld [vmem:[%s4506 + $0x18] sm:$0xff]
        %v4511 = vld [vmem:[%s4506 + $0x20] sm:$0xff]
        %v4512 = vld [vmem:[%s4506 + $0x28] sm:$0xff]
        %v4513 = vld [vmem:[%s4506 + $0x30] sm:$0xff]
        %v4514 = vld [vmem:[%s4506 + $0x38] sm:$0xff]
        %v4515 = vld [vmem:[%s4506 + $0x40] sm:$0xff]
        %v4516 = vld [vmem:[%s4506 + $0x48] sm:$0xff]
        %v4517 = vld [vmem:[%s4506 + $0x50] sm:$0xff]
        %v4518 = vld [vmem:[%s4506 + $0x58] sm:$0xff]
        %v4519 = vld [vmem:[%s4506 + $0x60] sm:$0xff]
        %v4520 = vld [vmem:[%s4506 + $0x68] sm:$0xff]
        %v4521 = vld [vmem:[%s4506 + $0x70] sm:$0xff]
        %v4522 = vld [vmem:[%s4506 + $0x78] sm:$0xff]
        %v4523 = vld [vmem:[%s4506 + $0x80] sm:$0xff]
        %v4524 = vld [vmem:[%s4506 + $0x88] sm:$0xff]
        %v4525 = vld [vmem:[%s4506 + $0x90] sm:$0xff]
        %v4526 = vld [vmem:[%s4506 + $0x98] sm:$0xff]
        %v4527 = vld [vmem:[%s4506 + $0xa0] sm:$0xff]
        %v4528 = vld [vmem:[%s4506 + $0xa8] sm:$0xff]
        %v4529 = vld [vmem:[%s4506 + $0xb0] sm:$0xff]
        %v4530 = vld [vmem:[%s4506 + $0xb8] sm:$0xff]
        %v4531 = vld [vmem:[%s4506 + $0xc0] sm:$0xff]
        %v4532 = vld [vmem:[%s4506 + $0xc8] sm:$0xff]
        %v4533 = vld [vmem:[%s4506 + $0xd0] sm:$0xff]
        %v4534 = vld [vmem:[%s4506 + $0xd8] sm:$0xff]
        %v4535 = vld [vmem:[%s4506 + $0xe0] sm:$0xff]
        %v4536 = vld [vmem:[%s4506 + $0xe8] sm:$0xff]
        %v4537 = vld [vmem:[%s4506 + $0xf0] sm:$0xff]
        %v4538 = vld [vmem:[%s4506 + $0xf8] sm:$0xff]
        %v4539 = vld [vmem:[%s4506 + $0x100] sm:$0xff]
        %v4540 = vld [vmem:[%s4506 + $0x108] sm:$0xff]
        %v4541 = vld [vmem:[%s4506 + $0x110] sm:$0xff]
        %v4542 = vld [vmem:[%s4506 + $0x118] sm:$0xff]
        %s4543 = scalar_lea.vmem %s2, 1
        %v4544 = vld [vmem:[%s4543] sm:$0x1]
        %4545 = vst.msk [vmem:[%s394 + $0x1] sm:$0xff] %vm385, %v4370
        %4546 = vst.msk [vmem:[%s394 + $0x9] sm:$0xff] %vm385, %v4371
        %4547 = vst.msk [vmem:[%s394 + $0x19] sm:$0xff] %vm385, %v4372
        %4548 = vst.msk [vmem:[%s394 + $0x21] sm:$0xff] %vm385, %v4373
        %4549 = vst.msk [vmem:[%s394 + $0x31] sm:$0xff] %vm385, %v4374
        %4550 = vst.msk [vmem:[%s394 + $0x39] sm:$0xff] %vm385, %v4375
        %4551 = vst.msk [vmem:[%s394 + $0x49] sm:$0xff] %vm385, %v4376
        %4552 = vst.msk [vmem:[%s394 + $0x51] sm:$0xff] %vm385, %v4377
        %4553 = vst.msk [vmem:[%s394 + $0x61] sm:$0xff] %vm385, %v4378
        %4554 = vst.msk [vmem:[%s394 + $0x69] sm:$0xff] %vm385, %v4379
        %4555 = vst.msk [vmem:[%s394 + $0x79] sm:$0xff] %vm385, %v4380
        %4556 = vst.msk [vmem:[%s394 + $0x81] sm:$0xff] %vm385, %v4381
        %4557 = vst.msk [vmem:[%s394 + $0x91] sm:$0xff] %vm385, %v4382
        %4558 = vst.msk [vmem:[%s394 + $0x99] sm:$0xff] %vm385, %v4383
        %4559 = vst.msk [vmem:[%s394 + $0xa9] sm:$0xff] %vm385, %v4384
        %4560 = vst.msk [vmem:[%s394 + $0xb1] sm:$0xff] %vm385, %v4385
        %4561 = vst.msk [vmem:[%s394 + $0xc1] sm:$0xff] %vm385, %v4386
        %4562 = vst.msk [vmem:[%s394 + $0xc9] sm:$0xff] %vm385, %v4387
        %4563 = vst.msk [vmem:[%s394 + $0xd9] sm:$0xff] %vm385, %v4388
        %4564 = vst.msk [vmem:[%s394 + $0xe1] sm:$0xff] %vm385, %v4389
        %4565 = vst.msk [vmem:[%s394 + $0xf1] sm:$0xff] %vm385, %v4390
        %4566 = vst.msk [vmem:[%s394 + $0xf9] sm:$0xff] %vm385, %v4391
        %4567 = vst.msk [vmem:[%s394 + $0x109] sm:$0xff] %vm385, %v4392
        %4568 = vst.msk [vmem:[%s394 + $0x111] sm:$0xff] %vm385, %v4393
        %4569 = vst.msk [vmem:[%s394 + $0x121] sm:$0xff] %vm385, %v4394
        %4570 = vst.msk [vmem:[%s394 + $0x129] sm:$0xff] %vm385, %v4395
        %4571 = vst.msk [vmem:[%s394 + $0x139] sm:$0xff] %vm385, %v4396
        %4572 = vst.msk [vmem:[%s394 + $0x141] sm:$0xff] %vm385, %v4397
        %4573 = vst.msk [vmem:[%s394 + $0x151] sm:$0xff] %vm385, %v4398
        %4574 = vst.msk [vmem:[%s394 + $0x159] sm:$0xff] %vm385, %v4399
        %4575 = vst.msk [vmem:[%s394 + $0x169] sm:$0xff] %vm385, %v4400
        %4576 = vst.msk [vmem:[%s394 + $0x171] sm:$0xff] %vm385, %v4401
        %v4577 = vld [vmem:[#allocation2] sm:$0xff]
        %v4578 = vld [vmem:[#allocation2 + $0x8] sm:$0xff]
        %v4579 = vld [vmem:[#allocation2 + $0x18] sm:$0xff]
        %v4580 = vld [vmem:[#allocation2 + $0x20] sm:$0xff]
        %v4581 = vld [vmem:[#allocation2 + $0x30] sm:$0xff]
        %v4582 = vld [vmem:[#allocation2 + $0x38] sm:$0xff]
        %v4583 = vld [vmem:[#allocation2 + $0x48] sm:$0xff]
        %v4584 = vld [vmem:[#allocation2 + $0x50] sm:$0xff]
        %v4585 = vld [vmem:[#allocation2 + $0x60] sm:$0xff]
        %v4586 = vld [vmem:[#allocation2 + $0x68] sm:$0xff]
        %v4587 = vld [vmem:[#allocation2 + $0x78] sm:$0xff]
        %v4588 = vld [vmem:[#allocation2 + $0x80] sm:$0xff]
        %v4589 = vld [vmem:[#allocation2 + $0x90] sm:$0xff]
        %v4590 = vld [vmem:[#allocation2 + $0x98] sm:$0xff]
        %v4591 = vld [vmem:[#allocation2 + $0xa8] sm:$0xff]
        %v4592 = vld [vmem:[#allocation2 + $0xb0] sm:$0xff]
        %v4593 = vld [vmem:[#allocation2 + $0xc0] sm:$0xff]
        %v4594 = vld [vmem:[#allocation2 + $0xc8] sm:$0xff]
        %v4595 = vld [vmem:[#allocation2 + $0xd8] sm:$0xff]
        %v4596 = vld [vmem:[#allocation2 + $0xe0] sm:$0xff]
        %v4597 = vld [vmem:[#allocation2 + $0xf0] sm:$0xff]
        %v4598 = vld [vmem:[#allocation2 + $0xf8] sm:$0xff]
        %v4599 = vld [vmem:[#allocation2 + $0x108] sm:$0xff]
        %v4600 = vld [vmem:[#allocation2 + $0x110] sm:$0xff]
        %v4601 = vld [vmem:[#allocation2 + $0x120] sm:$0xff]
        %v4602 = vld [vmem:[#allocation2 + $0x128] sm:$0xff]
        %v4603 = vld [vmem:[#allocation2 + $0x138] sm:$0xff]
        %v4604 = vld [vmem:[#allocation2 + $0x140] sm:$0xff]
        %v4605 = vld [vmem:[#allocation2 + $0x150] sm:$0xff]
        %v4606 = vld [vmem:[#allocation2 + $0x158] sm:$0xff]
        %v4607 = vld [vmem:[#allocation2 + $0x168] sm:$0xff]
        %v4608 = vld [vmem:[#allocation2 + $0x170] sm:$0xff]
        %v4609 = vld [vmem:[#allocation2 + $0x1] sm:$0xff]
        %v4610 = vld [vmem:[#allocation2 + $0x9] sm:$0xff]
        %v4611 = vld [vmem:[#allocation2 + $0x19] sm:$0xff]
        %v4612 = vld [vmem:[#allocation2 + $0x21] sm:$0xff]
        %v4613 = vld [vmem:[#allocation2 + $0x31] sm:$0xff]
        %v4614 = vld [vmem:[#allocation2 + $0x39] sm:$0xff]
        %v4615 = vld [vmem:[#allocation2 + $0x49] sm:$0xff]
        %v4616 = vld [vmem:[#allocation2 + $0x51] sm:$0xff]
        %v4617 = vld [vmem:[#allocation2 + $0x61] sm:$0xff]
        %v4618 = vld [vmem:[#allocation2 + $0x69] sm:$0xff]
        %v4619 = vld [vmem:[#allocation2 + $0x79] sm:$0xff]
        %v4620 = vld [vmem:[#allocation2 + $0x81] sm:$0xff]
        %v4621 = vld [vmem:[#allocation2 + $0x91] sm:$0xff]
        %v4622 = vld [vmem:[#allocation2 + $0x99] sm:$0xff]
        %v4623 = vld [vmem:[#allocation2 + $0xa9] sm:$0xff]
        %v4624 = vld [vmem:[#allocation2 + $0xb1] sm:$0xff]
        %v4625 = vld [vmem:[#allocation2 + $0xc1] sm:$0xff]
        %v4626 = vld [vmem:[#allocation2 + $0xc9] sm:$0xff]
        %v4627 = vld [vmem:[#allocation2 + $0xd9] sm:$0xff]
        %v4628 = vld [vmem:[#allocation2 + $0xe1] sm:$0xff]
        %v4629 = vld [vmem:[#allocation2 + $0xf1] sm:$0xff]
        %v4630 = vld [vmem:[#allocation2 + $0xf9] sm:$0xff]
        %v4631 = vld [vmem:[#allocation2 + $0x109] sm:$0xff]
        %v4632 = vld [vmem:[#allocation2 + $0x111] sm:$0xff]
        %v4633 = vld [vmem:[#allocation2 + $0x121] sm:$0xff]
        %v4634 = vld [vmem:[#allocation2 + $0x129] sm:$0xff]
        %v4635 = vld [vmem:[#allocation2 + $0x139] sm:$0xff]
        %v4636 = vld [vmem:[#allocation2 + $0x141] sm:$0xff]
        %v4637 = vld [vmem:[#allocation2 + $0x151] sm:$0xff]
        %v4638 = vld [vmem:[#allocation2 + $0x159] sm:$0xff]
        %v4639 = vld [vmem:[#allocation2 + $0x169] sm:$0xff]
        %v4640 = vld [vmem:[#allocation2 + $0x171] sm:$0xff]
        %v4641 = vld [vmem:[#allocation2 + $0x2] sm:$0xff]
        %v4642 = vld [vmem:[#allocation2 + $0xa] sm:$0xff]
        %v4643 = vld [vmem:[#allocation2 + $0x1a] sm:$0xff]
        %v4644 = vld [vmem:[#allocation2 + $0x22] sm:$0xff]
        %v4645 = vld [vmem:[#allocation2 + $0x32] sm:$0xff]
        %v4646 = vld [vmem:[#allocation2 + $0x3a] sm:$0xff]
        %v4647 = vld [vmem:[#allocation2 + $0x4a] sm:$0xff]
        %v4648 = vld [vmem:[#allocation2 + $0x52] sm:$0xff]
        %v4649 = vld [vmem:[#allocation2 + $0x62] sm:$0xff]
        %v4650 = vld [vmem:[#allocation2 + $0x6a] sm:$0xff]
        %v4651 = vld [vmem:[#allocation2 + $0x7a] sm:$0xff]
        %v4652 = vld [vmem:[#allocation2 + $0x82] sm:$0xff]
        %v4653 = vld [vmem:[#allocation2 + $0x92] sm:$0xff]
        %v4654 = vld [vmem:[#allocation2 + $0x9a] sm:$0xff]
        %v4655 = vld [vmem:[#allocation2 + $0xaa] sm:$0xff]
        %v4656 = vld [vmem:[#allocation2 + $0xb2] sm:$0xff]
        %v4657 = vld [vmem:[#allocation2 + $0xc2] sm:$0xff]
        %v4658 = vld [vmem:[#allocation2 + $0xca] sm:$0xff]
        %v4659 = vld [vmem:[#allocation2 + $0xda] sm:$0xff]
        %v4660 = vld [vmem:[#allocation2 + $0xe2] sm:$0xff]
        %v4661 = vld [vmem:[#allocation2 + $0xf2] sm:$0xff]
        %v4662 = vld [vmem:[#allocation2 + $0xfa] sm:$0xff]
        %v4663 = vld [vmem:[#allocation2 + $0x10a] sm:$0xff]
        %v4664 = vld [vmem:[#allocation2 + $0x112] sm:$0xff]
        %v4665 = vld [vmem:[#allocation2 + $0x122] sm:$0xff]
        %v4666 = vld [vmem:[#allocation2 + $0x12a] sm:$0xff]
        %v4667 = vld [vmem:[#allocation2 + $0x13a] sm:$0xff]
        %v4668 = vld [vmem:[#allocation2 + $0x142] sm:$0xff]
        %v4669 = vld [vmem:[#allocation2 + $0x152] sm:$0xff]
        %v4670 = vld [vmem:[#allocation2 + $0x15a] sm:$0xff]
        %v4671 = vld [vmem:[#allocation2 + $0x16a] sm:$0xff]
        %v4672 = vld [vmem:[#allocation2 + $0x172] sm:$0xff]
        %v4673 = vld [vmem:[%s394] sm:$0xff]
        %v4674 = vld [vmem:[%s394 + $0x8] sm:$0xff]
        %v4675 = vld [vmem:[%s394 + $0x18] sm:$0xff]
        %v4676 = vld [vmem:[%s394 + $0x20] sm:$0xff]
        %v4677 = vld [vmem:[%s394 + $0x30] sm:$0xff]
        %v4678 = vld [vmem:[%s394 + $0x38] sm:$0xff]
        %v4679 = vld [vmem:[%s394 + $0x48] sm:$0xff]
        %v4680 = vld [vmem:[%s394 + $0x50] sm:$0xff]
        %v4681 = vld [vmem:[%s394 + $0x60] sm:$0xff]
        %v4682 = vld [vmem:[%s394 + $0x68] sm:$0xff]
        %v4683 = vld [vmem:[%s394 + $0x78] sm:$0xff]
        %v4684 = vld [vmem:[%s394 + $0x80] sm:$0xff]
        %v4685 = vld [vmem:[%s394 + $0x90] sm:$0xff]
        %v4686 = vld [vmem:[%s394 + $0x98] sm:$0xff]
        %v4687 = vld [vmem:[%s394 + $0xa8] sm:$0xff]
        %v4688 = vld [vmem:[%s394 + $0xb0] sm:$0xff]
        %v4689 = vld [vmem:[%s394 + $0xc0] sm:$0xff]
        %v4690 = vld [vmem:[%s394 + $0xc8] sm:$0xff]
        %v4691 = vld [vmem:[%s394 + $0xd8] sm:$0xff]
        %v4692 = vld [vmem:[%s394 + $0xe0] sm:$0xff]
        %v4693 = vld [vmem:[%s394 + $0xf0] sm:$0xff]
        %v4694 = vld [vmem:[%s394 + $0xf8] sm:$0xff]
        %v4695 = vld [vmem:[%s394 + $0x108] sm:$0xff]
        %v4696 = vld [vmem:[%s394 + $0x110] sm:$0xff]
        %v4697 = vld [vmem:[%s394 + $0x120] sm:$0xff]
        %v4698 = vld [vmem:[%s394 + $0x128] sm:$0xff]
        %v4699 = vld [vmem:[%s394 + $0x138] sm:$0xff]
        %v4700 = vld [vmem:[%s394 + $0x140] sm:$0xff]
        %v4701 = vld [vmem:[%s394 + $0x150] sm:$0xff]
        %v4702 = vld [vmem:[%s394 + $0x158] sm:$0xff]
        %v4703 = vld [vmem:[%s394 + $0x168] sm:$0xff]
        %v4704 = vld [vmem:[%s394 + $0x170] sm:$0xff]
        %v4705 = vld [vmem:[%s394 + $0x1] sm:$0xff]
        %v4706 = vld [vmem:[%s394 + $0x9] sm:$0xff]
        %v4707 = vld [vmem:[%s394 + $0x19] sm:$0xff]
        %v4708 = vld [vmem:[%s394 + $0x21] sm:$0xff]
        %v4709 = vld [vmem:[%s394 + $0x31] sm:$0xff]
        %v4710 = vld [vmem:[%s394 + $0x39] sm:$0xff]
        %v4711 = vld [vmem:[%s394 + $0x49] sm:$0xff]
        %v4712 = vld [vmem:[%s394 + $0x51] sm:$0xff]
        %v4713 = vld [vmem:[%s394 + $0x61] sm:$0xff]
        %v4714 = vld [vmem:[%s394 + $0x69] sm:$0xff]
        %v4715 = vld [vmem:[%s394 + $0x79] sm:$0xff]
        %v4716 = vld [vmem:[%s394 + $0x81] sm:$0xff]
        %v4717 = vld [vmem:[%s394 + $0x91] sm:$0xff]
        %v4718 = vld [vmem:[%s394 + $0x99] sm:$0xff]
        %v4719 = vld [vmem:[%s394 + $0xa9] sm:$0xff]
        %v4720 = vld [vmem:[%s394 + $0xb1] sm:$0xff]
        %v4721 = vld [vmem:[%s394 + $0xc1] sm:$0xff]
        %v4722 = vld [vmem:[%s394 + $0xc9] sm:$0xff]
        %v4723 = vld [vmem:[%s394 + $0xd9] sm:$0xff]
        %v4724 = vld [vmem:[%s394 + $0xe1] sm:$0xff]
        %v4725 = vld [vmem:[%s394 + $0xf1] sm:$0xff]
        %v4726 = vld [vmem:[%s394 + $0xf9] sm:$0xff]
        %v4727 = vld [vmem:[%s394 + $0x109] sm:$0xff]
        %v4728 = vld [vmem:[%s394 + $0x111] sm:$0xff]
        %v4729 = vld [vmem:[%s394 + $0x121] sm:$0xff]
        %v4730 = vld [vmem:[%s394 + $0x129] sm:$0xff]
        %v4731 = vld [vmem:[%s394 + $0x139] sm:$0xff]
        %v4732 = vld [vmem:[%s394 + $0x141] sm:$0xff]
        %v4733 = vld [vmem:[%s394 + $0x151] sm:$0xff]
        %v4734 = vld [vmem:[%s394 + $0x159] sm:$0xff]
        %v4735 = vld [vmem:[%s394 + $0x169] sm:$0xff]
        %v4736 = vld [vmem:[%s394 + $0x171] sm:$0xff]
        %v4737 = vld [vmem:[%s394 + $0x2] sm:$0xff]
        %v4738 = vld [vmem:[%s394 + $0xa] sm:$0xff]
        %v4739 = vld [vmem:[%s394 + $0x1a] sm:$0xff]
        %v4740 = vld [vmem:[%s394 + $0x22] sm:$0xff]
        %v4741 = vld [vmem:[%s394 + $0x32] sm:$0xff]
        %v4742 = vld [vmem:[%s394 + $0x3a] sm:$0xff]
        %v4743 = vld [vmem:[%s394 + $0x4a] sm:$0xff]
        %v4744 = vld [vmem:[%s394 + $0x52] sm:$0xff]
        %v4745 = vld [vmem:[%s394 + $0x62] sm:$0xff]
        %v4746 = vld [vmem:[%s394 + $0x6a] sm:$0xff]
        %v4747 = vld [vmem:[%s394 + $0x7a] sm:$0xff]
        %v4748 = vld [vmem:[%s394 + $0x82] sm:$0xff]
        %v4749 = vld [vmem:[%s394 + $0x92] sm:$0xff]
        %v4750 = vld [vmem:[%s394 + $0x9a] sm:$0xff]
        %v4751 = vld [vmem:[%s394 + $0xaa] sm:$0xff]
        %v4752 = vld [vmem:[%s394 + $0xb2] sm:$0xff]
        %v4753 = vld [vmem:[%s394 + $0xc2] sm:$0xff]
        %v4754 = vld [vmem:[%s394 + $0xca] sm:$0xff]
        %v4755 = vld [vmem:[%s394 + $0xda] sm:$0xff]
        %v4756 = vld [vmem:[%s394 + $0xe2] sm:$0xff]
        %v4757 = vld [vmem:[%s394 + $0xf2] sm:$0xff]
        %v4758 = vld [vmem:[%s394 + $0xfa] sm:$0xff]
        %v4759 = vld [vmem:[%s394 + $0x10a] sm:$0xff]
        %v4760 = vld [vmem:[%s394 + $0x112] sm:$0xff]
        %v4761 = vld [vmem:[%s394 + $0x122] sm:$0xff]
        %v4762 = vld [vmem:[%s394 + $0x12a] sm:$0xff]
        %v4763 = vld [vmem:[%s394 + $0x13a] sm:$0xff]
        %v4764 = vld [vmem:[%s394 + $0x142] sm:$0xff]
        %v4765 = vld [vmem:[%s394 + $0x152] sm:$0xff]
        %v4766 = vld [vmem:[%s394 + $0x15a] sm:$0xff]
        %v4767 = vld [vmem:[%s394 + $0x16a] sm:$0xff]
        %v4768 = vld [vmem:[%s394 + $0x172] sm:$0xff]
        %v4769 = vld [vmem:[%s822] sm:$0xff]
        %v4770 = vld [vmem:[%s822 + $0x8] sm:$0xff]
        %v4771 = vld [vmem:[%s822 + $0x18] sm:$0xff]
        %v4772 = vld [vmem:[%s822 + $0x20] sm:$0xff]
        %v4773 = vld [vmem:[%s822 + $0x30] sm:$0xff]
        %v4774 = vld [vmem:[%s822 + $0x38] sm:$0xff]
        %v4775 = vld [vmem:[%s822 + $0x48] sm:$0xff]
        %v4776 = vld [vmem:[%s822 + $0x50] sm:$0xff]
        %v4777 = vld [vmem:[%s822 + $0x60] sm:$0xff]
        %v4778 = vld [vmem:[%s822 + $0x68] sm:$0xff]
        %v4779 = vld [vmem:[%s822 + $0x78] sm:$0xff]
        %v4780 = vld [vmem:[%s822 + $0x80] sm:$0xff]
        %v4781 = vld [vmem:[%s822 + $0x90] sm:$0xff]
        %v4782 = vld [vmem:[%s822 + $0x98] sm:$0xff]
        %v4783 = vld [vmem:[%s822 + $0xa8] sm:$0xff]
        %v4784 = vld [vmem:[%s822 + $0xb0] sm:$0xff]
        %v4785 = vld [vmem:[%s822 + $0xc0] sm:$0xff]
        %v4786 = vld [vmem:[%s822 + $0xc8] sm:$0xff]
        %v4787 = vld [vmem:[%s822 + $0xd8] sm:$0xff]
        %v4788 = vld [vmem:[%s822 + $0xe0] sm:$0xff]
        %v4789 = vld [vmem:[%s822 + $0xf0] sm:$0xff]
        %v4790 = vld [vmem:[%s822 + $0xf8] sm:$0xff]
        %v4791 = vld [vmem:[%s822 + $0x108] sm:$0xff]
        %v4792 = vld [vmem:[%s822 + $0x110] sm:$0xff]
        %v4793 = vld [vmem:[%s822 + $0x120] sm:$0xff]
        %v4794 = vld [vmem:[%s822 + $0x128] sm:$0xff]
        %v4795 = vld [vmem:[%s822 + $0x138] sm:$0xff]
        %v4796 = vld [vmem:[%s822 + $0x140] sm:$0xff]
        %v4797 = vld [vmem:[%s822 + $0x150] sm:$0xff]
        %v4798 = vld [vmem:[%s822 + $0x158] sm:$0xff]
        %v4799 = vld [vmem:[%s822 + $0x168] sm:$0xff]
        %v4800 = vld [vmem:[%s822 + $0x170] sm:$0xff]
        %v4801 = vld [vmem:[%s822 + $0x1] sm:$0xff]
        %v4802 = vld [vmem:[%s822 + $0x9] sm:$0xff]
        %v4803 = vld [vmem:[%s822 + $0x19] sm:$0xff]
        %v4804 = vld [vmem:[%s822 + $0x21] sm:$0xff]
        %v4805 = vld [vmem:[%s822 + $0x31] sm:$0xff]
        %v4806 = vld [vmem:[%s822 + $0x39] sm:$0xff]
        %v4807 = vld [vmem:[%s822 + $0x49] sm:$0xff]
        %v4808 = vld [vmem:[%s822 + $0x51] sm:$0xff]
        %v4809 = vld [vmem:[%s822 + $0x61] sm:$0xff]
        %v4810 = vld [vmem:[%s822 + $0x69] sm:$0xff]
        %v4811 = vld [vmem:[%s822 + $0x79] sm:$0xff]
        %v4812 = vld [vmem:[%s822 + $0x81] sm:$0xff]
        %v4813 = vld [vmem:[%s822 + $0x91] sm:$0xff]
        %v4814 = vld [vmem:[%s822 + $0x99] sm:$0xff]
        %v4815 = vld [vmem:[%s822 + $0xa9] sm:$0xff]
        %v4816 = vld [vmem:[%s822 + $0xb1] sm:$0xff]
        %v4817 = vld [vmem:[%s822 + $0xc1] sm:$0xff]
        %v4818 = vld [vmem:[%s822 + $0xc9] sm:$0xff]
        %v4819 = vld [vmem:[%s822 + $0xd9] sm:$0xff]
        %v4820 = vld [vmem:[%s822 + $0xe1] sm:$0xff]
        %v4821 = vld [vmem:[%s822 + $0xf1] sm:$0xff]
        %v4822 = vld [vmem:[%s822 + $0xf9] sm:$0xff]
        %v4823 = vld [vmem:[%s822 + $0x109] sm:$0xff]
        %v4824 = vld [vmem:[%s822 + $0x111] sm:$0xff]
        %v4825 = vld [vmem:[%s822 + $0x121] sm:$0xff]
        %v4826 = vld [vmem:[%s822 + $0x129] sm:$0xff]
        %v4827 = vld [vmem:[%s822 + $0x139] sm:$0xff]
        %v4828 = vld [vmem:[%s822 + $0x141] sm:$0xff]
        %v4829 = vld [vmem:[%s822 + $0x151] sm:$0xff]
        %v4830 = vld [vmem:[%s822 + $0x159] sm:$0xff]
        %v4831 = vld [vmem:[%s822 + $0x169] sm:$0xff]
        %v4832 = vld [vmem:[%s822 + $0x171] sm:$0xff]
        %v4833 = vld [vmem:[%s822 + $0x2] sm:$0xff]
        %v4834 = vld [vmem:[%s822 + $0xa] sm:$0xff]
        %v4835 = vld [vmem:[%s822 + $0x1a] sm:$0xff]
        %v4836 = vld [vmem:[%s822 + $0x22] sm:$0xff]
        %v4837 = vld [vmem:[%s822 + $0x32] sm:$0xff]
        %v4838 = vld [vmem:[%s822 + $0x3a] sm:$0xff]
        %v4839 = vld [vmem:[%s822 + $0x4a] sm:$0xff]
        %v4840 = vld [vmem:[%s822 + $0x52] sm:$0xff]
        %v4841 = vld [vmem:[%s822 + $0x62] sm:$0xff]
        %v4842 = vld [vmem:[%s822 + $0x6a] sm:$0xff]
        %v4843 = vld [vmem:[%s822 + $0x7a] sm:$0xff]
        %v4844 = vld [vmem:[%s822 + $0x82] sm:$0xff]
        %v4845 = vld [vmem:[%s822 + $0x92] sm:$0xff]
        %v4846 = vld [vmem:[%s822 + $0x9a] sm:$0xff]
        %v4847 = vld [vmem:[%s822 + $0xaa] sm:$0xff]
        %v4848 = vld [vmem:[%s822 + $0xb2] sm:$0xff]
        %v4849 = vld [vmem:[%s822 + $0xc2] sm:$0xff]
        %v4850 = vld [vmem:[%s822 + $0xca] sm:$0xff]
        %v4851 = vld [vmem:[%s822 + $0xda] sm:$0xff]
        %v4852 = vld [vmem:[%s822 + $0xe2] sm:$0xff]
        %v4853 = vld [vmem:[%s822 + $0xf2] sm:$0xff]
        %v4854 = vld [vmem:[%s822 + $0xfa] sm:$0xff]
        %v4855 = vld [vmem:[%s822 + $0x10a] sm:$0xff]
        %v4856 = vld [vmem:[%s822 + $0x112] sm:$0xff]
        %v4857 = vld [vmem:[%s822 + $0x122] sm:$0xff]
        %v4858 = vld [vmem:[%s822 + $0x12a] sm:$0xff]
        %v4859 = vld [vmem:[%s822 + $0x13a] sm:$0xff]
        %v4860 = vld [vmem:[%s822 + $0x142] sm:$0xff]
        %v4861 = vld [vmem:[%s822 + $0x152] sm:$0xff]
        %v4862 = vld [vmem:[%s822 + $0x15a] sm:$0xff]
        %v4863 = vld [vmem:[%s822 + $0x16a] sm:$0xff]
        %v4864 = vld [vmem:[%s822 + $0x172] sm:$0xff]
        %4897 = vrot.lane.b32.xlu0 %v4609, 32
        %v4898 = vpop.permute.xlu0 %4897
        %4899 = vrot.lane.b32.xlu0 %v4610, 32
        %v4900 = vpop.permute.xlu0 %4899
        %4901 = vrot.lane.b32.xlu0 %v4611, 32
        %v4902 = vpop.permute.xlu0 %4901
        %4903 = vrot.lane.b32.xlu0 %v4612, 32
        %v4904 = vpop.permute.xlu0 %4903
        %4905 = vrot.lane.b32.xlu0 %v4613, 32
        %v4906 = vpop.permute.xlu0 %4905
        %4907 = vrot.lane.b32.xlu0 %v4614, 32
        %v4908 = vpop.permute.xlu0 %4907
        %4909 = vrot.lane.b32.xlu0 %v4615, 32
        %v4910 = vpop.permute.xlu0 %4909
        %4911 = vrot.lane.b32.xlu0 %v4616, 32
        %v4912 = vpop.permute.xlu0 %4911
        %4913 = vrot.lane.b32.xlu0 %v4617, 32
        %v4914 = vpop.permute.xlu0 %4913
        %4915 = vrot.lane.b32.xlu0 %v4618, 32
        %v4916 = vpop.permute.xlu0 %4915
        %4917 = vrot.lane.b32.xlu0 %v4619, 32
        %v4918 = vpop.permute.xlu0 %4917
        %4919 = vrot.lane.b32.xlu0 %v4620, 32
        %v4920 = vpop.permute.xlu0 %4919
        %4921 = vrot.lane.b32.xlu0 %v4621, 32
        %v4922 = vpop.permute.xlu0 %4921
        %4923 = vrot.lane.b32.xlu0 %v4622, 32
        %v4924 = vpop.permute.xlu0 %4923
        %4925 = vrot.lane.b32.xlu0 %v4623, 32
        %v4926 = vpop.permute.xlu0 %4925
        %4927 = vrot.lane.b32.xlu0 %v4624, 32
        %v4928 = vpop.permute.xlu0 %4927
        %4929 = vrot.lane.b32.xlu0 %v4625, 32
        %v4930 = vpop.permute.xlu0 %4929
        %4931 = vrot.lane.b32.xlu0 %v4626, 32
        %v4932 = vpop.permute.xlu0 %4931
        %4933 = vrot.lane.b32.xlu0 %v4627, 32
        %v4934 = vpop.permute.xlu0 %4933
        %4935 = vrot.lane.b32.xlu0 %v4628, 32
        %v4936 = vpop.permute.xlu0 %4935
        %4937 = vrot.lane.b32.xlu0 %v4629, 32
        %v4938 = vpop.permute.xlu0 %4937
        %4939 = vrot.lane.b32.xlu0 %v4630, 32
        %v4940 = vpop.permute.xlu0 %4939
        %4941 = vrot.lane.b32.xlu0 %v4631, 32
        %v4942 = vpop.permute.xlu0 %4941
        %4943 = vrot.lane.b32.xlu0 %v4632, 32
        %v4944 = vpop.permute.xlu0 %4943
        %4945 = vrot.lane.b32.xlu0 %v4633, 32
        %v4946 = vpop.permute.xlu0 %4945
        %4947 = vrot.lane.b32.xlu0 %v4634, 32
        %v4948 = vpop.permute.xlu0 %4947
        %4949 = vrot.lane.b32.xlu0 %v4635, 32
        %v4950 = vpop.permute.xlu0 %4949
        %4951 = vrot.lane.b32.xlu0 %v4636, 32
        %v4952 = vpop.permute.xlu0 %4951
        %4953 = vrot.lane.b32.xlu0 %v4637, 32
        %v4954 = vpop.permute.xlu0 %4953
        %4955 = vrot.lane.b32.xlu0 %v4638, 32
        %v4956 = vpop.permute.xlu0 %4955
        %4957 = vrot.lane.b32.xlu0 %v4639, 32
        %v4958 = vpop.permute.xlu0 %4957
        %4959 = vrot.lane.b32.xlu0 %v4640, 32
        %v4960 = vpop.permute.xlu0 %4959
        %5025 = vrot.lane.b32.xlu0 %v4641, 64
        %v5026 = vpop.permute.xlu0 %5025
        %5027 = vrot.lane.b32.xlu0 %v4642, 64
        %v5028 = vpop.permute.xlu0 %5027
        %5029 = vrot.lane.b32.xlu0 %v4643, 64
        %v5030 = vpop.permute.xlu0 %5029
        %5031 = vrot.lane.b32.xlu0 %v4644, 64
        %v5032 = vpop.permute.xlu0 %5031
        %5033 = vrot.lane.b32.xlu0 %v4645, 64
        %v5034 = vpop.permute.xlu0 %5033
        %5035 = vrot.lane.b32.xlu0 %v4646, 64
        %v5036 = vpop.permute.xlu0 %5035
        %5037 = vrot.lane.b32.xlu0 %v4647, 64
        %v5038 = vpop.permute.xlu0 %5037
        %5039 = vrot.lane.b32.xlu0 %v4648, 64
        %v5040 = vpop.permute.xlu0 %5039
        %5041 = vrot.lane.b32.xlu0 %v4649, 64
        %v5042 = vpop.permute.xlu0 %5041
        %5043 = vrot.lane.b32.xlu0 %v4650, 64
        %v5044 = vpop.permute.xlu0 %5043
        %5045 = vrot.lane.b32.xlu0 %v4651, 64
        %v5046 = vpop.permute.xlu0 %5045
        %5047 = vrot.lane.b32.xlu0 %v4652, 64
        %v5048 = vpop.permute.xlu0 %5047
        %5049 = vrot.lane.b32.xlu0 %v4653, 64
        %v5050 = vpop.permute.xlu0 %5049
        %5051 = vrot.lane.b32.xlu0 %v4654, 64
        %v5052 = vpop.permute.xlu0 %5051
        %5053 = vrot.lane.b32.xlu0 %v4655, 64
        %v5054 = vpop.permute.xlu0 %5053
        %5055 = vrot.lane.b32.xlu0 %v4656, 64
        %v5056 = vpop.permute.xlu0 %5055
        %5057 = vrot.lane.b32.xlu0 %v4657, 64
        %v5058 = vpop.permute.xlu0 %5057
        %5059 = vrot.lane.b32.xlu0 %v4658, 64
        %v5060 = vpop.permute.xlu0 %5059
        %5061 = vrot.lane.b32.xlu0 %v4659, 64
        %v5062 = vpop.permute.xlu0 %5061
        %5063 = vrot.lane.b32.xlu0 %v4660, 64
        %v5064 = vpop.permute.xlu0 %5063
        %5065 = vrot.lane.b32.xlu0 %v4661, 64
        %v5066 = vpop.permute.xlu0 %5065
        %5067 = vrot.lane.b32.xlu0 %v4662, 64
        %v5068 = vpop.permute.xlu0 %5067
        %5069 = vrot.lane.b32.xlu0 %v4663, 64
        %v5070 = vpop.permute.xlu0 %5069
        %5071 = vrot.lane.b32.xlu0 %v4664, 64
        %v5072 = vpop.permute.xlu0 %5071
        %5073 = vrot.lane.b32.xlu0 %v4665, 64
        %v5074 = vpop.permute.xlu0 %5073
        %5075 = vrot.lane.b32.xlu0 %v4666, 64
        %v5076 = vpop.permute.xlu0 %5075
        %5077 = vrot.lane.b32.xlu0 %v4667, 64
        %v5078 = vpop.permute.xlu0 %5077
        %5079 = vrot.lane.b32.xlu0 %v4668, 64
        %v5080 = vpop.permute.xlu0 %5079
        %5081 = vrot.lane.b32.xlu0 %v4669, 64
        %v5082 = vpop.permute.xlu0 %5081
        %5083 = vrot.lane.b32.xlu0 %v4670, 64
        %v5084 = vpop.permute.xlu0 %5083
        %5085 = vrot.lane.b32.xlu0 %v4671, 64
        %v5086 = vpop.permute.xlu0 %5085
        %5087 = vrot.lane.b32.xlu0 %v4672, 64
        %v5088 = vpop.permute.xlu0 %5087
        %5153 = vrot.lane.b32.xlu0 %v4673, 96
        %v5154 = vpop.permute.xlu0 %5153
        %5155 = vrot.lane.b32.xlu0 %v4674, 96
        %v5156 = vpop.permute.xlu0 %5155
        %5157 = vrot.lane.b32.xlu0 %v4675, 96
        %v5158 = vpop.permute.xlu0 %5157
        %5159 = vrot.lane.b32.xlu0 %v4676, 96
        %v5160 = vpop.permute.xlu0 %5159
        %5161 = vrot.lane.b32.xlu0 %v4677, 96
        %v5162 = vpop.permute.xlu0 %5161
        %5163 = vrot.lane.b32.xlu0 %v4678, 96
        %v5164 = vpop.permute.xlu0 %5163
        %5165 = vrot.lane.b32.xlu0 %v4679, 96
        %v5166 = vpop.permute.xlu0 %5165
        %5167 = vrot.lane.b32.xlu0 %v4680, 96
        %v5168 = vpop.permute.xlu0 %5167
        %5169 = vrot.lane.b32.xlu0 %v4681, 96
        %v5170 = vpop.permute.xlu0 %5169
        %5171 = vrot.lane.b32.xlu0 %v4682, 96
        %v5172 = vpop.permute.xlu0 %5171
        %5173 = vrot.lane.b32.xlu0 %v4683, 96
        %v5174 = vpop.permute.xlu0 %5173
        %5175 = vrot.lane.b32.xlu0 %v4684, 96
        %v5176 = vpop.permute.xlu0 %5175
        %5177 = vrot.lane.b32.xlu0 %v4685, 96
        %v5178 = vpop.permute.xlu0 %5177
        %5179 = vrot.lane.b32.xlu0 %v4686, 96
        %v5180 = vpop.permute.xlu0 %5179
        %5181 = vrot.lane.b32.xlu0 %v4687, 96
        %v5182 = vpop.permute.xlu0 %5181
        %5183 = vrot.lane.b32.xlu0 %v4688, 96
        %v5184 = vpop.permute.xlu0 %5183
        %5185 = vrot.lane.b32.xlu0 %v4689, 96
        %v5186 = vpop.permute.xlu0 %5185
        %5187 = vrot.lane.b32.xlu0 %v4690, 96
        %v5188 = vpop.permute.xlu0 %5187
        %5189 = vrot.lane.b32.xlu0 %v4691, 96
        %v5190 = vpop.permute.xlu0 %5189
        %5191 = vrot.lane.b32.xlu0 %v4692, 96
        %v5192 = vpop.permute.xlu0 %5191
        %5193 = vrot.lane.b32.xlu0 %v4693, 96
        %v5194 = vpop.permute.xlu0 %5193
        %5195 = vrot.lane.b32.xlu0 %v4694, 96
        %v5196 = vpop.permute.xlu0 %5195
        %5197 = vrot.lane.b32.xlu0 %v4695, 96
        %v5198 = vpop.permute.xlu0 %5197
        %5199 = vrot.lane.b32.xlu0 %v4696, 96
        %v5200 = vpop.permute.xlu0 %5199
        %5201 = vrot.lane.b32.xlu0 %v4697, 96
        %v5202 = vpop.permute.xlu0 %5201
        %5203 = vrot.lane.b32.xlu0 %v4698, 96
        %v5204 = vpop.permute.xlu0 %5203
        %5205 = vrot.lane.b32.xlu0 %v4699, 96
        %v5206 = vpop.permute.xlu0 %5205
        %5207 = vrot.lane.b32.xlu0 %v4700, 96
        %v5208 = vpop.permute.xlu0 %5207
        %5209 = vrot.lane.b32.xlu0 %v4701, 96
        %v5210 = vpop.permute.xlu0 %5209
        %5211 = vrot.lane.b32.xlu0 %v4702, 96
        %v5212 = vpop.permute.xlu0 %5211
        %5213 = vrot.lane.b32.xlu0 %v4703, 96
        %v5214 = vpop.permute.xlu0 %5213
        %5215 = vrot.lane.b32.xlu0 %v4704, 96
        %v5216 = vpop.permute.xlu0 %5215
        %5281 = vrot.lane.b32.xlu0 %v4737, 32
        %v5282 = vpop.permute.xlu0 %5281
        %5283 = vrot.lane.b32.xlu0 %v4738, 32
        %v5284 = vpop.permute.xlu0 %5283
        %5285 = vrot.lane.b32.xlu0 %v4739, 32
        %v5286 = vpop.permute.xlu0 %5285
        %5287 = vrot.lane.b32.xlu0 %v4740, 32
        %v5288 = vpop.permute.xlu0 %5287
        %5289 = vrot.lane.b32.xlu0 %v4741, 32
        %v5290 = vpop.permute.xlu0 %5289
        %5291 = vrot.lane.b32.xlu0 %v4742, 32
        %v5292 = vpop.permute.xlu0 %5291
        %5293 = vrot.lane.b32.xlu0 %v4743, 32
        %v5294 = vpop.permute.xlu0 %5293
        %5295 = vrot.lane.b32.xlu0 %v4744, 32
        %v5296 = vpop.permute.xlu0 %5295
        %5297 = vrot.lane.b32.xlu0 %v4745, 32
        %v5298 = vpop.permute.xlu0 %5297
        %5299 = vrot.lane.b32.xlu0 %v4746, 32
        %v5300 = vpop.permute.xlu0 %5299
        %5301 = vrot.lane.b32.xlu0 %v4747, 32
        %v5302 = vpop.permute.xlu0 %5301
        %5303 = vrot.lane.b32.xlu0 %v4748, 32
        %v5304 = vpop.permute.xlu0 %5303
        %5305 = vrot.lane.b32.xlu0 %v4749, 32
        %v5306 = vpop.permute.xlu0 %5305
        %5307 = vrot.lane.b32.xlu0 %v4750, 32
        %v5308 = vpop.permute.xlu0 %5307
        %5309 = vrot.lane.b32.xlu0 %v4751, 32
        %v5310 = vpop.permute.xlu0 %5309
        %5311 = vrot.lane.b32.xlu0 %v4752, 32
        %v5312 = vpop.permute.xlu0 %5311
        %5313 = vrot.lane.b32.xlu0 %v4753, 32
        %v5314 = vpop.permute.xlu0 %5313
        %5315 = vrot.lane.b32.xlu0 %v4754, 32
        %v5316 = vpop.permute.xlu0 %5315
        %5317 = vrot.lane.b32.xlu0 %v4755, 32
        %v5318 = vpop.permute.xlu0 %5317
        %5319 = vrot.lane.b32.xlu0 %v4756, 32
        %v5320 = vpop.permute.xlu0 %5319
        %5321 = vrot.lane.b32.xlu0 %v4757, 32
        %v5322 = vpop.permute.xlu0 %5321
        %5323 = vrot.lane.b32.xlu0 %v4758, 32
        %v5324 = vpop.permute.xlu0 %5323
        %5325 = vrot.lane.b32.xlu0 %v4759, 32
        %v5326 = vpop.permute.xlu0 %5325
        %5327 = vrot.lane.b32.xlu0 %v4760, 32
        %v5328 = vpop.permute.xlu0 %5327
        %5329 = vrot.lane.b32.xlu0 %v4761, 32
        %v5330 = vpop.permute.xlu0 %5329
        %5331 = vrot.lane.b32.xlu0 %v4762, 32
        %v5332 = vpop.permute.xlu0 %5331
        %5333 = vrot.lane.b32.xlu0 %v4763, 32
        %v5334 = vpop.permute.xlu0 %5333
        %5335 = vrot.lane.b32.xlu0 %v4764, 32
        %v5336 = vpop.permute.xlu0 %5335
        %5337 = vrot.lane.b32.xlu0 %v4765, 32
        %v5338 = vpop.permute.xlu0 %5337
        %5339 = vrot.lane.b32.xlu0 %v4766, 32
        %v5340 = vpop.permute.xlu0 %5339
        %5341 = vrot.lane.b32.xlu0 %v4767, 32
        %v5342 = vpop.permute.xlu0 %5341
        %5343 = vrot.lane.b32.xlu0 %v4768, 32
        %v5344 = vpop.permute.xlu0 %5343
        %5409 = vrot.lane.b32.xlu0 %v4769, 64
        %v5410 = vpop.permute.xlu0 %5409
        %5411 = vrot.lane.b32.xlu0 %v4770, 64
        %v5412 = vpop.permute.xlu0 %5411
        %5413 = vrot.lane.b32.xlu0 %v4771, 64
        %v5414 = vpop.permute.xlu0 %5413
        %5415 = vrot.lane.b32.xlu0 %v4772, 64
        %v5416 = vpop.permute.xlu0 %5415
        %5417 = vrot.lane.b32.xlu0 %v4773, 64
        %v5418 = vpop.permute.xlu0 %5417
        %5419 = vrot.lane.b32.xlu0 %v4774, 64
        %v5420 = vpop.permute.xlu0 %5419
        %5421 = vrot.lane.b32.xlu0 %v4775, 64
        %v5422 = vpop.permute.xlu0 %5421
        %5423 = vrot.lane.b32.xlu0 %v4776, 64
        %v5424 = vpop.permute.xlu0 %5423
        %5425 = vrot.lane.b32.xlu0 %v4777, 64
        %v5426 = vpop.permute.xlu0 %5425
        %5427 = vrot.lane.b32.xlu0 %v4778, 64
        %v5428 = vpop.permute.xlu0 %5427
        %5429 = vrot.lane.b32.xlu0 %v4779, 64
        %v5430 = vpop.permute.xlu0 %5429
        %5431 = vrot.lane.b32.xlu0 %v4780, 64
        %v5432 = vpop.permute.xlu0 %5431
        %5433 = vrot.lane.b32.xlu0 %v4781, 64
        %v5434 = vpop.permute.xlu0 %5433
        %5435 = vrot.lane.b32.xlu0 %v4782, 64
        %v5436 = vpop.permute.xlu0 %5435
        %5437 = vrot.lane.b32.xlu0 %v4783, 64
        %v5438 = vpop.permute.xlu0 %5437
        %5439 = vrot.lane.b32.xlu0 %v4784, 64
        %v5440 = vpop.permute.xlu0 %5439
        %5441 = vrot.lane.b32.xlu0 %v4785, 64
        %v5442 = vpop.permute.xlu0 %5441
        %5443 = vrot.lane.b32.xlu0 %v4786, 64
        %v5444 = vpop.permute.xlu0 %5443
        %5445 = vrot.lane.b32.xlu0 %v4787, 64
        %v5446 = vpop.permute.xlu0 %5445
        %5447 = vrot.lane.b32.xlu0 %v4788, 64
        %v5448 = vpop.permute.xlu0 %5447
        %5449 = vrot.lane.b32.xlu0 %v4789, 64
        %v5450 = vpop.permute.xlu0 %5449
        %5451 = vrot.lane.b32.xlu0 %v4790, 64
        %v5452 = vpop.permute.xlu0 %5451
        %5453 = vrot.lane.b32.xlu0 %v4791, 64
        %v5454 = vpop.permute.xlu0 %5453
        %5455 = vrot.lane.b32.xlu0 %v4792, 64
        %v5456 = vpop.permute.xlu0 %5455
        %5457 = vrot.lane.b32.xlu0 %v4793, 64
        %v5458 = vpop.permute.xlu0 %5457
        %5459 = vrot.lane.b32.xlu0 %v4794, 64
        %v5460 = vpop.permute.xlu0 %5459
        %5461 = vrot.lane.b32.xlu0 %v4795, 64
        %v5462 = vpop.permute.xlu0 %5461
        %5463 = vrot.lane.b32.xlu0 %v4796, 64
        %v5464 = vpop.permute.xlu0 %5463
        %5465 = vrot.lane.b32.xlu0 %v4797, 64
        %v5466 = vpop.permute.xlu0 %5465
        %5467 = vrot.lane.b32.xlu0 %v4798, 64
        %v5468 = vpop.permute.xlu0 %5467
        %5469 = vrot.lane.b32.xlu0 %v4799, 64
        %v5470 = vpop.permute.xlu0 %5469
        %5471 = vrot.lane.b32.xlu0 %v4800, 64
        %v5472 = vpop.permute.xlu0 %5471
        %5537 = vrot.lane.b32.xlu0 %v4801, 96
        %v5538 = vpop.permute.xlu0 %5537
        %5539 = vrot.lane.b32.xlu0 %v4802, 96
        %v5540 = vpop.permute.xlu0 %5539
        %5541 = vrot.lane.b32.xlu0 %v4803, 96
        %v5542 = vpop.permute.xlu0 %5541
        %5543 = vrot.lane.b32.xlu0 %v4804, 96
        %v5544 = vpop.permute.xlu0 %5543
        %5545 = vrot.lane.b32.xlu0 %v4805, 96
        %v5546 = vpop.permute.xlu0 %5545
        %5547 = vrot.lane.b32.xlu0 %v4806, 96
        %v5548 = vpop.permute.xlu0 %5547
        %5549 = vrot.lane.b32.xlu0 %v4807, 96
        %v5550 = vpop.permute.xlu0 %5549
        %5551 = vrot.lane.b32.xlu0 %v4808, 96
        %v5552 = vpop.permute.xlu0 %5551
        %5553 = vrot.lane.b32.xlu0 %v4809, 96
        %v5554 = vpop.permute.xlu0 %5553
        %5555 = vrot.lane.b32.xlu0 %v4810, 96
        %v5556 = vpop.permute.xlu0 %5555
        %5557 = vrot.lane.b32.xlu0 %v4811, 96
        %v5558 = vpop.permute.xlu0 %5557
        %5559 = vrot.lane.b32.xlu0 %v4812, 96
        %v5560 = vpop.permute.xlu0 %5559
        %5561 = vrot.lane.b32.xlu0 %v4813, 96
        %v5562 = vpop.permute.xlu0 %5561
        %5563 = vrot.lane.b32.xlu0 %v4814, 96
        %v5564 = vpop.permute.xlu0 %5563
        %5565 = vrot.lane.b32.xlu0 %v4815, 96
        %v5566 = vpop.permute.xlu0 %5565
        %5567 = vrot.lane.b32.xlu0 %v4816, 96
        %v5568 = vpop.permute.xlu0 %5567
        %5569 = vrot.lane.b32.xlu0 %v4817, 96
        %v5570 = vpop.permute.xlu0 %5569
        %5571 = vrot.lane.b32.xlu0 %v4818, 96
        %v5572 = vpop.permute.xlu0 %5571
        %5573 = vrot.lane.b32.xlu0 %v4819, 96
        %v5574 = vpop.permute.xlu0 %5573
        %5575 = vrot.lane.b32.xlu0 %v4820, 96
        %v5576 = vpop.permute.xlu0 %5575
        %5577 = vrot.lane.b32.xlu0 %v4821, 96
        %v5578 = vpop.permute.xlu0 %5577
        %5579 = vrot.lane.b32.xlu0 %v4822, 96
        %v5580 = vpop.permute.xlu0 %5579
        %5581 = vrot.lane.b32.xlu0 %v4823, 96
        %v5582 = vpop.permute.xlu0 %5581
        %5583 = vrot.lane.b32.xlu0 %v4824, 96
        %v5584 = vpop.permute.xlu0 %5583
        %5585 = vrot.lane.b32.xlu0 %v4825, 96
        %v5586 = vpop.permute.xlu0 %5585
        %5587 = vrot.lane.b32.xlu0 %v4826, 96
        %v5588 = vpop.permute.xlu0 %5587
        %5589 = vrot.lane.b32.xlu0 %v4827, 96
        %v5590 = vpop.permute.xlu0 %5589
        %5591 = vrot.lane.b32.xlu0 %v4828, 96
        %v5592 = vpop.permute.xlu0 %5591
        %5593 = vrot.lane.b32.xlu0 %v4829, 96
        %v5594 = vpop.permute.xlu0 %5593
        %5595 = vrot.lane.b32.xlu0 %v4830, 96
        %v5596 = vpop.permute.xlu0 %5595
        %5597 = vrot.lane.b32.xlu0 %v4831, 96
        %v5598 = vpop.permute.xlu0 %5597
        %5599 = vrot.lane.b32.xlu0 %v4832, 96
        %v5600 = vpop.permute.xlu0 %5599
        %v5633 = vsel %vm385, %v4577, %v4898
        %v5634 = vsel %vm385, %v4578, %v4900
        %v5635 = vsel %vm385, %v4579, %v4902
        %v5636 = vsel %vm385, %v4580, %v4904
        %v5637 = vsel %vm385, %v4581, %v4906
        %v5638 = vsel %vm385, %v4582, %v4908
        %v5639 = vsel %vm385, %v4583, %v4910
        %v5640 = vsel %vm385, %v4584, %v4912
        %v5641 = vsel %vm385, %v4585, %v4914
        %v5642 = vsel %vm385, %v4586, %v4916
        %v5643 = vsel %vm385, %v4587, %v4918
        %v5644 = vsel %vm385, %v4588, %v4920
        %v5645 = vsel %vm385, %v4589, %v4922
        %v5646 = vsel %vm385, %v4590, %v4924
        %v5647 = vsel %vm385, %v4591, %v4926
        %v5648 = vsel %vm385, %v4592, %v4928
        %v5649 = vsel %vm385, %v4593, %v4930
        %v5650 = vsel %vm385, %v4594, %v4932
        %v5651 = vsel %vm385, %v4595, %v4934
        %v5652 = vsel %vm385, %v4596, %v4936
        %v5653 = vsel %vm385, %v4597, %v4938
        %v5654 = vsel %vm385, %v4598, %v4940
        %v5655 = vsel %vm385, %v4599, %v4942
        %v5656 = vsel %vm385, %v4600, %v4944
        %v5657 = vsel %vm385, %v4601, %v4946
        %v5658 = vsel %vm385, %v4602, %v4948
        %v5659 = vsel %vm385, %v4603, %v4950
        %v5660 = vsel %vm385, %v4604, %v4952
        %v5661 = vsel %vm385, %v4605, %v4954
        %v5662 = vsel %vm385, %v4606, %v4956
        %v5663 = vsel %vm385, %v4607, %v4958
        %v5664 = vsel %vm385, %v4608, %v4960
        %v5665 = vsel %vm1719, %v5633, %v5026
        %v5666 = vsel %vm1719, %v5634, %v5028
        %v5667 = vsel %vm1719, %v5635, %v5030
        %v5668 = vsel %vm1719, %v5636, %v5032
        %v5669 = vsel %vm1719, %v5637, %v5034
        %v5670 = vsel %vm1719, %v5638, %v5036
        %v5671 = vsel %vm1719, %v5639, %v5038
        %v5672 = vsel %vm1719, %v5640, %v5040
        %v5673 = vsel %vm1719, %v5641, %v5042
        %v5674 = vsel %vm1719, %v5642, %v5044
        %v5675 = vsel %vm1719, %v5643, %v5046
        %v5676 = vsel %vm1719, %v5644, %v5048
        %v5677 = vsel %vm1719, %v5645, %v5050
        %v5678 = vsel %vm1719, %v5646, %v5052
        %v5679 = vsel %vm1719, %v5647, %v5054
        %v5680 = vsel %vm1719, %v5648, %v5056
        %v5681 = vsel %vm1719, %v5649, %v5058
        %v5682 = vsel %vm1719, %v5650, %v5060
        %v5683 = vsel %vm1719, %v5651, %v5062
        %v5684 = vsel %vm1719, %v5652, %v5064
        %v5685 = vsel %vm1719, %v5653, %v5066
        %v5686 = vsel %vm1719, %v5654, %v5068
        %v5687 = vsel %vm1719, %v5655, %v5070
        %v5688 = vsel %vm1719, %v5656, %v5072
        %v5689 = vsel %vm1719, %v5657, %v5074
        %v5690 = vsel %vm1719, %v5658, %v5076
        %v5691 = vsel %vm1719, %v5659, %v5078
        %v5692 = vsel %vm1719, %v5660, %v5080
        %v5693 = vsel %vm1719, %v5661, %v5082
        %v5694 = vsel %vm1719, %v5662, %v5084
        %v5695 = vsel %vm1719, %v5663, %v5086
        %v5696 = vsel %vm1719, %v5664, %v5088
        %v5697 = vsel %vm1752, %v5665, %v5154
        %v5698 = vsel %vm1752, %v5666, %v5156
        %v5699 = vsel %vm1752, %v5667, %v5158
        %v5700 = vsel %vm1752, %v5668, %v5160
        %v5701 = vsel %vm1752, %v5669, %v5162
        %v5702 = vsel %vm1752, %v5670, %v5164
        %v5703 = vsel %vm1752, %v5671, %v5166
        %v5704 = vsel %vm1752, %v5672, %v5168
        %v5705 = vsel %vm1752, %v5673, %v5170
        %v5706 = vsel %vm1752, %v5674, %v5172
        %v5707 = vsel %vm1752, %v5675, %v5174
        %v5708 = vsel %vm1752, %v5676, %v5176
        %v5709 = vsel %vm1752, %v5677, %v5178
        %v5710 = vsel %vm1752, %v5678, %v5180
        %v5711 = vsel %vm1752, %v5679, %v5182
        %v5712 = vsel %vm1752, %v5680, %v5184
        %v5713 = vsel %vm1752, %v5681, %v5186
        %v5714 = vsel %vm1752, %v5682, %v5188
        %v5715 = vsel %vm1752, %v5683, %v5190
        %v5716 = vsel %vm1752, %v5684, %v5192
        %v5717 = vsel %vm1752, %v5685, %v5194
        %v5718 = vsel %vm1752, %v5686, %v5196
        %v5719 = vsel %vm1752, %v5687, %v5198
        %v5720 = vsel %vm1752, %v5688, %v5200
        %v5721 = vsel %vm1752, %v5689, %v5202
        %v5722 = vsel %vm1752, %v5690, %v5204
        %v5723 = vsel %vm1752, %v5691, %v5206
        %v5724 = vsel %vm1752, %v5692, %v5208
        %v5725 = vsel %vm1752, %v5693, %v5210
        %v5726 = vsel %vm1752, %v5694, %v5212
        %v5727 = vsel %vm1752, %v5695, %v5214
        %v5728 = vsel %vm1752, %v5696, %v5216
        %v5729 = vsel %vm385, %v4705, %v5282
        %v5730 = vsel %vm385, %v4706, %v5284
        %v5731 = vsel %vm385, %v4707, %v5286
        %v5732 = vsel %vm385, %v4708, %v5288
        %v5733 = vsel %vm385, %v4709, %v5290
        %v5734 = vsel %vm385, %v4710, %v5292
        %v5735 = vsel %vm385, %v4711, %v5294
        %v5736 = vsel %vm385, %v4712, %v5296
        %v5737 = vsel %vm385, %v4713, %v5298
        %v5738 = vsel %vm385, %v4714, %v5300
        %v5739 = vsel %vm385, %v4715, %v5302
        %v5740 = vsel %vm385, %v4716, %v5304
        %v5741 = vsel %vm385, %v4717, %v5306
        %v5742 = vsel %vm385, %v4718, %v5308
        %v5743 = vsel %vm385, %v4719, %v5310
        %v5744 = vsel %vm385, %v4720, %v5312
        %v5745 = vsel %vm385, %v4721, %v5314
        %v5746 = vsel %vm385, %v4722, %v5316
        %v5747 = vsel %vm385, %v4723, %v5318
        %v5748 = vsel %vm385, %v4724, %v5320
        %v5749 = vsel %vm385, %v4725, %v5322
        %v5750 = vsel %vm385, %v4726, %v5324
        %v5751 = vsel %vm385, %v4727, %v5326
        %v5752 = vsel %vm385, %v4728, %v5328
        %v5753 = vsel %vm385, %v4729, %v5330
        %v5754 = vsel %vm385, %v4730, %v5332
        %v5755 = vsel %vm385, %v4731, %v5334
        %v5756 = vsel %vm385, %v4732, %v5336
        %v5757 = vsel %vm385, %v4733, %v5338
        %v5758 = vsel %vm385, %v4734, %v5340
        %v5759 = vsel %vm385, %v4735, %v5342
        %v5760 = vsel %vm385, %v4736, %v5344
        %v5761 = vsel %vm1719, %v5729, %v5410
        %v5762 = vsel %vm1719, %v5730, %v5412
        %v5763 = vsel %vm1719, %v5731, %v5414
        %v5764 = vsel %vm1719, %v5732, %v5416
        %v5765 = vsel %vm1719, %v5733, %v5418
        %v5766 = vsel %vm1719, %v5734, %v5420
        %v5767 = vsel %vm1719, %v5735, %v5422
        %v5768 = vsel %vm1719, %v5736, %v5424
        %v5769 = vsel %vm1719, %v5737, %v5426
        %v5770 = vsel %vm1719, %v5738, %v5428
        %v5771 = vsel %vm1719, %v5739, %v5430
        %v5772 = vsel %vm1719, %v5740, %v5432
        %v5773 = vsel %vm1719, %v5741, %v5434
        %v5774 = vsel %vm1719, %v5742, %v5436
        %v5775 = vsel %vm1719, %v5743, %v5438
        %v5776 = vsel %vm1719, %v5744, %v5440
        %v5777 = vsel %vm1719, %v5745, %v5442
        %v5778 = vsel %vm1719, %v5746, %v5444
        %v5779 = vsel %vm1719, %v5747, %v5446
        %v5780 = vsel %vm1719, %v5748, %v5448
        %v5781 = vsel %vm1719, %v5749, %v5450
        %v5782 = vsel %vm1719, %v5750, %v5452
        %v5783 = vsel %vm1719, %v5751, %v5454
        %v5784 = vsel %vm1719, %v5752, %v5456
        %v5785 = vsel %vm1719, %v5753, %v5458
        %v5786 = vsel %vm1719, %v5754, %v5460
        %v5787 = vsel %vm1719, %v5755, %v5462
        %v5788 = vsel %vm1719, %v5756, %v5464
        %v5789 = vsel %vm1719, %v5757, %v5466
        %v5790 = vsel %vm1719, %v5758, %v5468
        %v5791 = vsel %vm1719, %v5759, %v5470
        %v5792 = vsel %vm1719, %v5760, %v5472
        %v5793 = vsel %vm1752, %v5761, %v5538
        %v5794 = vsel %vm1752, %v5762, %v5540
        %v5795 = vsel %vm1752, %v5763, %v5542
        %v5796 = vsel %vm1752, %v5764, %v5544
        %v5797 = vsel %vm1752, %v5765, %v5546
        %v5798 = vsel %vm1752, %v5766, %v5548
        %v5799 = vsel %vm1752, %v5767, %v5550
        %v5800 = vsel %vm1752, %v5768, %v5552
        %v5801 = vsel %vm1752, %v5769, %v5554
        %v5802 = vsel %vm1752, %v5770, %v5556
        %v5803 = vsel %vm1752, %v5771, %v5558
        %v5804 = vsel %vm1752, %v5772, %v5560
        %v5805 = vsel %vm1752, %v5773, %v5562
        %v5806 = vsel %vm1752, %v5774, %v5564
        %v5807 = vsel %vm1752, %v5775, %v5566
        %v5808 = vsel %vm1752, %v5776, %v5568
        %v5809 = vsel %vm1752, %v5777, %v5570
        %v5810 = vsel %vm1752, %v5778, %v5572
        %v5811 = vsel %vm1752, %v5779, %v5574
        %v5812 = vsel %vm1752, %v5780, %v5576
        %v5813 = vsel %vm1752, %v5781, %v5578
        %v5814 = vsel %vm1752, %v5782, %v5580
        %v5815 = vsel %vm1752, %v5783, %v5582
        %v5816 = vsel %vm1752, %v5784, %v5584
        %v5817 = vsel %vm1752, %v5785, %v5586
        %v5818 = vsel %vm1752, %v5786, %v5588
        %v5819 = vsel %vm1752, %v5787, %v5590
        %v5820 = vsel %vm1752, %v5788, %v5592
        %v5821 = vsel %vm1752, %v5789, %v5594
        %v5822 = vsel %vm1752, %v5790, %v5596
        %v5823 = vsel %vm1752, %v5791, %v5598
        %v5824 = vsel %vm1752, %v5792, %v5600
        %v5826 = vlaneseq
        %v5827 = vshrl.u32 %v5826, 7
        %v5828 = vsub.s32 0, %v5827
        %v5829 = vrot.slane %v4544, %v5828
        %v5832 = vsel %vm385, %v4833, 0
        %v5835 = vsel %vm385, %v4834, 0
        %v5838 = vsel %vm385, %v4835, 0
        %v5841 = vsel %vm385, %v4836, 0
        %v5844 = vsel %vm385, %v4837, 0
        %v5847 = vsel %vm385, %v4838, 0
        %v5850 = vsel %vm385, %v4839, 0
        %v5853 = vsel %vm385, %v4840, 0
        %v5856 = vsel %vm385, %v4841, 0
        %v5859 = vsel %vm385, %v4842, 0
        %v5862 = vsel %vm385, %v4843, 0
        %v5865 = vsel %vm385, %v4844, 0
        %v5868 = vsel %vm385, %v4845, 0
        %v5871 = vsel %vm385, %v4846, 0
        %v5874 = vsel %vm385, %v4847, 0
        %v5877 = vsel %vm385, %v4848, 0
        %v5880 = vsel %vm385, %v4849, 0
        %v5883 = vsel %vm385, %v4850, 0
        %v5886 = vsel %vm385, %v4851, 0
        %v5889 = vsel %vm385, %v4852, 0
        %v5892 = vsel %vm385, %v4853, 0
        %v5895 = vsel %vm385, %v4854, 0
        %v5898 = vsel %vm385, %v4855, 0
        %v5901 = vsel %vm385, %v4856, 0
        %v5904 = vsel %vm385, %v4857, 0
        %v5907 = vsel %vm385, %v4858, 0
        %v5910 = vsel %vm385, %v4859, 0
        %v5913 = vsel %vm385, %v4860, 0
        %v5916 = vsel %vm385, %v4861, 0
        %v5919 = vsel %vm385, %v4862, 0
        %v5922 = vsel %vm385, %v4863, 0
        %v5925 = vsel %vm385, %v4864, 0
        %5927 = vmatprep.subr.mxu0 0.0
        %5928 = vmatpush1.msra.mxu0 %v4507
        %5929 = vmatprep.subr.mxu0 0.0
        %5930 = vmatpush1.msra.mxu0 %v4508
        %5931 = vmatprep.subr.mxu0 0.0
        %5932 = vmatpush1.msra.mxu0 %v4509
        %5933 = vmatprep.subr.mxu0 0.0
        %5934 = vmatpush1.msra.mxu0 %v4510
        %5935 = vmatprep.subr.mxu0 0.0
        %5936 = vmatpush1.msra.mxu0 %v4511
        %5937 = vmatprep.subr.mxu0 0.0
        %5938 = vmatpush1.msra.mxu0 %v4512
        %5939 = vmatprep.subr.mxu0 0.0
        %5940 = vmatpush1.msra.mxu0 %v4513
        %5941 = vmatprep.subr.mxu0 0.0
        %5942 = vmatpush1.msra.mxu0 %v4514
        %5943 = vmatprep.subr.mxu0 0.0
        %5944 = vmatpush1.msra.mxu0 %v4515
        %5945 = vmatprep.subr.mxu0 0.0
        %5946 = vmatpush1.msra.mxu0 %v4516
        %5947 = vmatprep.subr.mxu0 0.0
        %5948 = vmatpush1.msra.mxu0 %v4517
        %5949 = vmatprep.subr.mxu0 0.0
        %5950 = vmatpush1.msra.mxu0 %v4518
        %5951 = vmatprep.subr.mxu0 0.0
        %5952 = vmatpush1.msra.mxu0 %v4519
        %5953 = vmatprep.subr.mxu0 0.0
        %5954 = vmatpush1.msra.mxu0 %v4520
        %5955 = vmatprep.subr.mxu0 0.0
        %5956 = vmatpush1.msra.mxu0 %v4521
        %5957 = vmatprep.subr.mxu0 0.0
        %5958 = vmatpush1.msra.mxu0 %v4522
        %5959 = vmatprep.subr.mxu0 0.0
        %5960 = vmatpush1.msra.mxu0 %v4523
        %5961 = vmatprep.subr.mxu0 0.0
        %5962 = vmatpush1.msra.mxu0 %v4524
        %5963 = vmatprep.subr.mxu0 0.0
        %5964 = vmatpush1.msra.mxu0 %v4525
        %5965 = vmatprep.subr.mxu0 0.0
        %5966 = vmatpush1.msra.mxu0 %v4526
        %5967 = vmatprep.subr.mxu0 0.0
        %5968 = vmatpush1.msra.mxu0 %v4527
        %5969 = vmatprep.subr.mxu0 0.0
        %5970 = vmatpush1.msra.mxu0 %v4528
        %5971 = vmatprep.subr.mxu0 0.0
        %5972 = vmatpush1.msra.mxu0 %v4529
        %5973 = vmatprep.subr.mxu0 0.0
        %5974 = vmatpush1.msra.mxu0 %v4530
        %5975 = vmatprep.subr.mxu0 0.0
        %5976 = vmatpush1.msra.mxu0 %v4531
        %5977 = vmatprep.subr.mxu0 0.0
        %5978 = vmatpush1.msra.mxu0 %v4532
        %5979 = vmatprep.subr.mxu0 0.0
        %5980 = vmatpush1.msra.mxu0 %v4533
        %5981 = vmatprep.subr.mxu0 0.0
        %5982 = vmatpush1.msra.mxu0 %v4534
        %5983 = vmatprep.subr.mxu0 0.0
        %5984 = vmatpush1.msra.mxu0 %v4535
        %5985 = vmatprep.subr.mxu0 0.0
        %5986 = vmatpush1.msra.mxu0 %v4536
        %5987 = vmatprep.subr.mxu0 0.0
        %5988 = vmatpush1.msra.mxu0 %v4537
        %5989 = vmatprep.subr.mxu0 0.0
        %5990 = vmatpush1.msra.mxu0 %v4538
        %5991 = vmatprep.mubr.f32.mxu0 %v5793
        %5992 = vmatmul.mubr.f32.gmra.mrb[0].mxu0 %v5697
        %v5993 = vpop.f32.mrb[0].mxu0
        %v5994 = vadd.f32 %v5829, %v5993
        %v5995 = vpop.f32.mrb[0].mxu0
        %5996 = vmatprep.mubr.f32.mxu0 %v5794
        %5997 = vmatmul.mubr.f32.gmra.mrb[0].mxu0 %v5698
        %v5998 = vpop.f32.mrb[0].mxu0
        %v5999 = vadd.f32 %v5829, %v5998
        %v6000 = vpop.f32.mrb[0].mxu0
        %6001 = vmatprep.mubr.f32.mxu0 %v5795
        %6002 = vmatmul.mubr.f32.gmra.mrb[0].mxu0 %v5699
        %v6003 = vpop.f32.mrb[0].mxu0
        %v6004 = vadd.f32 %v5829, %v6003
        %v6005 = vpop.f32.mrb[0].mxu0
        %6006 = vmatprep.mubr.f32.mxu0 %v5796
        %6007 = vmatmul.mubr.f32.gmra.mrb[0].mxu0 %v5700
        %v6008 = vpop.f32.mrb[0].mxu0
        %v6009 = vadd.f32 %v5829, %v6008
        %v6010 = vpop.f32.mrb[0].mxu0
        %6011 = vmatprep.mubr.f32.mxu0 %v5797
        %6012 = vmatmul.mubr.f32.gmra.mrb[0].mxu0 %v5701
        %v6013 = vpop.f32.mrb[0].mxu0
        %v6014 = vadd.f32 %v5829, %v6013
        %v6015 = vpop.f32.mrb[0].mxu0
        %6016 = vmatprep.mubr.f32.mxu0 %v5798
        %6017 = vmatmul.mubr.f32.gmra.mrb[0].mxu0 %v5702
        %v6018 = vpop.f32.mrb[0].mxu0
        %v6019 = vadd.f32 %v5829, %v6018
        %v6020 = vpop.f32.mrb[0].mxu0
        %6021 = vmatprep.mubr.f32.mxu0 %v5799
        %6022 = vmatmul.mubr.f32.gmra.mrb[0].mxu0 %v5703
        %v6023 = vpop.f32.mrb[0].mxu0
        %v6024 = vadd.f32 %v5829, %v6023
        %v6025 = vpop.f32.mrb[0].mxu0
        %6026 = vmatprep.mubr.f32.mxu0 %v5800
        %6027 = vmatmul.mubr.f32.gmra.mrb[0].mxu0 %v5704
        %v6028 = vpop.f32.mrb[0].mxu0
        %v6029 = vadd.f32 %v5829, %v6028
        %v6030 = vpop.f32.mrb[0].mxu0
        %6031 = vmatprep.mubr.f32.mxu0 %v5801
        %6032 = vmatmul.mubr.f32.gmra.mrb[0].mxu0 %v5705
        %v6033 = vpop.f32.mrb[0].mxu0
        %v6034 = vadd.f32 %v5829, %v6033
        %v6035 = vpop.f32.mrb[0].mxu0
        %6036 = vmatprep.mubr.f32.mxu0 %v5802
        %6037 = vmatmul.mubr.f32.gmra.mrb[0].mxu0 %v5706
        %v6038 = vpop.f32.mrb[0].mxu0
        %v6039 = vadd.f32 %v5829, %v6038
        %v6040 = vpop.f32.mrb[0].mxu0
        %6041 = vmatprep.mubr.f32.mxu0 %v5803
        %6042 = vmatmul.mubr.f32.gmra.mrb[0].mxu0 %v5707
        %v6043 = vpop.f32.mrb[0].mxu0
        %v6044 = vadd.f32 %v5829, %v6043
        %v6045 = vpop.f32.mrb[0].mxu0
        %6046 = vmatprep.mubr.f32.mxu0 %v5804
        %6047 = vmatmul.mubr.f32.gmra.mrb[0].mxu0 %v5708
        %v6048 = vpop.f32.mrb[0].mxu0
        %v6049 = vadd.f32 %v5829, %v6048
        %v6050 = vpop.f32.mrb[0].mxu0
        %6051 = vmatprep.mubr.f32.mxu0 %v5805
        %6052 = vmatmul.mubr.f32.gmra.mrb[0].mxu0 %v5709
        %v6053 = vpop.f32.mrb[0].mxu0
        %v6054 = vadd.f32 %v5829, %v6053
        %v6055 = vpop.f32.mrb[0].mxu0
        %6056 = vmatprep.mubr.f32.mxu0 %v5806
        %6057 = vmatmul.mubr.f32.gmra.mrb[0].mxu0 %v5710
        %v6058 = vpop.f32.mrb[0].mxu0
        %v6059 = vadd.f32 %v5829, %v6058
        %v6060 = vpop.f32.mrb[0].mxu0
        %6061 = vmatprep.mubr.f32.mxu0 %v5807
        %6062 = vmatmul.mubr.f32.gmra.mrb[0].mxu0 %v5711
        %v6063 = vpop.f32.mrb[0].mxu0
        %v6064 = vadd.f32 %v5829, %v6063
        %v6065 = vpop.f32.mrb[0].mxu0
        %6066 = vmatprep.mubr.f32.mxu0 %v5808
        %6067 = vmatmul.mubr.f32.gmra.mrb[0].mxu0 %v5712
        %v6068 = vpop.f32.mrb[0].mxu0
        %v6069 = vadd.f32 %v5829, %v6068
        %v6070 = vpop.f32.mrb[0].mxu0
        %6071 = vmatprep.mubr.f32.mxu0 %v5809
        %6072 = vmatmul.mubr.f32.gmra.mrb[0].mxu0 %v5713
        %v6073 = vpop.f32.mrb[0].mxu0
        %v6074 = vadd.f32 %v5829, %v6073
        %v6075 = vpop.f32.mrb[0].mxu0
        %6076 = vmatprep.mubr.f32.mxu0 %v5810
        %6077 = vmatmul.mubr.f32.gmra.mrb[0].mxu0 %v5714
        %v6078 = vpop.f32.mrb[0].mxu0
        %v6079 = vadd.f32 %v5829, %v6078
        %v6080 = vpop.f32.mrb[0].mxu0
        %6081 = vmatprep.mubr.f32.mxu0 %v5811
        %6082 = vmatmul.mubr.f32.gmra.mrb[0].mxu0 %v5715
        %v6083 = vpop.f32.mrb[0].mxu0
        %v6084 = vadd.f32 %v5829, %v6083
        %v6085 = vpop.f32.mrb[0].mxu0
        %6086 = vmatprep.mubr.f32.mxu0 %v5812
        %6087 = vmatmul.mubr.f32.gmra.mrb[0].mxu0 %v5716
        %v6088 = vpop.f32.mrb[0].mxu0
        %v6089 = vadd.f32 %v5829, %v6088
        %v6090 = vpop.f32.mrb[0].mxu0
        %6091 = vmatprep.mubr.f32.mxu0 %v5813
        %6092 = vmatmul.mubr.f32.gmra.mrb[0].mxu0 %v5717
        %v6093 = vpop.f32.mrb[0].mxu0
        %v6094 = vadd.f32 %v5829, %v6093
        %v6095 = vpop.f32.mrb[0].mxu0
        %6096 = vmatprep.mubr.f32.mxu0 %v5814
        %6097 = vmatmul.mubr.f32.gmra.mrb[0].mxu0 %v5718
        %v6098 = vpop.f32.mrb[0].mxu0
        %v6099 = vadd.f32 %v5829, %v6098
        %v6100 = vpop.f32.mrb[0].mxu0
        %6101 = vmatprep.mubr.f32.mxu0 %v5815
        %6102 = vmatmul.mubr.f32.gmra.mrb[0].mxu0 %v5719
        %v6103 = vpop.f32.mrb[0].mxu0
        %v6104 = vadd.f32 %v5829, %v6103
        %v6105 = vpop.f32.mrb[0].mxu0
        %6106 = vmatprep.mubr.f32.mxu0 %v5816
        %6107 = vmatmul.mubr.f32.gmra.mrb[0].mxu0 %v5720
        %v6108 = vpop.f32.mrb[0].mxu0
        %v6109 = vadd.f32 %v5829, %v6108
        %v6110 = vpop.f32.mrb[0].mxu0
        %6111 = vmatprep.mubr.f32.mxu0 %v5817
        %6112 = vmatmul.mubr.f32.gmra.mrb[0].mxu0 %v5721
        %v6113 = vpop.f32.mrb[0].mxu0
        %v6114 = vadd.f32 %v5829, %v6113
        %v6115 = vpop.f32.mrb[0].mxu0
        %6116 = vmatprep.mubr.f32.mxu0 %v5818
        %6117 = vmatmul.mubr.f32.gmra.mrb[0].mxu0 %v5722
        %v6118 = vpop.f32.mrb[0].mxu0
        %v6119 = vadd.f32 %v5829, %v6118
        %v6120 = vpop.f32.mrb[0].mxu0
        %6121 = vmatprep.mubr.f32.mxu0 %v5819
        %6122 = vmatmul.mubr.f32.gmra.mrb[0].mxu0 %v5723
        %v6123 = vpop.f32.mrb[0].mxu0
        %v6124 = vadd.f32 %v5829, %v6123
        %v6125 = vpop.f32.mrb[0].mxu0
        %6126 = vmatprep.mubr.f32.mxu0 %v5820
        %6127 = vmatmul.mubr.f32.gmra.mrb[0].mxu0 %v5724
        %v6128 = vpop.f32.mrb[0].mxu0
        %v6129 = vadd.f32 %v5829, %v6128
        %v6130 = vpop.f32.mrb[0].mxu0
        %6131 = vmatprep.mubr.f32.mxu0 %v5821
        %6132 = vmatmul.mubr.f32.gmra.mrb[0].mxu0 %v5725
        %v6133 = vpop.f32.mrb[0].mxu0
        %v6134 = vadd.f32 %v5829, %v6133
        %v6135 = vpop.f32.mrb[0].mxu0
        %6136 = vmatprep.mubr.f32.mxu0 %v5822
        %6137 = vmatmul.mubr.f32.gmra.mrb[0].mxu0 %v5726
        %v6138 = vpop.f32.mrb[0].mxu0
        %v6139 = vadd.f32 %v5829, %v6138
        %v6140 = vpop.f32.mrb[0].mxu0
        %6141 = vmatprep.mubr.f32.mxu0 %v5823
        %6142 = vmatmul.mubr.f32.gmra.mrb[0].mxu0 %v5727
        %v6143 = vpop.f32.mrb[0].mxu0
        %v6144 = vadd.f32 %v5829, %v6143
        %v6145 = vpop.f32.mrb[0].mxu0
        %6146 = vmatprep.mubr.f32.mxu0 %v5824
        %6147 = vmatmul.mubr.f32.gmra.mrb[0].mxu0 %v5728
        %v6148 = vpop.f32.mrb[0].mxu0
        %v6149 = vadd.f32 %v5829, %v6148
        %v6150 = vpop.f32.mrb[0].mxu0
        %6151 = vdwg.mxu0
        %6152 = vmatprep.subr.mxu0 0.0
        %6153 = vmatpush1.msra.mxu0 %v4539
        %6154 = vmatprep.subr.mxu0 0.0
        %6155 = vmatpush1.msra.mxu0 %v4540
        %6156 = vmatprep.subr.mxu0 0.0
        %6157 = vmatpush1.msra.mxu0 %v4541
        %6158 = vmatprep.subr.mxu0 0.0
        %6159 = vmatpush1.msra.mxu0 %v4542
        %6160 = vmatprep.subr.mxu0 0.0
        %6161 = vmatpush1.msra.mxu0 0.0
        %6162 = vmatprep.subr.mxu0 0.0
        %6163 = vmatpush1.msra.mxu0 0.0
        %6164 = vmatprep.subr.mxu0 0.0
        %6165 = vmatpush1.msra.mxu0 0.0
        %6166 = vmatprep.subr.mxu0 0.0
        %6167 = vmatpush1.msra.mxu0 0.0
        %6168 = vmatprep.subr.mxu0 0.0
        %6169 = vmatpush1.msra.mxu0 0.0
        %6170 = vmatprep.subr.mxu0 0.0
        %6171 = vmatpush1.msra.mxu0 0.0
        %6172 = vmatprep.subr.mxu0 0.0
        %6173 = vmatpush1.msra.mxu0 0.0
        %6174 = vmatprep.subr.mxu0 0.0
        %6175 = vmatpush1.msra.mxu0 0.0
        %6176 = vmatprep.subr.mxu0 0.0
        %6177 = vmatpush1.msra.mxu0 0.0
        %6178 = vmatprep.subr.mxu0 0.0
        %6179 = vmatpush1.msra.mxu0 0.0
        %6180 = vmatprep.subr.mxu0 0.0
        %6181 = vmatpush1.msra.mxu0 0.0
        %6182 = vmatprep.subr.mxu0 0.0
        %6183 = vmatpush1.msra.mxu0 0.0
        %6184 = vmatprep.subr.mxu0 0.0
        %6185 = vmatpush1.msra.mxu0 0.0
        %6186 = vmatprep.subr.mxu0 0.0
        %6187 = vmatpush1.msra.mxu0 0.0
        %6188 = vmatprep.subr.mxu0 0.0
        %6189 = vmatpush1.msra.mxu0 0.0
        %6190 = vmatprep.subr.mxu0 0.0
        %6191 = vmatpush1.msra.mxu0 0.0
        %6192 = vmatprep.subr.mxu0 0.0
        %6193 = vmatpush1.msra.mxu0 0.0
        %6194 = vmatprep.subr.mxu0 0.0
        %6195 = vmatpush1.msra.mxu0 0.0
        %6196 = vmatprep.subr.mxu0 0.0
        %6197 = vmatpush1.msra.mxu0 0.0
        %6198 = vmatprep.subr.mxu0 0.0
        %6199 = vmatpush1.msra.mxu0 0.0
        %6200 = vmatprep.subr.mxu0 0.0
        %6201 = vmatpush1.msra.mxu0 0.0
        %6202 = vmatprep.subr.mxu0 0.0
        %6203 = vmatpush1.msra.mxu0 0.0
        %6204 = vmatprep.subr.mxu0 0.0
        %6205 = vmatpush1.msra.mxu0 0.0
        %6206 = vmatprep.subr.mxu0 0.0
        %6207 = vmatpush1.msra.mxu0 0.0
        %6208 = vmatprep.subr.mxu0 0.0
        %6209 = vmatpush1.msra.mxu0 0.0
        %6210 = vmatprep.subr.mxu0 0.0
        %6211 = vmatpush1.msra.mxu0 0.0
        %6212 = vmatprep.subr.mxu0 0.0
        %6213 = vmatpush1.msra.mxu0 0.0
        %6214 = vmatprep.subr.mxu0 0.0
        %6215 = vmatpush1.msra.mxu0 0.0
        %6216 = vmatprep.mubr.f32.mxu0 0.0
        %6217 = vmatmul.mubr.f32.gmra.mrb[0].mxu0 %v5832
        %v6218 = vpop.f32.mrb[0].mxu0
        %v6219 = vadd.f32 %v5994, %v6218
        %v6220 = vpop.f32.mrb[0].mxu0
        %6221 = vmatprep.mubr.f32.mxu0 0.0
        %6222 = vmatmul.mubr.f32.gmra.mrb[0].mxu0 %v5835
        %v6223 = vpop.f32.mrb[0].mxu0
        %v6224 = vadd.f32 %v5999, %v6223
        %v6225 = vpop.f32.mrb[0].mxu0
        %6226 = vmatprep.mubr.f32.mxu0 0.0
        %6227 = vmatmul.mubr.f32.gmra.mrb[0].mxu0 %v5838
        %v6228 = vpop.f32.mrb[0].mxu0
        %v6229 = vadd.f32 %v6004, %v6228
        %v6230 = vpop.f32.mrb[0].mxu0
        %6231 = vmatprep.mubr.f32.mxu0 0.0
        %6232 = vmatmul.mubr.f32.gmra.mrb[0].mxu0 %v5841
        %v6233 = vpop.f32.mrb[0].mxu0
        %v6234 = vadd.f32 %v6009, %v6233
        %v6235 = vpop.f32.mrb[0].mxu0
        %6236 = vmatprep.mubr.f32.mxu0 0.0
        %6237 = vmatmul.mubr.f32.gmra.mrb[0].mxu0 %v5844
        %v6238 = vpop.f32.mrb[0].mxu0
        %v6239 = vadd.f32 %v6014, %v6238
        %v6240 = vpop.f32.mrb[0].mxu0
        %6241 = vmatprep.mubr.f32.mxu0 0.0
        %6242 = vmatmul.mubr.f32.gmra.mrb[0].mxu0 %v5847
        %v6243 = vpop.f32.mrb[0].mxu0
        %v6244 = vadd.f32 %v6019, %v6243
        %v6245 = vpop.f32.mrb[0].mxu0
        %6246 = vmatprep.mubr.f32.mxu0 0.0
        %6247 = vmatmul.mubr.f32.gmra.mrb[0].mxu0 %v5850
        %v6248 = vpop.f32.mrb[0].mxu0
        %v6249 = vadd.f32 %v6024, %v6248
        %v6250 = vpop.f32.mrb[0].mxu0
        %6251 = vmatprep.mubr.f32.mxu0 0.0
        %6252 = vmatmul.mubr.f32.gmra.mrb[0].mxu0 %v5853
        %v6253 = vpop.f32.mrb[0].mxu0
        %v6254 = vadd.f32 %v6029, %v6253
        %v6255 = vpop.f32.mrb[0].mxu0
        %6256 = vmatprep.mubr.f32.mxu0 0.0
        %6257 = vmatmul.mubr.f32.gmra.mrb[0].mxu0 %v5856
        %v6258 = vpop.f32.mrb[0].mxu0
        %v6259 = vadd.f32 %v6034, %v6258
        %v6260 = vpop.f32.mrb[0].mxu0
        %6261 = vmatprep.mubr.f32.mxu0 0.0
        %6262 = vmatmul.mubr.f32.gmra.mrb[0].mxu0 %v5859
        %v6263 = vpop.f32.mrb[0].mxu0
        %v6264 = vadd.f32 %v6039, %v6263
        %v6265 = vpop.f32.mrb[0].mxu0
        %6266 = vmatprep.mubr.f32.mxu0 0.0
        %6267 = vmatmul.mubr.f32.gmra.mrb[0].mxu0 %v5862
        %v6268 = vpop.f32.mrb[0].mxu0
        %v6269 = vadd.f32 %v6044, %v6268
        %v6270 = vpop.f32.mrb[0].mxu0
        %6271 = vmatprep.mubr.f32.mxu0 0.0
        %6272 = vmatmul.mubr.f32.gmra.mrb[0].mxu0 %v5865
        %v6273 = vpop.f32.mrb[0].mxu0
        %v6274 = vadd.f32 %v6049, %v6273
        %v6275 = vpop.f32.mrb[0].mxu0
        %6276 = vmatprep.mubr.f32.mxu0 0.0
        %6277 = vmatmul.mubr.f32.gmra.mrb[0].mxu0 %v5868
        %v6278 = vpop.f32.mrb[0].mxu0
        %v6279 = vadd.f32 %v6054, %v6278
        %v6280 = vpop.f32.mrb[0].mxu0
        %6281 = vmatprep.mubr.f32.mxu0 0.0
        %6282 = vmatmul.mubr.f32.gmra.mrb[0].mxu0 %v5871
        %v6283 = vpop.f32.mrb[0].mxu0
        %v6284 = vadd.f32 %v6059, %v6283
        %v6285 = vpop.f32.mrb[0].mxu0
        %6286 = vmatprep.mubr.f32.mxu0 0.0
        %6287 = vmatmul.mubr.f32.gmra.mrb[0].mxu0 %v5874
        %v6288 = vpop.f32.mrb[0].mxu0
        %v6289 = vadd.f32 %v6064, %v6288
        %v6290 = vpop.f32.mrb[0].mxu0
        %6291 = vmatprep.mubr.f32.mxu0 0.0
        %6292 = vmatmul.mubr.f32.gmra.mrb[0].mxu0 %v5877
        %v6293 = vpop.f32.mrb[0].mxu0
        %v6294 = vadd.f32 %v6069, %v6293
        %v6295 = vpop.f32.mrb[0].mxu0
        %6296 = vmatprep.mubr.f32.mxu0 0.0
        %6297 = vmatmul.mubr.f32.gmra.mrb[0].mxu0 %v5880
        %v6298 = vpop.f32.mrb[0].mxu0
        %v6299 = vadd.f32 %v6074, %v6298
        %v6300 = vpop.f32.mrb[0].mxu0
        %6301 = vmatprep.mubr.f32.mxu0 0.0
        %6302 = vmatmul.mubr.f32.gmra.mrb[0].mxu0 %v5883
        %v6303 = vpop.f32.mrb[0].mxu0
        %v6304 = vadd.f32 %v6079, %v6303
        %v6305 = vpop.f32.mrb[0].mxu0
        %6306 = vmatprep.mubr.f32.mxu0 0.0
        %6307 = vmatmul.mubr.f32.gmra.mrb[0].mxu0 %v5886
        %v6308 = vpop.f32.mrb[0].mxu0
        %v6309 = vadd.f32 %v6084, %v6308
        %v6310 = vpop.f32.mrb[0].mxu0
        %6311 = vmatprep.mubr.f32.mxu0 0.0
        %6312 = vmatmul.mubr.f32.gmra.mrb[0].mxu0 %v5889
        %v6313 = vpop.f32.mrb[0].mxu0
        %v6314 = vadd.f32 %v6089, %v6313
        %v6315 = vpop.f32.mrb[0].mxu0
        %6316 = vmatprep.mubr.f32.mxu0 0.0
        %6317 = vmatmul.mubr.f32.gmra.mrb[0].mxu0 %v5892
        %v6318 = vpop.f32.mrb[0].mxu0
        %v6319 = vadd.f32 %v6094, %v6318
        %v6320 = vpop.f32.mrb[0].mxu0
        %6321 = vmatprep.mubr.f32.mxu0 0.0
        %6322 = vmatmul.mubr.f32.gmra.mrb[0].mxu0 %v5895
        %v6323 = vpop.f32.mrb[0].mxu0
        %v6324 = vadd.f32 %v6099, %v6323
        %v6325 = vpop.f32.mrb[0].mxu0
        %6326 = vmatprep.mubr.f32.mxu0 0.0
        %6327 = vmatmul.mubr.f32.gmra.mrb[0].mxu0 %v5898
        %v6328 = vpop.f32.mrb[0].mxu0
        %v6329 = vadd.f32 %v6104, %v6328
        %v6330 = vpop.f32.mrb[0].mxu0
        %6331 = vmatprep.mubr.f32.mxu0 0.0
        %6332 = vmatmul.mubr.f32.gmra.mrb[0].mxu0 %v5901
        %v6333 = vpop.f32.mrb[0].mxu0
        %v6334 = vadd.f32 %v6109, %v6333
        %v6335 = vpop.f32.mrb[0].mxu0
        %6336 = vmatprep.mubr.f32.mxu0 0.0
        %6337 = vmatmul.mubr.f32.gmra.mrb[0].mxu0 %v5904
        %v6338 = vpop.f32.mrb[0].mxu0
        %v6339 = vadd.f32 %v6114, %v6338
        %v6340 = vpop.f32.mrb[0].mxu0
        %6341 = vmatprep.mubr.f32.mxu0 0.0
        %6342 = vmatmul.mubr.f32.gmra.mrb[0].mxu0 %v5907
        %v6343 = vpop.f32.mrb[0].mxu0
        %v6344 = vadd.f32 %v6119, %v6343
        %v6345 = vpop.f32.mrb[0].mxu0
        %6346 = vmatprep.mubr.f32.mxu0 0.0
        %6347 = vmatmul.mubr.f32.gmra.mrb[0].mxu0 %v5910
        %v6348 = vpop.f32.mrb[0].mxu0
        %v6349 = vadd.f32 %v6124, %v6348
        %v6350 = vpop.f32.mrb[0].mxu0
        %6351 = vmatprep.mubr.f32.mxu0 0.0
        %6352 = vmatmul.mubr.f32.gmra.mrb[0].mxu0 %v5913
        %v6353 = vpop.f32.mrb[0].mxu0
        %v6354 = vadd.f32 %v6129, %v6353
        %v6355 = vpop.f32.mrb[0].mxu0
        %6356 = vmatprep.mubr.f32.mxu0 0.0
        %6357 = vmatmul.mubr.f32.gmra.mrb[0].mxu0 %v5916
        %v6358 = vpop.f32.mrb[0].mxu0
        %v6359 = vadd.f32 %v6134, %v6358
        %v6360 = vpop.f32.mrb[0].mxu0
        %6361 = vmatprep.mubr.f32.mxu0 0.0
        %6362 = vmatmul.mubr.f32.gmra.mrb[0].mxu0 %v5919
        %v6363 = vpop.f32.mrb[0].mxu0
        %v6364 = vadd.f32 %v6139, %v6363
        %v6365 = vpop.f32.mrb[0].mxu0
        %6366 = vmatprep.mubr.f32.mxu0 0.0
        %6367 = vmatmul.mubr.f32.gmra.mrb[0].mxu0 %v5922
        %v6368 = vpop.f32.mrb[0].mxu0
        %v6369 = vadd.f32 %v6144, %v6368
        %v6370 = vpop.f32.mrb[0].mxu0
        %6371 = vmatprep.mubr.f32.mxu0 0.0
        %6372 = vmatmul.mubr.f32.gmra.mrb[0].mxu0 %v5925
        %v6373 = vpop.f32.mrb[0].mxu0
        %v6374 = vadd.f32 %v6149, %v6373
        %v6375 = vpop.f32.mrb[0].mxu0
        %6376 = vdwg.mxu0
        %v6377 = vmax.f32 %v6219, 0.0
        %v6378 = vmax.f32 %v6224, 0.0
        %v6379 = vmax.f32 %v6229, 0.0
        %v6380 = vmax.f32 %v6234, 0.0
        %v6381 = vmax.f32 %v6239, 0.0
        %v6382 = vmax.f32 %v6244, 0.0
        %v6383 = vmax.f32 %v6249, 0.0
        %v6384 = vmax.f32 %v6254, 0.0
        %v6385 = vmax.f32 %v6259, 0.0
        %v6386 = vmax.f32 %v6264, 0.0
        %v6387 = vmax.f32 %v6269, 0.0
        %v6388 = vmax.f32 %v6274, 0.0
        %v6389 = vmax.f32 %v6279, 0.0
        %v6390 = vmax.f32 %v6284, 0.0
        %v6391 = vmax.f32 %v6289, 0.0
        %v6392 = vmax.f32 %v6294, 0.0
        %v6393 = vmax.f32 %v6299, 0.0
        %v6394 = vmax.f32 %v6304, 0.0
        %v6395 = vmax.f32 %v6309, 0.0
        %v6396 = vmax.f32 %v6314, 0.0
        %v6397 = vmax.f32 %v6319, 0.0
        %v6398 = vmax.f32 %v6324, 0.0
        %v6399 = vmax.f32 %v6329, 0.0
        %v6400 = vmax.f32 %v6334, 0.0
        %v6401 = vmax.f32 %v6339, 0.0
        %v6402 = vmax.f32 %v6344, 0.0
        %v6403 = vmax.f32 %v6349, 0.0
        %v6404 = vmax.f32 %v6354, 0.0
        %v6405 = vmax.f32 %v6359, 0.0
        %v6406 = vmax.f32 %v6364, 0.0
        %v6407 = vmax.f32 %v6369, 0.0
        %v6408 = vmax.f32 %v6374, 0.0
        %s6409 = scalar_lea.vmem %s3, 288
        %v6410 = vld [vmem:[%s6409] sm:$0xff]
        %v6411 = vld [vmem:[%s6409 + $0x8] sm:$0xff]
        %v6412 = vld [vmem:[%s6409 + $0x10] sm:$0xff]
        %v6413 = vld [vmem:[%s6409 + $0x18] sm:$0xff]
        %v6414 = vld [vmem:[%s6409 + $0x20] sm:$0xff]
        %v6415 = vld [vmem:[%s6409 + $0x28] sm:$0xff]
        %v6416 = vld [vmem:[%s6409 + $0x30] sm:$0xff]
        %v6417 = vld [vmem:[%s6409 + $0x38] sm:$0xff]
        %v6418 = vld [vmem:[%s6409 + $0x40] sm:$0xff]
        %v6419 = vld [vmem:[%s6409 + $0x48] sm:$0xff]
        %v6420 = vld [vmem:[%s6409 + $0x50] sm:$0xff]
        %v6421 = vld [vmem:[%s6409 + $0x58] sm:$0xff]
        %v6422 = vld [vmem:[%s6409 + $0x60] sm:$0xff]
        %v6423 = vld [vmem:[%s6409 + $0x68] sm:$0xff]
        %v6424 = vld [vmem:[%s6409 + $0x70] sm:$0xff]
        %v6425 = vld [vmem:[%s6409 + $0x78] sm:$0xff]
        %v6426 = vld [vmem:[%s6409 + $0x80] sm:$0xff]
        %v6427 = vld [vmem:[%s6409 + $0x88] sm:$0xff]
        %v6428 = vld [vmem:[%s6409 + $0x90] sm:$0xff]
        %v6429 = vld [vmem:[%s6409 + $0x98] sm:$0xff]
        %v6430 = vld [vmem:[%s6409 + $0xa0] sm:$0xff]
        %v6431 = vld [vmem:[%s6409 + $0xa8] sm:$0xff]
        %v6432 = vld [vmem:[%s6409 + $0xb0] sm:$0xff]
        %v6433 = vld [vmem:[%s6409 + $0xb8] sm:$0xff]
        %v6434 = vld [vmem:[%s6409 + $0xc0] sm:$0xff]
        %v6435 = vld [vmem:[%s6409 + $0xc8] sm:$0xff]
        %v6436 = vld [vmem:[%s6409 + $0xd0] sm:$0xff]
        %v6437 = vld [vmem:[%s6409 + $0xd8] sm:$0xff]
        %v6438 = vld [vmem:[%s6409 + $0xe0] sm:$0xff]
        %v6439 = vld [vmem:[%s6409 + $0xe8] sm:$0xff]
        %v6440 = vld [vmem:[%s6409 + $0xf0] sm:$0xff]
        %v6441 = vld [vmem:[%s6409 + $0xf8] sm:$0xff]
        %v6442 = vld [vmem:[%s6409 + $0x100] sm:$0xff]
        %v6443 = vld [vmem:[%s6409 + $0x108] sm:$0xff]
        %v6444 = vld [vmem:[%s6409 + $0x110] sm:$0xff]
        %v6445 = vld [vmem:[%s6409 + $0x118] sm:$0xff]
        %s6446 = scalar_lea.vmem %s4, 1
        %v6447 = vld [vmem:[%s6446] sm:$0x1]
        %6448 = vst.msk [vmem:[%s394 + $0x1] sm:$0xff] %vm385, %v6377
        %6449 = vst.msk [vmem:[%s394 + $0x9] sm:$0xff] %vm385, %v6378
        %6450 = vst.msk [vmem:[%s394 + $0x19] sm:$0xff] %vm385, %v6379
        %6451 = vst.msk [vmem:[%s394 + $0x21] sm:$0xff] %vm385, %v6380
        %6452 = vst.msk [vmem:[%s394 + $0x31] sm:$0xff] %vm385, %v6381
        %6453 = vst.msk [vmem:[%s394 + $0x39] sm:$0xff] %vm385, %v6382
        %6454 = vst.msk [vmem:[%s394 + $0x49] sm:$0xff] %vm385, %v6383
        %6455 = vst.msk [vmem:[%s394 + $0x51] sm:$0xff] %vm385, %v6384
        %6456 = vst.msk [vmem:[%s394 + $0x61] sm:$0xff] %vm385, %v6385
        %6457 = vst.msk [vmem:[%s394 + $0x69] sm:$0xff] %vm385, %v6386
        %6458 = vst.msk [vmem:[%s394 + $0x79] sm:$0xff] %vm385, %v6387
        %6459 = vst.msk [vmem:[%s394 + $0x81] sm:$0xff] %vm385, %v6388
        %6460 = vst.msk [vmem:[%s394 + $0x91] sm:$0xff] %vm385, %v6389
        %6461 = vst.msk [vmem:[%s394 + $0x99] sm:$0xff] %vm385, %v6390
        %6462 = vst.msk [vmem:[%s394 + $0xa9] sm:$0xff] %vm385, %v6391
        %6463 = vst.msk [vmem:[%s394 + $0xb1] sm:$0xff] %vm385, %v6392
        %6464 = vst.msk [vmem:[%s394 + $0xc1] sm:$0xff] %vm385, %v6393
        %6465 = vst.msk [vmem:[%s394 + $0xc9] sm:$0xff] %vm385, %v6394
        %6466 = vst.msk [vmem:[%s394 + $0xd9] sm:$0xff] %vm385, %v6395
        %6467 = vst.msk [vmem:[%s394 + $0xe1] sm:$0xff] %vm385, %v6396
        %6468 = vst.msk [vmem:[%s394 + $0xf1] sm:$0xff] %vm385, %v6397
        %6469 = vst.msk [vmem:[%s394 + $0xf9] sm:$0xff] %vm385, %v6398
        %6470 = vst.msk [vmem:[%s394 + $0x109] sm:$0xff] %vm385, %v6399
        %6471 = vst.msk [vmem:[%s394 + $0x111] sm:$0xff] %vm385, %v6400
        %6472 = vst.msk [vmem:[%s394 + $0x121] sm:$0xff] %vm385, %v6401
        %6473 = vst.msk [vmem:[%s394 + $0x129] sm:$0xff] %vm385, %v6402
        %6474 = vst.msk [vmem:[%s394 + $0x139] sm:$0xff] %vm385, %v6403
        %6475 = vst.msk [vmem:[%s394 + $0x141] sm:$0xff] %vm385, %v6404
        %6476 = vst.msk [vmem:[%s394 + $0x151] sm:$0xff] %vm385, %v6405
        %6477 = vst.msk [vmem:[%s394 + $0x159] sm:$0xff] %vm385, %v6406
        %6478 = vst.msk [vmem:[%s394 + $0x169] sm:$0xff] %vm385, %v6407
        %6479 = vst.msk [vmem:[%s394 + $0x171] sm:$0xff] %vm385, %v6408
        %v6480 = vld [vmem:[#allocation2] sm:$0xff]
        %v6481 = vld [vmem:[#allocation2 + $0x8] sm:$0xff]
        %v6482 = vld [vmem:[#allocation2 + $0x18] sm:$0xff]
        %v6483 = vld [vmem:[#allocation2 + $0x20] sm:$0xff]
        %v6484 = vld [vmem:[#allocation2 + $0x30] sm:$0xff]
        %v6485 = vld [vmem:[#allocation2 + $0x38] sm:$0xff]
        %v6486 = vld [vmem:[#allocation2 + $0x48] sm:$0xff]
        %v6487 = vld [vmem:[#allocation2 + $0x50] sm:$0xff]
        %v6488 = vld [vmem:[#allocation2 + $0x60] sm:$0xff]
        %v6489 = vld [vmem:[#allocation2 + $0x68] sm:$0xff]
        %v6490 = vld [vmem:[#allocation2 + $0x78] sm:$0xff]
        %v6491 = vld [vmem:[#allocation2 + $0x80] sm:$0xff]
        %v6492 = vld [vmem:[#allocation2 + $0x90] sm:$0xff]
        %v6493 = vld [vmem:[#allocation2 + $0x98] sm:$0xff]
        %v6494 = vld [vmem:[#allocation2 + $0xa8] sm:$0xff]
        %v6495 = vld [vmem:[#allocation2 + $0xb0] sm:$0xff]
        %v6496 = vld [vmem:[#allocation2 + $0xc0] sm:$0xff]
        %v6497 = vld [vmem:[#allocation2 + $0xc8] sm:$0xff]
        %v6498 = vld [vmem:[#allocation2 + $0xd8] sm:$0xff]
        %v6499 = vld [vmem:[#allocation2 + $0xe0] sm:$0xff]
        %v6500 = vld [vmem:[#allocation2 + $0xf0] sm:$0xff]
        %v6501 = vld [vmem:[#allocation2 + $0xf8] sm:$0xff]
        %v6502 = vld [vmem:[#allocation2 + $0x108] sm:$0xff]
        %v6503 = vld [vmem:[#allocation2 + $0x110] sm:$0xff]
        %v6504 = vld [vmem:[#allocation2 + $0x120] sm:$0xff]
        %v6505 = vld [vmem:[#allocation2 + $0x128] sm:$0xff]
        %v6506 = vld [vmem:[#allocation2 + $0x138] sm:$0xff]
        %v6507 = vld [vmem:[#allocation2 + $0x140] sm:$0xff]
        %v6508 = vld [vmem:[#allocation2 + $0x150] sm:$0xff]
        %v6509 = vld [vmem:[#allocation2 + $0x158] sm:$0xff]
        %v6510 = vld [vmem:[#allocation2 + $0x168] sm:$0xff]
        %v6511 = vld [vmem:[#allocation2 + $0x170] sm:$0xff]
        %v6512 = vld [vmem:[#allocation2 + $0x1] sm:$0xff]
        %v6513 = vld [vmem:[#allocation2 + $0x9] sm:$0xff]
        %v6514 = vld [vmem:[#allocation2 + $0x19] sm:$0xff]
        %v6515 = vld [vmem:[#allocation2 + $0x21] sm:$0xff]
        %v6516 = vld [vmem:[#allocation2 + $0x31] sm:$0xff]
        %v6517 = vld [vmem:[#allocation2 + $0x39] sm:$0xff]
        %v6518 = vld [vmem:[#allocation2 + $0x49] sm:$0xff]
        %v6519 = vld [vmem:[#allocation2 + $0x51] sm:$0xff]
        %v6520 = vld [vmem:[#allocation2 + $0x61] sm:$0xff]
        %v6521 = vld [vmem:[#allocation2 + $0x69] sm:$0xff]
        %v6522 = vld [vmem:[#allocation2 + $0x79] sm:$0xff]
        %v6523 = vld [vmem:[#allocation2 + $0x81] sm:$0xff]
        %v6524 = vld [vmem:[#allocation2 + $0x91] sm:$0xff]
        %v6525 = vld [vmem:[#allocation2 + $0x99] sm:$0xff]
        %v6526 = vld [vmem:[#allocation2 + $0xa9] sm:$0xff]
        %v6527 = vld [vmem:[#allocation2 + $0xb1] sm:$0xff]
        %v6528 = vld [vmem:[#allocation2 + $0xc1] sm:$0xff]
        %v6529 = vld [vmem:[#allocation2 + $0xc9] sm:$0xff]
        %v6530 = vld [vmem:[#allocation2 + $0xd9] sm:$0xff]
        %v6531 = vld [vmem:[#allocation2 + $0xe1] sm:$0xff]
        %v6532 = vld [vmem:[#allocation2 + $0xf1] sm:$0xff]
        %v6533 = vld [vmem:[#allocation2 + $0xf9] sm:$0xff]
        %v6534 = vld [vmem:[#allocation2 + $0x109] sm:$0xff]
        %v6535 = vld [vmem:[#allocation2 + $0x111] sm:$0xff]
        %v6536 = vld [vmem:[#allocation2 + $0x121] sm:$0xff]
        %v6537 = vld [vmem:[#allocation2 + $0x129] sm:$0xff]
        %v6538 = vld [vmem:[#allocation2 + $0x139] sm:$0xff]
        %v6539 = vld [vmem:[#allocation2 + $0x141] sm:$0xff]
        %v6540 = vld [vmem:[#allocation2 + $0x151] sm:$0xff]
        %v6541 = vld [vmem:[#allocation2 + $0x159] sm:$0xff]
        %v6542 = vld [vmem:[#allocation2 + $0x169] sm:$0xff]
        %v6543 = vld [vmem:[#allocation2 + $0x171] sm:$0xff]
        %v6544 = vld [vmem:[#allocation2 + $0x2] sm:$0xff]
        %v6545 = vld [vmem:[#allocation2 + $0xa] sm:$0xff]
        %v6546 = vld [vmem:[#allocation2 + $0x1a] sm:$0xff]
        %v6547 = vld [vmem:[#allocation2 + $0x22] sm:$0xff]
        %v6548 = vld [vmem:[#allocation2 + $0x32] sm:$0xff]
        %v6549 = vld [vmem:[#allocation2 + $0x3a] sm:$0xff]
        %v6550 = vld [vmem:[#allocation2 + $0x4a] sm:$0xff]
        %v6551 = vld [vmem:[#allocation2 + $0x52] sm:$0xff]
        %v6552 = vld [vmem:[#allocation2 + $0x62] sm:$0xff]
        %v6553 = vld [vmem:[#allocation2 + $0x6a] sm:$0xff]
        %v6554 = vld [vmem:[#allocation2 + $0x7a] sm:$0xff]
        %v6555 = vld [vmem:[#allocation2 + $0x82] sm:$0xff]
        %v6556 = vld [vmem:[#allocation2 + $0x92] sm:$0xff]
        %v6557 = vld [vmem:[#allocation2 + $0x9a] sm:$0xff]
        %v6558 = vld [vmem:[#allocation2 + $0xaa] sm:$0xff]
        %v6559 = vld [vmem:[#allocation2 + $0xb2] sm:$0xff]
        %v6560 = vld [vmem:[#allocation2 + $0xc2] sm:$0xff]
        %v6561 = vld [vmem:[#allocation2 + $0xca] sm:$0xff]
        %v6562 = vld [vmem:[#allocation2 + $0xda] sm:$0xff]
        %v6563 = vld [vmem:[#allocation2 + $0xe2] sm:$0xff]
        %v6564 = vld [vmem:[#allocation2 + $0xf2] sm:$0xff]
        %v6565 = vld [vmem:[#allocation2 + $0xfa] sm:$0xff]
        %v6566 = vld [vmem:[#allocation2 + $0x10a] sm:$0xff]
        %v6567 = vld [vmem:[#allocation2 + $0x112] sm:$0xff]
        %v6568 = vld [vmem:[#allocation2 + $0x122] sm:$0xff]
        %v6569 = vld [vmem:[#allocation2 + $0x12a] sm:$0xff]
        %v6570 = vld [vmem:[#allocation2 + $0x13a] sm:$0xff]
        %v6571 = vld [vmem:[#allocation2 + $0x142] sm:$0xff]
        %v6572 = vld [vmem:[#allocation2 + $0x152] sm:$0xff]
        %v6573 = vld [vmem:[#allocation2 + $0x15a] sm:$0xff]
        %v6574 = vld [vmem:[#allocation2 + $0x16a] sm:$0xff]
        %v6575 = vld [vmem:[#allocation2 + $0x172] sm:$0xff]
        %v6576 = vld [vmem:[%s394] sm:$0xff]
        %v6577 = vld [vmem:[%s394 + $0x8] sm:$0xff]
        %v6578 = vld [vmem:[%s394 + $0x18] sm:$0xff]
        %v6579 = vld [vmem:[%s394 + $0x20] sm:$0xff]
        %v6580 = vld [vmem:[%s394 + $0x30] sm:$0xff]
        %v6581 = vld [vmem:[%s394 + $0x38] sm:$0xff]
        %v6582 = vld [vmem:[%s394 + $0x48] sm:$0xff]
        %v6583 = vld [vmem:[%s394 + $0x50] sm:$0xff]
        %v6584 = vld [vmem:[%s394 + $0x60] sm:$0xff]
        %v6585 = vld [vmem:[%s394 + $0x68] sm:$0xff]
        %v6586 = vld [vmem:[%s394 + $0x78] sm:$0xff]
        %v6587 = vld [vmem:[%s394 + $0x80] sm:$0xff]
        %v6588 = vld [vmem:[%s394 + $0x90] sm:$0xff]
        %v6589 = vld [vmem:[%s394 + $0x98] sm:$0xff]
        %v6590 = vld [vmem:[%s394 + $0xa8] sm:$0xff]
        %v6591 = vld [vmem:[%s394 + $0xb0] sm:$0xff]
        %v6592 = vld [vmem:[%s394 + $0xc0] sm:$0xff]
        %v6593 = vld [vmem:[%s394 + $0xc8] sm:$0xff]
        %v6594 = vld [vmem:[%s394 + $0xd8] sm:$0xff]
        %v6595 = vld [vmem:[%s394 + $0xe0] sm:$0xff]
        %v6596 = vld [vmem:[%s394 + $0xf0] sm:$0xff]
        %v6597 = vld [vmem:[%s394 + $0xf8] sm:$0xff]
        %v6598 = vld [vmem:[%s394 + $0x108] sm:$0xff]
        %v6599 = vld [vmem:[%s394 + $0x110] sm:$0xff]
        %v6600 = vld [vmem:[%s394 + $0x120] sm:$0xff]
        %v6601 = vld [vmem:[%s394 + $0x128] sm:$0xff]
        %v6602 = vld [vmem:[%s394 + $0x138] sm:$0xff]
        %v6603 = vld [vmem:[%s394 + $0x140] sm:$0xff]
        %v6604 = vld [vmem:[%s394 + $0x150] sm:$0xff]
        %v6605 = vld [vmem:[%s394 + $0x158] sm:$0xff]
        %v6606 = vld [vmem:[%s394 + $0x168] sm:$0xff]
        %v6607 = vld [vmem:[%s394 + $0x170] sm:$0xff]
        %v6608 = vld [vmem:[%s394 + $0x1] sm:$0xff]
        %v6609 = vld [vmem:[%s394 + $0x9] sm:$0xff]
        %v6610 = vld [vmem:[%s394 + $0x19] sm:$0xff]
        %v6611 = vld [vmem:[%s394 + $0x21] sm:$0xff]
        %v6612 = vld [vmem:[%s394 + $0x31] sm:$0xff]
        %v6613 = vld [vmem:[%s394 + $0x39] sm:$0xff]
        %v6614 = vld [vmem:[%s394 + $0x49] sm:$0xff]
        %v6615 = vld [vmem:[%s394 + $0x51] sm:$0xff]
        %v6616 = vld [vmem:[%s394 + $0x61] sm:$0xff]
        %v6617 = vld [vmem:[%s394 + $0x69] sm:$0xff]
        %v6618 = vld [vmem:[%s394 + $0x79] sm:$0xff]
        %v6619 = vld [vmem:[%s394 + $0x81] sm:$0xff]
        %v6620 = vld [vmem:[%s394 + $0x91] sm:$0xff]
        %v6621 = vld [vmem:[%s394 + $0x99] sm:$0xff]
        %v6622 = vld [vmem:[%s394 + $0xa9] sm:$0xff]
        %v6623 = vld [vmem:[%s394 + $0xb1] sm:$0xff]
        %v6624 = vld [vmem:[%s394 + $0xc1] sm:$0xff]
        %v6625 = vld [vmem:[%s394 + $0xc9] sm:$0xff]
        %v6626 = vld [vmem:[%s394 + $0xd9] sm:$0xff]
        %v6627 = vld [vmem:[%s394 + $0xe1] sm:$0xff]
        %v6628 = vld [vmem:[%s394 + $0xf1] sm:$0xff]
        %v6629 = vld [vmem:[%s394 + $0xf9] sm:$0xff]
        %v6630 = vld [vmem:[%s394 + $0x109] sm:$0xff]
        %v6631 = vld [vmem:[%s394 + $0x111] sm:$0xff]
        %v6632 = vld [vmem:[%s394 + $0x121] sm:$0xff]
        %v6633 = vld [vmem:[%s394 + $0x129] sm:$0xff]
        %v6634 = vld [vmem:[%s394 + $0x139] sm:$0xff]
        %v6635 = vld [vmem:[%s394 + $0x141] sm:$0xff]
        %v6636 = vld [vmem:[%s394 + $0x151] sm:$0xff]
        %v6637 = vld [vmem:[%s394 + $0x159] sm:$0xff]
        %v6638 = vld [vmem:[%s394 + $0x169] sm:$0xff]
        %v6639 = vld [vmem:[%s394 + $0x171] sm:$0xff]
        %v6640 = vld [vmem:[%s394 + $0x2] sm:$0xff]
        %v6641 = vld [vmem:[%s394 + $0xa] sm:$0xff]
        %v6642 = vld [vmem:[%s394 + $0x1a] sm:$0xff]
        %v6643 = vld [vmem:[%s394 + $0x22] sm:$0xff]
        %v6644 = vld [vmem:[%s394 + $0x32] sm:$0xff]
        %v6645 = vld [vmem:[%s394 + $0x3a] sm:$0xff]
        %v6646 = vld [vmem:[%s394 + $0x4a] sm:$0xff]
        %v6647 = vld [vmem:[%s394 + $0x52] sm:$0xff]
        %v6648 = vld [vmem:[%s394 + $0x62] sm:$0xff]
        %v6649 = vld [vmem:[%s394 + $0x6a] sm:$0xff]
        %v6650 = vld [vmem:[%s394 + $0x7a] sm:$0xff]
        %v6651 = vld [vmem:[%s394 + $0x82] sm:$0xff]
        %v6652 = vld [vmem:[%s394 + $0x92] sm:$0xff]
        %v6653 = vld [vmem:[%s394 + $0x9a] sm:$0xff]
        %v6654 = vld [vmem:[%s394 + $0xaa] sm:$0xff]
        %v6655 = vld [vmem:[%s394 + $0xb2] sm:$0xff]
        %v6656 = vld [vmem:[%s394 + $0xc2] sm:$0xff]
        %v6657 = vld [vmem:[%s394 + $0xca] sm:$0xff]
        %v6658 = vld [vmem:[%s394 + $0xda] sm:$0xff]
        %v6659 = vld [vmem:[%s394 + $0xe2] sm:$0xff]
        %v6660 = vld [vmem:[%s394 + $0xf2] sm:$0xff]
        %v6661 = vld [vmem:[%s394 + $0xfa] sm:$0xff]
        %v6662 = vld [vmem:[%s394 + $0x10a] sm:$0xff]
        %v6663 = vld [vmem:[%s394 + $0x112] sm:$0xff]
        %v6664 = vld [vmem:[%s394 + $0x122] sm:$0xff]
        %v6665 = vld [vmem:[%s394 + $0x12a] sm:$0xff]
        %v6666 = vld [vmem:[%s394 + $0x13a] sm:$0xff]
        %v6667 = vld [vmem:[%s394 + $0x142] sm:$0xff]
        %v6668 = vld [vmem:[%s394 + $0x152] sm:$0xff]
        %v6669 = vld [vmem:[%s394 + $0x15a] sm:$0xff]
        %v6670 = vld [vmem:[%s394 + $0x16a] sm:$0xff]
        %v6671 = vld [vmem:[%s394 + $0x172] sm:$0xff]
        %v6672 = vld [vmem:[%s822] sm:$0xff]
        %v6673 = vld [vmem:[%s822 + $0x8] sm:$0xff]
        %v6674 = vld [vmem:[%s822 + $0x18] sm:$0xff]
        %v6675 = vld [vmem:[%s822 + $0x20] sm:$0xff]
        %v6676 = vld [vmem:[%s822 + $0x30] sm:$0xff]
        %v6677 = vld [vmem:[%s822 + $0x38] sm:$0xff]
        %v6678 = vld [vmem:[%s822 + $0x48] sm:$0xff]
        %v6679 = vld [vmem:[%s822 + $0x50] sm:$0xff]
        %v6680 = vld [vmem:[%s822 + $0x60] sm:$0xff]
        %v6681 = vld [vmem:[%s822 + $0x68] sm:$0xff]
        %v6682 = vld [vmem:[%s822 + $0x78] sm:$0xff]
        %v6683 = vld [vmem:[%s822 + $0x80] sm:$0xff]
        %v6684 = vld [vmem:[%s822 + $0x90] sm:$0xff]
        %v6685 = vld [vmem:[%s822 + $0x98] sm:$0xff]
        %v6686 = vld [vmem:[%s822 + $0xa8] sm:$0xff]
        %v6687 = vld [vmem:[%s822 + $0xb0] sm:$0xff]
        %v6688 = vld [vmem:[%s822 + $0xc0] sm:$0xff]
        %v6689 = vld [vmem:[%s822 + $0xc8] sm:$0xff]
        %v6690 = vld [vmem:[%s822 + $0xd8] sm:$0xff]
        %v6691 = vld [vmem:[%s822 + $0xe0] sm:$0xff]
        %v6692 = vld [vmem:[%s822 + $0xf0] sm:$0xff]
        %v6693 = vld [vmem:[%s822 + $0xf8] sm:$0xff]
        %v6694 = vld [vmem:[%s822 + $0x108] sm:$0xff]
        %v6695 = vld [vmem:[%s822 + $0x110] sm:$0xff]
        %v6696 = vld [vmem:[%s822 + $0x120] sm:$0xff]
        %v6697 = vld [vmem:[%s822 + $0x128] sm:$0xff]
        %v6698 = vld [vmem:[%s822 + $0x138] sm:$0xff]
        %v6699 = vld [vmem:[%s822 + $0x140] sm:$0xff]
        %v6700 = vld [vmem:[%s822 + $0x150] sm:$0xff]
        %v6701 = vld [vmem:[%s822 + $0x158] sm:$0xff]
        %v6702 = vld [vmem:[%s822 + $0x168] sm:$0xff]
        %v6703 = vld [vmem:[%s822 + $0x170] sm:$0xff]
        %v6704 = vld [vmem:[%s822 + $0x1] sm:$0xff]
        %v6705 = vld [vmem:[%s822 + $0x9] sm:$0xff]
        %v6706 = vld [vmem:[%s822 + $0x19] sm:$0xff]
        %v6707 = vld [vmem:[%s822 + $0x21] sm:$0xff]
        %v6708 = vld [vmem:[%s822 + $0x31] sm:$0xff]
        %v6709 = vld [vmem:[%s822 + $0x39] sm:$0xff]
        %v6710 = vld [vmem:[%s822 + $0x49] sm:$0xff]
        %v6711 = vld [vmem:[%s822 + $0x51] sm:$0xff]
        %v6712 = vld [vmem:[%s822 + $0x61] sm:$0xff]
        %v6713 = vld [vmem:[%s822 + $0x69] sm:$0xff]
        %v6714 = vld [vmem:[%s822 + $0x79] sm:$0xff]
        %v6715 = vld [vmem:[%s822 + $0x81] sm:$0xff]
        %v6716 = vld [vmem:[%s822 + $0x91] sm:$0xff]
        %v6717 = vld [vmem:[%s822 + $0x99] sm:$0xff]
        %v6718 = vld [vmem:[%s822 + $0xa9] sm:$0xff]
        %v6719 = vld [vmem:[%s822 + $0xb1] sm:$0xff]
        %v6720 = vld [vmem:[%s822 + $0xc1] sm:$0xff]
        %v6721 = vld [vmem:[%s822 + $0xc9] sm:$0xff]
        %v6722 = vld [vmem:[%s822 + $0xd9] sm:$0xff]
        %v6723 = vld [vmem:[%s822 + $0xe1] sm:$0xff]
        %v6724 = vld [vmem:[%s822 + $0xf1] sm:$0xff]
        %v6725 = vld [vmem:[%s822 + $0xf9] sm:$0xff]
        %v6726 = vld [vmem:[%s822 + $0x109] sm:$0xff]
        %v6727 = vld [vmem:[%s822 + $0x111] sm:$0xff]
        %v6728 = vld [vmem:[%s822 + $0x121] sm:$0xff]
        %v6729 = vld [vmem:[%s822 + $0x129] sm:$0xff]
        %v6730 = vld [vmem:[%s822 + $0x139] sm:$0xff]
        %v6731 = vld [vmem:[%s822 + $0x141] sm:$0xff]
        %v6732 = vld [vmem:[%s822 + $0x151] sm:$0xff]
        %v6733 = vld [vmem:[%s822 + $0x159] sm:$0xff]
        %v6734 = vld [vmem:[%s822 + $0x169] sm:$0xff]
        %v6735 = vld [vmem:[%s822 + $0x171] sm:$0xff]
        %v6736 = vld [vmem:[%s822 + $0x2] sm:$0xff]
        %v6737 = vld [vmem:[%s822 + $0xa] sm:$0xff]
        %v6738 = vld [vmem:[%s822 + $0x1a] sm:$0xff]
        %v6739 = vld [vmem:[%s822 + $0x22] sm:$0xff]
        %v6740 = vld [vmem:[%s822 + $0x32] sm:$0xff]
        %v6741 = vld [vmem:[%s822 + $0x3a] sm:$0xff]
        %v6742 = vld [vmem:[%s822 + $0x4a] sm:$0xff]
        %v6743 = vld [vmem:[%s822 + $0x52] sm:$0xff]
        %v6744 = vld [vmem:[%s822 + $0x62] sm:$0xff]
        %v6745 = vld [vmem:[%s822 + $0x6a] sm:$0xff]
        %v6746 = vld [vmem:[%s822 + $0x7a] sm:$0xff]
        %v6747 = vld [vmem:[%s822 + $0x82] sm:$0xff]
        %v6748 = vld [vmem:[%s822 + $0x92] sm:$0xff]
        %v6749 = vld [vmem:[%s822 + $0x9a] sm:$0xff]
        %v6750 = vld [vmem:[%s822 + $0xaa] sm:$0xff]
        %v6751 = vld [vmem:[%s822 + $0xb2] sm:$0xff]
        %v6752 = vld [vmem:[%s822 + $0xc2] sm:$0xff]
        %v6753 = vld [vmem:[%s822 + $0xca] sm:$0xff]
        %v6754 = vld [vmem:[%s822 + $0xda] sm:$0xff]
        %v6755 = vld [vmem:[%s822 + $0xe2] sm:$0xff]
        %v6756 = vld [vmem:[%s822 + $0xf2] sm:$0xff]
        %v6757 = vld [vmem:[%s822 + $0xfa] sm:$0xff]
        %v6758 = vld [vmem:[%s822 + $0x10a] sm:$0xff]
        %v6759 = vld [vmem:[%s822 + $0x112] sm:$0xff]
        %v6760 = vld [vmem:[%s822 + $0x122] sm:$0xff]
        %v6761 = vld [vmem:[%s822 + $0x12a] sm:$0xff]
        %v6762 = vld [vmem:[%s822 + $0x13a] sm:$0xff]
        %v6763 = vld [vmem:[%s822 + $0x142] sm:$0xff]
        %v6764 = vld [vmem:[%s822 + $0x152] sm:$0xff]
        %v6765 = vld [vmem:[%s822 + $0x15a] sm:$0xff]
        %v6766 = vld [vmem:[%s822 + $0x16a] sm:$0xff]
        %v6767 = vld [vmem:[%s822 + $0x172] sm:$0xff]
        %6800 = vrot.lane.b32.xlu0 %v6512, 32
        %v6801 = vpop.permute.xlu0 %6800
        %6802 = vrot.lane.b32.xlu0 %v6513, 32
        %v6803 = vpop.permute.xlu0 %6802
        %6804 = vrot.lane.b32.xlu0 %v6514, 32
        %v6805 = vpop.permute.xlu0 %6804
        %6806 = vrot.lane.b32.xlu0 %v6515, 32
        %v6807 = vpop.permute.xlu0 %6806
        %6808 = vrot.lane.b32.xlu0 %v6516, 32
        %v6809 = vpop.permute.xlu0 %6808
        %6810 = vrot.lane.b32.xlu0 %v6517, 32
        %v6811 = vpop.permute.xlu0 %6810
        %6812 = vrot.lane.b32.xlu0 %v6518, 32
        %v6813 = vpop.permute.xlu0 %6812
        %6814 = vrot.lane.b32.xlu0 %v6519, 32
        %v6815 = vpop.permute.xlu0 %6814
        %6816 = vrot.lane.b32.xlu0 %v6520, 32
        %v6817 = vpop.permute.xlu0 %6816
        %6818 = vrot.lane.b32.xlu0 %v6521, 32
        %v6819 = vpop.permute.xlu0 %6818
        %6820 = vrot.lane.b32.xlu0 %v6522, 32
        %v6821 = vpop.permute.xlu0 %6820
        %6822 = vrot.lane.b32.xlu0 %v6523, 32
        %v6823 = vpop.permute.xlu0 %6822
        %6824 = vrot.lane.b32.xlu0 %v6524, 32
        %v6825 = vpop.permute.xlu0 %6824
        %6826 = vrot.lane.b32.xlu0 %v6525, 32
        %v6827 = vpop.permute.xlu0 %6826
        %6828 = vrot.lane.b32.xlu0 %v6526, 32
        %v6829 = vpop.permute.xlu0 %6828
        %6830 = vrot.lane.b32.xlu0 %v6527, 32
        %v6831 = vpop.permute.xlu0 %6830
        %6832 = vrot.lane.b32.xlu0 %v6528, 32
        %v6833 = vpop.permute.xlu0 %6832
        %6834 = vrot.lane.b32.xlu0 %v6529, 32
        %v6835 = vpop.permute.xlu0 %6834
        %6836 = vrot.lane.b32.xlu0 %v6530, 32
        %v6837 = vpop.permute.xlu0 %6836
        %6838 = vrot.lane.b32.xlu0 %v6531, 32
        %v6839 = vpop.permute.xlu0 %6838
        %6840 = vrot.lane.b32.xlu0 %v6532, 32
        %v6841 = vpop.permute.xlu0 %6840
        %6842 = vrot.lane.b32.xlu0 %v6533, 32
        %v6843 = vpop.permute.xlu0 %6842
        %6844 = vrot.lane.b32.xlu0 %v6534, 32
        %v6845 = vpop.permute.xlu0 %6844
        %6846 = vrot.lane.b32.xlu0 %v6535, 32
        %v6847 = vpop.permute.xlu0 %6846
        %6848 = vrot.lane.b32.xlu0 %v6536, 32
        %v6849 = vpop.permute.xlu0 %6848
        %6850 = vrot.lane.b32.xlu0 %v6537, 32
        %v6851 = vpop.permute.xlu0 %6850
        %6852 = vrot.lane.b32.xlu0 %v6538, 32
        %v6853 = vpop.permute.xlu0 %6852
        %6854 = vrot.lane.b32.xlu0 %v6539, 32
        %v6855 = vpop.permute.xlu0 %6854
        %6856 = vrot.lane.b32.xlu0 %v6540, 32
        %v6857 = vpop.permute.xlu0 %6856
        %6858 = vrot.lane.b32.xlu0 %v6541, 32
        %v6859 = vpop.permute.xlu0 %6858
        %6860 = vrot.lane.b32.xlu0 %v6542, 32
        %v6861 = vpop.permute.xlu0 %6860
        %6862 = vrot.lane.b32.xlu0 %v6543, 32
        %v6863 = vpop.permute.xlu0 %6862
        %6928 = vrot.lane.b32.xlu0 %v6544, 64
        %v6929 = vpop.permute.xlu0 %6928
        %6930 = vrot.lane.b32.xlu0 %v6545, 64
        %v6931 = vpop.permute.xlu0 %6930
        %6932 = vrot.lane.b32.xlu0 %v6546, 64
        %v6933 = vpop.permute.xlu0 %6932
        %6934 = vrot.lane.b32.xlu0 %v6547, 64
        %v6935 = vpop.permute.xlu0 %6934
        %6936 = vrot.lane.b32.xlu0 %v6548, 64
        %v6937 = vpop.permute.xlu0 %6936
        %6938 = vrot.lane.b32.xlu0 %v6549, 64
        %v6939 = vpop.permute.xlu0 %6938
        %6940 = vrot.lane.b32.xlu0 %v6550, 64
        %v6941 = vpop.permute.xlu0 %6940
        %6942 = vrot.lane.b32.xlu0 %v6551, 64
        %v6943 = vpop.permute.xlu0 %6942
        %6944 = vrot.lane.b32.xlu0 %v6552, 64
        %v6945 = vpop.permute.xlu0 %6944
        %6946 = vrot.lane.b32.xlu0 %v6553, 64
        %v6947 = vpop.permute.xlu0 %6946
        %6948 = vrot.lane.b32.xlu0 %v6554, 64
        %v6949 = vpop.permute.xlu0 %6948
        %6950 = vrot.lane.b32.xlu0 %v6555, 64
        %v6951 = vpop.permute.xlu0 %6950
        %6952 = vrot.lane.b32.xlu0 %v6556, 64
        %v6953 = vpop.permute.xlu0 %6952
        %6954 = vrot.lane.b32.xlu0 %v6557, 64
        %v6955 = vpop.permute.xlu0 %6954
        %6956 = vrot.lane.b32.xlu0 %v6558, 64
        %v6957 = vpop.permute.xlu0 %6956
        %6958 = vrot.lane.b32.xlu0 %v6559, 64
        %v6959 = vpop.permute.xlu0 %6958
        %6960 = vrot.lane.b32.xlu0 %v6560, 64
        %v6961 = vpop.permute.xlu0 %6960
        %6962 = vrot.lane.b32.xlu0 %v6561, 64
        %v6963 = vpop.permute.xlu0 %6962
        %6964 = vrot.lane.b32.xlu0 %v6562, 64
        %v6965 = vpop.permute.xlu0 %6964
        %6966 = vrot.lane.b32.xlu0 %v6563, 64
        %v6967 = vpop.permute.xlu0 %6966
        %6968 = vrot.lane.b32.xlu0 %v6564, 64
        %v6969 = vpop.permute.xlu0 %6968
        %6970 = vrot.lane.b32.xlu0 %v6565, 64
        %v6971 = vpop.permute.xlu0 %6970
        %6972 = vrot.lane.b32.xlu0 %v6566, 64
        %v6973 = vpop.permute.xlu0 %6972
        %6974 = vrot.lane.b32.xlu0 %v6567, 64
        %v6975 = vpop.permute.xlu0 %6974
        %6976 = vrot.lane.b32.xlu0 %v6568, 64
        %v6977 = vpop.permute.xlu0 %6976
        %6978 = vrot.lane.b32.xlu0 %v6569, 64
        %v6979 = vpop.permute.xlu0 %6978
        %6980 = vrot.lane.b32.xlu0 %v6570, 64
        %v6981 = vpop.permute.xlu0 %6980
        %6982 = vrot.lane.b32.xlu0 %v6571, 64
        %v6983 = vpop.permute.xlu0 %6982
        %6984 = vrot.lane.b32.xlu0 %v6572, 64
        %v6985 = vpop.permute.xlu0 %6984
        %6986 = vrot.lane.b32.xlu0 %v6573, 64
        %v6987 = vpop.permute.xlu0 %6986
        %6988 = vrot.lane.b32.xlu0 %v6574, 64
        %v6989 = vpop.permute.xlu0 %6988
        %6990 = vrot.lane.b32.xlu0 %v6575, 64
        %v6991 = vpop.permute.xlu0 %6990
        %7056 = vrot.lane.b32.xlu0 %v6576, 96
        %v7057 = vpop.permute.xlu0 %7056
        %7058 = vrot.lane.b32.xlu0 %v6577, 96
        %v7059 = vpop.permute.xlu0 %7058
        %7060 = vrot.lane.b32.xlu0 %v6578, 96
        %v7061 = vpop.permute.xlu0 %7060
        %7062 = vrot.lane.b32.xlu0 %v6579, 96
        %v7063 = vpop.permute.xlu0 %7062
        %7064 = vrot.lane.b32.xlu0 %v6580, 96
        %v7065 = vpop.permute.xlu0 %7064
        %7066 = vrot.lane.b32.xlu0 %v6581, 96
        %v7067 = vpop.permute.xlu0 %7066
        %7068 = vrot.lane.b32.xlu0 %v6582, 96
        %v7069 = vpop.permute.xlu0 %7068
        %7070 = vrot.lane.b32.xlu0 %v6583, 96
        %v7071 = vpop.permute.xlu0 %7070
        %7072 = vrot.lane.b32.xlu0 %v6584, 96
        %v7073 = vpop.permute.xlu0 %7072
        %7074 = vrot.lane.b32.xlu0 %v6585, 96
        %v7075 = vpop.permute.xlu0 %7074
        %7076 = vrot.lane.b32.xlu0 %v6586, 96
        %v7077 = vpop.permute.xlu0 %7076
        %7078 = vrot.lane.b32.xlu0 %v6587, 96
        %v7079 = vpop.permute.xlu0 %7078
        %7080 = vrot.lane.b32.xlu0 %v6588, 96
        %v7081 = vpop.permute.xlu0 %7080
        %7082 = vrot.lane.b32.xlu0 %v6589, 96
        %v7083 = vpop.permute.xlu0 %7082
        %7084 = vrot.lane.b32.xlu0 %v6590, 96
        %v7085 = vpop.permute.xlu0 %7084
        %7086 = vrot.lane.b32.xlu0 %v6591, 96
        %v7087 = vpop.permute.xlu0 %7086
        %7088 = vrot.lane.b32.xlu0 %v6592, 96
        %v7089 = vpop.permute.xlu0 %7088
        %7090 = vrot.lane.b32.xlu0 %v6593, 96
        %v7091 = vpop.permute.xlu0 %7090
        %7092 = vrot.lane.b32.xlu0 %v6594, 96
        %v7093 = vpop.permute.xlu0 %7092
        %7094 = vrot.lane.b32.xlu0 %v6595, 96
        %v7095 = vpop.permute.xlu0 %7094
        %7096 = vrot.lane.b32.xlu0 %v6596, 96
        %v7097 = vpop.permute.xlu0 %7096
        %7098 = vrot.lane.b32.xlu0 %v6597, 96
        %v7099 = vpop.permute.xlu0 %7098
        %7100 = vrot.lane.b32.xlu0 %v6598, 96
        %v7101 = vpop.permute.xlu0 %7100
        %7102 = vrot.lane.b32.xlu0 %v6599, 96
        %v7103 = vpop.permute.xlu0 %7102
        %7104 = vrot.lane.b32.xlu0 %v6600, 96
        %v7105 = vpop.permute.xlu0 %7104
        %7106 = vrot.lane.b32.xlu0 %v6601, 96
        %v7107 = vpop.permute.xlu0 %7106
        %7108 = vrot.lane.b32.xlu0 %v6602, 96
        %v7109 = vpop.permute.xlu0 %7108
        %7110 = vrot.lane.b32.xlu0 %v6603, 96
        %v7111 = vpop.permute.xlu0 %7110
        %7112 = vrot.lane.b32.xlu0 %v6604, 96
        %v7113 = vpop.permute.xlu0 %7112
        %7114 = vrot.lane.b32.xlu0 %v6605, 96
        %v7115 = vpop.permute.xlu0 %7114
        %7116 = vrot.lane.b32.xlu0 %v6606, 96
        %v7117 = vpop.permute.xlu0 %7116
        %7118 = vrot.lane.b32.xlu0 %v6607, 96
        %v7119 = vpop.permute.xlu0 %7118
        %7184 = vrot.lane.b32.xlu0 %v6640, 32
        %v7185 = vpop.permute.xlu0 %7184
        %7186 = vrot.lane.b32.xlu0 %v6641, 32
        %v7187 = vpop.permute.xlu0 %7186
        %7188 = vrot.lane.b32.xlu0 %v6642, 32
        %v7189 = vpop.permute.xlu0 %7188
        %7190 = vrot.lane.b32.xlu0 %v6643, 32
        %v7191 = vpop.permute.xlu0 %7190
        %7192 = vrot.lane.b32.xlu0 %v6644, 32
        %v7193 = vpop.permute.xlu0 %7192
        %7194 = vrot.lane.b32.xlu0 %v6645, 32
        %v7195 = vpop.permute.xlu0 %7194
        %7196 = vrot.lane.b32.xlu0 %v6646, 32
        %v7197 = vpop.permute.xlu0 %7196
        %7198 = vrot.lane.b32.xlu0 %v6647, 32
        %v7199 = vpop.permute.xlu0 %7198
        %7200 = vrot.lane.b32.xlu0 %v6648, 32
        %v7201 = vpop.permute.xlu0 %7200
        %7202 = vrot.lane.b32.xlu0 %v6649, 32
        %v7203 = vpop.permute.xlu0 %7202
        %7204 = vrot.lane.b32.xlu0 %v6650, 32
        %v7205 = vpop.permute.xlu0 %7204
        %7206 = vrot.lane.b32.xlu0 %v6651, 32
        %v7207 = vpop.permute.xlu0 %7206
        %7208 = vrot.lane.b32.xlu0 %v6652, 32
        %v7209 = vpop.permute.xlu0 %7208
        %7210 = vrot.lane.b32.xlu0 %v6653, 32
        %v7211 = vpop.permute.xlu0 %7210
        %7212 = vrot.lane.b32.xlu0 %v6654, 32
        %v7213 = vpop.permute.xlu0 %7212
        %7214 = vrot.lane.b32.xlu0 %v6655, 32
        %v7215 = vpop.permute.xlu0 %7214
        %7216 = vrot.lane.b32.xlu0 %v6656, 32
        %v7217 = vpop.permute.xlu0 %7216
        %7218 = vrot.lane.b32.xlu0 %v6657, 32
        %v7219 = vpop.permute.xlu0 %7218
        %7220 = vrot.lane.b32.xlu0 %v6658, 32
        %v7221 = vpop.permute.xlu0 %7220
        %7222 = vrot.lane.b32.xlu0 %v6659, 32
        %v7223 = vpop.permute.xlu0 %7222
        %7224 = vrot.lane.b32.xlu0 %v6660, 32
        %v7225 = vpop.permute.xlu0 %7224
        %7226 = vrot.lane.b32.xlu0 %v6661, 32
        %v7227 = vpop.permute.xlu0 %7226
        %7228 = vrot.lane.b32.xlu0 %v6662, 32
        %v7229 = vpop.permute.xlu0 %7228
        %7230 = vrot.lane.b32.xlu0 %v6663, 32
        %v7231 = vpop.permute.xlu0 %7230
        %7232 = vrot.lane.b32.xlu0 %v6664, 32
        %v7233 = vpop.permute.xlu0 %7232
        %7234 = vrot.lane.b32.xlu0 %v6665, 32
        %v7235 = vpop.permute.xlu0 %7234
        %7236 = vrot.lane.b32.xlu0 %v6666, 32
        %v7237 = vpop.permute.xlu0 %7236
        %7238 = vrot.lane.b32.xlu0 %v6667, 32
        %v7239 = vpop.permute.xlu0 %7238
        %7240 = vrot.lane.b32.xlu0 %v6668, 32
        %v7241 = vpop.permute.xlu0 %7240
        %7242 = vrot.lane.b32.xlu0 %v6669, 32
        %v7243 = vpop.permute.xlu0 %7242
        %7244 = vrot.lane.b32.xlu0 %v6670, 32
        %v7245 = vpop.permute.xlu0 %7244
        %7246 = vrot.lane.b32.xlu0 %v6671, 32
        %v7247 = vpop.permute.xlu0 %7246
        %7312 = vrot.lane.b32.xlu0 %v6672, 64
        %v7313 = vpop.permute.xlu0 %7312
        %7314 = vrot.lane.b32.xlu0 %v6673, 64
        %v7315 = vpop.permute.xlu0 %7314
        %7316 = vrot.lane.b32.xlu0 %v6674, 64
        %v7317 = vpop.permute.xlu0 %7316
        %7318 = vrot.lane.b32.xlu0 %v6675, 64
        %v7319 = vpop.permute.xlu0 %7318
        %7320 = vrot.lane.b32.xlu0 %v6676, 64
        %v7321 = vpop.permute.xlu0 %7320
        %7322 = vrot.lane.b32.xlu0 %v6677, 64
        %v7323 = vpop.permute.xlu0 %7322
        %7324 = vrot.lane.b32.xlu0 %v6678, 64
        %v7325 = vpop.permute.xlu0 %7324
        %7326 = vrot.lane.b32.xlu0 %v6679, 64
        %v7327 = vpop.permute.xlu0 %7326
        %7328 = vrot.lane.b32.xlu0 %v6680, 64
        %v7329 = vpop.permute.xlu0 %7328
        %7330 = vrot.lane.b32.xlu0 %v6681, 64
        %v7331 = vpop.permute.xlu0 %7330
        %7332 = vrot.lane.b32.xlu0 %v6682, 64
        %v7333 = vpop.permute.xlu0 %7332
        %7334 = vrot.lane.b32.xlu0 %v6683, 64
        %v7335 = vpop.permute.xlu0 %7334
        %7336 = vrot.lane.b32.xlu0 %v6684, 64
        %v7337 = vpop.permute.xlu0 %7336
        %7338 = vrot.lane.b32.xlu0 %v6685, 64
        %v7339 = vpop.permute.xlu0 %7338
        %7340 = vrot.lane.b32.xlu0 %v6686, 64
        %v7341 = vpop.permute.xlu0 %7340
        %7342 = vrot.lane.b32.xlu0 %v6687, 64
        %v7343 = vpop.permute.xlu0 %7342
        %7344 = vrot.lane.b32.xlu0 %v6688, 64
        %v7345 = vpop.permute.xlu0 %7344
        %7346 = vrot.lane.b32.xlu0 %v6689, 64
        %v7347 = vpop.permute.xlu0 %7346
        %7348 = vrot.lane.b32.xlu0 %v6690, 64
        %v7349 = vpop.permute.xlu0 %7348
        %7350 = vrot.lane.b32.xlu0 %v6691, 64
        %v7351 = vpop.permute.xlu0 %7350
        %7352 = vrot.lane.b32.xlu0 %v6692, 64
        %v7353 = vpop.permute.xlu0 %7352
        %7354 = vrot.lane.b32.xlu0 %v6693, 64
        %v7355 = vpop.permute.xlu0 %7354
        %7356 = vrot.lane.b32.xlu0 %v6694, 64
        %v7357 = vpop.permute.xlu0 %7356
        %7358 = vrot.lane.b32.xlu0 %v6695, 64
        %v7359 = vpop.permute.xlu0 %7358
        %7360 = vrot.lane.b32.xlu0 %v6696, 64
        %v7361 = vpop.permute.xlu0 %7360
        %7362 = vrot.lane.b32.xlu0 %v6697, 64
        %v7363 = vpop.permute.xlu0 %7362
        %7364 = vrot.lane.b32.xlu0 %v6698, 64
        %v7365 = vpop.permute.xlu0 %7364
        %7366 = vrot.lane.b32.xlu0 %v6699, 64
        %v7367 = vpop.permute.xlu0 %7366
        %7368 = vrot.lane.b32.xlu0 %v6700, 64
        %v7369 = vpop.permute.xlu0 %7368
        %7370 = vrot.lane.b32.xlu0 %v6701, 64
        %v7371 = vpop.permute.xlu0 %7370
        %7372 = vrot.lane.b32.xlu0 %v6702, 64
        %v7373 = vpop.permute.xlu0 %7372
        %7374 = vrot.lane.b32.xlu0 %v6703, 64
        %v7375 = vpop.permute.xlu0 %7374
        %7440 = vrot.lane.b32.xlu0 %v6704, 96
        %v7441 = vpop.permute.xlu0 %7440
        %7442 = vrot.lane.b32.xlu0 %v6705, 96
        %v7443 = vpop.permute.xlu0 %7442
        %7444 = vrot.lane.b32.xlu0 %v6706, 96
        %v7445 = vpop.permute.xlu0 %7444
        %7446 = vrot.lane.b32.xlu0 %v6707, 96
        %v7447 = vpop.permute.xlu0 %7446
        %7448 = vrot.lane.b32.xlu0 %v6708, 96
        %v7449 = vpop.permute.xlu0 %7448
        %7450 = vrot.lane.b32.xlu0 %v6709, 96
        %v7451 = vpop.permute.xlu0 %7450
        %7452 = vrot.lane.b32.xlu0 %v6710, 96
        %v7453 = vpop.permute.xlu0 %7452
        %7454 = vrot.lane.b32.xlu0 %v6711, 96
        %v7455 = vpop.permute.xlu0 %7454
        %7456 = vrot.lane.b32.xlu0 %v6712, 96
        %v7457 = vpop.permute.xlu0 %7456
        %7458 = vrot.lane.b32.xlu0 %v6713, 96
        %v7459 = vpop.permute.xlu0 %7458
        %7460 = vrot.lane.b32.xlu0 %v6714, 96
        %v7461 = vpop.permute.xlu0 %7460
        %7462 = vrot.lane.b32.xlu0 %v6715, 96
        %v7463 = vpop.permute.xlu0 %7462
        %7464 = vrot.lane.b32.xlu0 %v6716, 96
        %v7465 = vpop.permute.xlu0 %7464
        %7466 = vrot.lane.b32.xlu0 %v6717, 96
        %v7467 = vpop.permute.xlu0 %7466
        %7468 = vrot.lane.b32.xlu0 %v6718, 96
        %v7469 = vpop.permute.xlu0 %7468
        %7470 = vrot.lane.b32.xlu0 %v6719, 96
        %v7471 = vpop.permute.xlu0 %7470
        %7472 = vrot.lane.b32.xlu0 %v6720, 96
        %v7473 = vpop.permute.xlu0 %7472
        %7474 = vrot.lane.b32.xlu0 %v6721, 96
        %v7475 = vpop.permute.xlu0 %7474
        %7476 = vrot.lane.b32.xlu0 %v6722, 96
        %v7477 = vpop.permute.xlu0 %7476
        %7478 = vrot.lane.b32.xlu0 %v6723, 96
        %v7479 = vpop.permute.xlu0 %7478
        %7480 = vrot.lane.b32.xlu0 %v6724, 96
        %v7481 = vpop.permute.xlu0 %7480
        %7482 = vrot.lane.b32.xlu0 %v6725, 96
        %v7483 = vpop.permute.xlu0 %7482
        %7484 = vrot.lane.b32.xlu0 %v6726, 96
        %v7485 = vpop.permute.xlu0 %7484
        %7486 = vrot.lane.b32.xlu0 %v6727, 96
        %v7487 = vpop.permute.xlu0 %7486
        %7488 = vrot.lane.b32.xlu0 %v6728, 96
        %v7489 = vpop.permute.xlu0 %7488
        %7490 = vrot.lane.b32.xlu0 %v6729, 96
        %v7491 = vpop.permute.xlu0 %7490
        %7492 = vrot.lane.b32.xlu0 %v6730, 96
        %v7493 = vpop.permute.xlu0 %7492
        %7494 = vrot.lane.b32.xlu0 %v6731, 96
        %v7495 = vpop.permute.xlu0 %7494
        %7496 = vrot.lane.b32.xlu0 %v6732, 96
        %v7497 = vpop.permute.xlu0 %7496
        %7498 = vrot.lane.b32.xlu0 %v6733, 96
        %v7499 = vpop.permute.xlu0 %7498
        %7500 = vrot.lane.b32.xlu0 %v6734, 96
        %v7501 = vpop.permute.xlu0 %7500
        %7502 = vrot.lane.b32.xlu0 %v6735, 96
        %v7503 = vpop.permute.xlu0 %7502
        %v7536 = vsel %vm385, %v6480, %v6801
        %v7537 = vsel %vm385, %v6481, %v6803
        %v7538 = vsel %vm385, %v6482, %v6805
        %v7539 = vsel %vm385, %v6483, %v6807
        %v7540 = vsel %vm385, %v6484, %v6809
        %v7541 = vsel %vm385, %v6485, %v6811
        %v7542 = vsel %vm385, %v6486, %v6813
        %v7543 = vsel %vm385, %v6487, %v6815
        %v7544 = vsel %vm385, %v6488, %v6817
        %v7545 = vsel %vm385, %v6489, %v6819
        %v7546 = vsel %vm385, %v6490, %v6821
        %v7547 = vsel %vm385, %v6491, %v6823
        %v7548 = vsel %vm385, %v6492, %v6825
        %v7549 = vsel %vm385, %v6493, %v6827
        %v7550 = vsel %vm385, %v6494, %v6829
        %v7551 = vsel %vm385, %v6495, %v6831
        %v7552 = vsel %vm385, %v6496, %v6833
        %v7553 = vsel %vm385, %v6497, %v6835
        %v7554 = vsel %vm385, %v6498, %v6837
        %v7555 = vsel %vm385, %v6499, %v6839
        %v7556 = vsel %vm385, %v6500, %v6841
        %v7557 = vsel %vm385, %v6501, %v6843
        %v7558 = vsel %vm385, %v6502, %v6845
        %v7559 = vsel %vm385, %v6503, %v6847
        %v7560 = vsel %vm385, %v6504, %v6849
        %v7561 = vsel %vm385, %v6505, %v6851
        %v7562 = vsel %vm385, %v6506, %v6853
        %v7563 = vsel %vm385, %v6507, %v6855
        %v7564 = vsel %vm385, %v6508, %v6857
        %v7565 = vsel %vm385, %v6509, %v6859
        %v7566 = vsel %vm385, %v6510, %v6861
        %v7567 = vsel %vm385, %v6511, %v6863
        %v7568 = vsel %vm1719, %v7536, %v6929
        %v7569 = vsel %vm1719, %v7537, %v6931
        %v7570 = vsel %vm1719, %v7538, %v6933
        %v7571 = vsel %vm1719, %v7539, %v6935
        %v7572 = vsel %vm1719, %v7540, %v6937
        %v7573 = vsel %vm1719, %v7541, %v6939
        %v7574 = vsel %vm1719, %v7542, %v6941
        %v7575 = vsel %vm1719, %v7543, %v6943
        %v7576 = vsel %vm1719, %v7544, %v6945
        %v7577 = vsel %vm1719, %v7545, %v6947
        %v7578 = vsel %vm1719, %v7546, %v6949
        %v7579 = vsel %vm1719, %v7547, %v6951
        %v7580 = vsel %vm1719, %v7548, %v6953
        %v7581 = vsel %vm1719, %v7549, %v6955
        %v7582 = vsel %vm1719, %v7550, %v6957
        %v7583 = vsel %vm1719, %v7551, %v6959
        %v7584 = vsel %vm1719, %v7552, %v6961
        %v7585 = vsel %vm1719, %v7553, %v6963
        %v7586 = vsel %vm1719, %v7554, %v6965
        %v7587 = vsel %vm1719, %v7555, %v6967
        %v7588 = vsel %vm1719, %v7556, %v6969
        %v7589 = vsel %vm1719, %v7557, %v6971
        %v7590 = vsel %vm1719, %v7558, %v6973
        %v7591 = vsel %vm1719, %v7559, %v6975
        %v7592 = vsel %vm1719, %v7560, %v6977
        %v7593 = vsel %vm1719, %v7561, %v6979
        %v7594 = vsel %vm1719, %v7562, %v6981
        %v7595 = vsel %vm1719, %v7563, %v6983
        %v7596 = vsel %vm1719, %v7564, %v6985
        %v7597 = vsel %vm1719, %v7565, %v6987
        %v7598 = vsel %vm1719, %v7566, %v6989
        %v7599 = vsel %vm1719, %v7567, %v6991
        %v7600 = vsel %vm1752, %v7568, %v7057
        %v7601 = vsel %vm1752, %v7569, %v7059
        %v7602 = vsel %vm1752, %v7570, %v7061
        %v7603 = vsel %vm1752, %v7571, %v7063
        %v7604 = vsel %vm1752, %v7572, %v7065
        %v7605 = vsel %vm1752, %v7573, %v7067
        %v7606 = vsel %vm1752, %v7574, %v7069
        %v7607 = vsel %vm1752, %v7575, %v7071
        %v7608 = vsel %vm1752, %v7576, %v7073
        %v7609 = vsel %vm1752, %v7577, %v7075
        %v7610 = vsel %vm1752, %v7578, %v7077
        %v7611 = vsel %vm1752, %v7579, %v7079
        %v7612 = vsel %vm1752, %v7580, %v7081
        %v7613 = vsel %vm1752, %v7581, %v7083
        %v7614 = vsel %vm1752, %v7582, %v7085
        %v7615 = vsel %vm1752, %v7583, %v7087
        %v7616 = vsel %vm1752, %v7584, %v7089
        %v7617 = vsel %vm1752, %v7585, %v7091
        %v7618 = vsel %vm1752, %v7586, %v7093
        %v7619 = vsel %vm1752, %v7587, %v7095
        %v7620 = vsel %vm1752, %v7588, %v7097
        %v7621 = vsel %vm1752, %v7589, %v7099
        %v7622 = vsel %vm1752, %v7590, %v7101
        %v7623 = vsel %vm1752, %v7591, %v7103
        %v7624 = vsel %vm1752, %v7592, %v7105
        %v7625 = vsel %vm1752, %v7593, %v7107
        %v7626 = vsel %vm1752, %v7594, %v7109
        %v7627 = vsel %vm1752, %v7595, %v7111
        %v7628 = vsel %vm1752, %v7596, %v7113
        %v7629 = vsel %vm1752, %v7597, %v7115
        %v7630 = vsel %vm1752, %v7598, %v7117
        %v7631 = vsel %vm1752, %v7599, %v7119
        %v7632 = vsel %vm385, %v6608, %v7185
        %v7633 = vsel %vm385, %v6609, %v7187
        %v7634 = vsel %vm385, %v6610, %v7189
        %v7635 = vsel %vm385, %v6611, %v7191
        %v7636 = vsel %vm385, %v6612, %v7193
        %v7637 = vsel %vm385, %v6613, %v7195
        %v7638 = vsel %vm385, %v6614, %v7197
        %v7639 = vsel %vm385, %v6615, %v7199
        %v7640 = vsel %vm385, %v6616, %v7201
        %v7641 = vsel %vm385, %v6617, %v7203
        %v7642 = vsel %vm385, %v6618, %v7205
        %v7643 = vsel %vm385, %v6619, %v7207
        %v7644 = vsel %vm385, %v6620, %v7209
        %v7645 = vsel %vm385, %v6621, %v7211
        %v7646 = vsel %vm385, %v6622, %v7213
        %v7647 = vsel %vm385, %v6623, %v7215
        %v7648 = vsel %vm385, %v6624, %v7217
        %v7649 = vsel %vm385, %v6625, %v7219
        %v7650 = vsel %vm385, %v6626, %v7221
        %v7651 = vsel %vm385, %v6627, %v7223
        %v7652 = vsel %vm385, %v6628, %v7225
        %v7653 = vsel %vm385, %v6629, %v7227
        %v7654 = vsel %vm385, %v6630, %v7229
        %v7655 = vsel %vm385, %v6631, %v7231
        %v7656 = vsel %vm385, %v6632, %v7233
        %v7657 = vsel %vm385, %v6633, %v7235
        %v7658 = vsel %vm385, %v6634, %v7237
        %v7659 = vsel %vm385, %v6635, %v7239
        %v7660 = vsel %vm385, %v6636, %v7241
        %v7661 = vsel %vm385, %v6637, %v7243
        %v7662 = vsel %vm385, %v6638, %v7245
        %v7663 = vsel %vm385, %v6639, %v7247
        %v7664 = vsel %vm1719, %v7632, %v7313
        %v7665 = vsel %vm1719, %v7633, %v7315
        %v7666 = vsel %vm1719, %v7634, %v7317
        %v7667 = vsel %vm1719, %v7635, %v7319
        %v7668 = vsel %vm1719, %v7636, %v7321
        %v7669 = vsel %vm1719, %v7637, %v7323
        %v7670 = vsel %vm1719, %v7638, %v7325
        %v7671 = vsel %vm1719, %v7639, %v7327
        %v7672 = vsel %vm1719, %v7640, %v7329
        %v7673 = vsel %vm1719, %v7641, %v7331
        %v7674 = vsel %vm1719, %v7642, %v7333
        %v7675 = vsel %vm1719, %v7643, %v7335
        %v7676 = vsel %vm1719, %v7644, %v7337
        %v7677 = vsel %vm1719, %v7645, %v7339
        %v7678 = vsel %vm1719, %v7646, %v7341
        %v7679 = vsel %vm1719, %v7647, %v7343
        %v7680 = vsel %vm1719, %v7648, %v7345
        %v7681 = vsel %vm1719, %v7649, %v7347
        %v7682 = vsel %vm1719, %v7650, %v7349
        %v7683 = vsel %vm1719, %v7651, %v7351
        %v7684 = vsel %vm1719, %v7652, %v7353
        %v7685 = vsel %vm1719, %v7653, %v7355
        %v7686 = vsel %vm1719, %v7654, %v7357
        %v7687 = vsel %vm1719, %v7655, %v7359
        %v7688 = vsel %vm1719, %v7656, %v7361
        %v7689 = vsel %vm1719, %v7657, %v7363
        %v7690 = vsel %vm1719, %v7658, %v7365
        %v7691 = vsel %vm1719, %v7659, %v7367
        %v7692 = vsel %vm1719, %v7660, %v7369
        %v7693 = vsel %vm1719, %v7661, %v7371
        %v7694 = vsel %vm1719, %v7662, %v7373
        %v7695 = vsel %vm1719, %v7663, %v7375
        %v7696 = vsel %vm1752, %v7664, %v7441
        %v7697 = vsel %vm1752, %v7665, %v7443
        %v7698 = vsel %vm1752, %v7666, %v7445
        %v7699 = vsel %vm1752, %v7667, %v7447
        %v7700 = vsel %vm1752, %v7668, %v7449
        %v7701 = vsel %vm1752, %v7669, %v7451
        %v7702 = vsel %vm1752, %v7670, %v7453
        %v7703 = vsel %vm1752, %v7671, %v7455
        %v7704 = vsel %vm1752, %v7672, %v7457
        %v7705 = vsel %vm1752, %v7673, %v7459
        %v7706 = vsel %vm1752, %v7674, %v7461
        %v7707 = vsel %vm1752, %v7675, %v7463
        %v7708 = vsel %vm1752, %v7676, %v7465
        %v7709 = vsel %vm1752, %v7677, %v7467
        %v7710 = vsel %vm1752, %v7678, %v7469
        %v7711 = vsel %vm1752, %v7679, %v7471
        %v7712 = vsel %vm1752, %v7680, %v7473
        %v7713 = vsel %vm1752, %v7681, %v7475
        %v7714 = vsel %vm1752, %v7682, %v7477
        %v7715 = vsel %vm1752, %v7683, %v7479
        %v7716 = vsel %vm1752, %v7684, %v7481
        %v7717 = vsel %vm1752, %v7685, %v7483
        %v7718 = vsel %vm1752, %v7686, %v7485
        %v7719 = vsel %vm1752, %v7687, %v7487
        %v7720 = vsel %vm1752, %v7688, %v7489
        %v7721 = vsel %vm1752, %v7689, %v7491
        %v7722 = vsel %vm1752, %v7690, %v7493
        %v7723 = vsel %vm1752, %v7691, %v7495
        %v7724 = vsel %vm1752, %v7692, %v7497
        %v7725 = vsel %vm1752, %v7693, %v7499
        %v7726 = vsel %vm1752, %v7694, %v7501
        %v7727 = vsel %vm1752, %v7695, %v7503
        %v7729 = vlaneseq
        %v7730 = vshrl.u32 %v7729, 7
        %v7731 = vsub.s32 0, %v7730
        %v7732 = vrot.slane %v6447, %v7731
        %v7735 = vsel %vm385, %v6736, 0
        %v7738 = vsel %vm385, %v6737, 0
        %v7741 = vsel %vm385, %v6738, 0
        %v7744 = vsel %vm385, %v6739, 0
        %v7747 = vsel %vm385, %v6740, 0
        %v7750 = vsel %vm385, %v6741, 0
        %v7753 = vsel %vm385, %v6742, 0
        %v7756 = vsel %vm385, %v6743, 0
        %v7759 = vsel %vm385, %v6744, 0
        %v7762 = vsel %vm385, %v6745, 0
        %v7765 = vsel %vm385, %v6746, 0
        %v7768 = vsel %vm385, %v6747, 0
        %v7771 = vsel %vm385, %v6748, 0
        %v7774 = vsel %vm385, %v6749, 0
        %v7777 = vsel %vm385, %v6750, 0
        %v7780 = vsel %vm385, %v6751, 0
        %v7783 = vsel %vm385, %v6752, 0
        %v7786 = vsel %vm385, %v6753, 0
        %v7789 = vsel %vm385, %v6754, 0
        %v7792 = vsel %vm385, %v6755, 0
        %v7795 = vsel %vm385, %v6756, 0
        %v7798 = vsel %vm385, %v6757, 0
        %v7801 = vsel %vm385, %v6758, 0
        %v7804 = vsel %vm385, %v6759, 0
        %v7807 = vsel %vm385, %v6760, 0
        %v7810 = vsel %vm385, %v6761, 0
        %v7813 = vsel %vm385, %v6762, 0
        %v7816 = vsel %vm385, %v6763, 0
        %v7819 = vsel %vm385, %v6764, 0
        %v7822 = vsel %vm385, %v6765, 0
        %v7825 = vsel %vm385, %v6766, 0
        %v7828 = vsel %vm385, %v6767, 0
        %7830 = vmatprep.subr.mxu0 0.0
        %7831 = vmatpush1.msra.mxu0 %v6410
        %7832 = vmatprep.subr.mxu0 0.0
        %7833 = vmatpush1.msra.mxu0 %v6411
        %7834 = vmatprep.subr.mxu0 0.0
        %7835 = vmatpush1.msra.mxu0 %v6412
        %7836 = vmatprep.subr.mxu0 0.0
        %7837 = vmatpush1.msra.mxu0 %v6413
        %7838 = vmatprep.subr.mxu0 0.0
        %7839 = vmatpush1.msra.mxu0 %v6414
        %7840 = vmatprep.subr.mxu0 0.0
        %7841 = vmatpush1.msra.mxu0 %v6415
        %7842 = vmatprep.subr.mxu0 0.0
        %7843 = vmatpush1.msra.mxu0 %v6416
        %7844 = vmatprep.subr.mxu0 0.0
        %7845 = vmatpush1.msra.mxu0 %v6417
        %7846 = vmatprep.subr.mxu0 0.0
        %7847 = vmatpush1.msra.mxu0 %v6418
        %7848 = vmatprep.subr.mxu0 0.0
        %7849 = vmatpush1.msra.mxu0 %v6419
        %7850 = vmatprep.subr.mxu0 0.0
        %7851 = vmatpush1.msra.mxu0 %v6420
        %7852 = vmatprep.subr.mxu0 0.0
        %7853 = vmatpush1.msra.mxu0 %v6421
        %7854 = vmatprep.subr.mxu0 0.0
        %7855 = vmatpush1.msra.mxu0 %v6422
        %7856 = vmatprep.subr.mxu0 0.0
        %7857 = vmatpush1.msra.mxu0 %v6423
        %7858 = vmatprep.subr.mxu0 0.0
        %7859 = vmatpush1.msra.mxu0 %v6424
        %7860 = vmatprep.subr.mxu0 0.0
        %7861 = vmatpush1.msra.mxu0 %v6425
        %7862 = vmatprep.subr.mxu0 0.0
        %7863 = vmatpush1.msra.mxu0 %v6426
        %7864 = vmatprep.subr.mxu0 0.0
        %7865 = vmatpush1.msra.mxu0 %v6427
        %7866 = vmatprep.subr.mxu0 0.0
        %7867 = vmatpush1.msra.mxu0 %v6428
        %7868 = vmatprep.subr.mxu0 0.0
        %7869 = vmatpush1.msra.mxu0 %v6429
        %7870 = vmatprep.subr.mxu0 0.0
        %7871 = vmatpush1.msra.mxu0 %v6430
        %7872 = vmatprep.subr.mxu0 0.0
        %7873 = vmatpush1.msra.mxu0 %v6431
        %7874 = vmatprep.subr.mxu0 0.0
        %7875 = vmatpush1.msra.mxu0 %v6432
        %7876 = vmatprep.subr.mxu0 0.0
        %7877 = vmatpush1.msra.mxu0 %v6433
        %7878 = vmatprep.subr.mxu0 0.0
        %7879 = vmatpush1.msra.mxu0 %v6434
        %7880 = vmatprep.subr.mxu0 0.0
        %7881 = vmatpush1.msra.mxu0 %v6435
        %7882 = vmatprep.subr.mxu0 0.0
        %7883 = vmatpush1.msra.mxu0 %v6436
        %7884 = vmatprep.subr.mxu0 0.0
        %7885 = vmatpush1.msra.mxu0 %v6437
        %7886 = vmatprep.subr.mxu0 0.0
        %7887 = vmatpush1.msra.mxu0 %v6438
        %7888 = vmatprep.subr.mxu0 0.0
        %7889 = vmatpush1.msra.mxu0 %v6439
        %7890 = vmatprep.subr.mxu0 0.0
        %7891 = vmatpush1.msra.mxu0 %v6440
        %7892 = vmatprep.subr.mxu0 0.0
        %7893 = vmatpush1.msra.mxu0 %v6441
        %7894 = vmatprep.mubr.f32.mxu0 %v7696
        %7895 = vmatmul.mubr.f32.gmra.mrb[0].mxu0 %v7600
        %v7896 = vpop.f32.mrb[0].mxu0
        %v7897 = vadd.f32 %v7732, %v7896
        %v7898 = vpop.f32.mrb[0].mxu0
        %7899 = vmatprep.mubr.f32.mxu0 %v7697
        %7900 = vmatmul.mubr.f32.gmra.mrb[0].mxu0 %v7601
        %v7901 = vpop.f32.mrb[0].mxu0
        %v7902 = vadd.f32 %v7732, %v7901
        %v7903 = vpop.f32.mrb[0].mxu0
        %7904 = vmatprep.mubr.f32.mxu0 %v7698
        %7905 = vmatmul.mubr.f32.gmra.mrb[0].mxu0 %v7602
        %v7906 = vpop.f32.mrb[0].mxu0
        %v7907 = vadd.f32 %v7732, %v7906
        %v7908 = vpop.f32.mrb[0].mxu0
        %7909 = vmatprep.mubr.f32.mxu0 %v7699
        %7910 = vmatmul.mubr.f32.gmra.mrb[0].mxu0 %v7603
        %v7911 = vpop.f32.mrb[0].mxu0
        %v7912 = vadd.f32 %v7732, %v7911
        %v7913 = vpop.f32.mrb[0].mxu0
        %7914 = vmatprep.mubr.f32.mxu0 %v7700
        %7915 = vmatmul.mubr.f32.gmra.mrb[0].mxu0 %v7604
        %v7916 = vpop.f32.mrb[0].mxu0
        %v7917 = vadd.f32 %v7732, %v7916
        %v7918 = vpop.f32.mrb[0].mxu0
        %7919 = vmatprep.mubr.f32.mxu0 %v7701
        %7920 = vmatmul.mubr.f32.gmra.mrb[0].mxu0 %v7605
        %v7921 = vpop.f32.mrb[0].mxu0
        %v7922 = vadd.f32 %v7732, %v7921
        %v7923 = vpop.f32.mrb[0].mxu0
        %7924 = vmatprep.mubr.f32.mxu0 %v7702
        %7925 = vmatmul.mubr.f32.gmra.mrb[0].mxu0 %v7606
        %v7926 = vpop.f32.mrb[0].mxu0
        %v7927 = vadd.f32 %v7732, %v7926
        %v7928 = vpop.f32.mrb[0].mxu0
        %7929 = vmatprep.mubr.f32.mxu0 %v7703
        %7930 = vmatmul.mubr.f32.gmra.mrb[0].mxu0 %v7607
        %v7931 = vpop.f32.mrb[0].mxu0
        %v7932 = vadd.f32 %v7732, %v7931
        %v7933 = vpop.f32.mrb[0].mxu0
        %7934 = vmatprep.mubr.f32.mxu0 %v7704
        %7935 = vmatmul.mubr.f32.gmra.mrb[0].mxu0 %v7608
        %v7936 = vpop.f32.mrb[0].mxu0
        %v7937 = vadd.f32 %v7732, %v7936
        %v7938 = vpop.f32.mrb[0].mxu0
        %7939 = vmatprep.mubr.f32.mxu0 %v7705
        %7940 = vmatmul.mubr.f32.gmra.mrb[0].mxu0 %v7609
        %v7941 = vpop.f32.mrb[0].mxu0
        %v7942 = vadd.f32 %v7732, %v7941
        %v7943 = vpop.f32.mrb[0].mxu0
        %7944 = vmatprep.mubr.f32.mxu0 %v7706
        %7945 = vmatmul.mubr.f32.gmra.mrb[0].mxu0 %v7610
        %v7946 = vpop.f32.mrb[0].mxu0
        %v7947 = vadd.f32 %v7732, %v7946
        %v7948 = vpop.f32.mrb[0].mxu0
        %7949 = vmatprep.mubr.f32.mxu0 %v7707
        %7950 = vmatmul.mubr.f32.gmra.mrb[0].mxu0 %v7611
        %v7951 = vpop.f32.mrb[0].mxu0
        %v7952 = vadd.f32 %v7732, %v7951
        %v7953 = vpop.f32.mrb[0].mxu0
        %7954 = vmatprep.mubr.f32.mxu0 %v7708
        %7955 = vmatmul.mubr.f32.gmra.mrb[0].mxu0 %v7612
        %v7956 = vpop.f32.mrb[0].mxu0
        %v7957 = vadd.f32 %v7732, %v7956
        %v7958 = vpop.f32.mrb[0].mxu0
        %7959 = vmatprep.mubr.f32.mxu0 %v7709
        %7960 = vmatmul.mubr.f32.gmra.mrb[0].mxu0 %v7613
        %v7961 = vpop.f32.mrb[0].mxu0
        %v7962 = vadd.f32 %v7732, %v7961
        %v7963 = vpop.f32.mrb[0].mxu0
        %7964 = vmatprep.mubr.f32.mxu0 %v7710
        %7965 = vmatmul.mubr.f32.gmra.mrb[0].mxu0 %v7614
        %v7966 = vpop.f32.mrb[0].mxu0
        %v7967 = vadd.f32 %v7732, %v7966
        %v7968 = vpop.f32.mrb[0].mxu0
        %7969 = vmatprep.mubr.f32.mxu0 %v7711
        %7970 = vmatmul.mubr.f32.gmra.mrb[0].mxu0 %v7615
        %v7971 = vpop.f32.mrb[0].mxu0
        %v7972 = vadd.f32 %v7732, %v7971
        %v7973 = vpop.f32.mrb[0].mxu0
        %7974 = vmatprep.mubr.f32.mxu0 %v7712
        %7975 = vmatmul.mubr.f32.gmra.mrb[0].mxu0 %v7616
        %v7976 = vpop.f32.mrb[0].mxu0
        %v7977 = vadd.f32 %v7732, %v7976
        %v7978 = vpop.f32.mrb[0].mxu0
        %7979 = vmatprep.mubr.f32.mxu0 %v7713
        %7980 = vmatmul.mubr.f32.gmra.mrb[0].mxu0 %v7617
        %v7981 = vpop.f32.mrb[0].mxu0
        %v7982 = vadd.f32 %v7732, %v7981
        %v7983 = vpop.f32.mrb[0].mxu0
        %7984 = vmatprep.mubr.f32.mxu0 %v7714
        %7985 = vmatmul.mubr.f32.gmra.mrb[0].mxu0 %v7618
        %v7986 = vpop.f32.mrb[0].mxu0
        %v7987 = vadd.f32 %v7732, %v7986
        %v7988 = vpop.f32.mrb[0].mxu0
        %7989 = vmatprep.mubr.f32.mxu0 %v7715
        %7990 = vmatmul.mubr.f32.gmra.mrb[0].mxu0 %v7619
        %v7991 = vpop.f32.mrb[0].mxu0
        %v7992 = vadd.f32 %v7732, %v7991
        %v7993 = vpop.f32.mrb[0].mxu0
        %7994 = vmatprep.mubr.f32.mxu0 %v7716
        %7995 = vmatmul.mubr.f32.gmra.mrb[0].mxu0 %v7620
        %v7996 = vpop.f32.mrb[0].mxu0
        %v7997 = vadd.f32 %v7732, %v7996
        %v7998 = vpop.f32.mrb[0].mxu0
        %7999 = vmatprep.mubr.f32.mxu0 %v7717
        %8000 = vmatmul.mubr.f32.gmra.mrb[0].mxu0 %v7621
        %v8001 = vpop.f32.mrb[0].mxu0
        %v8002 = vadd.f32 %v7732, %v8001
        %v8003 = vpop.f32.mrb[0].mxu0
        %8004 = vmatprep.mubr.f32.mxu0 %v7718
        %8005 = vmatmul.mubr.f32.gmra.mrb[0].mxu0 %v7622
        %v8006 = vpop.f32.mrb[0].mxu0
        %v8007 = vadd.f32 %v7732, %v8006
        %v8008 = vpop.f32.mrb[0].mxu0
        %8009 = vmatprep.mubr.f32.mxu0 %v7719
        %8010 = vmatmul.mubr.f32.gmra.mrb[0].mxu0 %v7623
        %v8011 = vpop.f32.mrb[0].mxu0
        %v8012 = vadd.f32 %v7732, %v8011
        %v8013 = vpop.f32.mrb[0].mxu0
        %8014 = vmatprep.mubr.f32.mxu0 %v7720
        %8015 = vmatmul.mubr.f32.gmra.mrb[0].mxu0 %v7624
        %v8016 = vpop.f32.mrb[0].mxu0
        %v8017 = vadd.f32 %v7732, %v8016
        %v8018 = vpop.f32.mrb[0].mxu0
        %8019 = vmatprep.mubr.f32.mxu0 %v7721
        %8020 = vmatmul.mubr.f32.gmra.mrb[0].mxu0 %v7625
        %v8021 = vpop.f32.mrb[0].mxu0
        %v8022 = vadd.f32 %v7732, %v8021
        %v8023 = vpop.f32.mrb[0].mxu0
        %8024 = vmatprep.mubr.f32.mxu0 %v7722
        %8025 = vmatmul.mubr.f32.gmra.mrb[0].mxu0 %v7626
        %v8026 = vpop.f32.mrb[0].mxu0
        %v8027 = vadd.f32 %v7732, %v8026
        %v8028 = vpop.f32.mrb[0].mxu0
        %8029 = vmatprep.mubr.f32.mxu0 %v7723
        %8030 = vmatmul.mubr.f32.gmra.mrb[0].mxu0 %v7627
        %v8031 = vpop.f32.mrb[0].mxu0
        %v8032 = vadd.f32 %v7732, %v8031
        %v8033 = vpop.f32.mrb[0].mxu0
        %8034 = vmatprep.mubr.f32.mxu0 %v7724
        %8035 = vmatmul.mubr.f32.gmra.mrb[0].mxu0 %v7628
        %v8036 = vpop.f32.mrb[0].mxu0
        %v8037 = vadd.f32 %v7732, %v8036
        %v8038 = vpop.f32.mrb[0].mxu0
        %8039 = vmatprep.mubr.f32.mxu0 %v7725
        %8040 = vmatmul.mubr.f32.gmra.mrb[0].mxu0 %v7629
        %v8041 = vpop.f32.mrb[0].mxu0
        %v8042 = vadd.f32 %v7732, %v8041
        %v8043 = vpop.f32.mrb[0].mxu0
        %8044 = vmatprep.mubr.f32.mxu0 %v7726
        %8045 = vmatmul.mubr.f32.gmra.mrb[0].mxu0 %v7630
        %v8046 = vpop.f32.mrb[0].mxu0
        %v8047 = vadd.f32 %v7732, %v8046
        %v8048 = vpop.f32.mrb[0].mxu0
        %8049 = vmatprep.mubr.f32.mxu0 %v7727
        %8050 = vmatmul.mubr.f32.gmra.mrb[0].mxu0 %v7631
        %v8051 = vpop.f32.mrb[0].mxu0
        %v8052 = vadd.f32 %v7732, %v8051
        %v8053 = vpop.f32.mrb[0].mxu0
        %8054 = vdwg.mxu0
        %8055 = vmatprep.subr.mxu0 0.0
        %8056 = vmatpush1.msra.mxu0 %v6442
        %8057 = vmatprep.subr.mxu0 0.0
        %8058 = vmatpush1.msra.mxu0 %v6443
        %8059 = vmatprep.subr.mxu0 0.0
        %8060 = vmatpush1.msra.mxu0 %v6444
        %8061 = vmatprep.subr.mxu0 0.0
        %8062 = vmatpush1.msra.mxu0 %v6445
        %8063 = vmatprep.subr.mxu0 0.0
        %8064 = vmatpush1.msra.mxu0 0.0
        %8065 = vmatprep.subr.mxu0 0.0
        %8066 = vmatpush1.msra.mxu0 0.0
        %8067 = vmatprep.subr.mxu0 0.0
        %8068 = vmatpush1.msra.mxu0 0.0
        %8069 = vmatprep.subr.mxu0 0.0
        %8070 = vmatpush1.msra.mxu0 0.0
        %8071 = vmatprep.subr.mxu0 0.0
        %8072 = vmatpush1.msra.mxu0 0.0
        %8073 = vmatprep.subr.mxu0 0.0
        %8074 = vmatpush1.msra.mxu0 0.0
        %8075 = vmatprep.subr.mxu0 0.0
        %8076 = vmatpush1.msra.mxu0 0.0
        %8077 = vmatprep.subr.mxu0 0.0
        %8078 = vmatpush1.msra.mxu0 0.0
        %8079 = vmatprep.subr.mxu0 0.0
        %8080 = vmatpush1.msra.mxu0 0.0
        %8081 = vmatprep.subr.mxu0 0.0
        %8082 = vmatpush1.msra.mxu0 0.0
        %8083 = vmatprep.subr.mxu0 0.0
        %8084 = vmatpush1.msra.mxu0 0.0
        %8085 = vmatprep.subr.mxu0 0.0
        %8086 = vmatpush1.msra.mxu0 0.0
        %8087 = vmatprep.subr.mxu0 0.0
        %8088 = vmatpush1.msra.mxu0 0.0
        %8089 = vmatprep.subr.mxu0 0.0
        %8090 = vmatpush1.msra.mxu0 0.0
        %8091 = vmatprep.subr.mxu0 0.0
        %8092 = vmatpush1.msra.mxu0 0.0
        %8093 = vmatprep.subr.mxu0 0.0
        %8094 = vmatpush1.msra.mxu0 0.0
        %8095 = vmatprep.subr.mxu0 0.0
        %8096 = vmatpush1.msra.mxu0 0.0
        %8097 = vmatprep.subr.mxu0 0.0
        %8098 = vmatpush1.msra.mxu0 0.0
        %8099 = vmatprep.subr.mxu0 0.0
        %8100 = vmatpush1.msra.mxu0 0.0
        %8101 = vmatprep.subr.mxu0 0.0
        %8102 = vmatpush1.msra.mxu0 0.0
        %8103 = vmatprep.subr.mxu0 0.0
        %8104 = vmatpush1.msra.mxu0 0.0
        %8105 = vmatprep.subr.mxu0 0.0
        %8106 = vmatpush1.msra.mxu0 0.0
        %8107 = vmatprep.subr.mxu0 0.0
        %8108 = vmatpush1.msra.mxu0 0.0
        %8109 = vmatprep.subr.mxu0 0.0
        %8110 = vmatpush1.msra.mxu0 0.0
        %8111 = vmatprep.subr.mxu0 0.0
        %8112 = vmatpush1.msra.mxu0 0.0
        %8113 = vmatprep.subr.mxu0 0.0
        %8114 = vmatpush1.msra.mxu0 0.0
        %8115 = vmatprep.subr.mxu0 0.0
        %8116 = vmatpush1.msra.mxu0 0.0
        %8117 = vmatprep.subr.mxu0 0.0
        %8118 = vmatpush1.msra.mxu0 0.0
        %8119 = vmatprep.mubr.f32.mxu0 0.0
        %8120 = vmatmul.mubr.f32.gmra.mrb[0].mxu0 %v7735
        %v8121 = vpop.f32.mrb[0].mxu0
        %v8122 = vadd.f32 %v7897, %v8121
        %v8123 = vpop.f32.mrb[0].mxu0
        %8124 = vmatprep.mubr.f32.mxu0 0.0
        %8125 = vmatmul.mubr.f32.gmra.mrb[0].mxu0 %v7738
        %v8126 = vpop.f32.mrb[0].mxu0
        %v8127 = vadd.f32 %v7902, %v8126
        %v8128 = vpop.f32.mrb[0].mxu0
        %8129 = vmatprep.mubr.f32.mxu0 0.0
        %8130 = vmatmul.mubr.f32.gmra.mrb[0].mxu0 %v7741
        %v8131 = vpop.f32.mrb[0].mxu0
        %v8132 = vadd.f32 %v7907, %v8131
        %v8133 = vpop.f32.mrb[0].mxu0
        %8134 = vmatprep.mubr.f32.mxu0 0.0
        %8135 = vmatmul.mubr.f32.gmra.mrb[0].mxu0 %v7744
        %v8136 = vpop.f32.mrb[0].mxu0
        %v8137 = vadd.f32 %v7912, %v8136
        %v8138 = vpop.f32.mrb[0].mxu0
        %8139 = vmatprep.mubr.f32.mxu0 0.0
        %8140 = vmatmul.mubr.f32.gmra.mrb[0].mxu0 %v7747
        %v8141 = vpop.f32.mrb[0].mxu0
        %v8142 = vadd.f32 %v7917, %v8141
        %v8143 = vpop.f32.mrb[0].mxu0
        %8144 = vmatprep.mubr.f32.mxu0 0.0
        %8145 = vmatmul.mubr.f32.gmra.mrb[0].mxu0 %v7750
        %v8146 = vpop.f32.mrb[0].mxu0
        %v8147 = vadd.f32 %v7922, %v8146
        %v8148 = vpop.f32.mrb[0].mxu0
        %8149 = vmatprep.mubr.f32.mxu0 0.0
        %8150 = vmatmul.mubr.f32.gmra.mrb[0].mxu0 %v7753
        %v8151 = vpop.f32.mrb[0].mxu0
        %v8152 = vadd.f32 %v7927, %v8151
        %v8153 = vpop.f32.mrb[0].mxu0
        %8154 = vmatprep.mubr.f32.mxu0 0.0
        %8155 = vmatmul.mubr.f32.gmra.mrb[0].mxu0 %v7756
        %v8156 = vpop.f32.mrb[0].mxu0
        %v8157 = vadd.f32 %v7932, %v8156
        %v8158 = vpop.f32.mrb[0].mxu0
        %8159 = vmatprep.mubr.f32.mxu0 0.0
        %8160 = vmatmul.mubr.f32.gmra.mrb[0].mxu0 %v7759
        %v8161 = vpop.f32.mrb[0].mxu0
        %v8162 = vadd.f32 %v7937, %v8161
        %v8163 = vpop.f32.mrb[0].mxu0
        %8164 = vmatprep.mubr.f32.mxu0 0.0
        %8165 = vmatmul.mubr.f32.gmra.mrb[0].mxu0 %v7762
        %v8166 = vpop.f32.mrb[0].mxu0
        %v8167 = vadd.f32 %v7942, %v8166
        %v8168 = vpop.f32.mrb[0].mxu0
        %8169 = vmatprep.mubr.f32.mxu0 0.0
        %8170 = vmatmul.mubr.f32.gmra.mrb[0].mxu0 %v7765
        %v8171 = vpop.f32.mrb[0].mxu0
        %v8172 = vadd.f32 %v7947, %v8171
        %v8173 = vpop.f32.mrb[0].mxu0
        %8174 = vmatprep.mubr.f32.mxu0 0.0
        %8175 = vmatmul.mubr.f32.gmra.mrb[0].mxu0 %v7768
        %v8176 = vpop.f32.mrb[0].mxu0
        %v8177 = vadd.f32 %v7952, %v8176
        %v8178 = vpop.f32.mrb[0].mxu0
        %8179 = vmatprep.mubr.f32.mxu0 0.0
        %8180 = vmatmul.mubr.f32.gmra.mrb[0].mxu0 %v7771
        %v8181 = vpop.f32.mrb[0].mxu0
        %v8182 = vadd.f32 %v7957, %v8181
        %v8183 = vpop.f32.mrb[0].mxu0
        %8184 = vmatprep.mubr.f32.mxu0 0.0
        %8185 = vmatmul.mubr.f32.gmra.mrb[0].mxu0 %v7774
        %v8186 = vpop.f32.mrb[0].mxu0
        %v8187 = vadd.f32 %v7962, %v8186
        %v8188 = vpop.f32.mrb[0].mxu0
        %8189 = vmatprep.mubr.f32.mxu0 0.0
        %8190 = vmatmul.mubr.f32.gmra.mrb[0].mxu0 %v7777
        %v8191 = vpop.f32.mrb[0].mxu0
        %v8192 = vadd.f32 %v7967, %v8191
        %v8193 = vpop.f32.mrb[0].mxu0
        %8194 = vmatprep.mubr.f32.mxu0 0.0
        %8195 = vmatmul.mubr.f32.gmra.mrb[0].mxu0 %v7780
        %v8196 = vpop.f32.mrb[0].mxu0
        %v8197 = vadd.f32 %v7972, %v8196
        %v8198 = vpop.f32.mrb[0].mxu0
        %8199 = vmatprep.mubr.f32.mxu0 0.0
        %8200 = vmatmul.mubr.f32.gmra.mrb[0].mxu0 %v7783
        %v8201 = vpop.f32.mrb[0].mxu0
        %v8202 = vadd.f32 %v7977, %v8201
        %v8203 = vpop.f32.mrb[0].mxu0
        %8204 = vmatprep.mubr.f32.mxu0 0.0
        %8205 = vmatmul.mubr.f32.gmra.mrb[0].mxu0 %v7786
        %v8206 = vpop.f32.mrb[0].mxu0
        %v8207 = vadd.f32 %v7982, %v8206
        %v8208 = vpop.f32.mrb[0].mxu0
        %8209 = vmatprep.mubr.f32.mxu0 0.0
        %8210 = vmatmul.mubr.f32.gmra.mrb[0].mxu0 %v7789
        %v8211 = vpop.f32.mrb[0].mxu0
        %v8212 = vadd.f32 %v7987, %v8211
        %v8213 = vpop.f32.mrb[0].mxu0
        %8214 = vmatprep.mubr.f32.mxu0 0.0
        %8215 = vmatmul.mubr.f32.gmra.mrb[0].mxu0 %v7792
        %v8216 = vpop.f32.mrb[0].mxu0
        %v8217 = vadd.f32 %v7992, %v8216
        %v8218 = vpop.f32.mrb[0].mxu0
        %8219 = vmatprep.mubr.f32.mxu0 0.0
        %8220 = vmatmul.mubr.f32.gmra.mrb[0].mxu0 %v7795
        %v8221 = vpop.f32.mrb[0].mxu0
        %v8222 = vadd.f32 %v7997, %v8221
        %v8223 = vpop.f32.mrb[0].mxu0
        %8224 = vmatprep.mubr.f32.mxu0 0.0
        %8225 = vmatmul.mubr.f32.gmra.mrb[0].mxu0 %v7798
        %v8226 = vpop.f32.mrb[0].mxu0
        %v8227 = vadd.f32 %v8002, %v8226
        %v8228 = vpop.f32.mrb[0].mxu0
        %8229 = vmatprep.mubr.f32.mxu0 0.0
        %8230 = vmatmul.mubr.f32.gmra.mrb[0].mxu0 %v7801
        %v8231 = vpop.f32.mrb[0].mxu0
        %v8232 = vadd.f32 %v8007, %v8231
        %v8233 = vpop.f32.mrb[0].mxu0
        %8234 = vmatprep.mubr.f32.mxu0 0.0
        %8235 = vmatmul.mubr.f32.gmra.mrb[0].mxu0 %v7804
        %v8236 = vpop.f32.mrb[0].mxu0
        %v8237 = vadd.f32 %v8012, %v8236
        %v8238 = vpop.f32.mrb[0].mxu0
        %8239 = vmatprep.mubr.f32.mxu0 0.0
        %8240 = vmatmul.mubr.f32.gmra.mrb[0].mxu0 %v7807
        %v8241 = vpop.f32.mrb[0].mxu0
        %v8242 = vadd.f32 %v8017, %v8241
        %v8243 = vpop.f32.mrb[0].mxu0
        %8244 = vmatprep.mubr.f32.mxu0 0.0
        %8245 = vmatmul.mubr.f32.gmra.mrb[0].mxu0 %v7810
        %v8246 = vpop.f32.mrb[0].mxu0
        %v8247 = vadd.f32 %v8022, %v8246
        %v8248 = vpop.f32.mrb[0].mxu0
        %8249 = vmatprep.mubr.f32.mxu0 0.0
        %8250 = vmatmul.mubr.f32.gmra.mrb[0].mxu0 %v7813
        %v8251 = vpop.f32.mrb[0].mxu0
        %v8252 = vadd.f32 %v8027, %v8251
        %v8253 = vpop.f32.mrb[0].mxu0
        %8254 = vmatprep.mubr.f32.mxu0 0.0
        %8255 = vmatmul.mubr.f32.gmra.mrb[0].mxu0 %v7816
        %v8256 = vpop.f32.mrb[0].mxu0
        %v8257 = vadd.f32 %v8032, %v8256
        %v8258 = vpop.f32.mrb[0].mxu0
        %8259 = vmatprep.mubr.f32.mxu0 0.0
        %8260 = vmatmul.mubr.f32.gmra.mrb[0].mxu0 %v7819
        %v8261 = vpop.f32.mrb[0].mxu0
        %v8262 = vadd.f32 %v8037, %v8261
        %v8263 = vpop.f32.mrb[0].mxu0
        %8264 = vmatprep.mubr.f32.mxu0 0.0
        %8265 = vmatmul.mubr.f32.gmra.mrb[0].mxu0 %v7822
        %v8266 = vpop.f32.mrb[0].mxu0
        %v8267 = vadd.f32 %v8042, %v8266
        %v8268 = vpop.f32.mrb[0].mxu0
        %8269 = vmatprep.mubr.f32.mxu0 0.0
        %8270 = vmatmul.mubr.f32.gmra.mrb[0].mxu0 %v7825
        %v8271 = vpop.f32.mrb[0].mxu0
        %v8272 = vadd.f32 %v8047, %v8271
        %v8273 = vpop.f32.mrb[0].mxu0
        %8274 = vmatprep.mubr.f32.mxu0 0.0
        %8275 = vmatmul.mubr.f32.gmra.mrb[0].mxu0 %v7828
        %v8276 = vpop.f32.mrb[0].mxu0
        %v8277 = vadd.f32 %v8052, %v8276
        %v8278 = vpop.f32.mrb[0].mxu0
        %8279 = vdwg.mxu0
        %v8280 = vlaneseq
        %v8281 = vshrl.u32 %v8280, 7
        %v8282 = vsub.s32 0, %v8281
        %v8283 = vrot.slane %v4505, %v8282
        %v8284 = vmul.f32 %v8122, %v8283
        %v8285 = vmul.f32 %v8127, %v8283
        %v8286 = vmul.f32 %v8132, %v8283
        %v8287 = vmul.f32 %v8137, %v8283
        %v8288 = vmul.f32 %v8142, %v8283
        %v8289 = vmul.f32 %v8147, %v8283
        %v8290 = vmul.f32 %v8152, %v8283
        %v8291 = vmul.f32 %v8157, %v8283
        %v8292 = vmul.f32 %v8162, %v8283
        %v8293 = vmul.f32 %v8167, %v8283
        %v8294 = vmul.f32 %v8172, %v8283
        %v8295 = vmul.f32 %v8177, %v8283
        %v8296 = vmul.f32 %v8182, %v8283
        %v8297 = vmul.f32 %v8187, %v8283
        %v8298 = vmul.f32 %v8192, %v8283
        %v8299 = vmul.f32 %v8197, %v8283
        %v8300 = vmul.f32 %v8202, %v8283
        %v8301 = vmul.f32 %v8207, %v8283
        %v8302 = vmul.f32 %v8212, %v8283
        %v8303 = vmul.f32 %v8217, %v8283
        %v8304 = vmul.f32 %v8222, %v8283
        %v8305 = vmul.f32 %v8227, %v8283
        %v8306 = vmul.f32 %v8232, %v8283
        %v8307 = vmul.f32 %v8237, %v8283
        %v8308 = vmul.f32 %v8242, %v8283
        %v8309 = vmul.f32 %v8247, %v8283
        %v8310 = vmul.f32 %v8252, %v8283
        %v8311 = vmul.f32 %v8257, %v8283
        %v8312 = vmul.f32 %v8262, %v8283
        %v8313 = vmul.f32 %v8267, %v8283
        %v8314 = vmul.f32 %v8272, %v8283
        %v8315 = vmul.f32 %v8277, %v8283
        %v8316 = vadd.f32 %v8284, %v4370
        %v8317 = vadd.f32 %v8285, %v4371
        %v8318 = vadd.f32 %v8286, %v4372
        %v8319 = vadd.f32 %v8287, %v4373
        %v8320 = vadd.f32 %v8288, %v4374
        %v8321 = vadd.f32 %v8289, %v4375
        %v8322 = vadd.f32 %v8290, %v4376
        %v8323 = vadd.f32 %v8291, %v4377
        %v8324 = vadd.f32 %v8292, %v4378
        %v8325 = vadd.f32 %v8293, %v4379
        %v8326 = vadd.f32 %v8294, %v4380
        %v8327 = vadd.f32 %v8295, %v4381
        %v8328 = vadd.f32 %v8296, %v4382
        %v8329 = vadd.f32 %v8297, %v4383
        %v8330 = vadd.f32 %v8298, %v4384
        %v8331 = vadd.f32 %v8299, %v4385
        %v8332 = vadd.f32 %v8300, %v4386
        %v8333 = vadd.f32 %v8301, %v4387
        %v8334 = vadd.f32 %v8302, %v4388
        %v8335 = vadd.f32 %v8303, %v4389
        %v8336 = vadd.f32 %v8304, %v4390
        %v8337 = vadd.f32 %v8305, %v4391
        %v8338 = vadd.f32 %v8306, %v4392
        %v8339 = vadd.f32 %v8307, %v4393
        %v8340 = vadd.f32 %v8308, %v4394
        %v8341 = vadd.f32 %v8309, %v4395
        %v8342 = vadd.f32 %v8310, %v4396
        %v8343 = vadd.f32 %v8311, %v4397
        %v8344 = vadd.f32 %v8312, %v4398
        %v8345 = vadd.f32 %v8313, %v4399
        %v8346 = vadd.f32 %v8314, %v4400
        %v8347 = vadd.f32 %v8315, %v4401
        %v8348 = vld [vmem:[%s9] sm:$0xff]
        %v8349 = vld [vmem:[%s9 + $0x8] sm:$0xff]
        %v8350 = vld [vmem:[%s9 + $0x10] sm:$0xff]
        %v8351 = vld [vmem:[%s9 + $0x18] sm:$0xff]
        %v8352 = vld [vmem:[%s9 + $0x20] sm:$0xff]
        %v8353 = vld [vmem:[%s9 + $0x28] sm:$0xff]
        %v8354 = vld [vmem:[%s9 + $0x30] sm:$0xff]
        %v8355 = vld [vmem:[%s9 + $0x38] sm:$0xff]
        %v8356 = vld [vmem:[%s9 + $0x40] sm:$0xff]
        %v8357 = vld [vmem:[%s9 + $0x48] sm:$0xff]
        %v8358 = vld [vmem:[%s9 + $0x50] sm:$0xff]
        %v8359 = vld [vmem:[%s9 + $0x58] sm:$0xff]
        %v8360 = vld [vmem:[%s9 + $0x60] sm:$0xff]
        %v8361 = vld [vmem:[%s9 + $0x68] sm:$0xff]
        %v8362 = vld [vmem:[%s9 + $0x70] sm:$0xff]
        %v8363 = vld [vmem:[%s9 + $0x78] sm:$0xff]
        %v8364 = vld [vmem:[%s9 + $0x80] sm:$0xff]
        %v8365 = vld [vmem:[%s9 + $0x88] sm:$0xff]
        %v8366 = vld [vmem:[%s9 + $0x90] sm:$0xff]
        %v8367 = vld [vmem:[%s9 + $0x98] sm:$0xff]
        %v8368 = vld [vmem:[%s9 + $0xa0] sm:$0xff]
        %v8369 = vld [vmem:[%s9 + $0xa8] sm:$0xff]
        %v8370 = vld [vmem:[%s9 + $0xb0] sm:$0xff]
        %v8371 = vld [vmem:[%s9 + $0xb8] sm:$0xff]
        %v8372 = vld [vmem:[%s9 + $0xc0] sm:$0xff]
        %v8373 = vld [vmem:[%s9 + $0xc8] sm:$0xff]
        %v8374 = vld [vmem:[%s9 + $0xd0] sm:$0xff]
        %v8375 = vld [vmem:[%s9 + $0xd8] sm:$0xff]
        %v8376 = vld [vmem:[%s9 + $0xe0] sm:$0xff]
        %v8377 = vld [vmem:[%s9 + $0xe8] sm:$0xff]
        %v8378 = vld [vmem:[%s9 + $0xf0] sm:$0xff]
        %v8379 = vld [vmem:[%s9 + $0xf8] sm:$0xff]
        %v8380 = vld [vmem:[%s9 + $0x100] sm:$0xff]
        %v8381 = vld [vmem:[%s9 + $0x108] sm:$0xff]
        %v8382 = vld [vmem:[%s9 + $0x110] sm:$0xff]
        %v8383 = vld [vmem:[%s9 + $0x118] sm:$0xff]
        %v8384 = vld [vmem:[%s10] sm:$0x1]
        %8385 = vst.msk [vmem:[%s394 + $0x1] sm:$0xff] %vm385, %v8316
        %8386 = vst.msk [vmem:[%s394 + $0x9] sm:$0xff] %vm385, %v8317
        %8387 = vst.msk [vmem:[%s394 + $0x19] sm:$0xff] %vm385, %v8318
        %8388 = vst.msk [vmem:[%s394 + $0x21] sm:$0xff] %vm385, %v8319
        %8389 = vst.msk [vmem:[%s394 + $0x31] sm:$0xff] %vm385, %v8320
        %8390 = vst.msk [vmem:[%s394 + $0x39] sm:$0xff] %vm385, %v8321
        %8391 = vst.msk [vmem:[%s394 + $0x49] sm:$0xff] %vm385, %v8322
        %8392 = vst.msk [vmem:[%s394 + $0x51] sm:$0xff] %vm385, %v8323
        %8393 = vst.msk [vmem:[%s394 + $0x61] sm:$0xff] %vm385, %v8324
        %8394 = vst.msk [vmem:[%s394 + $0x69] sm:$0xff] %vm385, %v8325
        %8395 = vst.msk [vmem:[%s394 + $0x79] sm:$0xff] %vm385, %v8326
        %8396 = vst.msk [vmem:[%s394 + $0x81] sm:$0xff] %vm385, %v8327
        %8397 = vst.msk [vmem:[%s394 + $0x91] sm:$0xff] %vm385, %v8328
        %8398 = vst.msk [vmem:[%s394 + $0x99] sm:$0xff] %vm385, %v8329
        %8399 = vst.msk [vmem:[%s394 + $0xa9] sm:$0xff] %vm385, %v8330
        %8400 = vst.msk [vmem:[%s394 + $0xb1] sm:$0xff] %vm385, %v8331
        %8401 = vst.msk [vmem:[%s394 + $0xc1] sm:$0xff] %vm385, %v8332
        %8402 = vst.msk [vmem:[%s394 + $0xc9] sm:$0xff] %vm385, %v8333
        %8403 = vst.msk [vmem:[%s394 + $0xd9] sm:$0xff] %vm385, %v8334
        %8404 = vst.msk [vmem:[%s394 + $0xe1] sm:$0xff] %vm385, %v8335
        %8405 = vst.msk [vmem:[%s394 + $0xf1] sm:$0xff] %vm385, %v8336
        %8406 = vst.msk [vmem:[%s394 + $0xf9] sm:$0xff] %vm385, %v8337
        %8407 = vst.msk [vmem:[%s394 + $0x109] sm:$0xff] %vm385, %v8338
        %8408 = vst.msk [vmem:[%s394 + $0x111] sm:$0xff] %vm385, %v8339
        %8409 = vst.msk [vmem:[%s394 + $0x121] sm:$0xff] %vm385, %v8340
        %8410 = vst.msk [vmem:[%s394 + $0x129] sm:$0xff] %vm385, %v8341
        %8411 = vst.msk [vmem:[%s394 + $0x139] sm:$0xff] %vm385, %v8342
        %8412 = vst.msk [vmem:[%s394 + $0x141] sm:$0xff] %vm385, %v8343
        %8413 = vst.msk [vmem:[%s394 + $0x151] sm:$0xff] %vm385, %v8344
        %8414 = vst.msk [vmem:[%s394 + $0x159] sm:$0xff] %vm385, %v8345
        %8415 = vst.msk [vmem:[%s394 + $0x169] sm:$0xff] %vm385, %v8346
        %8416 = vst.msk [vmem:[%s394 + $0x171] sm:$0xff] %vm385, %v8347
        %v8417 = vld [vmem:[#allocation2] sm:$0xff]
        %v8418 = vld [vmem:[#allocation2 + $0x8] sm:$0xff]
        %v8419 = vld [vmem:[#allocation2 + $0x18] sm:$0xff]
        %v8420 = vld [vmem:[#allocation2 + $0x20] sm:$0xff]
        %v8421 = vld [vmem:[#allocation2 + $0x30] sm:$0xff]
        %v8422 = vld [vmem:[#allocation2 + $0x38] sm:$0xff]
        %v8423 = vld [vmem:[#allocation2 + $0x48] sm:$0xff]
        %v8424 = vld [vmem:[#allocation2 + $0x50] sm:$0xff]
        %v8425 = vld [vmem:[#allocation2 + $0x60] sm:$0xff]
        %v8426 = vld [vmem:[#allocation2 + $0x68] sm:$0xff]
        %v8427 = vld [vmem:[#allocation2 + $0x78] sm:$0xff]
        %v8428 = vld [vmem:[#allocation2 + $0x80] sm:$0xff]
        %v8429 = vld [vmem:[#allocation2 + $0x90] sm:$0xff]
        %v8430 = vld [vmem:[#allocation2 + $0x98] sm:$0xff]
        %v8431 = vld [vmem:[#allocation2 + $0xa8] sm:$0xff]
        %v8432 = vld [vmem:[#allocation2 + $0xb0] sm:$0xff]
        %v8433 = vld [vmem:[#allocation2 + $0xc0] sm:$0xff]
        %v8434 = vld [vmem:[#allocation2 + $0xc8] sm:$0xff]
        %v8435 = vld [vmem:[#allocation2 + $0xd8] sm:$0xff]
        %v8436 = vld [vmem:[#allocation2 + $0xe0] sm:$0xff]
        %v8437 = vld [vmem:[#allocation2 + $0xf0] sm:$0xff]
        %v8438 = vld [vmem:[#allocation2 + $0xf8] sm:$0xff]
        %v8439 = vld [vmem:[#allocation2 + $0x108] sm:$0xff]
        %v8440 = vld [vmem:[#allocation2 + $0x110] sm:$0xff]
        %v8441 = vld [vmem:[#allocation2 + $0x120] sm:$0xff]
        %v8442 = vld [vmem:[#allocation2 + $0x128] sm:$0xff]
        %v8443 = vld [vmem:[#allocation2 + $0x138] sm:$0xff]
        %v8444 = vld [vmem:[#allocation2 + $0x140] sm:$0xff]
        %v8445 = vld [vmem:[#allocation2 + $0x150] sm:$0xff]
        %v8446 = vld [vmem:[#allocation2 + $0x158] sm:$0xff]
        %v8447 = vld [vmem:[#allocation2 + $0x168] sm:$0xff]
        %v8448 = vld [vmem:[#allocation2 + $0x170] sm:$0xff]
        %v8449 = vld [vmem:[#allocation2 + $0x1] sm:$0xff]
        %v8450 = vld [vmem:[#allocation2 + $0x9] sm:$0xff]
        %v8451 = vld [vmem:[#allocation2 + $0x19] sm:$0xff]
        %v8452 = vld [vmem:[#allocation2 + $0x21] sm:$0xff]
        %v8453 = vld [vmem:[#allocation2 + $0x31] sm:$0xff]
        %v8454 = vld [vmem:[#allocation2 + $0x39] sm:$0xff]
        %v8455 = vld [vmem:[#allocation2 + $0x49] sm:$0xff]
        %v8456 = vld [vmem:[#allocation2 + $0x51] sm:$0xff]
        %v8457 = vld [vmem:[#allocation2 + $0x61] sm:$0xff]
        %v8458 = vld [vmem:[#allocation2 + $0x69] sm:$0xff]
        %v8459 = vld [vmem:[#allocation2 + $0x79] sm:$0xff]
        %v8460 = vld [vmem:[#allocation2 + $0x81] sm:$0xff]
        %v8461 = vld [vmem:[#allocation2 + $0x91] sm:$0xff]
        %v8462 = vld [vmem:[#allocation2 + $0x99] sm:$0xff]
        %v8463 = vld [vmem:[#allocation2 + $0xa9] sm:$0xff]
        %v8464 = vld [vmem:[#allocation2 + $0xb1] sm:$0xff]
        %v8465 = vld [vmem:[#allocation2 + $0xc1] sm:$0xff]
        %v8466 = vld [vmem:[#allocation2 + $0xc9] sm:$0xff]
        %v8467 = vld [vmem:[#allocation2 + $0xd9] sm:$0xff]
        %v8468 = vld [vmem:[#allocation2 + $0xe1] sm:$0xff]
        %v8469 = vld [vmem:[#allocation2 + $0xf1] sm:$0xff]
        %v8470 = vld [vmem:[#allocation2 + $0xf9] sm:$0xff]
        %v8471 = vld [vmem:[#allocation2 + $0x109] sm:$0xff]
        %v8472 = vld [vmem:[#allocation2 + $0x111] sm:$0xff]
        %v8473 = vld [vmem:[#allocation2 + $0x121] sm:$0xff]
        %v8474 = vld [vmem:[#allocation2 + $0x129] sm:$0xff]
        %v8475 = vld [vmem:[#allocation2 + $0x139] sm:$0xff]
        %v8476 = vld [vmem:[#allocation2 + $0x141] sm:$0xff]
        %v8477 = vld [vmem:[#allocation2 + $0x151] sm:$0xff]
        %v8478 = vld [vmem:[#allocation2 + $0x159] sm:$0xff]
        %v8479 = vld [vmem:[#allocation2 + $0x169] sm:$0xff]
        %v8480 = vld [vmem:[#allocation2 + $0x171] sm:$0xff]
        %v8481 = vld [vmem:[#allocation2 + $0x2] sm:$0xff]
        %v8482 = vld [vmem:[#allocation2 + $0xa] sm:$0xff]
        %v8483 = vld [vmem:[#allocation2 + $0x1a] sm:$0xff]
        %v8484 = vld [vmem:[#allocation2 + $0x22] sm:$0xff]
        %v8485 = vld [vmem:[#allocation2 + $0x32] sm:$0xff]
        %v8486 = vld [vmem:[#allocation2 + $0x3a] sm:$0xff]
        %v8487 = vld [vmem:[#allocation2 + $0x4a] sm:$0xff]
        %v8488 = vld [vmem:[#allocation2 + $0x52] sm:$0xff]
        %v8489 = vld [vmem:[#allocation2 + $0x62] sm:$0xff]
        %v8490 = vld [vmem:[#allocation2 + $0x6a] sm:$0xff]
        %v8491 = vld [vmem:[#allocation2 + $0x7a] sm:$0xff]
        %v8492 = vld [vmem:[#allocation2 + $0x82] sm:$0xff]
        %v8493 = vld [vmem:[#allocation2 + $0x92] sm:$0xff]
        %v8494 = vld [vmem:[#allocation2 + $0x9a] sm:$0xff]
        %v8495 = vld [vmem:[#allocation2 + $0xaa] sm:$0xff]
        %v8496 = vld [vmem:[#allocation2 + $0xb2] sm:$0xff]
        %v8497 = vld [vmem:[#allocation2 + $0xc2] sm:$0xff]
        %v8498 = vld [vmem:[#allocation2 + $0xca] sm:$0xff]
        %v8499 = vld [vmem:[#allocation2 + $0xda] sm:$0xff]
        %v8500 = vld [vmem:[#allocation2 + $0xe2] sm:$0xff]
        %v8501 = vld [vmem:[#allocation2 + $0xf2] sm:$0xff]
        %v8502 = vld [vmem:[#allocation2 + $0xfa] sm:$0xff]
        %v8503 = vld [vmem:[#allocation2 + $0x10a] sm:$0xff]
        %v8504 = vld [vmem:[#allocation2 + $0x112] sm:$0xff]
        %v8505 = vld [vmem:[#allocation2 + $0x122] sm:$0xff]
        %v8506 = vld [vmem:[#allocation2 + $0x12a] sm:$0xff]
        %v8507 = vld [vmem:[#allocation2 + $0x13a] sm:$0xff]
        %v8508 = vld [vmem:[#allocation2 + $0x142] sm:$0xff]
        %v8509 = vld [vmem:[#allocation2 + $0x152] sm:$0xff]
        %v8510 = vld [vmem:[#allocation2 + $0x15a] sm:$0xff]
        %v8511 = vld [vmem:[#allocation2 + $0x16a] sm:$0xff]
        %v8512 = vld [vmem:[#allocation2 + $0x172] sm:$0xff]
        %v8513 = vld [vmem:[%s394] sm:$0xff]
        %v8514 = vld [vmem:[%s394 + $0x8] sm:$0xff]
        %v8515 = vld [vmem:[%s394 + $0x18] sm:$0xff]
        %v8516 = vld [vmem:[%s394 + $0x20] sm:$0xff]
        %v8517 = vld [vmem:[%s394 + $0x30] sm:$0xff]
        %v8518 = vld [vmem:[%s394 + $0x38] sm:$0xff]
        %v8519 = vld [vmem:[%s394 + $0x48] sm:$0xff]
        %v8520 = vld [vmem:[%s394 + $0x50] sm:$0xff]
        %v8521 = vld [vmem:[%s394 + $0x60] sm:$0xff]
        %v8522 = vld [vmem:[%s394 + $0x68] sm:$0xff]
        %v8523 = vld [vmem:[%s394 + $0x78] sm:$0xff]
        %v8524 = vld [vmem:[%s394 + $0x80] sm:$0xff]
        %v8525 = vld [vmem:[%s394 + $0x90] sm:$0xff]
        %v8526 = vld [vmem:[%s394 + $0x98] sm:$0xff]
        %v8527 = vld [vmem:[%s394 + $0xa8] sm:$0xff]
        %v8528 = vld [vmem:[%s394 + $0xb0] sm:$0xff]
        %v8529 = vld [vmem:[%s394 + $0xc0] sm:$0xff]
        %v8530 = vld [vmem:[%s394 + $0xc8] sm:$0xff]
        %v8531 = vld [vmem:[%s394 + $0xd8] sm:$0xff]
        %v8532 = vld [vmem:[%s394 + $0xe0] sm:$0xff]
        %v8533 = vld [vmem:[%s394 + $0xf0] sm:$0xff]
        %v8534 = vld [vmem:[%s394 + $0xf8] sm:$0xff]
        %v8535 = vld [vmem:[%s394 + $0x108] sm:$0xff]
        %v8536 = vld [vmem:[%s394 + $0x110] sm:$0xff]
        %v8537 = vld [vmem:[%s394 + $0x120] sm:$0xff]
        %v8538 = vld [vmem:[%s394 + $0x128] sm:$0xff]
        %v8539 = vld [vmem:[%s394 + $0x138] sm:$0xff]
        %v8540 = vld [vmem:[%s394 + $0x140] sm:$0xff]
        %v8541 = vld [vmem:[%s394 + $0x150] sm:$0xff]
        %v8542 = vld [vmem:[%s394 + $0x158] sm:$0xff]
        %v8543 = vld [vmem:[%s394 + $0x168] sm:$0xff]
        %v8544 = vld [vmem:[%s394 + $0x170] sm:$0xff]
        %v8545 = vld [vmem:[%s394 + $0x1] sm:$0xff]
        %v8546 = vld [vmem:[%s394 + $0x9] sm:$0xff]
        %v8547 = vld [vmem:[%s394 + $0x19] sm:$0xff]
        %v8548 = vld [vmem:[%s394 + $0x21] sm:$0xff]
        %v8549 = vld [vmem:[%s394 + $0x31] sm:$0xff]
        %v8550 = vld [vmem:[%s394 + $0x39] sm:$0xff]
        %v8551 = vld [vmem:[%s394 + $0x49] sm:$0xff]
        %v8552 = vld [vmem:[%s394 + $0x51] sm:$0xff]
        %v8553 = vld [vmem:[%s394 + $0x61] sm:$0xff]
        %v8554 = vld [vmem:[%s394 + $0x69] sm:$0xff]
        %v8555 = vld [vmem:[%s394 + $0x79] sm:$0xff]
        %v8556 = vld [vmem:[%s394 + $0x81] sm:$0xff]
        %v8557 = vld [vmem:[%s394 + $0x91] sm:$0xff]
        %v8558 = vld [vmem:[%s394 + $0x99] sm:$0xff]
        %v8559 = vld [vmem:[%s394 + $0xa9] sm:$0xff]
        %v8560 = vld [vmem:[%s394 + $0xb1] sm:$0xff]
        %v8561 = vld [vmem:[%s394 + $0xc1] sm:$0xff]
        %v8562 = vld [vmem:[%s394 + $0xc9] sm:$0xff]
        %v8563 = vld [vmem:[%s394 + $0xd9] sm:$0xff]
        %v8564 = vld [vmem:[%s394 + $0xe1] sm:$0xff]
        %v8565 = vld [vmem:[%s394 + $0xf1] sm:$0xff]
        %v8566 = vld [vmem:[%s394 + $0xf9] sm:$0xff]
        %v8567 = vld [vmem:[%s394 + $0x109] sm:$0xff]
        %v8568 = vld [vmem:[%s394 + $0x111] sm:$0xff]
        %v8569 = vld [vmem:[%s394 + $0x121] sm:$0xff]
        %v8570 = vld [vmem:[%s394 + $0x129] sm:$0xff]
        %v8571 = vld [vmem:[%s394 + $0x139] sm:$0xff]
        %v8572 = vld [vmem:[%s394 + $0x141] sm:$0xff]
        %v8573 = vld [vmem:[%s394 + $0x151] sm:$0xff]
        %v8574 = vld [vmem:[%s394 + $0x159] sm:$0xff]
        %v8575 = vld [vmem:[%s394 + $0x169] sm:$0xff]
        %v8576 = vld [vmem:[%s394 + $0x171] sm:$0xff]
        %v8577 = vld [vmem:[%s394 + $0x2] sm:$0xff]
        %v8578 = vld [vmem:[%s394 + $0xa] sm:$0xff]
        %v8579 = vld [vmem:[%s394 + $0x1a] sm:$0xff]
        %v8580 = vld [vmem:[%s394 + $0x22] sm:$0xff]
        %v8581 = vld [vmem:[%s394 + $0x32] sm:$0xff]
        %v8582 = vld [vmem:[%s394 + $0x3a] sm:$0xff]
        %v8583 = vld [vmem:[%s394 + $0x4a] sm:$0xff]
        %v8584 = vld [vmem:[%s394 + $0x52] sm:$0xff]
        %v8585 = vld [vmem:[%s394 + $0x62] sm:$0xff]
        %v8586 = vld [vmem:[%s394 + $0x6a] sm:$0xff]
        %v8587 = vld [vmem:[%s394 + $0x7a] sm:$0xff]
        %v8588 = vld [vmem:[%s394 + $0x82] sm:$0xff]
        %v8589 = vld [vmem:[%s394 + $0x92] sm:$0xff]
        %v8590 = vld [vmem:[%s394 + $0x9a] sm:$0xff]
        %v8591 = vld [vmem:[%s394 + $0xaa] sm:$0xff]
        %v8592 = vld [vmem:[%s394 + $0xb2] sm:$0xff]
        %v8593 = vld [vmem:[%s394 + $0xc2] sm:$0xff]
        %v8594 = vld [vmem:[%s394 + $0xca] sm:$0xff]
        %v8595 = vld [vmem:[%s394 + $0xda] sm:$0xff]
        %v8596 = vld [vmem:[%s394 + $0xe2] sm:$0xff]
        %v8597 = vld [vmem:[%s394 + $0xf2] sm:$0xff]
        %v8598 = vld [vmem:[%s394 + $0xfa] sm:$0xff]
        %v8599 = vld [vmem:[%s394 + $0x10a] sm:$0xff]
        %v8600 = vld [vmem:[%s394 + $0x112] sm:$0xff]
        %v8601 = vld [vmem:[%s394 + $0x122] sm:$0xff]
        %v8602 = vld [vmem:[%s394 + $0x12a] sm:$0xff]
        %v8603 = vld [vmem:[%s394 + $0x13a] sm:$0xff]
        %v8604 = vld [vmem:[%s394 + $0x142] sm:$0xff]
        %v8605 = vld [vmem:[%s394 + $0x152] sm:$0xff]
        %v8606 = vld [vmem:[%s394 + $0x15a] sm:$0xff]
        %v8607 = vld [vmem:[%s394 + $0x16a] sm:$0xff]
        %v8608 = vld [vmem:[%s394 + $0x172] sm:$0xff]
        %v8609 = vld [vmem:[%s822] sm:$0xff]
        %v8610 = vld [vmem:[%s822 + $0x8] sm:$0xff]
        %v8611 = vld [vmem:[%s822 + $0x18] sm:$0xff]
        %v8612 = vld [vmem:[%s822 + $0x20] sm:$0xff]
        %v8613 = vld [vmem:[%s822 + $0x30] sm:$0xff]
        %v8614 = vld [vmem:[%s822 + $0x38] sm:$0xff]
        %v8615 = vld [vmem:[%s822 + $0x48] sm:$0xff]
        %v8616 = vld [vmem:[%s822 + $0x50] sm:$0xff]
        %v8617 = vld [vmem:[%s822 + $0x60] sm:$0xff]
        %v8618 = vld [vmem:[%s822 + $0x68] sm:$0xff]
        %v8619 = vld [vmem:[%s822 + $0x78] sm:$0xff]
        %v8620 = vld [vmem:[%s822 + $0x80] sm:$0xff]
        %v8621 = vld [vmem:[%s822 + $0x90] sm:$0xff]
        %v8622 = vld [vmem:[%s822 + $0x98] sm:$0xff]
        %v8623 = vld [vmem:[%s822 + $0xa8] sm:$0xff]
        %v8624 = vld [vmem:[%s822 + $0xb0] sm:$0xff]
        %v8625 = vld [vmem:[%s822 + $0xc0] sm:$0xff]
        %v8626 = vld [vmem:[%s822 + $0xc8] sm:$0xff]
        %v8627 = vld [vmem:[%s822 + $0xd8] sm:$0xff]
        %v8628 = vld [vmem:[%s822 + $0xe0] sm:$0xff]
        %v8629 = vld [vmem:[%s822 + $0xf0] sm:$0xff]
        %v8630 = vld [vmem:[%s822 + $0xf8] sm:$0xff]
        %v8631 = vld [vmem:[%s822 + $0x108] sm:$0xff]
        %v8632 = vld [vmem:[%s822 + $0x110] sm:$0xff]
        %v8633 = vld [vmem:[%s822 + $0x120] sm:$0xff]
        %v8634 = vld [vmem:[%s822 + $0x128] sm:$0xff]
        %v8635 = vld [vmem:[%s822 + $0x138] sm:$0xff]
        %v8636 = vld [vmem:[%s822 + $0x140] sm:$0xff]
        %v8637 = vld [vmem:[%s822 + $0x150] sm:$0xff]
        %v8638 = vld [vmem:[%s822 + $0x158] sm:$0xff]
        %v8639 = vld [vmem:[%s822 + $0x168] sm:$0xff]
        %v8640 = vld [vmem:[%s822 + $0x170] sm:$0xff]
        %v8641 = vld [vmem:[%s822 + $0x1] sm:$0xff]
        %v8642 = vld [vmem:[%s822 + $0x9] sm:$0xff]
        %v8643 = vld [vmem:[%s822 + $0x19] sm:$0xff]
        %v8644 = vld [vmem:[%s822 + $0x21] sm:$0xff]
        %v8645 = vld [vmem:[%s822 + $0x31] sm:$0xff]
        %v8646 = vld [vmem:[%s822 + $0x39] sm:$0xff]
        %v8647 = vld [vmem:[%s822 + $0x49] sm:$0xff]
        %v8648 = vld [vmem:[%s822 + $0x51] sm:$0xff]
        %v8649 = vld [vmem:[%s822 + $0x61] sm:$0xff]
        %v8650 = vld [vmem:[%s822 + $0x69] sm:$0xff]
        %v8651 = vld [vmem:[%s822 + $0x79] sm:$0xff]
        %v8652 = vld [vmem:[%s822 + $0x81] sm:$0xff]
        %v8653 = vld [vmem:[%s822 + $0x91] sm:$0xff]
        %v8654 = vld [vmem:[%s822 + $0x99] sm:$0xff]
        %v8655 = vld [vmem:[%s822 + $0xa9] sm:$0xff]
        %v8656 = vld [vmem:[%s822 + $0xb1] sm:$0xff]
        %v8657 = vld [vmem:[%s822 + $0xc1] sm:$0xff]
        %v8658 = vld [vmem:[%s822 + $0xc9] sm:$0xff]
        %v8659 = vld [vmem:[%s822 + $0xd9] sm:$0xff]
        %v8660 = vld [vmem:[%s822 + $0xe1] sm:$0xff]
        %v8661 = vld [vmem:[%s822 + $0xf1] sm:$0xff]
        %v8662 = vld [vmem:[%s822 + $0xf9] sm:$0xff]
        %v8663 = vld [vmem:[%s822 + $0x109] sm:$0xff]
        %v8664 = vld [vmem:[%s822 + $0x111] sm:$0xff]
        %v8665 = vld [vmem:[%s822 + $0x121] sm:$0xff]
        %v8666 = vld [vmem:[%s822 + $0x129] sm:$0xff]
        %v8667 = vld [vmem:[%s822 + $0x139] sm:$0xff]
        %v8668 = vld [vmem:[%s822 + $0x141] sm:$0xff]
        %v8669 = vld [vmem:[%s822 + $0x151] sm:$0xff]
        %v8670 = vld [vmem:[%s822 + $0x159] sm:$0xff]
        %v8671 = vld [vmem:[%s822 + $0x169] sm:$0xff]
        %v8672 = vld [vmem:[%s822 + $0x171] sm:$0xff]
        %v8673 = vld [vmem:[%s822 + $0x2] sm:$0xff]
        %v8674 = vld [vmem:[%s822 + $0xa] sm:$0xff]
        %v8675 = vld [vmem:[%s822 + $0x1a] sm:$0xff]
        %v8676 = vld [vmem:[%s822 + $0x22] sm:$0xff]
        %v8677 = vld [vmem:[%s822 + $0x32] sm:$0xff]
        %v8678 = vld [vmem:[%s822 + $0x3a] sm:$0xff]
        %v8679 = vld [vmem:[%s822 + $0x4a] sm:$0xff]
        %v8680 = vld [vmem:[%s822 + $0x52] sm:$0xff]
        %v8681 = vld [vmem:[%s822 + $0x62] sm:$0xff]
        %v8682 = vld [vmem:[%s822 + $0x6a] sm:$0xff]
        %v8683 = vld [vmem:[%s822 + $0x7a] sm:$0xff]
        %v8684 = vld [vmem:[%s822 + $0x82] sm:$0xff]
        %v8685 = vld [vmem:[%s822 + $0x92] sm:$0xff]
        %v8686 = vld [vmem:[%s822 + $0x9a] sm:$0xff]
        %v8687 = vld [vmem:[%s822 + $0xaa] sm:$0xff]
        %v8688 = vld [vmem:[%s822 + $0xb2] sm:$0xff]
        %v8689 = vld [vmem:[%s822 + $0xc2] sm:$0xff]
        %v8690 = vld [vmem:[%s822 + $0xca] sm:$0xff]
        %v8691 = vld [vmem:[%s822 + $0xda] sm:$0xff]
        %v8692 = vld [vmem:[%s822 + $0xe2] sm:$0xff]
        %v8693 = vld [vmem:[%s822 + $0xf2] sm:$0xff]
        %v8694 = vld [vmem:[%s822 + $0xfa] sm:$0xff]
        %v8695 = vld [vmem:[%s822 + $0x10a] sm:$0xff]
        %v8696 = vld [vmem:[%s822 + $0x112] sm:$0xff]
        %v8697 = vld [vmem:[%s822 + $0x122] sm:$0xff]
        %v8698 = vld [vmem:[%s822 + $0x12a] sm:$0xff]
        %v8699 = vld [vmem:[%s822 + $0x13a] sm:$0xff]
        %v8700 = vld [vmem:[%s822 + $0x142] sm:$0xff]
        %v8701 = vld [vmem:[%s822 + $0x152] sm:$0xff]
        %v8702 = vld [vmem:[%s822 + $0x15a] sm:$0xff]
        %v8703 = vld [vmem:[%s822 + $0x16a] sm:$0xff]
        %v8704 = vld [vmem:[%s822 + $0x172] sm:$0xff]
        %8737 = vrot.lane.b32.xlu0 %v8449, 32
        %v8738 = vpop.permute.xlu0 %8737
        %8739 = vrot.lane.b32.xlu0 %v8450, 32
        %v8740 = vpop.permute.xlu0 %8739
        %8741 = vrot.lane.b32.xlu0 %v8451, 32
        %v8742 = vpop.permute.xlu0 %8741
        %8743 = vrot.lane.b32.xlu0 %v8452, 32
        %v8744 = vpop.permute.xlu0 %8743
        %8745 = vrot.lane.b32.xlu0 %v8453, 32
        %v8746 = vpop.permute.xlu0 %8745
        %8747 = vrot.lane.b32.xlu0 %v8454, 32
        %v8748 = vpop.permute.xlu0 %8747
        %8749 = vrot.lane.b32.xlu0 %v8455, 32
        %v8750 = vpop.permute.xlu0 %8749
        %8751 = vrot.lane.b32.xlu0 %v8456, 32
        %v8752 = vpop.permute.xlu0 %8751
        %8753 = vrot.lane.b32.xlu0 %v8457, 32
        %v8754 = vpop.permute.xlu0 %8753
        %8755 = vrot.lane.b32.xlu0 %v8458, 32
        %v8756 = vpop.permute.xlu0 %8755
        %8757 = vrot.lane.b32.xlu0 %v8459, 32
        %v8758 = vpop.permute.xlu0 %8757
        %8759 = vrot.lane.b32.xlu0 %v8460, 32
        %v8760 = vpop.permute.xlu0 %8759
        %8761 = vrot.lane.b32.xlu0 %v8461, 32
        %v8762 = vpop.permute.xlu0 %8761
        %8763 = vrot.lane.b32.xlu0 %v8462, 32
        %v8764 = vpop.permute.xlu0 %8763
        %8765 = vrot.lane.b32.xlu0 %v8463, 32
        %v8766 = vpop.permute.xlu0 %8765
        %8767 = vrot.lane.b32.xlu0 %v8464, 32
        %v8768 = vpop.permute.xlu0 %8767
        %8769 = vrot.lane.b32.xlu0 %v8465, 32
        %v8770 = vpop.permute.xlu0 %8769
        %8771 = vrot.lane.b32.xlu0 %v8466, 32
        %v8772 = vpop.permute.xlu0 %8771
        %8773 = vrot.lane.b32.xlu0 %v8467, 32
        %v8774 = vpop.permute.xlu0 %8773
        %8775 = vrot.lane.b32.xlu0 %v8468, 32
        %v8776 = vpop.permute.xlu0 %8775
        %8777 = vrot.lane.b32.xlu0 %v8469, 32
        %v8778 = vpop.permute.xlu0 %8777
        %8779 = vrot.lane.b32.xlu0 %v8470, 32
        %v8780 = vpop.permute.xlu0 %8779
        %8781 = vrot.lane.b32.xlu0 %v8471, 32
        %v8782 = vpop.permute.xlu0 %8781
        %8783 = vrot.lane.b32.xlu0 %v8472, 32
        %v8784 = vpop.permute.xlu0 %8783
        %8785 = vrot.lane.b32.xlu0 %v8473, 32
        %v8786 = vpop.permute.xlu0 %8785
        %8787 = vrot.lane.b32.xlu0 %v8474, 32
        %v8788 = vpop.permute.xlu0 %8787
        %8789 = vrot.lane.b32.xlu0 %v8475, 32
        %v8790 = vpop.permute.xlu0 %8789
        %8791 = vrot.lane.b32.xlu0 %v8476, 32
        %v8792 = vpop.permute.xlu0 %8791
        %8793 = vrot.lane.b32.xlu0 %v8477, 32
        %v8794 = vpop.permute.xlu0 %8793
        %8795 = vrot.lane.b32.xlu0 %v8478, 32
        %v8796 = vpop.permute.xlu0 %8795
        %8797 = vrot.lane.b32.xlu0 %v8479, 32
        %v8798 = vpop.permute.xlu0 %8797
        %8799 = vrot.lane.b32.xlu0 %v8480, 32
        %v8800 = vpop.permute.xlu0 %8799
        %8865 = vrot.lane.b32.xlu0 %v8481, 64
        %v8866 = vpop.permute.xlu0 %8865
        %8867 = vrot.lane.b32.xlu0 %v8482, 64
        %v8868 = vpop.permute.xlu0 %8867
        %8869 = vrot.lane.b32.xlu0 %v8483, 64
        %v8870 = vpop.permute.xlu0 %8869
        %8871 = vrot.lane.b32.xlu0 %v8484, 64
        %v8872 = vpop.permute.xlu0 %8871
        %8873 = vrot.lane.b32.xlu0 %v8485, 64
        %v8874 = vpop.permute.xlu0 %8873
        %8875 = vrot.lane.b32.xlu0 %v8486, 64
        %v8876 = vpop.permute.xlu0 %8875
        %8877 = vrot.lane.b32.xlu0 %v8487, 64
        %v8878 = vpop.permute.xlu0 %8877
        %8879 = vrot.lane.b32.xlu0 %v8488, 64
        %v8880 = vpop.permute.xlu0 %8879
        %8881 = vrot.lane.b32.xlu0 %v8489, 64
        %v8882 = vpop.permute.xlu0 %8881
        %8883 = vrot.lane.b32.xlu0 %v8490, 64
        %v8884 = vpop.permute.xlu0 %8883
        %8885 = vrot.lane.b32.xlu0 %v8491, 64
        %v8886 = vpop.permute.xlu0 %8885
        %8887 = vrot.lane.b32.xlu0 %v8492, 64
        %v8888 = vpop.permute.xlu0 %8887
        %8889 = vrot.lane.b32.xlu0 %v8493, 64
        %v8890 = vpop.permute.xlu0 %8889
        %8891 = vrot.lane.b32.xlu0 %v8494, 64
        %v8892 = vpop.permute.xlu0 %8891
        %8893 = vrot.lane.b32.xlu0 %v8495, 64
        %v8894 = vpop.permute.xlu0 %8893
        %8895 = vrot.lane.b32.xlu0 %v8496, 64
        %v8896 = vpop.permute.xlu0 %8895
        %8897 = vrot.lane.b32.xlu0 %v8497, 64
        %v8898 = vpop.permute.xlu0 %8897
        %8899 = vrot.lane.b32.xlu0 %v8498, 64
        %v8900 = vpop.permute.xlu0 %8899
        %8901 = vrot.lane.b32.xlu0 %v8499, 64
        %v8902 = vpop.permute.xlu0 %8901
        %8903 = vrot.lane.b32.xlu0 %v8500, 64
        %v8904 = vpop.permute.xlu0 %8903
        %8905 = vrot.lane.b32.xlu0 %v8501, 64
        %v8906 = vpop.permute.xlu0 %8905
        %8907 = vrot.lane.b32.xlu0 %v8502, 64
        %v8908 = vpop.permute.xlu0 %8907
        %8909 = vrot.lane.b32.xlu0 %v8503, 64
        %v8910 = vpop.permute.xlu0 %8909
        %8911 = vrot.lane.b32.xlu0 %v8504, 64
        %v8912 = vpop.permute.xlu0 %8911
        %8913 = vrot.lane.b32.xlu0 %v8505, 64
        %v8914 = vpop.permute.xlu0 %8913
        %8915 = vrot.lane.b32.xlu0 %v8506, 64
        %v8916 = vpop.permute.xlu0 %8915
        %8917 = vrot.lane.b32.xlu0 %v8507, 64
        %v8918 = vpop.permute.xlu0 %8917
        %8919 = vrot.lane.b32.xlu0 %v8508, 64
        %v8920 = vpop.permute.xlu0 %8919
        %8921 = vrot.lane.b32.xlu0 %v8509, 64
        %v8922 = vpop.permute.xlu0 %8921
        %8923 = vrot.lane.b32.xlu0 %v8510, 64
        %v8924 = vpop.permute.xlu0 %8923
        %8925 = vrot.lane.b32.xlu0 %v8511, 64
        %v8926 = vpop.permute.xlu0 %8925
        %8927 = vrot.lane.b32.xlu0 %v8512, 64
        %v8928 = vpop.permute.xlu0 %8927
        %8993 = vrot.lane.b32.xlu0 %v8513, 96
        %v8994 = vpop.permute.xlu0 %8993
        %8995 = vrot.lane.b32.xlu0 %v8514, 96
        %v8996 = vpop.permute.xlu0 %8995
        %8997 = vrot.lane.b32.xlu0 %v8515, 96
        %v8998 = vpop.permute.xlu0 %8997
        %8999 = vrot.lane.b32.xlu0 %v8516, 96
        %v9000 = vpop.permute.xlu0 %8999
        %9001 = vrot.lane.b32.xlu0 %v8517, 96
        %v9002 = vpop.permute.xlu0 %9001
        %9003 = vrot.lane.b32.xlu0 %v8518, 96
        %v9004 = vpop.permute.xlu0 %9003
        %9005 = vrot.lane.b32.xlu0 %v8519, 96
        %v9006 = vpop.permute.xlu0 %9005
        %9007 = vrot.lane.b32.xlu0 %v8520, 96
        %v9008 = vpop.permute.xlu0 %9007
        %9009 = vrot.lane.b32.xlu0 %v8521, 96
        %v9010 = vpop.permute.xlu0 %9009
        %9011 = vrot.lane.b32.xlu0 %v8522, 96
        %v9012 = vpop.permute.xlu0 %9011
        %9013 = vrot.lane.b32.xlu0 %v8523, 96
        %v9014 = vpop.permute.xlu0 %9013
        %9015 = vrot.lane.b32.xlu0 %v8524, 96
        %v9016 = vpop.permute.xlu0 %9015
        %9017 = vrot.lane.b32.xlu0 %v8525, 96
        %v9018 = vpop.permute.xlu0 %9017
        %9019 = vrot.lane.b32.xlu0 %v8526, 96
        %v9020 = vpop.permute.xlu0 %9019
        %9021 = vrot.lane.b32.xlu0 %v8527, 96
        %v9022 = vpop.permute.xlu0 %9021
        %9023 = vrot.lane.b32.xlu0 %v8528, 96
        %v9024 = vpop.permute.xlu0 %9023
        %9025 = vrot.lane.b32.xlu0 %v8529, 96
        %v9026 = vpop.permute.xlu0 %9025
        %9027 = vrot.lane.b32.xlu0 %v8530, 96
        %v9028 = vpop.permute.xlu0 %9027
        %9029 = vrot.lane.b32.xlu0 %v8531, 96
        %v9030 = vpop.permute.xlu0 %9029
        %9031 = vrot.lane.b32.xlu0 %v8532, 96
        %v9032 = vpop.permute.xlu0 %9031
        %9033 = vrot.lane.b32.xlu0 %v8533, 96
        %v9034 = vpop.permute.xlu0 %9033
        %9035 = vrot.lane.b32.xlu0 %v8534, 96
        %v9036 = vpop.permute.xlu0 %9035
        %9037 = vrot.lane.b32.xlu0 %v8535, 96
        %v9038 = vpop.permute.xlu0 %9037
        %9039 = vrot.lane.b32.xlu0 %v8536, 96
        %v9040 = vpop.permute.xlu0 %9039
        %9041 = vrot.lane.b32.xlu0 %v8537, 96
        %v9042 = vpop.permute.xlu0 %9041
        %9043 = vrot.lane.b32.xlu0 %v8538, 96
        %v9044 = vpop.permute.xlu0 %9043
        %9045 = vrot.lane.b32.xlu0 %v8539, 96
        %v9046 = vpop.permute.xlu0 %9045
        %9047 = vrot.lane.b32.xlu0 %v8540, 96
        %v9048 = vpop.permute.xlu0 %9047
        %9049 = vrot.lane.b32.xlu0 %v8541, 96
        %v9050 = vpop.permute.xlu0 %9049
        %9051 = vrot.lane.b32.xlu0 %v8542, 96
        %v9052 = vpop.permute.xlu0 %9051
        %9053 = vrot.lane.b32.xlu0 %v8543, 96
        %v9054 = vpop.permute.xlu0 %9053
        %9055 = vrot.lane.b32.xlu0 %v8544, 96
        %v9056 = vpop.permute.xlu0 %9055
        %9121 = vrot.lane.b32.xlu0 %v8577, 32
        %v9122 = vpop.permute.xlu0 %9121
        %9123 = vrot.lane.b32.xlu0 %v8578, 32
        %v9124 = vpop.permute.xlu0 %9123
        %9125 = vrot.lane.b32.xlu0 %v8579, 32
        %v9126 = vpop.permute.xlu0 %9125
        %9127 = vrot.lane.b32.xlu0 %v8580, 32
        %v9128 = vpop.permute.xlu0 %9127
        %9129 = vrot.lane.b32.xlu0 %v8581, 32
        %v9130 = vpop.permute.xlu0 %9129
        %9131 = vrot.lane.b32.xlu0 %v8582, 32
        %v9132 = vpop.permute.xlu0 %9131
        %9133 = vrot.lane.b32.xlu0 %v8583, 32
        %v9134 = vpop.permute.xlu0 %9133
        %9135 = vrot.lane.b32.xlu0 %v8584, 32
        %v9136 = vpop.permute.xlu0 %9135
        %9137 = vrot.lane.b32.xlu0 %v8585, 32
        %v9138 = vpop.permute.xlu0 %9137
        %9139 = vrot.lane.b32.xlu0 %v8586, 32
        %v9140 = vpop.permute.xlu0 %9139
        %9141 = vrot.lane.b32.xlu0 %v8587, 32
        %v9142 = vpop.permute.xlu0 %9141
        %9143 = vrot.lane.b32.xlu0 %v8588, 32
        %v9144 = vpop.permute.xlu0 %9143
        %9145 = vrot.lane.b32.xlu0 %v8589, 32
        %v9146 = vpop.permute.xlu0 %9145
        %9147 = vrot.lane.b32.xlu0 %v8590, 32
        %v9148 = vpop.permute.xlu0 %9147
        %9149 = vrot.lane.b32.xlu0 %v8591, 32
        %v9150 = vpop.permute.xlu0 %9149
        %9151 = vrot.lane.b32.xlu0 %v8592, 32
        %v9152 = vpop.permute.xlu0 %9151
        %9153 = vrot.lane.b32.xlu0 %v8593, 32
        %v9154 = vpop.permute.xlu0 %9153
        %9155 = vrot.lane.b32.xlu0 %v8594, 32
        %v9156 = vpop.permute.xlu0 %9155
        %9157 = vrot.lane.b32.xlu0 %v8595, 32
        %v9158 = vpop.permute.xlu0 %9157
        %9159 = vrot.lane.b32.xlu0 %v8596, 32
        %v9160 = vpop.permute.xlu0 %9159
        %9161 = vrot.lane.b32.xlu0 %v8597, 32
        %v9162 = vpop.permute.xlu0 %9161
        %9163 = vrot.lane.b32.xlu0 %v8598, 32
        %v9164 = vpop.permute.xlu0 %9163
        %9165 = vrot.lane.b32.xlu0 %v8599, 32
        %v9166 = vpop.permute.xlu0 %9165
        %9167 = vrot.lane.b32.xlu0 %v8600, 32
        %v9168 = vpop.permute.xlu0 %9167
        %9169 = vrot.lane.b32.xlu0 %v8601, 32
        %v9170 = vpop.permute.xlu0 %9169
        %9171 = vrot.lane.b32.xlu0 %v8602, 32
        %v9172 = vpop.permute.xlu0 %9171
        %9173 = vrot.lane.b32.xlu0 %v8603, 32
        %v9174 = vpop.permute.xlu0 %9173
        %9175 = vrot.lane.b32.xlu0 %v8604, 32
        %v9176 = vpop.permute.xlu0 %9175
        %9177 = vrot.lane.b32.xlu0 %v8605, 32
        %v9178 = vpop.permute.xlu0 %9177
        %9179 = vrot.lane.b32.xlu0 %v8606, 32
        %v9180 = vpop.permute.xlu0 %9179
        %9181 = vrot.lane.b32.xlu0 %v8607, 32
        %v9182 = vpop.permute.xlu0 %9181
        %9183 = vrot.lane.b32.xlu0 %v8608, 32
        %v9184 = vpop.permute.xlu0 %9183
        %9249 = vrot.lane.b32.xlu0 %v8609, 64
        %v9250 = vpop.permute.xlu0 %9249
        %9251 = vrot.lane.b32.xlu0 %v8610, 64
        %v9252 = vpop.permute.xlu0 %9251
        %9253 = vrot.lane.b32.xlu0 %v8611, 64
        %v9254 = vpop.permute.xlu0 %9253
        %9255 = vrot.lane.b32.xlu0 %v8612, 64
        %v9256 = vpop.permute.xlu0 %9255
        %9257 = vrot.lane.b32.xlu0 %v8613, 64
        %v9258 = vpop.permute.xlu0 %9257
        %9259 = vrot.lane.b32.xlu0 %v8614, 64
        %v9260 = vpop.permute.xlu0 %9259
        %9261 = vrot.lane.b32.xlu0 %v8615, 64
        %v9262 = vpop.permute.xlu0 %9261
        %9263 = vrot.lane.b32.xlu0 %v8616, 64
        %v9264 = vpop.permute.xlu0 %9263
        %9265 = vrot.lane.b32.xlu0 %v8617, 64
        %v9266 = vpop.permute.xlu0 %9265
        %9267 = vrot.lane.b32.xlu0 %v8618, 64
        %v9268 = vpop.permute.xlu0 %9267
        %9269 = vrot.lane.b32.xlu0 %v8619, 64
        %v9270 = vpop.permute.xlu0 %9269
        %9271 = vrot.lane.b32.xlu0 %v8620, 64
        %v9272 = vpop.permute.xlu0 %9271
        %9273 = vrot.lane.b32.xlu0 %v8621, 64
        %v9274 = vpop.permute.xlu0 %9273
        %9275 = vrot.lane.b32.xlu0 %v8622, 64
        %v9276 = vpop.permute.xlu0 %9275
        %9277 = vrot.lane.b32.xlu0 %v8623, 64
        %v9278 = vpop.permute.xlu0 %9277
        %9279 = vrot.lane.b32.xlu0 %v8624, 64
        %v9280 = vpop.permute.xlu0 %9279
        %9281 = vrot.lane.b32.xlu0 %v8625, 64
        %v9282 = vpop.permute.xlu0 %9281
        %9283 = vrot.lane.b32.xlu0 %v8626, 64
        %v9284 = vpop.permute.xlu0 %9283
        %9285 = vrot.lane.b32.xlu0 %v8627, 64
        %v9286 = vpop.permute.xlu0 %9285
        %9287 = vrot.lane.b32.xlu0 %v8628, 64
        %v9288 = vpop.permute.xlu0 %9287
        %9289 = vrot.lane.b32.xlu0 %v8629, 64
        %v9290 = vpop.permute.xlu0 %9289
        %9291 = vrot.lane.b32.xlu0 %v8630, 64
        %v9292 = vpop.permute.xlu0 %9291
        %9293 = vrot.lane.b32.xlu0 %v8631, 64
        %v9294 = vpop.permute.xlu0 %9293
        %9295 = vrot.lane.b32.xlu0 %v8632, 64
        %v9296 = vpop.permute.xlu0 %9295
        %9297 = vrot.lane.b32.xlu0 %v8633, 64
        %v9298 = vpop.permute.xlu0 %9297
        %9299 = vrot.lane.b32.xlu0 %v8634, 64
        %v9300 = vpop.permute.xlu0 %9299
        %9301 = vrot.lane.b32.xlu0 %v8635, 64
        %v9302 = vpop.permute.xlu0 %9301
        %9303 = vrot.lane.b32.xlu0 %v8636, 64
        %v9304 = vpop.permute.xlu0 %9303
        %9305 = vrot.lane.b32.xlu0 %v8637, 64
        %v9306 = vpop.permute.xlu0 %9305
        %9307 = vrot.lane.b32.xlu0 %v8638, 64
        %v9308 = vpop.permute.xlu0 %9307
        %9309 = vrot.lane.b32.xlu0 %v8639, 64
        %v9310 = vpop.permute.xlu0 %9309
        %9311 = vrot.lane.b32.xlu0 %v8640, 64
        %v9312 = vpop.permute.xlu0 %9311
        %9377 = vrot.lane.b32.xlu0 %v8641, 96
        %v9378 = vpop.permute.xlu0 %9377
        %9379 = vrot.lane.b32.xlu0 %v8642, 96
        %v9380 = vpop.permute.xlu0 %9379
        %9381 = vrot.lane.b32.xlu0 %v8643, 96
        %v9382 = vpop.permute.xlu0 %9381
        %9383 = vrot.lane.b32.xlu0 %v8644, 96
        %v9384 = vpop.permute.xlu0 %9383
        %9385 = vrot.lane.b32.xlu0 %v8645, 96
        %v9386 = vpop.permute.xlu0 %9385
        %9387 = vrot.lane.b32.xlu0 %v8646, 96
        %v9388 = vpop.permute.xlu0 %9387
        %9389 = vrot.lane.b32.xlu0 %v8647, 96
        %v9390 = vpop.permute.xlu0 %9389
        %9391 = vrot.lane.b32.xlu0 %v8648, 96
        %v9392 = vpop.permute.xlu0 %9391
        %9393 = vrot.lane.b32.xlu0 %v8649, 96
        %v9394 = vpop.permute.xlu0 %9393
        %9395 = vrot.lane.b32.xlu0 %v8650, 96
        %v9396 = vpop.permute.xlu0 %9395
        %9397 = vrot.lane.b32.xlu0 %v8651, 96
        %v9398 = vpop.permute.xlu0 %9397
        %9399 = vrot.lane.b32.xlu0 %v8652, 96
        %v9400 = vpop.permute.xlu0 %9399
        %9401 = vrot.lane.b32.xlu0 %v8653, 96
        %v9402 = vpop.permute.xlu0 %9401
        %9403 = vrot.lane.b32.xlu0 %v8654, 96
        %v9404 = vpop.permute.xlu0 %9403
        %9405 = vrot.lane.b32.xlu0 %v8655, 96
        %v9406 = vpop.permute.xlu0 %9405
        %9407 = vrot.lane.b32.xlu0 %v8656, 96
        %v9408 = vpop.permute.xlu0 %9407
        %9409 = vrot.lane.b32.xlu0 %v8657, 96
        %v9410 = vpop.permute.xlu0 %9409
        %9411 = vrot.lane.b32.xlu0 %v8658, 96
        %v9412 = vpop.permute.xlu0 %9411
        %9413 = vrot.lane.b32.xlu0 %v8659, 96
        %v9414 = vpop.permute.xlu0 %9413
        %9415 = vrot.lane.b32.xlu0 %v8660, 96
        %v9416 = vpop.permute.xlu0 %9415
        %9417 = vrot.lane.b32.xlu0 %v8661, 96
        %v9418 = vpop.permute.xlu0 %9417
        %9419 = vrot.lane.b32.xlu0 %v8662, 96
        %v9420 = vpop.permute.xlu0 %9419
        %9421 = vrot.lane.b32.xlu0 %v8663, 96
        %v9422 = vpop.permute.xlu0 %9421
        %9423 = vrot.lane.b32.xlu0 %v8664, 96
        %v9424 = vpop.permute.xlu0 %9423
        %9425 = vrot.lane.b32.xlu0 %v8665, 96
        %v9426 = vpop.permute.xlu0 %9425
        %9427 = vrot.lane.b32.xlu0 %v8666, 96
        %v9428 = vpop.permute.xlu0 %9427
        %9429 = vrot.lane.b32.xlu0 %v8667, 96
        %v9430 = vpop.permute.xlu0 %9429
        %9431 = vrot.lane.b32.xlu0 %v8668, 96
        %v9432 = vpop.permute.xlu0 %9431
        %9433 = vrot.lane.b32.xlu0 %v8669, 96
        %v9434 = vpop.permute.xlu0 %9433
        %9435 = vrot.lane.b32.xlu0 %v8670, 96
        %v9436 = vpop.permute.xlu0 %9435
        %9437 = vrot.lane.b32.xlu0 %v8671, 96
        %v9438 = vpop.permute.xlu0 %9437
        %9439 = vrot.lane.b32.xlu0 %v8672, 96
        %v9440 = vpop.permute.xlu0 %9439
        %v9473 = vsel %vm385, %v8417, %v8738
        %v9474 = vsel %vm385, %v8418, %v8740
        %v9475 = vsel %vm385, %v8419, %v8742
        %v9476 = vsel %vm385, %v8420, %v8744
        %v9477 = vsel %vm385, %v8421, %v8746
        %v9478 = vsel %vm385, %v8422, %v8748
        %v9479 = vsel %vm385, %v8423, %v8750
        %v9480 = vsel %vm385, %v8424, %v8752
        %v9481 = vsel %vm385, %v8425, %v8754
        %v9482 = vsel %vm385, %v8426, %v8756
        %v9483 = vsel %vm385, %v8427, %v8758
        %v9484 = vsel %vm385, %v8428, %v8760
        %v9485 = vsel %vm385, %v8429, %v8762
        %v9486 = vsel %vm385, %v8430, %v8764
        %v9487 = vsel %vm385, %v8431, %v8766
        %v9488 = vsel %vm385, %v8432, %v8768
        %v9489 = vsel %vm385, %v8433, %v8770
        %v9490 = vsel %vm385, %v8434, %v8772
        %v9491 = vsel %vm385, %v8435, %v8774
        %v9492 = vsel %vm385, %v8436, %v8776
        %v9493 = vsel %vm385, %v8437, %v8778
        %v9494 = vsel %vm385, %v8438, %v8780
        %v9495 = vsel %vm385, %v8439, %v8782
        %v9496 = vsel %vm385, %v8440, %v8784
        %v9497 = vsel %vm385, %v8441, %v8786
        %v9498 = vsel %vm385, %v8442, %v8788
        %v9499 = vsel %vm385, %v8443, %v8790
        %v9500 = vsel %vm385, %v8444, %v8792
        %v9501 = vsel %vm385, %v8445, %v8794
        %v9502 = vsel %vm385, %v8446, %v8796
        %v9503 = vsel %vm385, %v8447, %v8798
        %v9504 = vsel %vm385, %v8448, %v8800
        %v9505 = vsel %vm1719, %v9473, %v8866
        %v9506 = vsel %vm1719, %v9474, %v8868
        %v9507 = vsel %vm1719, %v9475, %v8870
        %v9508 = vsel %vm1719, %v9476, %v8872
        %v9509 = vsel %vm1719, %v9477, %v8874
        %v9510 = vsel %vm1719, %v9478, %v8876
        %v9511 = vsel %vm1719, %v9479, %v8878
        %v9512 = vsel %vm1719, %v9480, %v8880
        %v9513 = vsel %vm1719, %v9481, %v8882
        %v9514 = vsel %vm1719, %v9482, %v8884
        %v9515 = vsel %vm1719, %v9483, %v8886
        %v9516 = vsel %vm1719, %v9484, %v8888
        %v9517 = vsel %vm1719, %v9485, %v8890
        %v9518 = vsel %vm1719, %v9486, %v8892
        %v9519 = vsel %vm1719, %v9487, %v8894
        %v9520 = vsel %vm1719, %v9488, %v8896
        %v9521 = vsel %vm1719, %v9489, %v8898
        %v9522 = vsel %vm1719, %v9490, %v8900
        %v9523 = vsel %vm1719, %v9491, %v8902
        %v9524 = vsel %vm1719, %v9492, %v8904
        %v9525 = vsel %vm1719, %v9493, %v8906
        %v9526 = vsel %vm1719, %v9494, %v8908
        %v9527 = vsel %vm1719, %v9495, %v8910
        %v9528 = vsel %vm1719, %v9496, %v8912
        %v9529 = vsel %vm1719, %v9497, %v8914
        %v9530 = vsel %vm1719, %v9498, %v8916
        %v9531 = vsel %vm1719, %v9499, %v8918
        %v9532 = vsel %vm1719, %v9500, %v8920
        %v9533 = vsel %vm1719, %v9501, %v8922
        %v9534 = vsel %vm1719, %v9502, %v8924
        %v9535 = vsel %vm1719, %v9503, %v8926
        %v9536 = vsel %vm1719, %v9504, %v8928
        %v9537 = vsel %vm1752, %v9505, %v8994
        %v9538 = vsel %vm1752, %v9506, %v8996
        %v9539 = vsel %vm1752, %v9507, %v8998
        %v9540 = vsel %vm1752, %v9508, %v9000
        %v9541 = vsel %vm1752, %v9509, %v9002
        %v9542 = vsel %vm1752, %v9510, %v9004
        %v9543 = vsel %vm1752, %v9511, %v9006
        %v9544 = vsel %vm1752, %v9512, %v9008
        %v9545 = vsel %vm1752, %v9513, %v9010
        %v9546 = vsel %vm1752, %v9514, %v9012
        %v9547 = vsel %vm1752, %v9515, %v9014
        %v9548 = vsel %vm1752, %v9516, %v9016
        %v9549 = vsel %vm1752, %v9517, %v9018
        %v9550 = vsel %vm1752, %v9518, %v9020
        %v9551 = vsel %vm1752, %v9519, %v9022
        %v9552 = vsel %vm1752, %v9520, %v9024
        %v9553 = vsel %vm1752, %v9521, %v9026
        %v9554 = vsel %vm1752, %v9522, %v9028
        %v9555 = vsel %vm1752, %v9523, %v9030
        %v9556 = vsel %vm1752, %v9524, %v9032
        %v9557 = vsel %vm1752, %v9525, %v9034
        %v9558 = vsel %vm1752, %v9526, %v9036
        %v9559 = vsel %vm1752, %v9527, %v9038
        %v9560 = vsel %vm1752, %v9528, %v9040
        %v9561 = vsel %vm1752, %v9529, %v9042
        %v9562 = vsel %vm1752, %v9530, %v9044
        %v9563 = vsel %vm1752, %v9531, %v9046
        %v9564 = vsel %vm1752, %v9532, %v9048
        %v9565 = vsel %vm1752, %v9533, %v9050
        %v9566 = vsel %vm1752, %v9534, %v9052
        %v9567 = vsel %vm1752, %v9535, %v9054
        %v9568 = vsel %vm1752, %v9536, %v9056
        %v9569 = vsel %vm385, %v8545, %v9122
        %v9570 = vsel %vm385, %v8546, %v9124
        %v9571 = vsel %vm385, %v8547, %v9126
        %v9572 = vsel %vm385, %v8548, %v9128
        %v9573 = vsel %vm385, %v8549, %v9130
        %v9574 = vsel %vm385, %v8550, %v9132
        %v9575 = vsel %vm385, %v8551, %v9134
        %v9576 = vsel %vm385, %v8552, %v9136
        %v9577 = vsel %vm385, %v8553, %v9138
        %v9578 = vsel %vm385, %v8554, %v9140
        %v9579 = vsel %vm385, %v8555, %v9142
        %v9580 = vsel %vm385, %v8556, %v9144
        %v9581 = vsel %vm385, %v8557, %v9146
        %v9582 = vsel %vm385, %v8558, %v9148
        %v9583 = vsel %vm385, %v8559, %v9150
        %v9584 = vsel %vm385, %v8560, %v9152
        %v9585 = vsel %vm385, %v8561, %v9154
        %v9586 = vsel %vm385, %v8562, %v9156
        %v9587 = vsel %vm385, %v8563, %v9158
        %v9588 = vsel %vm385, %v8564, %v9160
        %v9589 = vsel %vm385, %v8565, %v9162
        %v9590 = vsel %vm385, %v8566, %v9164
        %v9591 = vsel %vm385, %v8567, %v9166
        %v9592 = vsel %vm385, %v8568, %v9168
        %v9593 = vsel %vm385, %v8569, %v9170
        %v9594 = vsel %vm385, %v8570, %v9172
        %v9595 = vsel %vm385, %v8571, %v9174
        %v9596 = vsel %vm385, %v8572, %v9176
        %v9597 = vsel %vm385, %v8573, %v9178
        %v9598 = vsel %vm385, %v8574, %v9180
        %v9599 = vsel %vm385, %v8575, %v9182
        %v9600 = vsel %vm385, %v8576, %v9184
        %v9601 = vsel %vm1719, %v9569, %v9250
        %v9602 = vsel %vm1719, %v9570, %v9252
        %v9603 = vsel %vm1719, %v9571, %v9254
        %v9604 = vsel %vm1719, %v9572, %v9256
        %v9605 = vsel %vm1719, %v9573, %v9258
        %v9606 = vsel %vm1719, %v9574, %v9260
        %v9607 = vsel %vm1719, %v9575, %v9262
        %v9608 = vsel %vm1719, %v9576, %v9264
        %v9609 = vsel %vm1719, %v9577, %v9266
        %v9610 = vsel %vm1719, %v9578, %v9268
        %v9611 = vsel %vm1719, %v9579, %v9270
        %v9612 = vsel %vm1719, %v9580, %v9272
        %v9613 = vsel %vm1719, %v9581, %v9274
        %v9614 = vsel %vm1719, %v9582, %v9276
        %v9615 = vsel %vm1719, %v9583, %v9278
        %v9616 = vsel %vm1719, %v9584, %v9280
        %v9617 = vsel %vm1719, %v9585, %v9282
        %v9618 = vsel %vm1719, %v9586, %v9284
        %v9619 = vsel %vm1719, %v9587, %v9286
        %v9620 = vsel %vm1719, %v9588, %v9288
        %v9621 = vsel %vm1719, %v9589, %v9290
        %v9622 = vsel %vm1719, %v9590, %v9292
        %v9623 = vsel %vm1719, %v9591, %v9294
        %v9624 = vsel %vm1719, %v9592, %v9296
        %v9625 = vsel %vm1719, %v9593, %v9298
        %v9626 = vsel %vm1719, %v9594, %v9300
        %v9627 = vsel %vm1719, %v9595, %v9302
        %v9628 = vsel %vm1719, %v9596, %v9304
        %v9629 = vsel %vm1719, %v9597, %v9306
        %v9630 = vsel %vm1719, %v9598, %v9308
        %v9631 = vsel %vm1719, %v9599, %v9310
        %v9632 = vsel %vm1719, %v9600, %v9312
        %v9633 = vsel %vm1752, %v9601, %v9378
        %v9634 = vsel %vm1752, %v9602, %v9380
        %v9635 = vsel %vm1752, %v9603, %v9382
        %v9636 = vsel %vm1752, %v9604, %v9384
        %v9637 = vsel %vm1752, %v9605, %v9386
        %v9638 = vsel %vm1752, %v9606, %v9388
        %v9639 = vsel %vm1752, %v9607, %v9390
        %v9640 = vsel %vm1752, %v9608, %v9392
        %v9641 = vsel %vm1752, %v9609, %v9394
        %v9642 = vsel %vm1752, %v9610, %v9396
        %v9643 = vsel %vm1752, %v9611, %v9398
        %v9644 = vsel %vm1752, %v9612, %v9400
        %v9645 = vsel %vm1752, %v9613, %v9402
        %v9646 = vsel %vm1752, %v9614, %v9404
        %v9647 = vsel %vm1752, %v9615, %v9406
        %v9648 = vsel %vm1752, %v9616, %v9408
        %v9649 = vsel %vm1752, %v9617, %v9410
        %v9650 = vsel %vm1752, %v9618, %v9412
        %v9651 = vsel %vm1752, %v9619, %v9414
        %v9652 = vsel %vm1752, %v9620, %v9416
        %v9653 = vsel %vm1752, %v9621, %v9418
        %v9654 = vsel %vm1752, %v9622, %v9420
        %v9655 = vsel %vm1752, %v9623, %v9422
        %v9656 = vsel %vm1752, %v9624, %v9424
        %v9657 = vsel %vm1752, %v9625, %v9426
        %v9658 = vsel %vm1752, %v9626, %v9428
        %v9659 = vsel %vm1752, %v9627, %v9430
        %v9660 = vsel %vm1752, %v9628, %v9432
        %v9661 = vsel %vm1752, %v9629, %v9434
        %v9662 = vsel %vm1752, %v9630, %v9436
        %v9663 = vsel %vm1752, %v9631, %v9438
        %v9664 = vsel %vm1752, %v9632, %v9440
        %v9666 = vlaneseq
        %v9667 = vshrl.u32 %v9666, 7
        %v9668 = vsub.s32 0, %v9667
        %v9669 = vrot.slane %v8384, %v9668
        %v9672 = vsel %vm385, %v8673, 0
        %v9675 = vsel %vm385, %v8674, 0
        %v9678 = vsel %vm385, %v8675, 0
        %v9681 = vsel %vm385, %v8676, 0
        %v9684 = vsel %vm385, %v8677, 0
        %v9687 = vsel %vm385, %v8678, 0
        %v9690 = vsel %vm385, %v8679, 0
        %v9693 = vsel %vm385, %v8680, 0
        %v9696 = vsel %vm385, %v8681, 0
        %v9699 = vsel %vm385, %v8682, 0
        %v9702 = vsel %vm385, %v8683, 0
        %v9705 = vsel %vm385, %v8684, 0
        %v9708 = vsel %vm385, %v8685, 0
        %v9711 = vsel %vm385, %v8686, 0
        %v9714 = vsel %vm385, %v8687, 0
        %v9717 = vsel %vm385, %v8688, 0
        %v9720 = vsel %vm385, %v8689, 0
        %v9723 = vsel %vm385, %v8690, 0
        %v9726 = vsel %vm385, %v8691, 0
        %v9729 = vsel %vm385, %v8692, 0
        %v9732 = vsel %vm385, %v8693, 0
        %v9735 = vsel %vm385, %v8694, 0
        %v9738 = vsel %vm385, %v8695, 0
        %v9741 = vsel %vm385, %v8696, 0
        %v9744 = vsel %vm385, %v8697, 0
        %v9747 = vsel %vm385, %v8698, 0
        %v9750 = vsel %vm385, %v8699, 0
        %v9753 = vsel %vm385, %v8700, 0
        %v9756 = vsel %vm385, %v8701, 0
        %v9759 = vsel %vm385, %v8702, 0
        %v9762 = vsel %vm385, %v8703, 0
        %v9765 = vsel %vm385, %v8704, 0
        %9767 = vmatprep.subr.mxu0 0.0
        %9768 = vmatpush1.msra.mxu0 %v8348
        %9769 = vmatprep.subr.mxu0 0.0
        %9770 = vmatpush1.msra.mxu0 %v8349
        %9771 = vmatprep.subr.mxu0 0.0
        %9772 = vmatpush1.msra.mxu0 %v8350
        %9773 = vmatprep.subr.mxu0 0.0
        %9774 = vmatpush1.msra.mxu0 %v8351
        %9775 = vmatprep.subr.mxu0 0.0
        %9776 = vmatpush1.msra.mxu0 %v8352
        %9777 = vmatprep.subr.mxu0 0.0
        %9778 = vmatpush1.msra.mxu0 %v8353
        %9779 = vmatprep.subr.mxu0 0.0
        %9780 = vmatpush1.msra.mxu0 %v8354
        %9781 = vmatprep.subr.mxu0 0.0
        %9782 = vmatpush1.msra.mxu0 %v8355
        %9783 = vmatprep.subr.mxu0 0.0
        %9784 = vmatpush1.msra.mxu0 %v8356
        %9785 = vmatprep.subr.mxu0 0.0
        %9786 = vmatpush1.msra.mxu0 %v8357
        %9787 = vmatprep.subr.mxu0 0.0
        %9788 = vmatpush1.msra.mxu0 %v8358
        %9789 = vmatprep.subr.mxu0 0.0
        %9790 = vmatpush1.msra.mxu0 %v8359
        %9791 = vmatprep.subr.mxu0 0.0
        %9792 = vmatpush1.msra.mxu0 %v8360
        %9793 = vmatprep.subr.mxu0 0.0
        %9794 = vmatpush1.msra.mxu0 %v8361
        %9795 = vmatprep.subr.mxu0 0.0
        %9796 = vmatpush1.msra.mxu0 %v8362
        %9797 = vmatprep.subr.mxu0 0.0
        %9798 = vmatpush1.msra.mxu0 %v8363
        %9799 = vmatprep.subr.mxu0 0.0
        %9800 = vmatpush1.msra.mxu0 %v8364
        %9801 = vmatprep.subr.mxu0 0.0
        %9802 = vmatpush1.msra.mxu0 %v8365
        %9803 = vmatprep.subr.mxu0 0.0
        %9804 = vmatpush1.msra.mxu0 %v8366
        %9805 = vmatprep.subr.mxu0 0.0
        %9806 = vmatpush1.msra.mxu0 %v8367
        %9807 = vmatprep.subr.mxu0 0.0
        %9808 = vmatpush1.msra.mxu0 %v8368
        %9809 = vmatprep.subr.mxu0 0.0
        %9810 = vmatpush1.msra.mxu0 %v8369
        %9811 = vmatprep.subr.mxu0 0.0
        %9812 = vmatpush1.msra.mxu0 %v8370
        %9813 = vmatprep.subr.mxu0 0.0
        %9814 = vmatpush1.msra.mxu0 %v8371
        %9815 = vmatprep.subr.mxu0 0.0
        %9816 = vmatpush1.msra.mxu0 %v8372
        %9817 = vmatprep.subr.mxu0 0.0
        %9818 = vmatpush1.msra.mxu0 %v8373
        %9819 = vmatprep.subr.mxu0 0.0
        %9820 = vmatpush1.msra.mxu0 %v8374
        %9821 = vmatprep.subr.mxu0 0.0
        %9822 = vmatpush1.msra.mxu0 %v8375
        %9823 = vmatprep.subr.mxu0 0.0
        %9824 = vmatpush1.msra.mxu0 %v8376
        %9825 = vmatprep.subr.mxu0 0.0
        %9826 = vmatpush1.msra.mxu0 %v8377
        %9827 = vmatprep.subr.mxu0 0.0
        %9828 = vmatpush1.msra.mxu0 %v8378
        %9829 = vmatprep.subr.mxu0 0.0
        %9830 = vmatpush1.msra.mxu0 %v8379
        %9831 = vmatprep.mubr.f32.mxu0 %v9633
        %9832 = vmatmul.mubr.f32.gmra.mrb[0].mxu0 %v9537
        %v9833 = vpop.f32.mrb[0].mxu0
        %v9834 = vadd.f32 %v9669, %v9833
        %v9835 = vpop.f32.mrb[0].mxu0
        %9836 = vmatprep.mubr.f32.mxu0 %v9634
        %9837 = vmatmul.mubr.f32.gmra.mrb[0].mxu0 %v9538
        %v9838 = vpop.f32.mrb[0].mxu0
        %v9839 = vadd.f32 %v9669, %v9838
        %v9840 = vpop.f32.mrb[0].mxu0
        %9841 = vmatprep.mubr.f32.mxu0 %v9635
        %9842 = vmatmul.mubr.f32.gmra.mrb[0].mxu0 %v9539
        %v9843 = vpop.f32.mrb[0].mxu0
        %v9844 = vadd.f32 %v9669, %v9843
        %v9845 = vpop.f32.mrb[0].mxu0
        %9846 = vmatprep.mubr.f32.mxu0 %v9636
        %9847 = vmatmul.mubr.f32.gmra.mrb[0].mxu0 %v9540
        %v9848 = vpop.f32.mrb[0].mxu0
        %v9849 = vadd.f32 %v9669, %v9848
        %v9850 = vpop.f32.mrb[0].mxu0
        %9851 = vmatprep.mubr.f32.mxu0 %v9637
        %9852 = vmatmul.mubr.f32.gmra.mrb[0].mxu0 %v9541
        %v9853 = vpop.f32.mrb[0].mxu0
        %v9854 = vadd.f32 %v9669, %v9853
        %v9855 = vpop.f32.mrb[0].mxu0
        %9856 = vmatprep.mubr.f32.mxu0 %v9638
        %9857 = vmatmul.mubr.f32.gmra.mrb[0].mxu0 %v9542
        %v9858 = vpop.f32.mrb[0].mxu0
        %v9859 = vadd.f32 %v9669, %v9858
        %v9860 = vpop.f32.mrb[0].mxu0
        %9861 = vmatprep.mubr.f32.mxu0 %v9639
        %9862 = vmatmul.mubr.f32.gmra.mrb[0].mxu0 %v9543
        %v9863 = vpop.f32.mrb[0].mxu0
        %v9864 = vadd.f32 %v9669, %v9863
        %v9865 = vpop.f32.mrb[0].mxu0
        %9866 = vmatprep.mubr.f32.mxu0 %v9640
        %9867 = vmatmul.mubr.f32.gmra.mrb[0].mxu0 %v9544
        %v9868 = vpop.f32.mrb[0].mxu0
        %v9869 = vadd.f32 %v9669, %v9868
        %v9870 = vpop.f32.mrb[0].mxu0
        %9871 = vmatprep.mubr.f32.mxu0 %v9641
        %9872 = vmatmul.mubr.f32.gmra.mrb[0].mxu0 %v9545
        %v9873 = vpop.f32.mrb[0].mxu0
        %v9874 = vadd.f32 %v9669, %v9873
        %v9875 = vpop.f32.mrb[0].mxu0
        %9876 = vmatprep.mubr.f32.mxu0 %v9642
        %9877 = vmatmul.mubr.f32.gmra.mrb[0].mxu0 %v9546
        %v9878 = vpop.f32.mrb[0].mxu0
        %v9879 = vadd.f32 %v9669, %v9878
        %v9880 = vpop.f32.mrb[0].mxu0
        %9881 = vmatprep.mubr.f32.mxu0 %v9643
        %9882 = vmatmul.mubr.f32.gmra.mrb[0].mxu0 %v9547
        %v9883 = vpop.f32.mrb[0].mxu0
        %v9884 = vadd.f32 %v9669, %v9883
        %v9885 = vpop.f32.mrb[0].mxu0
        %9886 = vmatprep.mubr.f32.mxu0 %v9644
        %9887 = vmatmul.mubr.f32.gmra.mrb[0].mxu0 %v9548
        %v9888 = vpop.f32.mrb[0].mxu0
        %v9889 = vadd.f32 %v9669, %v9888
        %v9890 = vpop.f32.mrb[0].mxu0
        %9891 = vmatprep.mubr.f32.mxu0 %v9645
        %9892 = vmatmul.mubr.f32.gmra.mrb[0].mxu0 %v9549
        %v9893 = vpop.f32.mrb[0].mxu0
        %v9894 = vadd.f32 %v9669, %v9893
        %v9895 = vpop.f32.mrb[0].mxu0
        %9896 = vmatprep.mubr.f32.mxu0 %v9646
        %9897 = vmatmul.mubr.f32.gmra.mrb[0].mxu0 %v9550
        %v9898 = vpop.f32.mrb[0].mxu0
        %v9899 = vadd.f32 %v9669, %v9898
        %v9900 = vpop.f32.mrb[0].mxu0
        %9901 = vmatprep.mubr.f32.mxu0 %v9647
        %9902 = vmatmul.mubr.f32.gmra.mrb[0].mxu0 %v9551
        %v9903 = vpop.f32.mrb[0].mxu0
        %v9904 = vadd.f32 %v9669, %v9903
        %v9905 = vpop.f32.mrb[0].mxu0
        %9906 = vmatprep.mubr.f32.mxu0 %v9648
        %9907 = vmatmul.mubr.f32.gmra.mrb[0].mxu0 %v9552
        %v9908 = vpop.f32.mrb[0].mxu0
        %v9909 = vadd.f32 %v9669, %v9908
        %v9910 = vpop.f32.mrb[0].mxu0
        %9911 = vmatprep.mubr.f32.mxu0 %v9649
        %9912 = vmatmul.mubr.f32.gmra.mrb[0].mxu0 %v9553
        %v9913 = vpop.f32.mrb[0].mxu0
        %v9914 = vadd.f32 %v9669, %v9913
        %v9915 = vpop.f32.mrb[0].mxu0
        %9916 = vmatprep.mubr.f32.mxu0 %v9650
        %9917 = vmatmul.mubr.f32.gmra.mrb[0].mxu0 %v9554
        %v9918 = vpop.f32.mrb[0].mxu0
        %v9919 = vadd.f32 %v9669, %v9918
        %v9920 = vpop.f32.mrb[0].mxu0
        %9921 = vmatprep.mubr.f32.mxu0 %v9651
        %9922 = vmatmul.mubr.f32.gmra.mrb[0].mxu0 %v9555
        %v9923 = vpop.f32.mrb[0].mxu0
        %v9924 = vadd.f32 %v9669, %v9923
        %v9925 = vpop.f32.mrb[0].mxu0
        %9926 = vmatprep.mubr.f32.mxu0 %v9652
        %9927 = vmatmul.mubr.f32.gmra.mrb[0].mxu0 %v9556
        %v9928 = vpop.f32.mrb[0].mxu0
        %v9929 = vadd.f32 %v9669, %v9928
        %v9930 = vpop.f32.mrb[0].mxu0
        %9931 = vmatprep.mubr.f32.mxu0 %v9653
        %9932 = vmatmul.mubr.f32.gmra.mrb[0].mxu0 %v9557
        %v9933 = vpop.f32.mrb[0].mxu0
        %v9934 = vadd.f32 %v9669, %v9933
        %v9935 = vpop.f32.mrb[0].mxu0
        %9936 = vmatprep.mubr.f32.mxu0 %v9654
        %9937 = vmatmul.mubr.f32.gmra.mrb[0].mxu0 %v9558
        %v9938 = vpop.f32.mrb[0].mxu0
        %v9939 = vadd.f32 %v9669, %v9938
        %v9940 = vpop.f32.mrb[0].mxu0
        %9941 = vmatprep.mubr.f32.mxu0 %v9655
        %9942 = vmatmul.mubr.f32.gmra.mrb[0].mxu0 %v9559
        %v9943 = vpop.f32.mrb[0].mxu0
        %v9944 = vadd.f32 %v9669, %v9943
        %v9945 = vpop.f32.mrb[0].mxu0
        %9946 = vmatprep.mubr.f32.mxu0 %v9656
        %9947 = vmatmul.mubr.f32.gmra.mrb[0].mxu0 %v9560
        %v9948 = vpop.f32.mrb[0].mxu0
        %v9949 = vadd.f32 %v9669, %v9948
        %v9950 = vpop.f32.mrb[0].mxu0
        %9951 = vmatprep.mubr.f32.mxu0 %v9657
        %9952 = vmatmul.mubr.f32.gmra.mrb[0].mxu0 %v9561
        %v9953 = vpop.f32.mrb[0].mxu0
        %v9954 = vadd.f32 %v9669, %v9953
        %v9955 = vpop.f32.mrb[0].mxu0
        %9956 = vmatprep.mubr.f32.mxu0 %v9658
        %9957 = vmatmul.mubr.f32.gmra.mrb[0].mxu0 %v9562
        %v9958 = vpop.f32.mrb[0].mxu0
        %v9959 = vadd.f32 %v9669, %v9958
        %v9960 = vpop.f32.mrb[0].mxu0
        %9961 = vmatprep.mubr.f32.mxu0 %v9659
        %9962 = vmatmul.mubr.f32.gmra.mrb[0].mxu0 %v9563
        %v9963 = vpop.f32.mrb[0].mxu0
        %v9964 = vadd.f32 %v9669, %v9963
        %v9965 = vpop.f32.mrb[0].mxu0
        %9966 = vmatprep.mubr.f32.mxu0 %v9660
        %9967 = vmatmul.mubr.f32.gmra.mrb[0].mxu0 %v9564
        %v9968 = vpop.f32.mrb[0].mxu0
        %v9969 = vadd.f32 %v9669, %v9968
        %v9970 = vpop.f32.mrb[0].mxu0
        %9971 = vmatprep.mubr.f32.mxu0 %v9661
        %9972 = vmatmul.mubr.f32.gmra.mrb[0].mxu0 %v9565
        %v9973 = vpop.f32.mrb[0].mxu0
        %v9974 = vadd.f32 %v9669, %v9973
        %v9975 = vpop.f32.mrb[0].mxu0
        %9976 = vmatprep.mubr.f32.mxu0 %v9662
        %9977 = vmatmul.mubr.f32.gmra.mrb[0].mxu0 %v9566
        %v9978 = vpop.f32.mrb[0].mxu0
        %v9979 = vadd.f32 %v9669, %v9978
        %v9980 = vpop.f32.mrb[0].mxu0
        %9981 = vmatprep.mubr.f32.mxu0 %v9663
        %9982 = vmatmul.mubr.f32.gmra.mrb[0].mxu0 %v9567
        %v9983 = vpop.f32.mrb[0].mxu0
        %v9984 = vadd.f32 %v9669, %v9983
        %v9985 = vpop.f32.mrb[0].mxu0
        %9986 = vmatprep.mubr.f32.mxu0 %v9664
        %9987 = vmatmul.mubr.f32.gmra.mrb[0].mxu0 %v9568
        %v9988 = vpop.f32.mrb[0].mxu0
        %v9989 = vadd.f32 %v9669, %v9988
        %v9990 = vpop.f32.mrb[0].mxu0
        %9991 = vdwg.mxu0
        %9992 = vmatprep.subr.mxu0 0.0
        %9993 = vmatpush1.msra.mxu0 %v8380
        %9994 = vmatprep.subr.mxu0 0.0
        %9995 = vmatpush1.msra.mxu0 %v8381
        %9996 = vmatprep.subr.mxu0 0.0
        %9997 = vmatpush1.msra.mxu0 %v8382
        %9998 = vmatprep.subr.mxu0 0.0
        %9999 = vmatpush1.msra.mxu0 %v8383
        %10000 = vmatprep.subr.mxu0 0.0
        %10001 = vmatpush1.msra.mxu0 0.0
        %10002 = vmatprep.subr.mxu0 0.0
        %10003 = vmatpush1.msra.mxu0 0.0
        %10004 = vmatprep.subr.mxu0 0.0
        %10005 = vmatpush1.msra.mxu0 0.0
        %10006 = vmatprep.subr.mxu0 0.0
        %10007 = vmatpush1.msra.mxu0 0.0
        %10008 = vmatprep.subr.mxu0 0.0
        %10009 = vmatpush1.msra.mxu0 0.0
        %10010 = vmatprep.subr.mxu0 0.0
        %10011 = vmatpush1.msra.mxu0 0.0
        %10012 = vmatprep.subr.mxu0 0.0
        %10013 = vmatpush1.msra.mxu0 0.0
        %10014 = vmatprep.subr.mxu0 0.0
        %10015 = vmatpush1.msra.mxu0 0.0
        %10016 = vmatprep.subr.mxu0 0.0
        %10017 = vmatpush1.msra.mxu0 0.0
        %10018 = vmatprep.subr.mxu0 0.0
        %10019 = vmatpush1.msra.mxu0 0.0
        %10020 = vmatprep.subr.mxu0 0.0
        %10021 = vmatpush1.msra.mxu0 0.0
        %10022 = vmatprep.subr.mxu0 0.0
        %10023 = vmatpush1.msra.mxu0 0.0
        %10024 = vmatprep.subr.mxu0 0.0
        %10025 = vmatpush1.msra.mxu0 0.0
        %10026 = vmatprep.subr.mxu0 0.0
        %10027 = vmatpush1.msra.mxu0 0.0
        %10028 = vmatprep.subr.mxu0 0.0
        %10029 = vmatpush1.msra.mxu0 0.0
        %10030 = vmatprep.subr.mxu0 0.0
        %10031 = vmatpush1.msra.mxu0 0.0
        %10032 = vmatprep.subr.mxu0 0.0
        %10033 = vmatpush1.msra.mxu0 0.0
        %10034 = vmatprep.subr.mxu0 0.0
        %10035 = vmatpush1.msra.mxu0 0.0
        %10036 = vmatprep.subr.mxu0 0.0
        %10037 = vmatpush1.msra.mxu0 0.0
        %10038 = vmatprep.subr.mxu0 0.0
        %10039 = vmatpush1.msra.mxu0 0.0
        %10040 = vmatprep.subr.mxu0 0.0
        %10041 = vmatpush1.msra.mxu0 0.0
        %10042 = vmatprep.subr.mxu0 0.0
        %10043 = vmatpush1.msra.mxu0 0.0
        %10044 = vmatprep.subr.mxu0 0.0
        %10045 = vmatpush1.msra.mxu0 0.0
        %10046 = vmatprep.subr.mxu0 0.0
        %10047 = vmatpush1.msra.mxu0 0.0
        %10048 = vmatprep.subr.mxu0 0.0
        %10049 = vmatpush1.msra.mxu0 0.0
        %10050 = vmatprep.subr.mxu0 0.0
        %10051 = vmatpush1.msra.mxu0 0.0
        %10052 = vmatprep.subr.mxu0 0.0
        %10053 = vmatpush1.msra.mxu0 0.0
        %10054 = vmatprep.subr.mxu0 0.0
        %10055 = vmatpush1.msra.mxu0 0.0
        %10056 = vmatprep.mubr.f32.mxu0 0.0
        %10057 = vmatmul.mubr.f32.gmra.mrb[0].mxu0 %v9672
        %v10058 = vpop.f32.mrb[0].mxu0
        %v10059 = vadd.f32 %v9834, %v10058
        %v10060 = vpop.f32.mrb[0].mxu0
        %10061 = vmatprep.mubr.f32.mxu0 0.0
        %10062 = vmatmul.mubr.f32.gmra.mrb[0].mxu0 %v9675
        %v10063 = vpop.f32.mrb[0].mxu0
        %v10064 = vadd.f32 %v9839, %v10063
        %v10065 = vpop.f32.mrb[0].mxu0
        %10066 = vmatprep.mubr.f32.mxu0 0.0
        %10067 = vmatmul.mubr.f32.gmra.mrb[0].mxu0 %v9678
        %v10068 = vpop.f32.mrb[0].mxu0
        %v10069 = vadd.f32 %v9844, %v10068
        %v10070 = vpop.f32.mrb[0].mxu0
        %10071 = vmatprep.mubr.f32.mxu0 0.0
        %10072 = vmatmul.mubr.f32.gmra.mrb[0].mxu0 %v9681
        %v10073 = vpop.f32.mrb[0].mxu0
        %v10074 = vadd.f32 %v9849, %v10073
        %v10075 = vpop.f32.mrb[0].mxu0
        %10076 = vmatprep.mubr.f32.mxu0 0.0
        %10077 = vmatmul.mubr.f32.gmra.mrb[0].mxu0 %v9684
        %v10078 = vpop.f32.mrb[0].mxu0
        %v10079 = vadd.f32 %v9854, %v10078
        %v10080 = vpop.f32.mrb[0].mxu0
        %10081 = vmatprep.mubr.f32.mxu0 0.0
        %10082 = vmatmul.mubr.f32.gmra.mrb[0].mxu0 %v9687
        %v10083 = vpop.f32.mrb[0].mxu0
        %v10084 = vadd.f32 %v9859, %v10083
        %v10085 = vpop.f32.mrb[0].mxu0
        %10086 = vmatprep.mubr.f32.mxu0 0.0
        %10087 = vmatmul.mubr.f32.gmra.mrb[0].mxu0 %v9690
        %v10088 = vpop.f32.mrb[0].mxu0
        %v10089 = vadd.f32 %v9864, %v10088
        %v10090 = vpop.f32.mrb[0].mxu0
        %10091 = vmatprep.mubr.f32.mxu0 0.0
        %10092 = vmatmul.mubr.f32.gmra.mrb[0].mxu0 %v9693
        %v10093 = vpop.f32.mrb[0].mxu0
        %v10094 = vadd.f32 %v9869, %v10093
        %v10095 = vpop.f32.mrb[0].mxu0
        %10096 = vmatprep.mubr.f32.mxu0 0.0
        %10097 = vmatmul.mubr.f32.gmra.mrb[0].mxu0 %v9696
        %v10098 = vpop.f32.mrb[0].mxu0
        %v10099 = vadd.f32 %v9874, %v10098
        %v10100 = vpop.f32.mrb[0].mxu0
        %10101 = vmatprep.mubr.f32.mxu0 0.0
        %10102 = vmatmul.mubr.f32.gmra.mrb[0].mxu0 %v9699
        %v10103 = vpop.f32.mrb[0].mxu0
        %v10104 = vadd.f32 %v9879, %v10103
        %v10105 = vpop.f32.mrb[0].mxu0
        %10106 = vmatprep.mubr.f32.mxu0 0.0
        %10107 = vmatmul.mubr.f32.gmra.mrb[0].mxu0 %v9702
        %v10108 = vpop.f32.mrb[0].mxu0
        %v10109 = vadd.f32 %v9884, %v10108
        %v10110 = vpop.f32.mrb[0].mxu0
        %10111 = vmatprep.mubr.f32.mxu0 0.0
        %10112 = vmatmul.mubr.f32.gmra.mrb[0].mxu0 %v9705
        %v10113 = vpop.f32.mrb[0].mxu0
        %v10114 = vadd.f32 %v9889, %v10113
        %v10115 = vpop.f32.mrb[0].mxu0
        %10116 = vmatprep.mubr.f32.mxu0 0.0
        %10117 = vmatmul.mubr.f32.gmra.mrb[0].mxu0 %v9708
        %v10118 = vpop.f32.mrb[0].mxu0
        %v10119 = vadd.f32 %v9894, %v10118
        %v10120 = vpop.f32.mrb[0].mxu0
        %10121 = vmatprep.mubr.f32.mxu0 0.0
        %10122 = vmatmul.mubr.f32.gmra.mrb[0].mxu0 %v9711
        %v10123 = vpop.f32.mrb[0].mxu0
        %v10124 = vadd.f32 %v9899, %v10123
        %v10125 = vpop.f32.mrb[0].mxu0
        %10126 = vmatprep.mubr.f32.mxu0 0.0
        %10127 = vmatmul.mubr.f32.gmra.mrb[0].mxu0 %v9714
        %v10128 = vpop.f32.mrb[0].mxu0
        %v10129 = vadd.f32 %v9904, %v10128
        %v10130 = vpop.f32.mrb[0].mxu0
        %10131 = vmatprep.mubr.f32.mxu0 0.0
        %10132 = vmatmul.mubr.f32.gmra.mrb[0].mxu0 %v9717
        %v10133 = vpop.f32.mrb[0].mxu0
        %v10134 = vadd.f32 %v9909, %v10133
        %v10135 = vpop.f32.mrb[0].mxu0
        %10136 = vmatprep.mubr.f32.mxu0 0.0
        %10137 = vmatmul.mubr.f32.gmra.mrb[0].mxu0 %v9720
        %v10138 = vpop.f32.mrb[0].mxu0
        %v10139 = vadd.f32 %v9914, %v10138
        %v10140 = vpop.f32.mrb[0].mxu0
        %10141 = vmatprep.mubr.f32.mxu0 0.0
        %10142 = vmatmul.mubr.f32.gmra.mrb[0].mxu0 %v9723
        %v10143 = vpop.f32.mrb[0].mxu0
        %v10144 = vadd.f32 %v9919, %v10143
        %v10145 = vpop.f32.mrb[0].mxu0
        %10146 = vmatprep.mubr.f32.mxu0 0.0
        %10147 = vmatmul.mubr.f32.gmra.mrb[0].mxu0 %v9726
        %v10148 = vpop.f32.mrb[0].mxu0
        %v10149 = vadd.f32 %v9924, %v10148
        %v10150 = vpop.f32.mrb[0].mxu0
        %10151 = vmatprep.mubr.f32.mxu0 0.0
        %10152 = vmatmul.mubr.f32.gmra.mrb[0].mxu0 %v9729
        %v10153 = vpop.f32.mrb[0].mxu0
        %v10154 = vadd.f32 %v9929, %v10153
        %v10155 = vpop.f32.mrb[0].mxu0
        %10156 = vmatprep.mubr.f32.mxu0 0.0
        %10157 = vmatmul.mubr.f32.gmra.mrb[0].mxu0 %v9732
        %v10158 = vpop.f32.mrb[0].mxu0
        %v10159 = vadd.f32 %v9934, %v10158
        %v10160 = vpop.f32.mrb[0].mxu0
        %10161 = vmatprep.mubr.f32.mxu0 0.0
        %10162 = vmatmul.mubr.f32.gmra.mrb[0].mxu0 %v9735
        %v10163 = vpop.f32.mrb[0].mxu0
        %v10164 = vadd.f32 %v9939, %v10163
        %v10165 = vpop.f32.mrb[0].mxu0
        %10166 = vmatprep.mubr.f32.mxu0 0.0
        %10167 = vmatmul.mubr.f32.gmra.mrb[0].mxu0 %v9738
        %v10168 = vpop.f32.mrb[0].mxu0
        %v10169 = vadd.f32 %v9944, %v10168
        %v10170 = vpop.f32.mrb[0].mxu0
        %10171 = vmatprep.mubr.f32.mxu0 0.0
        %10172 = vmatmul.mubr.f32.gmra.mrb[0].mxu0 %v9741
        %v10173 = vpop.f32.mrb[0].mxu0
        %v10174 = vadd.f32 %v9949, %v10173
        %v10175 = vpop.f32.mrb[0].mxu0
        %10176 = vmatprep.mubr.f32.mxu0 0.0
        %10177 = vmatmul.mubr.f32.gmra.mrb[0].mxu0 %v9744
        %v10178 = vpop.f32.mrb[0].mxu0
        %v10179 = vadd.f32 %v9954, %v10178
        %v10180 = vpop.f32.mrb[0].mxu0
        %10181 = vmatprep.mubr.f32.mxu0 0.0
        %10182 = vmatmul.mubr.f32.gmra.mrb[0].mxu0 %v9747
        %v10183 = vpop.f32.mrb[0].mxu0
        %v10184 = vadd.f32 %v9959, %v10183
        %v10185 = vpop.f32.mrb[0].mxu0
        %10186 = vmatprep.mubr.f32.mxu0 0.0
        %10187 = vmatmul.mubr.f32.gmra.mrb[0].mxu0 %v9750
        %v10188 = vpop.f32.mrb[0].mxu0
        %v10189 = vadd.f32 %v9964, %v10188
        %v10190 = vpop.f32.mrb[0].mxu0
        %10191 = vmatprep.mubr.f32.mxu0 0.0
        %10192 = vmatmul.mubr.f32.gmra.mrb[0].mxu0 %v9753
        %v10193 = vpop.f32.mrb[0].mxu0
        %v10194 = vadd.f32 %v9969, %v10193
        %v10195 = vpop.f32.mrb[0].mxu0
        %10196 = vmatprep.mubr.f32.mxu0 0.0
        %10197 = vmatmul.mubr.f32.gmra.mrb[0].mxu0 %v9756
        %v10198 = vpop.f32.mrb[0].mxu0
        %v10199 = vadd.f32 %v9974, %v10198
        %v10200 = vpop.f32.mrb[0].mxu0
        %10201 = vmatprep.mubr.f32.mxu0 0.0
        %10202 = vmatmul.mubr.f32.gmra.mrb[0].mxu0 %v9759
        %v10203 = vpop.f32.mrb[0].mxu0
        %v10204 = vadd.f32 %v9979, %v10203
        %v10205 = vpop.f32.mrb[0].mxu0
        %10206 = vmatprep.mubr.f32.mxu0 0.0
        %10207 = vmatmul.mubr.f32.gmra.mrb[0].mxu0 %v9762
        %v10208 = vpop.f32.mrb[0].mxu0
        %v10209 = vadd.f32 %v9984, %v10208
        %v10210 = vpop.f32.mrb[0].mxu0
        %10211 = vmatprep.mubr.f32.mxu0 0.0
        %10212 = vmatmul.mubr.f32.gmra.mrb[0].mxu0 %v9765
        %v10213 = vpop.f32.mrb[0].mxu0
        %v10214 = vadd.f32 %v9989, %v10213
        %v10215 = vpop.f32.mrb[0].mxu0
        %10216 = vdwg.mxu0
        %v10217 = vadd.f32 %v10059, %v428
        %v10218 = vadd.f32 %v10064, %v429
        %v10219 = vadd.f32 %v10069, %v430
        %v10220 = vadd.f32 %v10074, %v431
        %v10221 = vadd.f32 %v10079, %v432
        %v10222 = vadd.f32 %v10084, %v433
        %v10223 = vadd.f32 %v10089, %v434
        %v10224 = vadd.f32 %v10094, %v435
        %v10225 = vadd.f32 %v10099, %v436
        %v10226 = vadd.f32 %v10104, %v437
        %v10227 = vadd.f32 %v10109, %v438
        %v10228 = vadd.f32 %v10114, %v439
        %v10229 = vadd.f32 %v10119, %v440
        %v10230 = vadd.f32 %v10124, %v441
        %v10231 = vadd.f32 %v10129, %v442
        %v10232 = vadd.f32 %v10134, %v443
        %v10233 = vadd.f32 %v10139, %v444
        %v10234 = vadd.f32 %v10144, %v445
        %v10235 = vadd.f32 %v10149, %v446
        %v10236 = vadd.f32 %v10154, %v447
        %v10237 = vadd.f32 %v10159, %v448
        %v10238 = vadd.f32 %v10164, %v449
        %v10239 = vadd.f32 %v10169, %v450
        %v10240 = vadd.f32 %v10174, %v451
        %v10241 = vadd.f32 %v10179, %v452
        %v10242 = vadd.f32 %v10184, %v453
        %v10243 = vadd.f32 %v10189, %v454
        %v10244 = vadd.f32 %v10194, %v455
        %v10245 = vadd.f32 %v10199, %v456
        %v10246 = vadd.f32 %v10204, %v457
        %v10247 = vadd.f32 %v10209, %v458
        %v10248 = vadd.f32 %v10214, %v459
        %10249 = vst.msk [vmem:[%s379] sm:$0xff] %vm385, %v10217
        %10250 = vst.msk [vmem:[%s379 + $0x8] sm:$0xff] %vm385, %v10218
        %10251 = vst.msk [vmem:[%s379 + $0x10] sm:$0xff] %vm385, %v10219
        %10252 = vst.msk [vmem:[%s379 + $0x18] sm:$0xff] %vm385, %v10220
        %10253 = vst.msk [vmem:[%s379 + $0x20] sm:$0xff] %vm385, %v10221
        %10254 = vst.msk [vmem:[%s379 + $0x28] sm:$0xff] %vm385, %v10222
        %10255 = vst.msk [vmem:[%s379 + $0x30] sm:$0xff] %vm385, %v10223
        %10256 = vst.msk [vmem:[%s379 + $0x38] sm:$0xff] %vm385, %v10224
        %10257 = vst.msk [vmem:[%s379 + $0x40] sm:$0xff] %vm385, %v10225
        %10258 = vst.msk [vmem:[%s379 + $0x48] sm:$0xff] %vm385, %v10226
        %10259 = vst.msk [vmem:[%s379 + $0x50] sm:$0xff] %vm385, %v10227
        %10260 = vst.msk [vmem:[%s379 + $0x58] sm:$0xff] %vm385, %v10228
        %10261 = vst.msk [vmem:[%s379 + $0x60] sm:$0xff] %vm385, %v10229
        %10262 = vst.msk [vmem:[%s379 + $0x68] sm:$0xff] %vm385, %v10230
        %10263 = vst.msk [vmem:[%s379 + $0x70] sm:$0xff] %vm385, %v10231
        %10264 = vst.msk [vmem:[%s379 + $0x78] sm:$0xff] %vm385, %v10232
        %10265 = vst.msk [vmem:[%s379 + $0x80] sm:$0xff] %vm385, %v10233
        %10266 = vst.msk [vmem:[%s379 + $0x88] sm:$0xff] %vm385, %v10234
        %10267 = vst.msk [vmem:[%s379 + $0x90] sm:$0xff] %vm385, %v10235
        %10268 = vst.msk [vmem:[%s379 + $0x98] sm:$0xff] %vm385, %v10236
        %10269 = vst.msk [vmem:[%s379 + $0xa0] sm:$0xff] %vm385, %v10237
        %10270 = vst.msk [vmem:[%s379 + $0xa8] sm:$0xff] %vm385, %v10238
        %10271 = vst.msk [vmem:[%s379 + $0xb0] sm:$0xff] %vm385, %v10239
        %10272 = vst.msk [vmem:[%s379 + $0xb8] sm:$0xff] %vm385, %v10240
        %10273 = vst.msk [vmem:[%s379 + $0xc0] sm:$0xff] %vm385, %v10241
        %10274 = vst.msk [vmem:[%s379 + $0xc8] sm:$0xff] %vm385, %v10242
        %10275 = vst.msk [vmem:[%s379 + $0xd0] sm:$0xff] %vm385, %v10243
        %10276 = vst.msk [vmem:[%s379 + $0xd8] sm:$0xff] %vm385, %v10244
        %10277 = vst.msk [vmem:[%s379 + $0xe0] sm:$0xff] %vm385, %v10245
        %10278 = vst.msk [vmem:[%s379 + $0xe8] sm:$0xff] %vm385, %v10246
        %10279 = vst.msk [vmem:[%s379 + $0xf0] sm:$0xff] %vm385, %v10247
        %10280 = vst.msk [vmem:[%s379 + $0xf8] sm:$0xff] %vm385, %v10248
        %s10281 = sand.u32 %s269, 1
        %s10282 = scalar_lea.sflag [#allocation4], %s10281
        %s10283 = sand.u32 %s269, 1
        %s10284 = smul.addr %s10283, 256
        %s10285 = scalar_lea.vmem [#allocation3], %s10284
        // Predicated region
        $region65: #{residual_block_forward.1} parent=63 // pred_check
          %p10286 = pneg %p279
        $region66: #{residual_block_forward.1} parent=63 // pred_check_branch
          %10288 = sbr.rel (%p10286) target = $region68
        $region67: #{residual_block_forward.1} parent=63 // pred_region
          %s10290 = ssub.s32 4096, 4096
          %10291 = vsyncadd %s10282, %s10290
          %s10292 = smul.addr %s25, 32
          %s10293 = smul.addr %s10292, 128
          %s10294 = scalar_lea.hbm %s11, %s10293
          %s10295 = sshll.u32 %s10285, 4
          %s10296 = int_to_ptr.vmem [resolvable:$true] %s10295
          %10301 = dma.vmem_to_hbm [thread:$0]  %s10296, 4096, %s10294, %s10282, 128, 128, 8
        $region68: #{residual_block_forward.1} parent=63 // pred_fallthru
          _
      $region64: #{residual_block_forward.1} parent=5 // pred_fallthru
        _
      %p10302 = scmp.le.s32.totalorder 2, %s20
      // Predicated region
      $region69: #{residual_block_forward.1} parent=5 // pred_check
        %p10303 = pneg %p10302
      $region70: #{residual_block_forward.1} parent=5 // pred_check_branch
        %10305 = sbr.rel (%p10303) target = $region72
      $region71: #{residual_block_forward.1} parent=5 // pred_region
        %s10306 = ssub.s32 %s20, 2
        // Predicated region
        $region73: #{residual_block_forward.1} parent=71 // pred_check
          %p10307 = pneg %p285
        $region74: #{residual_block_forward.1} parent=71 // pred_check_branch
          %10309 = sbr.rel (%p10307) target = $region76
        $region75: #{residual_block_forward.1} parent=71 // pred_region
          %s10310 = sand.u32 %s270, 1
          %s10311 = scalar_lea.sflag [#allocation4], %s10310
          %s10312 = sand.u32 %s270, 1
          %s10313 = smul.addr %s10312, 256
          %s10314 = scalar_lea.vmem [#allocation3], %s10313
          %10315 = dma.done %s10311, 4096
        $region76: #{residual_block_forward.1} parent=71 // pred_fallthru
          _
      $region72: #{residual_block_forward.1} parent=5 // pred_fallthru
        _
    $region6: #{residual_block_forward.1} parent=1 // loop_footer
      %s24 = sadd.s32 1, %s20
    $region7: #{residual_block_forward.1} parent=1 // loop_footer_branch
      %19 = sbr.rel target = $region3
    $region8: #{residual_block_forward.1} parent=1 // loop_exit
      _
    %10316 = vsyncpa [#allocation4], 1
    %s10317 = scalar_lea.sflag [#allocation4], 1
    %10318 = vsyncpa %s10317, 1

</llo_original>
